<compile_context>
chip_gen: v5e
topology: v5e:2x2
jax: 0.10.0
libtpu: 0.0.40
codegen_flags: <defaults>
</compile_context>

<pallas_src>
import functools

import jax
import jax.numpy as jnp
from jax.experimental import pallas as pl
from jax.experimental.pallas import tpu as pltpu

_LANE = 128
_EPS = 1e-5
_VMEM_LIMIT = 32 * 1024 * 1024  # explicit scoped-VMEM request (safe on v5e/v6e/v7x)


def _round_up(v, m):
    return ((v + m - 1) // m) * m


def _gelu(z):
    return 0.5 * z * (1.0 + jnp.tanh(0.79788456 * (z + 0.044715 * z * z * z)))


def _pick_tm(total):
    """Rows per grid step for the elementwise BN+GELU pass (mult of 8 or full)."""
    if total <= 4096:
        return total
    best = total
    for d in range(8, 4097, 8):
        if total % d == 0:
            best = d
    return best


def _pick_tb(Ho, W):
    """Pooled row-pairs per grid step for the fused residual+pool pass."""
    Wo = W // 2
    cap = max(1, 4096 // (2 * W))
    tb = Ho  # full-sample block is always a legal fallback
    for d in range(1, min(Ho, cap) + 1):
        if Ho % d == 0 and (d * 2 * W) % 8 == 0 and (d * Wo) % 8 == 0:
            tb = d
    return tb


# ---------------------------------------------------------------------------
# Kernel 1: 3x3 conv (9 shifted-tap bf16 matmuls) + bias + per-sample stats
# ---------------------------------------------------------------------------

def _conv_stats_kernel(x_ref, w_ref, b_ref, y_ref, s_ref, *, H, W):
    # x_ref: [H+2, W+2, Cin_p]  one spatially padded sample
    # w_ref: [9, Cin_p, Cp] bf16 ; b_ref: [1, Cp] f32
    # y_ref: [H*W, Cp] pre-BN conv output ; s_ref: [2, Cp] = (sum, sum of sq)
    HW = H * W
    acc = None
    for dh in range(3):
        for dw in range(3):
            tap = x_ref[pl.ds(dh, H), pl.ds(dw, W), :]
            tap = tap.reshape(HW, tap.shape[-1]).astype(jnp.bfloat16)
            d = jnp.dot(tap, w_ref[dh * 3 + dw],
                        preferred_element_type=jnp.float32)
            acc = d if acc is None else acc + d
    y = acc + b_ref[...]
    y_ref[...] = y
    s_ref[0:1, :] = jnp.sum(y, axis=0, keepdims=True)
    s_ref[1:2, :] = jnp.sum(y * y, axis=0, keepdims=True)


def _conv3x3_stats(x_pad, w_taps, bias_row, H, W):
    N, Hp, Wp, Cin_p = x_pad.shape
    Cp = w_taps.shape[-1]
    HW = H * W
    flops = 2 * N * HW * 9 * Cin_p * Cp
    bytes_accessed = (x_pad.size * x_pad.dtype.itemsize + w_taps.size * 2
                      + N * HW * Cp * 4 + N * 2 * Cp * 4)
    return pl.pallas_call(
        functools.partial(_conv_stats_kernel, H=H, W=W),
        out_shape=(jax.ShapeDtypeStruct((N, HW, Cp), jnp.float32),
                   jax.ShapeDtypeStruct((N, 2, Cp), jnp.float32)),
        grid=(N,),
        in_specs=[
            pl.BlockSpec((None, Hp, Wp, Cin_p), lambda n: (n, 0, 0, 0)),
            pl.BlockSpec((9, Cin_p, Cp), lambda n: (0, 0, 0)),
            pl.BlockSpec((1, Cp), lambda n: (0, 0)),
        ],
        out_specs=(
            pl.BlockSpec((None, HW, Cp), lambda n: (n, 0, 0)),
            pl.BlockSpec((None, 2, Cp), lambda n: (n, 0, 0)),
        ),
        compiler_params=pltpu.CompilerParams(
            dimension_semantics=("parallel",),
            vmem_limit_bytes=_VMEM_LIMIT),
        cost_estimate=pl.CostEstimate(flops=flops, transcendentals=0,
                                      bytes_accessed=bytes_accessed),
    )(x_pad, w_taps, bias_row)


# ---------------------------------------------------------------------------
# Kernel 2: BatchNorm (precomputed scale/shift) + GELU, tiled elementwise
# ---------------------------------------------------------------------------

def _bn_gelu_kernel(y_ref, s_ref, t_ref, o_ref):
    o_ref[...] = _gelu(y_ref[...] * s_ref[...] + t_ref[...])


def _bn_gelu(y, scale_row, shift_row):
    N, HW, Cp = y.shape
    TM = _pick_tm(HW)
    return pl.pallas_call(
        _bn_gelu_kernel,
        out_shape=jax.ShapeDtypeStruct((N, HW, Cp), jnp.float32),
        grid=(N, HW // TM),
        in_specs=[
            pl.BlockSpec((None, TM, Cp), lambda n, m: (n, m, 0)),
            pl.BlockSpec((1, Cp), lambda n, m: (0, 0)),
            pl.BlockSpec((1, Cp), lambda n, m: (0, 0)),
        ],
        out_specs=pl.BlockSpec((None, TM, Cp), lambda n, m: (n, m, 0)),
        compiler_params=pltpu.CompilerParams(
            dimension_semantics=("parallel", "parallel"),
            vmem_limit_bytes=_VMEM_LIMIT),
        cost_estimate=pl.CostEstimate(flops=12 * N * HW * Cp,
                                      transcendentals=N * HW * Cp,
                                      bytes_accessed=2 * N * HW * Cp * 4),
    )(y, scale_row, shift_row)


# ---------------------------------------------------------------------------
# Kernel 3: BN + GELU + residual-add + /1.414 + 2x2 max-pool, fused
# ---------------------------------------------------------------------------

def _bn_gelu_res_pool_kernel(y_ref, r_ref, s_ref, t_ref, o_ref, *, W, TB):
    # y_ref/r_ref: [TB*2*W, Cp] (TB pooled-row-pairs of full image rows)
    # o_ref: [TB*(W//2), Cp]
    Wo = W // 2
    scale = s_ref[...]
    shift = t_ref[...]
    inv = 1.0 / 1.414
    for j in range(TB):
        base = j * 2 * W

        def window(start):
            g = _gelu(y_ref[pl.ds(start, Wo, 2), :] * scale + shift)
            return (g + r_ref[pl.ds(start, Wo, 2), :]) * inv

        a, b = window(base), window(base + 1)
        c, d = window(base + W), window(base + W + 1)
        o_ref[pl.ds(j * Wo, Wo), :] = jnp.maximum(jnp.maximum(a, b),
                                                  jnp.maximum(c, d))


def _bn_gelu_res_pool(y, res, scale_row, shift_row, H, W):
    N, HW, Cp = y.shape
    Ho, Wo = H // 2, W // 2
    TB = _pick_tb(Ho, W)
    return pl.pallas_call(
        functools.partial(_bn_gelu_res_pool_kernel, W=W, TB=TB),
        out_shape=jax.ShapeDtypeStruct((N, Ho * Wo, Cp), jnp.float32),
        grid=(N, Ho // TB),
        in_specs=[
            pl.BlockSpec((None, TB * 2 * W, Cp), lambda n, p: (n, p, 0)),
            pl.BlockSpec((None, TB * 2 * W, Cp), lambda n, p: (n, p, 0)),
            pl.BlockSpec((1, Cp), lambda n, p: (0, 0)),
            pl.BlockSpec((1, Cp), lambda n, p: (0, 0)),
        ],
        out_specs=pl.BlockSpec((None, TB * Wo, Cp), lambda n, p: (n, p, 0)),
        compiler_params=pltpu.CompilerParams(
            dimension_semantics=("parallel", "parallel"),
            vmem_limit_bytes=_VMEM_LIMIT),
        cost_estimate=pl.CostEstimate(flops=16 * N * HW * Cp,
                                      transcendentals=N * HW * Cp,
                                      bytes_accessed=(2 * N * HW + N * Ho * Wo) * Cp * 4),
    )(y, res, scale_row, shift_row)


# ---------------------------------------------------------------------------
# Parameter prep (JAX glue)
# ---------------------------------------------------------------------------

def _prep_conv_w(w_oihw, cin_p, cp):
    """(Cout, Cin, 3, 3) -> [9, cin_p, cp] bf16, tap index = dh*3+dw."""
    cout, cin = w_oihw.shape[0], w_oihw.shape[1]
    w = jnp.transpose(w_oihw, (2, 3, 1, 0)).reshape(9, cin, cout)
    w = jnp.pad(w, ((0, 0), (0, cin_p - cin), (0, cp - cout)))
    return w.astype(jnp.bfloat16)


def _pad_row(v, cp):
    return jnp.pad(v.astype(jnp.float32), (0, cp - v.shape[0])).reshape(1, cp)


def _bn_scale_shift(stats, gamma_row, beta_row, count):
    """Fold batch sum / sum-of-squares into per-channel scale & shift."""
    tot = jnp.sum(stats, axis=0)                       # [2, Cp]
    mean = tot[0] / count
    var = jnp.maximum(tot[1] / count - mean * mean, 0.0)   # biased (training BN)
    scale = gamma_row[0] * jax.lax.rsqrt(var + _EPS)
    shift = beta_row[0] - mean * scale
    return scale.reshape(1, -1), shift.reshape(1, -1)


def init_params(key, in_channels, out_channels):
    k1, k2, k3, k4 = jax.random.split(key, 4)
    return {
        "w1": jax.random.normal(k1, (out_channels, in_channels, 3, 3), jnp.float32) * 0.1,
        "b1": jax.random.normal(k2, (out_channels,), jnp.float32) * 0.1,
        "g1": jnp.ones((out_channels,), jnp.float32),
        "bt1": jnp.zeros((out_channels,), jnp.float32),
        "w2": jax.random.normal(k3, (out_channels, out_channels, 3, 3), jnp.float32) * 0.1,
        "b2": jax.random.normal(k4, (out_channels,), jnp.float32) * 0.1,
        "g2": jnp.ones((out_channels,), jnp.float32),
        "bt2": jnp.zeros((out_channels,), jnp.float32),
    }


# ---------------------------------------------------------------------------
# Forward
# ---------------------------------------------------------------------------

@functools.partial(jax.jit, static_argnames=("in_channels", "out_channels"))
def unet_down_forward(x_nchw, params, *, in_channels, out_channels):
    N, Cin, H, W = x_nchw.shape
    assert Cin == in_channels and H % 2 == 0 and W % 2 == 0
    Cp = _round_up(out_channels, _LANE)            # lane-dense channel padding
    Cin_p = _round_up(in_channels, 8)
    HW, Ho, Wo = H * W, H // 2, W // 2

    x = jnp.transpose(x_nchw, (0, 2, 3, 1)).astype(jnp.float32)       # NHWC
    x_pad = jnp.pad(x, ((0, 0), (1, 1), (1, 1), (0, Cin_p - Cin)))

    # ---- conv1 + BN(batch stats) + GELU --------------------------------
    w1 = _prep_conv_w(params["w1"], Cin_p, Cp)
    b1, g1, bt1 = (_pad_row(params[k], Cp) for k in ("b1", "g1", "bt1"))
    y1, st1 = _conv3x3_stats(x_pad, w1, b1, H, W)
    sc1, sh1 = _bn_scale_shift(st1, g1, bt1, N * HW)
    x1 = _bn_gelu(y1, sc1, sh1)                                        # [N,HW,Cp]

    # ---- conv2 + BN + GELU, fused with residual + /1.414 + MaxPool2d(2)
    x1_pad = jnp.pad(x1.reshape(N, H, W, Cp).astype(jnp.bfloat16),
                     ((0, 0), (1, 1), (1, 1), (0, 0)))
    w2 = _prep_conv_w(params["w2"], Cp, Cp)
    b2, g2, bt2 = (_pad_row(params[k], Cp) for k in ("b2", "g2", "bt2"))
    y2, st2 = _conv3x3_stats(x1_pad, w2, b2, H, W)
    sc2, sh2 = _bn_scale_shift(st2, g2, bt2, N * HW)

    if in_channels == out_channels:
        res = jnp.pad(x, ((0, 0), (0, 0), (0, 0), (0, Cp - Cin))).reshape(N, HW, Cp)
    else:
        res = x1
    pooled = _bn_gelu_res_pool(y2, res, sc2, sh2, H, W)                # [N,Ho*Wo,Cp]

    out = pooled.reshape(N, Ho, Wo, Cp)[..., :out_channels]
    return jnp.transpose(out, (0, 3, 1, 2))                           # NCHW


# ---------------------------------------------------------------------------
# Pure-JAX reference (silent sanity check)
# ---------------------------------------------------------------------------

def _ref_forward(x_nchw, params, in_channels, out_channels):
    def conv_block(x_nhwc, w, b, g, bt):
        y = jax.lax.conv_general_dilated(
            x_nhwc, jnp.transpose(w, (2, 3, 1, 0)), (1, 1), ((1, 1), (1, 1)),
            dimension_numbers=("NHWC", "HWIO", "NHWC")) + b
        mean = jnp.mean(y, axis=(0, 1, 2), keepdims=True)
        var = jnp.mean((y - mean) ** 2, axis=(0, 1, 2), keepdims=True)
        return _gelu(g * (y - mean) * jax.lax.rsqrt(var + _EPS) + bt)

    x = jnp.transpose(x_nchw, (0, 2, 3, 1))
    x1 = conv_block(x, params["w1"], params["b1"], params["g1"], params["bt1"])
    x2 = conv_block(x1, params["w2"], params["b2"], params["g2"], params["bt2"])
    res = x if in_channels == out_channels else x1
    s = (res + x2) / 1.414
    N, H, W, C = s.shape
    s = s.reshape(N, H // 2, 2, W // 2, 2, C).max(axis=(2, 4))
    return jnp.transpose(s, (0, 3, 1, 2))


# ---------------------------------------------------------------------------

if __name__ == "__main__":
    in_channels, out_channels = 4, 8
    N, H, W = 2, 16, 16

    key = jax.random.PRNGKey(0)
    k_x, k_p = jax.random.split(key)
    x = jax.random.normal(k_x, (N, in_channels, H, W), jnp.float32)
    params = init_params(k_p, in_channels, out_channels)

    out = unet_down_forward(x, params, in_channels=in_channels,
                            out_channels=out_channels)
    out = jax.block_until_ready(out)
    assert out.shape == (N, out_channels, H // 2, W // 2), out.shape

    ref = _ref_forward(x, params, in_channels, out_channels)
    # bf16 MXU operands -> slightly looser tolerance than a pure-f32 pipeline.
    err = float(jnp.max(jnp.abs(out - ref)))
    assert jnp.allclose(out, ref, rtol=2e-2, atol=2e-2), err

    print("KERNEL_OK")
</pallas_src>

<mosaic_0001>
module attributes {stable_mosaic.version = 11 : i64} {
  func.func @_conv_stats_kernel(%arg0: i32, %arg1: memref<1x18x18x8xf32, #tpu.memory_space<vmem>>, %arg2: memref<9x8x128xbf16, #tpu.memory_space<vmem>>, %arg3: memref<1x128xf32, #tpu.memory_space<vmem>>, %arg4: memref<1x256x128xf32, #tpu.memory_space<vmem>>, %arg5: memref<1x2x128xf32, #tpu.memory_space<vmem>>) attributes {dimension_semantics = [#tpu.dimension_semantics<parallel>], iteration_bounds = array<i64: 2>, scalar_prefetch = 0 : i64, scratch_operands = 0 : i64, tpu.core_type = #tpu.core_type<tc>, window_params = [{transform_indices = @transform_0, window_bounds = array<i64: 1, 18, 18, 8>}, {pipeline_mode = #tpu.pipeline_mode<synchronous>, transform_indices = @transform_1, window_bounds = array<i64: 9, 8, 128>}, {pipeline_mode = #tpu.pipeline_mode<synchronous>, transform_indices = @transform_2, window_bounds = array<i64: 1, 128>}, {transform_indices = @transform_3, window_bounds = array<i64: 1, 256, 128>}, {transform_indices = @transform_4, window_bounds = array<i64: 1, 2, 128>}]} {
    %c0 = arith.constant 0 : index
    %c0_0 = arith.constant 0 : index
    %c0_1 = arith.constant 0 : index
    %c0_2 = arith.constant 0 : index
    %0 = vector.load %arg1[%c0, %c0_0, %c0_1, %c0_2] : memref<1x18x18x8xf32, #tpu.memory_space<vmem>>, vector<1x16x16x8xf32>
    %1 = vector.shape_cast %0 : vector<1x16x16x8xf32> to vector<16x16x8xf32>
    %2 = vector.shape_cast %1 : vector<16x16x8xf32> to vector<256x8xf32>
    %3 = arith.truncf %2 : vector<256x8xf32> to vector<256x8xbf16>
    %c0_3 = arith.constant 0 : index
    %c0_4 = arith.constant 0 : index
    %c0_5 = arith.constant 0 : index
    %4 = vector.load %arg2[%c0_3, %c0_4, %c0_5] : memref<9x8x128xbf16, #tpu.memory_space<vmem>>, vector<1x8x128xbf16>
    %5 = vector.shape_cast %4 : vector<1x8x128xbf16> to vector<8x128xbf16>
    %cst = arith.constant dense<0.000000e+00> : vector<256x128xf32>
    %6 = tpu.matmul %3, %5, %cst {dimension_numbers = #tpu.dot_dimension_numbers<[1], [0], [0], [1], [0, 0, 1, 1], [], []>} : vector<256x8xbf16>, vector<8x128xbf16>, vector<256x128xf32> -> vector<256x128xf32>
    %c0_6 = arith.constant 0 : index
    %c0_7 = arith.constant 0 : index
    %c1 = arith.constant 1 : index
    %c0_8 = arith.constant 0 : index
    %7 = vector.load %arg1[%c0_6, %c0_7, %c1, %c0_8] : memref<1x18x18x8xf32, #tpu.memory_space<vmem>>, vector<1x16x16x8xf32>
    %8 = vector.shape_cast %7 : vector<1x16x16x8xf32> to vector<16x16x8xf32>
    %9 = vector.shape_cast %8 : vector<16x16x8xf32> to vector<256x8xf32>
    %10 = arith.truncf %9 : vector<256x8xf32> to vector<256x8xbf16>
    %c1_9 = arith.constant 1 : index
    %c0_10 = arith.constant 0 : index
    %c0_11 = arith.constant 0 : index
    %11 = vector.load %arg2[%c1_9, %c0_10, %c0_11] : memref<9x8x128xbf16, #tpu.memory_space<vmem>>, vector<1x8x128xbf16>
    %12 = vector.shape_cast %11 : vector<1x8x128xbf16> to vector<8x128xbf16>
    %cst_12 = arith.constant dense<0.000000e+00> : vector<256x128xf32>
    %13 = tpu.matmul %10, %12, %cst_12 {dimension_numbers = #tpu.dot_dimension_numbers<[1], [0], [0], [1], [0, 0, 1, 1], [], []>} : vector<256x8xbf16>, vector<8x128xbf16>, vector<256x128xf32> -> vector<256x128xf32>
    %14 = arith.addf %6, %13 : vector<256x128xf32>
    %c0_13 = arith.constant 0 : index
    %c0_14 = arith.constant 0 : index
    %c2 = arith.constant 2 : index
    %c0_15 = arith.constant 0 : index
    %15 = vector.load %arg1[%c0_13, %c0_14, %c2, %c0_15] : memref<1x18x18x8xf32, #tpu.memory_space<vmem>>, vector<1x16x16x8xf32>
    %16 = vector.shape_cast %15 : vector<1x16x16x8xf32> to vector<16x16x8xf32>
    %17 = vector.shape_cast %16 : vector<16x16x8xf32> to vector<256x8xf32>
    %18 = arith.truncf %17 : vector<256x8xf32> to vector<256x8xbf16>
    %c2_16 = arith.constant 2 : index
    %c0_17 = arith.constant 0 : index
    %c0_18 = arith.constant 0 : index
    %19 = vector.load %arg2[%c2_16, %c0_17, %c0_18] : memref<9x8x128xbf16, #tpu.memory_space<vmem>>, vector<1x8x128xbf16>
    %20 = vector.shape_cast %19 : vector<1x8x128xbf16> to vector<8x128xbf16>
    %cst_19 = arith.constant dense<0.000000e+00> : vector<256x128xf32>
    %21 = tpu.matmul %18, %20, %cst_19 {dimension_numbers = #tpu.dot_dimension_numbers<[1], [0], [0], [1], [0, 0, 1, 1], [], []>} : vector<256x8xbf16>, vector<8x128xbf16>, vector<256x128xf32> -> vector<256x128xf32>
    %22 = arith.addf %14, %21 : vector<256x128xf32>
    %c0_20 = arith.constant 0 : index
    %c1_21 = arith.constant 1 : index
    %c0_22 = arith.constant 0 : index
    %c0_23 = arith.constant 0 : index
    %23 = vector.load %arg1[%c0_20, %c1_21, %c0_22, %c0_23] : memref<1x18x18x8xf32, #tpu.memory_space<vmem>>, vector<1x16x16x8xf32>
    %24 = vector.shape_cast %23 : vector<1x16x16x8xf32> to vector<16x16x8xf32>
    %25 = vector.shape_cast %24 : vector<16x16x8xf32> to vector<256x8xf32>
    %26 = arith.truncf %25 : vector<256x8xf32> to vector<256x8xbf16>
    %c3 = arith.constant 3 : index
    %c0_24 = arith.constant 0 : index
    %c0_25 = arith.constant 0 : index
    %27 = vector.load %arg2[%c3, %c0_24, %c0_25] : memref<9x8x128xbf16, #tpu.memory_space<vmem>>, vector<1x8x128xbf16>
    %28 = vector.shape_cast %27 : vector<1x8x128xbf16> to vector<8x128xbf16>
    %cst_26 = arith.constant dense<0.000000e+00> : vector<256x128xf32>
    %29 = tpu.matmul %26, %28, %cst_26 {dimension_numbers = #tpu.dot_dimension_numbers<[1], [0], [0], [1], [0, 0, 1, 1], [], []>} : vector<256x8xbf16>, vector<8x128xbf16>, vector<256x128xf32> -> vector<256x128xf32>
    %30 = arith.addf %22, %29 : vector<256x128xf32>
    %c0_27 = arith.constant 0 : index
    %c1_28 = arith.constant 1 : index
    %c1_29 = arith.constant 1 : index
    %c0_30 = arith.constant 0 : index
    %31 = vector.load %arg1[%c0_27, %c1_28, %c1_29, %c0_30] : memref<1x18x18x8xf32, #tpu.memory_space<vmem>>, vector<1x16x16x8xf32>
    %32 = vector.shape_cast %31 : vector<1x16x16x8xf32> to vector<16x16x8xf32>
    %33 = vector.shape_cast %32 : vector<16x16x8xf32> to vector<256x8xf32>
    %34 = arith.truncf %33 : vector<256x8xf32> to vector<256x8xbf16>
    %c4 = arith.constant 4 : index
    %c0_31 = arith.constant 0 : index
    %c0_32 = arith.constant 0 : index
    %35 = vector.load %arg2[%c4, %c0_31, %c0_32] : memref<9x8x128xbf16, #tpu.memory_space<vmem>>, vector<1x8x128xbf16>
    %36 = vector.shape_cast %35 : vector<1x8x128xbf16> to vector<8x128xbf16>
    %cst_33 = arith.constant dense<0.000000e+00> : vector<256x128xf32>
    %37 = tpu.matmul %34, %36, %cst_33 {dimension_numbers = #tpu.dot_dimension_numbers<[1], [0], [0], [1], [0, 0, 1, 1], [], []>} : vector<256x8xbf16>, vector<8x128xbf16>, vector<256x128xf32> -> vector<256x128xf32>
    %38 = arith.addf %30, %37 : vector<256x128xf32>
    %c0_34 = arith.constant 0 : index
    %c1_35 = arith.constant 1 : index
    %c2_36 = arith.constant 2 : index
    %c0_37 = arith.constant 0 : index
    %39 = vector.load %arg1[%c0_34, %c1_35, %c2_36, %c0_37] : memref<1x18x18x8xf32, #tpu.memory_space<vmem>>, vector<1x16x16x8xf32>
    %40 = vector.shape_cast %39 : vector<1x16x16x8xf32> to vector<16x16x8xf32>
    %41 = vector.shape_cast %40 : vector<16x16x8xf32> to vector<256x8xf32>
    %42 = arith.truncf %41 : vector<256x8xf32> to vector<256x8xbf16>
    %c5 = arith.constant 5 : index
    %c0_38 = arith.constant 0 : index
    %c0_39 = arith.constant 0 : index
    %43 = vector.load %arg2[%c5, %c0_38, %c0_39] : memref<9x8x128xbf16, #tpu.memory_space<vmem>>, vector<1x8x128xbf16>
    %44 = vector.shape_cast %43 : vector<1x8x128xbf16> to vector<8x128xbf16>
    %cst_40 = arith.constant dense<0.000000e+00> : vector<256x128xf32>
    %45 = tpu.matmul %42, %44, %cst_40 {dimension_numbers = #tpu.dot_dimension_numbers<[1], [0], [0], [1], [0, 0, 1, 1], [], []>} : vector<256x8xbf16>, vector<8x128xbf16>, vector<256x128xf32> -> vector<256x128xf32>
    %46 = arith.addf %38, %45 : vector<256x128xf32>
    %c0_41 = arith.constant 0 : index
    %c2_42 = arith.constant 2 : index
    %c0_43 = arith.constant 0 : index
    %c0_44 = arith.constant 0 : index
    %47 = vector.load %arg1[%c0_41, %c2_42, %c0_43, %c0_44] : memref<1x18x18x8xf32, #tpu.memory_space<vmem>>, vector<1x16x16x8xf32>
    %48 = vector.shape_cast %47 : vector<1x16x16x8xf32> to vector<16x16x8xf32>
    %49 = vector.shape_cast %48 : vector<16x16x8xf32> to vector<256x8xf32>
    %50 = arith.truncf %49 : vector<256x8xf32> to vector<256x8xbf16>
    %c6 = arith.constant 6 : index
    %c0_45 = arith.constant 0 : index
    %c0_46 = arith.constant 0 : index
    %51 = vector.load %arg2[%c6, %c0_45, %c0_46] : memref<9x8x128xbf16, #tpu.memory_space<vmem>>, vector<1x8x128xbf16>
    %52 = vector.shape_cast %51 : vector<1x8x128xbf16> to vector<8x128xbf16>
    %cst_47 = arith.constant dense<0.000000e+00> : vector<256x128xf32>
    %53 = tpu.matmul %50, %52, %cst_47 {dimension_numbers = #tpu.dot_dimension_numbers<[1], [0], [0], [1], [0, 0, 1, 1], [], []>} : vector<256x8xbf16>, vector<8x128xbf16>, vector<256x128xf32> -> vector<256x128xf32>
    %54 = arith.addf %46, %53 : vector<256x128xf32>
    %c0_48 = arith.constant 0 : index
    %c2_49 = arith.constant 2 : index
    %c1_50 = arith.constant 1 : index
    %c0_51 = arith.constant 0 : index
    %55 = vector.load %arg1[%c0_48, %c2_49, %c1_50, %c0_51] : memref<1x18x18x8xf32, #tpu.memory_space<vmem>>, vector<1x16x16x8xf32>
    %56 = vector.shape_cast %55 : vector<1x16x16x8xf32> to vector<16x16x8xf32>
    %57 = vector.shape_cast %56 : vector<16x16x8xf32> to vector<256x8xf32>
    %58 = arith.truncf %57 : vector<256x8xf32> to vector<256x8xbf16>
    %c7 = arith.constant 7 : index
    %c0_52 = arith.constant 0 : index
    %c0_53 = arith.constant 0 : index
    %59 = vector.load %arg2[%c7, %c0_52, %c0_53] : memref<9x8x128xbf16, #tpu.memory_space<vmem>>, vector<1x8x128xbf16>
    %60 = vector.shape_cast %59 : vector<1x8x128xbf16> to vector<8x128xbf16>
    %cst_54 = arith.constant dense<0.000000e+00> : vector<256x128xf32>
    %61 = tpu.matmul %58, %60, %cst_54 {dimension_numbers = #tpu.dot_dimension_numbers<[1], [0], [0], [1], [0, 0, 1, 1], [], []>} : vector<256x8xbf16>, vector<8x128xbf16>, vector<256x128xf32> -> vector<256x128xf32>
    %62 = arith.addf %54, %61 : vector<256x128xf32>
    %c0_55 = arith.constant 0 : index
    %c2_56 = arith.constant 2 : index
    %c2_57 = arith.constant 2 : index
    %c0_58 = arith.constant 0 : index
    %63 = vector.load %arg1[%c0_55, %c2_56, %c2_57, %c0_58] : memref<1x18x18x8xf32, #tpu.memory_space<vmem>>, vector<1x16x16x8xf32>
    %64 = vector.shape_cast %63 : vector<1x16x16x8xf32> to vector<16x16x8xf32>
    %65 = vector.shape_cast %64 : vector<16x16x8xf32> to vector<256x8xf32>
    %66 = arith.truncf %65 : vector<256x8xf32> to vector<256x8xbf16>
    %c8 = arith.constant 8 : index
    %c0_59 = arith.constant 0 : index
    %c0_60 = arith.constant 0 : index
    %67 = vector.load %arg2[%c8, %c0_59, %c0_60] : memref<9x8x128xbf16, #tpu.memory_space<vmem>>, vector<1x8x128xbf16>
    %68 = vector.shape_cast %67 : vector<1x8x128xbf16> to vector<8x128xbf16>
    %cst_61 = arith.constant dense<0.000000e+00> : vector<256x128xf32>
    %69 = tpu.matmul %66, %68, %cst_61 {dimension_numbers = #tpu.dot_dimension_numbers<[1], [0], [0], [1], [0, 0, 1, 1], [], []>} : vector<256x8xbf16>, vector<8x128xbf16>, vector<256x128xf32> -> vector<256x128xf32>
    %70 = arith.addf %62, %69 : vector<256x128xf32>
    %c0_62 = arith.constant 0 : index
    %c0_63 = arith.constant 0 : index
    %71 = vector.load %arg3[%c0_62, %c0_63] : memref<1x128xf32, #tpu.memory_space<vmem>>, vector<1x128xf32>
    %72 = vector.broadcast %71 : vector<1x128xf32> to vector<256x128xf32>
    %73 = arith.addf %70, %72 : vector<256x128xf32>
    %c0_64 = arith.constant 0 : index
    %c0_65 = arith.constant 0 : index
    %c0_66 = arith.constant 0 : index
    %74 = vector.load %arg4[%c0_64, %c0_65, %c0_66] : memref<1x256x128xf32, #tpu.memory_space<vmem>>, vector<1x256x128xf32>
    %75 = vector.shape_cast %74 : vector<1x256x128xf32> to vector<256x128xf32>
    %76 = vector.shape_cast %73 : vector<256x128xf32> to vector<1x256x128xf32>
    tpu.vector_store %arg4[%c0_64, %c0_65, %c0_66], %76 {strides = array<i32>} : memref<1x256x128xf32, #tpu.memory_space<vmem>>, vector<1x256x128xf32>,
    %cst_67 = arith.constant dense<0.000000e+00> : vector<128xf32>
    %77 = vector.multi_reduction <add>, %73, %cst_67 [0] : vector<256x128xf32> to vector<128xf32>
    %78 = vector.shape_cast %77 : vector<128xf32> to vector<1x128xf32>
    %c0_68 = arith.constant 0 : index
    %c0_69 = arith.constant 0 : index
    %c0_70 = arith.constant 0 : index
    %79 = vector.load %arg5[%c0_68, %c0_69, %c0_70] : memref<1x2x128xf32, #tpu.memory_space<vmem>>, vector<1x1x128xf32>
    %80 = vector.shape_cast %79 : vector<1x1x128xf32> to vector<1x128xf32>
    %81 = vector.shape_cast %78 : vector<1x128xf32> to vector<1x1x128xf32>
    tpu.vector_store %arg5[%c0_68, %c0_69, %c0_70], %81 {strides = array<i32>} : memref<1x2x128xf32, #tpu.memory_space<vmem>>, vector<1x1x128xf32>,
    %82 = arith.mulf %73, %73 : vector<256x128xf32>
    %cst_71 = arith.constant dense<0.000000e+00> : vector<128xf32>
    %83 = vector.multi_reduction <add>, %82, %cst_71 [0] : vector<256x128xf32> to vector<128xf32>
    %84 = vector.shape_cast %83 : vector<128xf32> to vector<1x128xf32>
    %c0_72 = arith.constant 0 : index
    %c1_73 = arith.constant 1 : index
    %c0_74 = arith.constant 0 : index
    %85 = vector.load %arg5[%c0_72, %c1_73, %c0_74] : memref<1x2x128xf32, #tpu.memory_space<vmem>>, vector<1x1x128xf32>
    %86 = vector.shape_cast %85 : vector<1x1x128xf32> to vector<1x128xf32>
    %87 = vector.shape_cast %84 : vector<1x128xf32> to vector<1x1x128xf32>
    tpu.vector_store %arg5[%c0_72, %c1_73, %c0_74], %87 {strides = array<i32>} : memref<1x2x128xf32, #tpu.memory_space<vmem>>, vector<1x1x128xf32>,
    return
  }
  func.func @transform_0(%arg0: i32) -> (i32, i32, i32, i32) {
    %c0_i32 = arith.constant 0 : i32
    %c0_i32_0 = arith.constant 0 : i32
    %c0_i32_1 = arith.constant 0 : i32
    %c0_i32_2 = arith.constant 0 : i32
    return %arg0, %c0_i32, %c0_i32_0, %c0_i32_1 : i32, i32, i32, i32
  }
  func.func @transform_1(%arg0: i32) -> (i32, i32, i32) {
    %c0_i32 = arith.constant 0 : i32
    %c0_i32_0 = arith.constant 0 : i32
    %c0_i32_1 = arith.constant 0 : i32
    %c0_i32_2 = arith.constant 0 : i32
    return %c0_i32, %c0_i32_0, %c0_i32_1 : i32, i32, i32
  }
  func.func @transform_2(%arg0: i32) -> (i32, i32) {
    %c0_i32 = arith.constant 0 : i32
    %c0_i32_0 = arith.constant 0 : i32
    %c0_i32_1 = arith.constant 0 : i32
    return %c0_i32, %c0_i32_0 : i32, i32
  }
  func.func @transform_3(%arg0: i32) -> (i32, i32, i32) {
    %c0_i32 = arith.constant 0 : i32
    %c0_i32_0 = arith.constant 0 : i32
    %c0_i32_1 = arith.constant 0 : i32
    return %arg0, %c0_i32, %c0_i32_0 : i32, i32, i32
  }
  func.func @transform_4(%arg0: i32) -> (i32, i32, i32) {
    %c0_i32 = arith.constant 0 : i32
    %c0_i32_0 = arith.constant 0 : i32
    %c0_i32_1 = arith.constant 0 : i32
    return %arg0, %c0_i32, %c0_i32_0 : i32, i32, i32
  }
}

module attributes {stable_mosaic.version = 11 : i64} {
  func.func @_bn_gelu_kernel(%arg0: i32, %arg1: i32, %arg2: memref<1x256x128xf32, #tpu.memory_space<vmem>>, %arg3: memref<1x128xf32, #tpu.memory_space<vmem>>, %arg4: memref<1x128xf32, #tpu.memory_space<vmem>>, %arg5: memref<1x256x128xf32, #tpu.memory_space<vmem>>) attributes {dimension_semantics = [#tpu.dimension_semantics<parallel>, #tpu.dimension_semantics<parallel>], iteration_bounds = array<i64: 2, 1>, scalar_prefetch = 0 : i64, scratch_operands = 0 : i64, tpu.core_type = #tpu.core_type<tc>, window_params = [{transform_indices = @transform_0, window_bounds = array<i64: 1, 256, 128>}, {pipeline_mode = #tpu.pipeline_mode<synchronous>, transform_indices = @transform_1, window_bounds = array<i64: 1, 128>}, {pipeline_mode = #tpu.pipeline_mode<synchronous>, transform_indices = @transform_2, window_bounds = array<i64: 1, 128>}, {transform_indices = @transform_3, window_bounds = array<i64: 1, 256, 128>}]} {
    %c0 = arith.constant 0 : index
    %c0_0 = arith.constant 0 : index
    %c0_1 = arith.constant 0 : index
    %0 = vector.load %arg2[%c0, %c0_0, %c0_1] : memref<1x256x128xf32, #tpu.memory_space<vmem>>, vector<1x256x128xf32>
    %1 = vector.shape_cast %0 : vector<1x256x128xf32> to vector<256x128xf32>
    %c0_2 = arith.constant 0 : index
    %c0_3 = arith.constant 0 : index
    %2 = vector.load %arg3[%c0_2, %c0_3] : memref<1x128xf32, #tpu.memory_space<vmem>>, vector<1x128xf32>
    %3 = vector.broadcast %2 : vector<1x128xf32> to vector<256x128xf32>
    %4 = arith.mulf %1, %3 : vector<256x128xf32>
    %c0_4 = arith.constant 0 : index
    %c0_5 = arith.constant 0 : index
    %5 = vector.load %arg4[%c0_4, %c0_5] : memref<1x128xf32, #tpu.memory_space<vmem>>, vector<1x128xf32>
    %6 = vector.broadcast %5 : vector<1x128xf32> to vector<256x128xf32>
    %7 = arith.addf %4, %6 : vector<256x128xf32>
    %cst = arith.constant 5.000000e-01 : f32
    %8 = vector.broadcast %cst : f32 to vector<256x128xf32>
    %9 = arith.mulf %8, %7 : vector<256x128xf32>
    %cst_6 = arith.constant 4.471500e-02 : f32
    %10 = vector.broadcast %cst_6 : f32 to vector<256x128xf32>
    %11 = arith.mulf %10, %7 : vector<256x128xf32>
    %12 = arith.mulf %11, %7 : vector<256x128xf32>
    %13 = arith.mulf %12, %7 : vector<256x128xf32>
    %14 = arith.addf %7, %13 : vector<256x128xf32>
    %cst_7 = arith.constant 0.797884583 : f32
    %15 = vector.broadcast %cst_7 : f32 to vector<256x128xf32>
    %16 = arith.mulf %15, %14 : vector<256x128xf32>
    %17 = math.tanh %16 : vector<256x128xf32>
    %cst_8 = arith.constant 1.000000e+00 : f32
    %18 = vector.broadcast %cst_8 : f32 to vector<256x128xf32>
    %19 = arith.addf %18, %17 : vector<256x128xf32>
    %20 = arith.mulf %9, %19 : vector<256x128xf32>
    %c0_9 = arith.constant 0 : index
    %c0_10 = arith.constant 0 : index
    %c0_11 = arith.constant 0 : index
    %21 = vector.load %arg5[%c0_9, %c0_10, %c0_11] : memref<1x256x128xf32, #tpu.memory_space<vmem>>, vector<1x256x128xf32>
    %22 = vector.shape_cast %21 : vector<1x256x128xf32> to vector<256x128xf32>
    %23 = vector.shape_cast %20 : vector<256x128xf32> to vector<1x256x128xf32>
    tpu.vector_store %arg5[%c0_9, %c0_10, %c0_11], %23 {strides = array<i32>} : memref<1x256x128xf32, #tpu.memory_space<vmem>>, vector<1x256x128xf32>,
    return
  }
  func.func @transform_0(%arg0: i32, %arg1: i32) -> (i32, i32, i32) {
    %c0_i32 = arith.constant 0 : i32
    %c0_i32_0 = arith.constant 0 : i32
    return %arg0, %arg1, %c0_i32 : i32, i32, i32
  }
  func.func @transform_1(%arg0: i32, %arg1: i32) -> (i32, i32) {
    %c0_i32 = arith.constant 0 : i32
    %c0_i32_0 = arith.constant 0 : i32
    %c0_i32_1 = arith.constant 0 : i32
    return %c0_i32, %c0_i32_0 : i32, i32
  }
  func.func @transform_2(%arg0: i32, %arg1: i32) -> (i32, i32) {
    %c0_i32 = arith.constant 0 : i32
    %c0_i32_0 = arith.constant 0 : i32
    %c0_i32_1 = arith.constant 0 : i32
    return %c0_i32, %c0_i32_0 : i32, i32
  }
  func.func @transform_3(%arg0: i32, %arg1: i32) -> (i32, i32, i32) {
    %c0_i32 = arith.constant 0 : i32
    %c0_i32_0 = arith.constant 0 : i32
    return %arg0, %arg1, %c0_i32 : i32, i32, i32
  }
}

module attributes {stable_mosaic.version = 11 : i64} {
  func.func @_conv_stats_kernel(%arg0: i32, %arg1: memref<1x18x18x128xbf16, #tpu.memory_space<vmem>>, %arg2: memref<9x128x128xbf16, #tpu.memory_space<vmem>>, %arg3: memref<1x128xf32, #tpu.memory_space<vmem>>, %arg4: memref<1x256x128xf32, #tpu.memory_space<vmem>>, %arg5: memref<1x2x128xf32, #tpu.memory_space<vmem>>) attributes {dimension_semantics = [#tpu.dimension_semantics<parallel>], iteration_bounds = array<i64: 2>, scalar_prefetch = 0 : i64, scratch_operands = 0 : i64, tpu.core_type = #tpu.core_type<tc>, window_params = [{transform_indices = @transform_0, window_bounds = array<i64: 1, 18, 18, 128>}, {pipeline_mode = #tpu.pipeline_mode<synchronous>, transform_indices = @transform_1, window_bounds = array<i64: 9, 128, 128>}, {pipeline_mode = #tpu.pipeline_mode<synchronous>, transform_indices = @transform_2, window_bounds = array<i64: 1, 128>}, {transform_indices = @transform_3, window_bounds = array<i64: 1, 256, 128>}, {transform_indices = @transform_4, window_bounds = array<i64: 1, 2, 128>}]} {
    %c0 = arith.constant 0 : index
    %c0_0 = arith.constant 0 : index
    %c0_1 = arith.constant 0 : index
    %c0_2 = arith.constant 0 : index
    %0 = vector.load %arg1[%c0, %c0_0, %c0_1, %c0_2] : memref<1x18x18x128xbf16, #tpu.memory_space<vmem>>, vector<1x16x16x128xbf16>
    %1 = vector.shape_cast %0 : vector<1x16x16x128xbf16> to vector<16x16x128xbf16>
    %2 = vector.shape_cast %1 : vector<16x16x128xbf16> to vector<256x128xbf16>
    %c0_3 = arith.constant 0 : index
    %c0_4 = arith.constant 0 : index
    %c0_5 = arith.constant 0 : index
    %3 = vector.load %arg2[%c0_3, %c0_4, %c0_5] : memref<9x128x128xbf16, #tpu.memory_space<vmem>>, vector<1x128x128xbf16>
    %4 = vector.shape_cast %3 : vector<1x128x128xbf16> to vector<128x128xbf16>
    %cst = arith.constant dense<0.000000e+00> : vector<256x128xf32>
    %5 = tpu.matmul %2, %4, %cst {dimension_numbers = #tpu.dot_dimension_numbers<[1], [0], [0], [1], [0, 0, 1, 1], [], []>} : vector<256x128xbf16>, vector<128x128xbf16>, vector<256x128xf32> -> vector<256x128xf32>
    %c0_6 = arith.constant 0 : index
    %c0_7 = arith.constant 0 : index
    %c1 = arith.constant 1 : index
    %c0_8 = arith.constant 0 : index
    %6 = vector.load %arg1[%c0_6, %c0_7, %c1, %c0_8] : memref<1x18x18x128xbf16, #tpu.memory_space<vmem>>, vector<1x16x16x128xbf16>
    %7 = vector.shape_cast %6 : vector<1x16x16x128xbf16> to vector<16x16x128xbf16>
    %8 = vector.shape_cast %7 : vector<16x16x128xbf16> to vector<256x128xbf16>
    %c1_9 = arith.constant 1 : index
    %c0_10 = arith.constant 0 : index
    %c0_11 = arith.constant 0 : index
    %9 = vector.load %arg2[%c1_9, %c0_10, %c0_11] : memref<9x128x128xbf16, #tpu.memory_space<vmem>>, vector<1x128x128xbf16>
    %10 = vector.shape_cast %9 : vector<1x128x128xbf16> to vector<128x128xbf16>
    %cst_12 = arith.constant dense<0.000000e+00> : vector<256x128xf32>
    %11 = tpu.matmul %8, %10, %cst_12 {dimension_numbers = #tpu.dot_dimension_numbers<[1], [0], [0], [1], [0, 0, 1, 1], [], []>} : vector<256x128xbf16>, vector<128x128xbf16>, vector<256x128xf32> -> vector<256x128xf32>
    %12 = arith.addf %5, %11 : vector<256x128xf32>
    %c0_13 = arith.constant 0 : index
    %c0_14 = arith.constant 0 : index
    %c2 = arith.constant 2 : index
    %c0_15 = arith.constant 0 : index
    %13 = vector.load %arg1[%c0_13, %c0_14, %c2, %c0_15] : memref<1x18x18x128xbf16, #tpu.memory_space<vmem>>, vector<1x16x16x128xbf16>
    %14 = vector.shape_cast %13 : vector<1x16x16x128xbf16> to vector<16x16x128xbf16>
    %15 = vector.shape_cast %14 : vector<16x16x128xbf16> to vector<256x128xbf16>
    %c2_16 = arith.constant 2 : index
    %c0_17 = arith.constant 0 : index
    %c0_18 = arith.constant 0 : index
    %16 = vector.load %arg2[%c2_16, %c0_17, %c0_18] : memref<9x128x128xbf16, #tpu.memory_space<vmem>>, vector<1x128x128xbf16>
    %17 = vector.shape_cast %16 : vector<1x128x128xbf16> to vector<128x128xbf16>
    %cst_19 = arith.constant dense<0.000000e+00> : vector<256x128xf32>
    %18 = tpu.matmul %15, %17, %cst_19 {dimension_numbers = #tpu.dot_dimension_numbers<[1], [0], [0], [1], [0, 0, 1, 1], [], []>} : vector<256x128xbf16>, vector<128x128xbf16>, vector<256x128xf32> -> vector<256x128xf32>
    %19 = arith.addf %12, %18 : vector<256x128xf32>
    %c0_20 = arith.constant 0 : index
    %c1_21 = arith.constant 1 : index
    %c0_22 = arith.constant 0 : index
    %c0_23 = arith.constant 0 : index
    %20 = vector.load %arg1[%c0_20, %c1_21, %c0_22, %c0_23] : memref<1x18x18x128xbf16, #tpu.memory_space<vmem>>, vector<1x16x16x128xbf16>
    %21 = vector.shape_cast %20 : vector<1x16x16x128xbf16> to vector<16x16x128xbf16>
    %22 = vector.shape_cast %21 : vector<16x16x128xbf16> to vector<256x128xbf16>
    %c3 = arith.constant 3 : index
    %c0_24 = arith.constant 0 : index
    %c0_25 = arith.constant 0 : index
    %23 = vector.load %arg2[%c3, %c0_24, %c0_25] : memref<9x128x128xbf16, #tpu.memory_space<vmem>>, vector<1x128x128xbf16>
    %24 = vector.shape_cast %23 : vector<1x128x128xbf16> to vector<128x128xbf16>
    %cst_26 = arith.constant dense<0.000000e+00> : vector<256x128xf32>
    %25 = tpu.matmul %22, %24, %cst_26 {dimension_numbers = #tpu.dot_dimension_numbers<[1], [0], [0], [1], [0, 0, 1, 1], [], []>} : vector<256x128xbf16>, vector<128x128xbf16>, vector<256x128xf32> -> vector<256x128xf32>
    %26 = arith.addf %19, %25 : vector<256x128xf32>
    %c0_27 = arith.constant 0 : index
    %c1_28 = arith.constant 1 : index
    %c1_29 = arith.constant 1 : index
    %c0_30 = arith.constant 0 : index
    %27 = vector.load %arg1[%c0_27, %c1_28, %c1_29, %c0_30] : memref<1x18x18x128xbf16, #tpu.memory_space<vmem>>, vector<1x16x16x128xbf16>
    %28 = vector.shape_cast %27 : vector<1x16x16x128xbf16> to vector<16x16x128xbf16>
    %29 = vector.shape_cast %28 : vector<16x16x128xbf16> to vector<256x128xbf16>
    %c4 = arith.constant 4 : index
    %c0_31 = arith.constant 0 : index
    %c0_32 = arith.constant 0 : index
    %30 = vector.load %arg2[%c4, %c0_31, %c0_32] : memref<9x128x128xbf16, #tpu.memory_space<vmem>>, vector<1x128x128xbf16>
    %31 = vector.shape_cast %30 : vector<1x128x128xbf16> to vector<128x128xbf16>
    %cst_33 = arith.constant dense<0.000000e+00> : vector<256x128xf32>
    %32 = tpu.matmul %29, %31, %cst_33 {dimension_numbers = #tpu.dot_dimension_numbers<[1], [0], [0], [1], [0, 0, 1, 1], [], []>} : vector<256x128xbf16>, vector<128x128xbf16>, vector<256x128xf32> -> vector<256x128xf32>
    %33 = arith.addf %26, %32 : vector<256x128xf32>
    %c0_34 = arith.constant 0 : index
    %c1_35 = arith.constant 1 : index
    %c2_36 = arith.constant 2 : index
    %c0_37 = arith.constant 0 : index
    %34 = vector.load %arg1[%c0_34, %c1_35, %c2_36, %c0_37] : memref<1x18x18x128xbf16, #tpu.memory_space<vmem>>, vector<1x16x16x128xbf16>
    %35 = vector.shape_cast %34 : vector<1x16x16x128xbf16> to vector<16x16x128xbf16>
    %36 = vector.shape_cast %35 : vector<16x16x128xbf16> to vector<256x128xbf16>
    %c5 = arith.constant 5 : index
    %c0_38 = arith.constant 0 : index
    %c0_39 = arith.constant 0 : index
    %37 = vector.load %arg2[%c5, %c0_38, %c0_39] : memref<9x128x128xbf16, #tpu.memory_space<vmem>>, vector<1x128x128xbf16>
    %38 = vector.shape_cast %37 : vector<1x128x128xbf16> to vector<128x128xbf16>
    %cst_40 = arith.constant dense<0.000000e+00> : vector<256x128xf32>
    %39 = tpu.matmul %36, %38, %cst_40 {dimension_numbers = #tpu.dot_dimension_numbers<[1], [0], [0], [1], [0, 0, 1, 1], [], []>} : vector<256x128xbf16>, vector<128x128xbf16>, vector<256x128xf32> -> vector<256x128xf32>
    %40 = arith.addf %33, %39 : vector<256x128xf32>
    %c0_41 = arith.constant 0 : index
    %c2_42 = arith.constant 2 : index
    %c0_43 = arith.constant 0 : index
    %c0_44 = arith.constant 0 : index
    %41 = vector.load %arg1[%c0_41, %c2_42, %c0_43, %c0_44] : memref<1x18x18x128xbf16, #tpu.memory_space<vmem>>, vector<1x16x16x128xbf16>
    %42 = vector.shape_cast %41 : vector<1x16x16x128xbf16> to vector<16x16x128xbf16>
    %43 = vector.shape_cast %42 : vector<16x16x128xbf16> to vector<256x128xbf16>
    %c6 = arith.constant 6 : index
    %c0_45 = arith.constant 0 : index
    %c0_46 = arith.constant 0 : index
    %44 = vector.load %arg2[%c6, %c0_45, %c0_46] : memref<9x128x128xbf16, #tpu.memory_space<vmem>>, vector<1x128x128xbf16>
    %45 = vector.shape_cast %44 : vector<1x128x128xbf16> to vector<128x128xbf16>
    %cst_47 = arith.constant dense<0.000000e+00> : vector<256x128xf32>
    %46 = tpu.matmul %43, %45, %cst_47 {dimension_numbers = #tpu.dot_dimension_numbers<[1], [0], [0], [1], [0, 0, 1, 1], [], []>} : vector<256x128xbf16>, vector<128x128xbf16>, vector<256x128xf32> -> vector<256x128xf32>
    %47 = arith.addf %40, %46 : vector<256x128xf32>
    %c0_48 = arith.constant 0 : index
    %c2_49 = arith.constant 2 : index
    %c1_50 = arith.constant 1 : index
    %c0_51 = arith.constant 0 : index
    %48 = vector.load %arg1[%c0_48, %c2_49, %c1_50, %c0_51] : memref<1x18x18x128xbf16, #tpu.memory_space<vmem>>, vector<1x16x16x128xbf16>
    %49 = vector.shape_cast %48 : vector<1x16x16x128xbf16> to vector<16x16x128xbf16>
    %50 = vector.shape_cast %49 : vector<16x16x128xbf16> to vector<256x128xbf16>
    %c7 = arith.constant 7 : index
    %c0_52 = arith.constant 0 : index
    %c0_53 = arith.constant 0 : index
    %51 = vector.load %arg2[%c7, %c0_52, %c0_53] : memref<9x128x128xbf16, #tpu.memory_space<vmem>>, vector<1x128x128xbf16>
    %52 = vector.shape_cast %51 : vector<1x128x128xbf16> to vector<128x128xbf16>
    %cst_54 = arith.constant dense<0.000000e+00> : vector<256x128xf32>
    %53 = tpu.matmul %50, %52, %cst_54 {dimension_numbers = #tpu.dot_dimension_numbers<[1], [0], [0], [1], [0, 0, 1, 1], [], []>} : vector<256x128xbf16>, vector<128x128xbf16>, vector<256x128xf32> -> vector<256x128xf32>
    %54 = arith.addf %47, %53 : vector<256x128xf32>
    %c0_55 = arith.constant 0 : index
    %c2_56 = arith.constant 2 : index
    %c2_57 = arith.constant 2 : index
    %c0_58 = arith.constant 0 : index
    %55 = vector.load %arg1[%c0_55, %c2_56, %c2_57, %c0_58] : memref<1x18x18x128xbf16, #tpu.memory_space<vmem>>, vector<1x16x16x128xbf16>
    %56 = vector.shape_cast %55 : vector<1x16x16x128xbf16> to vector<16x16x128xbf16>
    %57 = vector.shape_cast %56 : vector<16x16x128xbf16> to vector<256x128xbf16>
    %c8 = arith.constant 8 : index
    %c0_59 = arith.constant 0 : index
    %c0_60 = arith.constant 0 : index
    %58 = vector.load %arg2[%c8, %c0_59, %c0_60] : memref<9x128x128xbf16, #tpu.memory_space<vmem>>, vector<1x128x128xbf16>
    %59 = vector.shape_cast %58 : vector<1x128x128xbf16> to vector<128x128xbf16>
    %cst_61 = arith.constant dense<0.000000e+00> : vector<256x128xf32>
    %60 = tpu.matmul %57, %59, %cst_61 {dimension_numbers = #tpu.dot_dimension_numbers<[1], [0], [0], [1], [0, 0, 1, 1], [], []>} : vector<256x128xbf16>, vector<128x128xbf16>, vector<256x128xf32> -> vector<256x128xf32>
    %61 = arith.addf %54, %60 : vector<256x128xf32>
    %c0_62 = arith.constant 0 : index
    %c0_63 = arith.constant 0 : index
    %62 = vector.load %arg3[%c0_62, %c0_63] : memref<1x128xf32, #tpu.memory_space<vmem>>, vector<1x128xf32>
    %63 = vector.broadcast %62 : vector<1x128xf32> to vector<256x128xf32>
    %64 = arith.addf %61, %63 : vector<256x128xf32>
    %c0_64 = arith.constant 0 : index
    %c0_65 = arith.constant 0 : index
    %c0_66 = arith.constant 0 : index
    %65 = vector.load %arg4[%c0_64, %c0_65, %c0_66] : memref<1x256x128xf32, #tpu.memory_space<vmem>>, vector<1x256x128xf32>
    %66 = vector.shape_cast %65 : vector<1x256x128xf32> to vector<256x128xf32>
    %67 = vector.shape_cast %64 : vector<256x128xf32> to vector<1x256x128xf32>
    tpu.vector_store %arg4[%c0_64, %c0_65, %c0_66], %67 {strides = array<i32>} : memref<1x256x128xf32, #tpu.memory_space<vmem>>, vector<1x256x128xf32>,
    %cst_67 = arith.constant dense<0.000000e+00> : vector<128xf32>
    %68 = vector.multi_reduction <add>, %64, %cst_67 [0] : vector<256x128xf32> to vector<128xf32>
    %69 = vector.shape_cast %68 : vector<128xf32> to vector<1x128xf32>
    %c0_68 = arith.constant 0 : index
    %c0_69 = arith.constant 0 : index
    %c0_70 = arith.constant 0 : index
    %70 = vector.load %arg5[%c0_68, %c0_69, %c0_70] : memref<1x2x128xf32, #tpu.memory_space<vmem>>, vector<1x1x128xf32>
    %71 = vector.shape_cast %70 : vector<1x1x128xf32> to vector<1x128xf32>
    %72 = vector.shape_cast %69 : vector<1x128xf32> to vector<1x1x128xf32>
    tpu.vector_store %arg5[%c0_68, %c0_69, %c0_70], %72 {strides = array<i32>} : memref<1x2x128xf32, #tpu.memory_space<vmem>>, vector<1x1x128xf32>,
    %73 = arith.mulf %64, %64 : vector<256x128xf32>
    %cst_71 = arith.constant dense<0.000000e+00> : vector<128xf32>
    %74 = vector.multi_reduction <add>, %73, %cst_71 [0] : vector<256x128xf32> to vector<128xf32>
    %75 = vector.shape_cast %74 : vector<128xf32> to vector<1x128xf32>
    %c0_72 = arith.constant 0 : index
    %c1_73 = arith.constant 1 : index
    %c0_74 = arith.constant 0 : index
    %76 = vector.load %arg5[%c0_72, %c1_73, %c0_74] : memref<1x2x128xf32, #tpu.memory_space<vmem>>, vector<1x1x128xf32>
    %77 = vector.shape_cast %76 : vector<1x1x128xf32> to vector<1x128xf32>
    %78 = vector.shape_cast %75 : vector<1x128xf32> to vector<1x1x128xf32>
    tpu.vector_store %arg5[%c0_72, %c1_73, %c0_74], %78 {strides = array<i32>} : memref<1x2x128xf32, #tpu.memory_space<vmem>>, vector<1x1x128xf32>,
    return
  }
  func.func @transform_0(%arg0: i32) -> (i32, i32, i32, i32) {
    %c0_i32 = arith.constant 0 : i32
    %c0_i32_0 = arith.constant 0 : i32
    %c0_i32_1 = arith.constant 0 : i32
    %c0_i32_2 = arith.constant 0 : i32
    return %arg0, %c0_i32, %c0_i32_0, %c0_i32_1 : i32, i32, i32, i32
  }
  func.func @transform_1(%arg0: i32) -> (i32, i32, i32) {
    %c0_i32 = arith.constant 0 : i32
    %c0_i32_0 = arith.constant 0 : i32
    %c0_i32_1 = arith.constant 0 : i32
    %c0_i32_2 = arith.constant 0 : i32
    return %c0_i32, %c0_i32_0, %c0_i32_1 : i32, i32, i32
  }
  func.func @transform_2(%arg0: i32) -> (i32, i32) {
    %c0_i32 = arith.constant 0 : i32
    %c0_i32_0 = arith.constant 0 : i32
    %c0_i32_1 = arith.constant 0 : i32
    return %c0_i32, %c0_i32_0 : i32, i32
  }
  func.func @transform_3(%arg0: i32) -> (i32, i32, i32) {
    %c0_i32 = arith.constant 0 : i32
    %c0_i32_0 = arith.constant 0 : i32
    %c0_i32_1 = arith.constant 0 : i32
    return %arg0, %c0_i32, %c0_i32_0 : i32, i32, i32
  }
  func.func @transform_4(%arg0: i32) -> (i32, i32, i32) {
    %c0_i32 = arith.constant 0 : i32
    %c0_i32_0 = arith.constant 0 : i32
    %c0_i32_1 = arith.constant 0 : i32
    return %arg0, %c0_i32, %c0_i32_0 : i32, i32, i32
  }
}

module attributes {stable_mosaic.version = 11 : i64} {
  func.func @_bn_gelu_res_pool_kernel(%arg0: i32, %arg1: i32, %arg2: memref<1x256x128xf32, #tpu.memory_space<vmem>>, %arg3: memref<1x256x128xf32, #tpu.memory_space<vmem>>, %arg4: memref<1x128xf32, #tpu.memory_space<vmem>>, %arg5: memref<1x128xf32, #tpu.memory_space<vmem>>, %arg6: memref<1x64x128xf32, #tpu.memory_space<vmem>>) attributes {dimension_semantics = [#tpu.dimension_semantics<parallel>, #tpu.dimension_semantics<parallel>], iteration_bounds = array<i64: 2, 1>, scalar_prefetch = 0 : i64, scratch_operands = 0 : i64, tpu.core_type = #tpu.core_type<tc>, window_params = [{transform_indices = @transform_0, window_bounds = array<i64: 1, 256, 128>}, {transform_indices = @transform_1, window_bounds = array<i64: 1, 256, 128>}, {pipeline_mode = #tpu.pipeline_mode<synchronous>, transform_indices = @transform_2, window_bounds = array<i64: 1, 128>}, {pipeline_mode = #tpu.pipeline_mode<synchronous>, transform_indices = @transform_3, window_bounds = array<i64: 1, 128>}, {transform_indices = @transform_4, window_bounds = array<i64: 1, 64, 128>}]} {
    %c0 = arith.constant 0 : index
    %c0_0 = arith.constant 0 : index
    %0 = vector.load %arg4[%c0, %c0_0] : memref<1x128xf32, #tpu.memory_space<vmem>>, vector<1x128xf32>
    %c0_1 = arith.constant 0 : index
    %c0_2 = arith.constant 0 : index
    %1 = vector.load %arg5[%c0_1, %c0_2] : memref<1x128xf32, #tpu.memory_space<vmem>>, vector<1x128xf32>
    %c0_3 = arith.constant 0 : index
    %c0_4 = arith.constant 0 : index
    %c0_5 = arith.constant 0 : index
    %2 = tpu.strided_load %arg2[%c0_3, %c0_4, %c0_5] {strides = array<i32: 1, 2, 1>} : memref<1x256x128xf32, #tpu.memory_space<vmem>>, vector<1x8x128xf32>
    %3 = vector.shape_cast %2 : vector<1x8x128xf32> to vector<8x128xf32>
    %4 = vector.broadcast %0 : vector<1x128xf32> to vector<8x128xf32>
    %5 = arith.mulf %3, %4 : vector<8x128xf32>
    %6 = vector.broadcast %1 : vector<1x128xf32> to vector<8x128xf32>
    %7 = arith.addf %5, %6 : vector<8x128xf32>
    %cst = arith.constant 5.000000e-01 : f32
    %8 = vector.broadcast %cst : f32 to vector<8x128xf32>
    %9 = arith.mulf %8, %7 : vector<8x128xf32>
    %cst_6 = arith.constant 4.471500e-02 : f32
    %10 = vector.broadcast %cst_6 : f32 to vector<8x128xf32>
    %11 = arith.mulf %10, %7 : vector<8x128xf32>
    %12 = arith.mulf %11, %7 : vector<8x128xf32>
    %13 = arith.mulf %12, %7 : vector<8x128xf32>
    %14 = arith.addf %7, %13 : vector<8x128xf32>
    %cst_7 = arith.constant 0.797884583 : f32
    %15 = vector.broadcast %cst_7 : f32 to vector<8x128xf32>
    %16 = arith.mulf %15, %14 : vector<8x128xf32>
    %17 = math.tanh %16 : vector<8x128xf32>
    %cst_8 = arith.constant 1.000000e+00 : f32
    %18 = vector.broadcast %cst_8 : f32 to vector<8x128xf32>
    %19 = arith.addf %18, %17 : vector<8x128xf32>
    %20 = arith.mulf %9, %19 : vector<8x128xf32>
    %c0_9 = arith.constant 0 : index
    %c0_10 = arith.constant 0 : index
    %c0_11 = arith.constant 0 : index
    %21 = tpu.strided_load %arg3[%c0_9, %c0_10, %c0_11] {strides = array<i32: 1, 2, 1>} : memref<1x256x128xf32, #tpu.memory_space<vmem>>, vector<1x8x128xf32>
    %22 = vector.shape_cast %21 : vector<1x8x128xf32> to vector<8x128xf32>
    %23 = arith.addf %20, %22 : vector<8x128xf32>
    %cst_12 = arith.constant 0.70721358 : f32
    %24 = vector.broadcast %cst_12 : f32 to vector<8x128xf32>
    %25 = arith.mulf %23, %24 : vector<8x128xf32>
    %c0_13 = arith.constant 0 : index
    %c1 = arith.constant 1 : index
    %c0_14 = arith.constant 0 : index
    %26 = tpu.strided_load %arg2[%c0_13, %c1, %c0_14] {strides = array<i32: 1, 2, 1>} : memref<1x256x128xf32, #tpu.memory_space<vmem>>, vector<1x8x128xf32>
    %27 = vector.shape_cast %26 : vector<1x8x128xf32> to vector<8x128xf32>
    %28 = vector.broadcast %0 : vector<1x128xf32> to vector<8x128xf32>
    %29 = arith.mulf %27, %28 : vector<8x128xf32>
    %30 = vector.broadcast %1 : vector<1x128xf32> to vector<8x128xf32>
    %31 = arith.addf %29, %30 : vector<8x128xf32>
    %cst_15 = arith.constant 5.000000e-01 : f32
    %32 = vector.broadcast %cst_15 : f32 to vector<8x128xf32>
    %33 = arith.mulf %32, %31 : vector<8x128xf32>
    %cst_16 = arith.constant 4.471500e-02 : f32
    %34 = vector.broadcast %cst_16 : f32 to vector<8x128xf32>
    %35 = arith.mulf %34, %31 : vector<8x128xf32>
    %36 = arith.mulf %35, %31 : vector<8x128xf32>
    %37 = arith.mulf %36, %31 : vector<8x128xf32>
    %38 = arith.addf %31, %37 : vector<8x128xf32>
    %cst_17 = arith.constant 0.797884583 : f32
    %39 = vector.broadcast %cst_17 : f32 to vector<8x128xf32>
    %40 = arith.mulf %39, %38 : vector<8x128xf32>
    %41 = math.tanh %40 : vector<8x128xf32>
    %cst_18 = arith.constant 1.000000e+00 : f32
    %42 = vector.broadcast %cst_18 : f32 to vector<8x128xf32>
    %43 = arith.addf %42, %41 : vector<8x128xf32>
    %44 = arith.mulf %33, %43 : vector<8x128xf32>
    %c0_19 = arith.constant 0 : index
    %c1_20 = arith.constant 1 : index
    %c0_21 = arith.constant 0 : index
    %45 = tpu.strided_load %arg3[%c0_19, %c1_20, %c0_21] {strides = array<i32: 1, 2, 1>} : memref<1x256x128xf32, #tpu.memory_space<vmem>>, vector<1x8x128xf32>
    %46 = vector.shape_cast %45 : vector<1x8x128xf32> to vector<8x128xf32>
    %47 = arith.addf %44, %46 : vector<8x128xf32>
    %cst_22 = arith.constant 0.70721358 : f32
    %48 = vector.broadcast %cst_22 : f32 to vector<8x128xf32>
    %49 = arith.mulf %47, %48 : vector<8x128xf32>
    %c0_23 = arith.constant 0 : index
    %c16 = arith.constant 16 : index
    %c0_24 = arith.constant 0 : index
    %50 = tpu.strided_load %arg2[%c0_23, %c16, %c0_24] {strides = array<i32: 1, 2, 1>} : memref<1x256x128xf32, #tpu.memory_space<vmem>>, vector<1x8x128xf32>
    %51 = vector.shape_cast %50 : vector<1x8x128xf32> to vector<8x128xf32>
    %52 = vector.broadcast %0 : vector<1x128xf32> to vector<8x128xf32>
    %53 = arith.mulf %51, %52 : vector<8x128xf32>
    %54 = vector.broadcast %1 : vector<1x128xf32> to vector<8x128xf32>
    %55 = arith.addf %53, %54 : vector<8x128xf32>
    %cst_25 = arith.constant 5.000000e-01 : f32
    %56 = vector.broadcast %cst_25 : f32 to vector<8x128xf32>
    %57 = arith.mulf %56, %55 : vector<8x128xf32>
    %cst_26 = arith.constant 4.471500e-02 : f32
    %58 = vector.broadcast %cst_26 : f32 to vector<8x128xf32>
    %59 = arith.mulf %58, %55 : vector<8x128xf32>
    %60 = arith.mulf %59, %55 : vector<8x128xf32>
    %61 = arith.mulf %60, %55 : vector<8x128xf32>
    %62 = arith.addf %55, %61 : vector<8x128xf32>
    %cst_27 = arith.constant 0.797884583 : f32
    %63 = vector.broadcast %cst_27 : f32 to vector<8x128xf32>
    %64 = arith.mulf %63, %62 : vector<8x128xf32>
    %65 = math.tanh %64 : vector<8x128xf32>
    %cst_28 = arith.constant 1.000000e+00 : f32
    %66 = vector.broadcast %cst_28 : f32 to vector<8x128xf32>
    %67 = arith.addf %66, %65 : vector<8x128xf32>
    %68 = arith.mulf %57, %67 : vector<8x128xf32>
    %c0_29 = arith.constant 0 : index
    %c16_30 = arith.constant 16 : index
    %c0_31 = arith.constant 0 : index
    %69 = tpu.strided_load %arg3[%c0_29, %c16_30, %c0_31] {strides = array<i32: 1, 2, 1>} : memref<1x256x128xf32, #tpu.memory_space<vmem>>, vector<1x8x128xf32>
    %70 = vector.shape_cast %69 : vector<1x8x128xf32> to vector<8x128xf32>
    %71 = arith.addf %68, %70 : vector<8x128xf32>
    %cst_32 = arith.constant 0.70721358 : f32
    %72 = vector.broadcast %cst_32 : f32 to vector<8x128xf32>
    %73 = arith.mulf %71, %72 : vector<8x128xf32>
    %c0_33 = arith.constant 0 : index
    %c17 = arith.constant 17 : index
    %c0_34 = arith.constant 0 : index
    %74 = tpu.strided_load %arg2[%c0_33, %c17, %c0_34] {strides = array<i32: 1, 2, 1>} : memref<1x256x128xf32, #tpu.memory_space<vmem>>, vector<1x8x128xf32>
    %75 = vector.shape_cast %74 : vector<1x8x128xf32> to vector<8x128xf32>
    %76 = vector.broadcast %0 : vector<1x128xf32> to vector<8x128xf32>
    %77 = arith.mulf %75, %76 : vector<8x128xf32>
    %78 = vector.broadcast %1 : vector<1x128xf32> to vector<8x128xf32>
    %79 = arith.addf %77, %78 : vector<8x128xf32>
    %cst_35 = arith.constant 5.000000e-01 : f32
    %80 = vector.broadcast %cst_35 : f32 to vector<8x128xf32>
    %81 = arith.mulf %80, %79 : vector<8x128xf32>
    %cst_36 = arith.constant 4.471500e-02 : f32
    %82 = vector.broadcast %cst_36 : f32 to vector<8x128xf32>
    %83 = arith.mulf %82, %79 : vector<8x128xf32>
    %84 = arith.mulf %83, %79 : vector<8x128xf32>
    %85 = arith.mulf %84, %79 : vector<8x128xf32>
    %86 = arith.addf %79, %85 : vector<8x128xf32>
    %cst_37 = arith.constant 0.797884583 : f32
    %87 = vector.broadcast %cst_37 : f32 to vector<8x128xf32>
    %88 = arith.mulf %87, %86 : vector<8x128xf32>
    %89 = math.tanh %88 : vector<8x128xf32>
    %cst_38 = arith.constant 1.000000e+00 : f32
    %90 = vector.broadcast %cst_38 : f32 to vector<8x128xf32>
    %91 = arith.addf %90, %89 : vector<8x128xf32>
    %92 = arith.mulf %81, %91 : vector<8x128xf32>
    %c0_39 = arith.constant 0 : index
    %c17_40 = arith.constant 17 : index
    %c0_41 = arith.constant 0 : index
    %93 = tpu.strided_load %arg3[%c0_39, %c17_40, %c0_41] {strides = array<i32: 1, 2, 1>} : memref<1x256x128xf32, #tpu.memory_space<vmem>>, vector<1x8x128xf32>
    %94 = vector.shape_cast %93 : vector<1x8x128xf32> to vector<8x128xf32>
    %95 = arith.addf %92, %94 : vector<8x128xf32>
    %cst_42 = arith.constant 0.70721358 : f32
    %96 = vector.broadcast %cst_42 : f32 to vector<8x128xf32>
    %97 = arith.mulf %95, %96 : vector<8x128xf32>
    %98 = arith.maximumf %25, %49 : vector<8x128xf32>
    %99 = arith.maximumf %73, %97 : vector<8x128xf32>
    %100 = arith.maximumf %98, %99 : vector<8x128xf32>
    %c0_43 = arith.constant 0 : index
    %c0_44 = arith.constant 0 : index
    %c0_45 = arith.constant 0 : index
    %101 = vector.load %arg6[%c0_43, %c0_44, %c0_45] : memref<1x64x128xf32, #tpu.memory_space<vmem>>, vector<1x8x128xf32>
    %102 = vector.shape_cast %101 : vector<1x8x128xf32> to vector<8x128xf32>
    %103 = vector.shape_cast %100 : vector<8x128xf32> to vector<1x8x128xf32>
    tpu.vector_store %arg6[%c0_43, %c0_44, %c0_45], %103 {strides = array<i32>} : memref<1x64x128xf32, #tpu.memory_space<vmem>>, vector<1x8x128xf32>,
    %c0_46 = arith.constant 0 : index
    %c32 = arith.constant 32 : index
    %c0_47 = arith.constant 0 : index
    %104 = tpu.strided_load %arg2[%c0_46, %c32, %c0_47] {strides = array<i32: 1, 2, 1>} : memref<1x256x128xf32, #tpu.memory_space<vmem>>, vector<1x8x128xf32>
    %105 = vector.shape_cast %104 : vector<1x8x128xf32> to vector<8x128xf32>
    %106 = vector.broadcast %0 : vector<1x128xf32> to vector<8x128xf32>
    %107 = arith.mulf %105, %106 : vector<8x128xf32>
    %108 = vector.broadcast %1 : vector<1x128xf32> to vector<8x128xf32>
    %109 = arith.addf %107, %108 : vector<8x128xf32>
    %cst_48 = arith.constant 5.000000e-01 : f32
    %110 = vector.broadcast %cst_48 : f32 to vector<8x128xf32>
    %111 = arith.mulf %110, %109 : vector<8x128xf32>
    %cst_49 = arith.constant 4.471500e-02 : f32
    %112 = vector.broadcast %cst_49 : f32 to vector<8x128xf32>
    %113 = arith.mulf %112, %109 : vector<8x128xf32>
    %114 = arith.mulf %113, %109 : vector<8x128xf32>
    %115 = arith.mulf %114, %109 : vector<8x128xf32>
    %116 = arith.addf %109, %115 : vector<8x128xf32>
    %cst_50 = arith.constant 0.797884583 : f32
    %117 = vector.broadcast %cst_50 : f32 to vector<8x128xf32>
    %118 = arith.mulf %117, %116 : vector<8x128xf32>
    %119 = math.tanh %118 : vector<8x128xf32>
    %cst_51 = arith.constant 1.000000e+00 : f32
    %120 = vector.broadcast %cst_51 : f32 to vector<8x128xf32>
    %121 = arith.addf %120, %119 : vector<8x128xf32>
    %122 = arith.mulf %111, %121 : vector<8x128xf32>
    %c0_52 = arith.constant 0 : index
    %c32_53 = arith.constant 32 : index
    %c0_54 = arith.constant 0 : index
    %123 = tpu.strided_load %arg3[%c0_52, %c32_53, %c0_54] {strides = array<i32: 1, 2, 1>} : memref<1x256x128xf32, #tpu.memory_space<vmem>>, vector<1x8x128xf32>
    %124 = vector.shape_cast %123 : vector<1x8x128xf32> to vector<8x128xf32>
    %125 = arith.addf %122, %124 : vector<8x128xf32>
    %cst_55 = arith.constant 0.70721358 : f32
    %126 = vector.broadcast %cst_55 : f32 to vector<8x128xf32>
    %127 = arith.mulf %125, %126 : vector<8x128xf32>
    %c0_56 = arith.constant 0 : index
    %c33 = arith.constant 33 : index
    %c0_57 = arith.constant 0 : index
    %128 = tpu.strided_load %arg2[%c0_56, %c33, %c0_57] {strides = array<i32: 1, 2, 1>} : memref<1x256x128xf32, #tpu.memory_space<vmem>>, vector<1x8x128xf32>
    %129 = vector.shape_cast %128 : vector<1x8x128xf32> to vector<8x128xf32>
    %130 = vector.broadcast %0 : vector<1x128xf32> to vector<8x128xf32>
    %131 = arith.mulf %129, %130 : vector<8x128xf32>
    %132 = vector.broadcast %1 : vector<1x128xf32> to vector<8x128xf32>
    %133 = arith.addf %131, %132 : vector<8x128xf32>
    %cst_58 = arith.constant 5.000000e-01 : f32
    %134 = vector.broadcast %cst_58 : f32 to vector<8x128xf32>
    %135 = arith.mulf %134, %133 : vector<8x128xf32>
    %cst_59 = arith.constant 4.471500e-02 : f32
    %136 = vector.broadcast %cst_59 : f32 to vector<8x128xf32>
    %137 = arith.mulf %136, %133 : vector<8x128xf32>
    %138 = arith.mulf %137, %133 : vector<8x128xf32>
    %139 = arith.mulf %138, %133 : vector<8x128xf32>
    %140 = arith.addf %133, %139 : vector<8x128xf32>
    %cst_60 = arith.constant 0.797884583 : f32
    %141 = vector.broadcast %cst_60 : f32 to vector<8x128xf32>
    %142 = arith.mulf %141, %140 : vector<8x128xf32>
    %143 = math.tanh %142 : vector<8x128xf32>
    %cst_61 = arith.constant 1.000000e+00 : f32
    %144 = vector.broadcast %cst_61 : f32 to vector<8x128xf32>
    %145 = arith.addf %144, %143 : vector<8x128xf32>
    %146 = arith.mulf %135, %145 : vector<8x128xf32>
    %c0_62 = arith.constant 0 : index
    %c33_63 = arith.constant 33 : index
    %c0_64 = arith.constant 0 : index
    %147 = tpu.strided_load %arg3[%c0_62, %c33_63, %c0_64] {strides = array<i32: 1, 2, 1>} : memref<1x256x128xf32, #tpu.memory_space<vmem>>, vector<1x8x128xf32>
    %148 = vector.shape_cast %147 : vector<1x8x128xf32> to vector<8x128xf32>
    %149 = arith.addf %146, %148 : vector<8x128xf32>
    %cst_65 = arith.constant 0.70721358 : f32
    %150 = vector.broadcast %cst_65 : f32 to vector<8x128xf32>
    %151 = arith.mulf %149, %150 : vector<8x128xf32>
    %c0_66 = arith.constant 0 : index
    %c48 = arith.constant 48 : index
    %c0_67 = arith.constant 0 : index
    %152 = tpu.strided_load %arg2[%c0_66, %c48, %c0_67] {strides = array<i32: 1, 2, 1>} : memref<1x256x128xf32, #tpu.memory_space<vmem>>, vector<1x8x128xf32>
    %153 = vector.shape_cast %152 : vector<1x8x128xf32> to vector<8x128xf32>
    %154 = vector.broadcast %0 : vector<1x128xf32> to vector<8x128xf32>
    %155 = arith.mulf %153, %154 : vector<8x128xf32>
    %156 = vector.broadcast %1 : vector<1x128xf32> to vector<8x128xf32>
    %157 = arith.addf %155, %156 : vector<8x128xf32>
    %cst_68 = arith.constant 5.000000e-01 : f32
    %158 = vector.broadcast %cst_68 : f32 to vector<8x128xf32>
    %159 = arith.mulf %158, %157 : vector<8x128xf32>
    %cst_69 = arith.constant 4.471500e-02 : f32
    %160 = vector.broadcast %cst_69 : f32 to vector<8x128xf32>
    %161 = arith.mulf %160, %157 : vector<8x128xf32>
    %162 = arith.mulf %161, %157 : vector<8x128xf32>
    %163 = arith.mulf %162, %157 : vector<8x128xf32>
    %164 = arith.addf %157, %163 : vector<8x128xf32>
    %cst_70 = arith.constant 0.797884583 : f32
    %165 = vector.broadcast %cst_70 : f32 to vector<8x128xf32>
    %166 = arith.mulf %165, %164 : vector<8x128xf32>
    %167 = math.tanh %166 : vector<8x128xf32>
    %cst_71 = arith.constant 1.000000e+00 : f32
    %168 = vector.broadcast %cst_71 : f32 to vector<8x128xf32>
    %169 = arith.addf %168, %167 : vector<8x128xf32>
    %170 = arith.mulf %159, %169 : vector<8x128xf32>
    %c0_72 = arith.constant 0 : index
    %c48_73 = arith.constant 48 : index
    %c0_74 = arith.constant 0 : index
    %171 = tpu.strided_load %arg3[%c0_72, %c48_73, %c0_74] {strides = array<i32: 1, 2, 1>} : memref<1x256x128xf32, #tpu.memory_space<vmem>>, vector<1x8x128xf32>
    %172 = vector.shape_cast %171 : vector<1x8x128xf32> to vector<8x128xf32>
    %173 = arith.addf %170, %172 : vector<8x128xf32>
    %cst_75 = arith.constant 0.70721358 : f32
    %174 = vector.broadcast %cst_75 : f32 to vector<8x128xf32>
    %175 = arith.mulf %173, %174 : vector<8x128xf32>
    %c0_76 = arith.constant 0 : index
    %c49 = arith.constant 49 : index
    %c0_77 = arith.constant 0 : index
    %176 = tpu.strided_load %arg2[%c0_76, %c49, %c0_77] {strides = array<i32: 1, 2, 1>} : memref<1x256x128xf32, #tpu.memory_space<vmem>>, vector<1x8x128xf32>
    %177 = vector.shape_cast %176 : vector<1x8x128xf32> to vector<8x128xf32>
    %178 = vector.broadcast %0 : vector<1x128xf32> to vector<8x128xf32>
    %179 = arith.mulf %177, %178 : vector<8x128xf32>
    %180 = vector.broadcast %1 : vector<1x128xf32> to vector<8x128xf32>
    %181 = arith.addf %179, %180 : vector<8x128xf32>
    %cst_78 = arith.constant 5.000000e-01 : f32
    %182 = vector.broadcast %cst_78 : f32 to vector<8x128xf32>
    %183 = arith.mulf %182, %181 : vector<8x128xf32>
    %cst_79 = arith.constant 4.471500e-02 : f32
    %184 = vector.broadcast %cst_79 : f32 to vector<8x128xf32>
    %185 = arith.mulf %184, %181 : vector<8x128xf32>
    %186 = arith.mulf %185, %181 : vector<8x128xf32>
    %187 = arith.mulf %186, %181 : vector<8x128xf32>
    %188 = arith.addf %181, %187 : vector<8x128xf32>
    %cst_80 = arith.constant 0.797884583 : f32
    %189 = vector.broadcast %cst_80 : f32 to vector<8x128xf32>
    %190 = arith.mulf %189, %188 : vector<8x128xf32>
    %191 = math.tanh %190 : vector<8x128xf32>
    %cst_81 = arith.constant 1.000000e+00 : f32
    %192 = vector.broadcast %cst_81 : f32 to vector<8x128xf32>
    %193 = arith.addf %192, %191 : vector<8x128xf32>
    %194 = arith.mulf %183, %193 : vector<8x128xf32>
    %c0_82 = arith.constant 0 : index
    %c49_83 = arith.constant 49 : index
    %c0_84 = arith.constant 0 : index
    %195 = tpu.strided_load %arg3[%c0_82, %c49_83, %c0_84] {strides = array<i32: 1, 2, 1>} : memref<1x256x128xf32, #tpu.memory_space<vmem>>, vector<1x8x128xf32>
    %196 = vector.shape_cast %195 : vector<1x8x128xf32> to vector<8x128xf32>
    %197 = arith.addf %194, %196 : vector<8x128xf32>
    %cst_85 = arith.constant 0.70721358 : f32
    %198 = vector.broadcast %cst_85 : f32 to vector<8x128xf32>
    %199 = arith.mulf %197, %198 : vector<8x128xf32>
    %200 = arith.maximumf %127, %151 : vector<8x128xf32>
    %201 = arith.maximumf %175, %199 : vector<8x128xf32>
    %202 = arith.maximumf %200, %201 : vector<8x128xf32>
    %c0_86 = arith.constant 0 : index
    %c8 = arith.constant 8 : index
    %c0_87 = arith.constant 0 : index
    %203 = vector.load %arg6[%c0_86, %c8, %c0_87] : memref<1x64x128xf32, #tpu.memory_space<vmem>>, vector<1x8x128xf32>
    %204 = vector.shape_cast %203 : vector<1x8x128xf32> to vector<8x128xf32>
    %205 = vector.shape_cast %202 : vector<8x128xf32> to vector<1x8x128xf32>
    tpu.vector_store %arg6[%c0_86, %c8, %c0_87], %205 {strides = array<i32>} : memref<1x64x128xf32, #tpu.memory_space<vmem>>, vector<1x8x128xf32>,
    %c0_88 = arith.constant 0 : index
    %c64 = arith.constant 64 : index
    %c0_89 = arith.constant 0 : index
    %206 = tpu.strided_load %arg2[%c0_88, %c64, %c0_89] {strides = array<i32: 1, 2, 1>} : memref<1x256x128xf32, #tpu.memory_space<vmem>>, vector<1x8x128xf32>
    %207 = vector.shape_cast %206 : vector<1x8x128xf32> to vector<8x128xf32>
    %208 = vector.broadcast %0 : vector<1x128xf32> to vector<8x128xf32>
    %209 = arith.mulf %207, %208 : vector<8x128xf32>
    %210 = vector.broadcast %1 : vector<1x128xf32> to vector<8x128xf32>
    %211 = arith.addf %209, %210 : vector<8x128xf32>
    %cst_90 = arith.constant 5.000000e-01 : f32
    %212 = vector.broadcast %cst_90 : f32 to vector<8x128xf32>
    %213 = arith.mulf %212, %211 : vector<8x128xf32>
    %cst_91 = arith.constant 4.471500e-02 : f32
    %214 = vector.broadcast %cst_91 : f32 to vector<8x128xf32>
    %215 = arith.mulf %214, %211 : vector<8x128xf32>
    %216 = arith.mulf %215, %211 : vector<8x128xf32>
    %217 = arith.mulf %216, %211 : vector<8x128xf32>
    %218 = arith.addf %211, %217 : vector<8x128xf32>
    %cst_92 = arith.constant 0.797884583 : f32
    %219 = vector.broadcast %cst_92 : f32 to vector<8x128xf32>
    %220 = arith.mulf %219, %218 : vector<8x128xf32>
    %221 = math.tanh %220 : vector<8x128xf32>
    %cst_93 = arith.constant 1.000000e+00 : f32
    %222 = vector.broadcast %cst_93 : f32 to vector<8x128xf32>
    %223 = arith.addf %222, %221 : vector<8x128xf32>
    %224 = arith.mulf %213, %223 : vector<8x128xf32>
    %c0_94 = arith.constant 0 : index
    %c64_95 = arith.constant 64 : index
    %c0_96 = arith.constant 0 : index
    %225 = tpu.strided_load %arg3[%c0_94, %c64_95, %c0_96] {strides = array<i32: 1, 2, 1>} : memref<1x256x128xf32, #tpu.memory_space<vmem>>, vector<1x8x128xf32>
    %226 = vector.shape_cast %225 : vector<1x8x128xf32> to vector<8x128xf32>
    %227 = arith.addf %224, %226 : vector<8x128xf32>
    %cst_97 = arith.constant 0.70721358 : f32
    %228 = vector.broadcast %cst_97 : f32 to vector<8x128xf32>
    %229 = arith.mulf %227, %228 : vector<8x128xf32>
    %c0_98 = arith.constant 0 : index
    %c65 = arith.constant 65 : index
    %c0_99 = arith.constant 0 : index
    %230 = tpu.strided_load %arg2[%c0_98, %c65, %c0_99] {strides = array<i32: 1, 2, 1>} : memref<1x256x128xf32, #tpu.memory_space<vmem>>, vector<1x8x128xf32>
    %231 = vector.shape_cast %230 : vector<1x8x128xf32> to vector<8x128xf32>
    %232 = vector.broadcast %0 : vector<1x128xf32> to vector<8x128xf32>
    %233 = arith.mulf %231, %232 : vector<8x128xf32>
    %234 = vector.broadcast %1 : vector<1x128xf32> to vector<8x128xf32>
    %235 = arith.addf %233, %234 : vector<8x128xf32>
    %cst_100 = arith.constant 5.000000e-01 : f32
    %236 = vector.broadcast %cst_100 : f32 to vector<8x128xf32>
    %237 = arith.mulf %236, %235 : vector<8x128xf32>
    %cst_101 = arith.constant 4.471500e-02 : f32
    %238 = vector.broadcast %cst_101 : f32 to vector<8x128xf32>
    %239 = arith.mulf %238, %235 : vector<8x128xf32>
    %240 = arith.mulf %239, %235 : vector<8x128xf32>
    %241 = arith.mulf %240, %235 : vector<8x128xf32>
    %242 = arith.addf %235, %241 : vector<8x128xf32>
    %cst_102 = arith.constant 0.797884583 : f32
    %243 = vector.broadcast %cst_102 : f32 to vector<8x128xf32>
    %244 = arith.mulf %243, %242 : vector<8x128xf32>
    %245 = math.tanh %244 : vector<8x128xf32>
    %cst_103 = arith.constant 1.000000e+00 : f32
    %246 = vector.broadcast %cst_103 : f32 to vector<8x128xf32>
    %247 = arith.addf %246, %245 : vector<8x128xf32>
    %248 = arith.mulf %237, %247 : vector<8x128xf32>
    %c0_104 = arith.constant 0 : index
    %c65_105 = arith.constant 65 : index
    %c0_106 = arith.constant 0 : index
    %249 = tpu.strided_load %arg3[%c0_104, %c65_105, %c0_106] {strides = array<i32: 1, 2, 1>} : memref<1x256x128xf32, #tpu.memory_space<vmem>>, vector<1x8x128xf32>
    %250 = vector.shape_cast %249 : vector<1x8x128xf32> to vector<8x128xf32>
    %251 = arith.addf %248, %250 : vector<8x128xf32>
    %cst_107 = arith.constant 0.70721358 : f32
    %252 = vector.broadcast %cst_107 : f32 to vector<8x128xf32>
    %253 = arith.mulf %251, %252 : vector<8x128xf32>
    %c0_108 = arith.constant 0 : index
    %c80 = arith.constant 80 : index
    %c0_109 = arith.constant 0 : index
    %254 = tpu.strided_load %arg2[%c0_108, %c80, %c0_109] {strides = array<i32: 1, 2, 1>} : memref<1x256x128xf32, #tpu.memory_space<vmem>>, vector<1x8x128xf32>
    %255 = vector.shape_cast %254 : vector<1x8x128xf32> to vector<8x128xf32>
    %256 = vector.broadcast %0 : vector<1x128xf32> to vector<8x128xf32>
    %257 = arith.mulf %255, %256 : vector<8x128xf32>
    %258 = vector.broadcast %1 : vector<1x128xf32> to vector<8x128xf32>
    %259 = arith.addf %257, %258 : vector<8x128xf32>
    %cst_110 = arith.constant 5.000000e-01 : f32
    %260 = vector.broadcast %cst_110 : f32 to vector<8x128xf32>
    %261 = arith.mulf %260, %259 : vector<8x128xf32>
    %cst_111 = arith.constant 4.471500e-02 : f32
    %262 = vector.broadcast %cst_111 : f32 to vector<8x128xf32>
    %263 = arith.mulf %262, %259 : vector<8x128xf32>
    %264 = arith.mulf %263, %259 : vector<8x128xf32>
    %265 = arith.mulf %264, %259 : vector<8x128xf32>
    %266 = arith.addf %259, %265 : vector<8x128xf32>
    %cst_112 = arith.constant 0.797884583 : f32
    %267 = vector.broadcast %cst_112 : f32 to vector<8x128xf32>
    %268 = arith.mulf %267, %266 : vector<8x128xf32>
    %269 = math.tanh %268 : vector<8x128xf32>
    %cst_113 = arith.constant 1.000000e+00 : f32
    %270 = vector.broadcast %cst_113 : f32 to vector<8x128xf32>
    %271 = arith.addf %270, %269 : vector<8x128xf32>
    %272 = arith.mulf %261, %271 : vector<8x128xf32>
    %c0_114 = arith.constant 0 : index
    %c80_115 = arith.constant 80 : index
    %c0_116 = arith.constant 0 : index
    %273 = tpu.strided_load %arg3[%c0_114, %c80_115, %c0_116] {strides = array<i32: 1, 2, 1>} : memref<1x256x128xf32, #tpu.memory_space<vmem>>, vector<1x8x128xf32>
    %274 = vector.shape_cast %273 : vector<1x8x128xf32> to vector<8x128xf32>
    %275 = arith.addf %272, %274 : vector<8x128xf32>
    %cst_117 = arith.constant 0.70721358 : f32
    %276 = vector.broadcast %cst_117 : f32 to vector<8x128xf32>
    %277 = arith.mulf %275, %276 : vector<8x128xf32>
    %c0_118 = arith.constant 0 : index
    %c81 = arith.constant 81 : index
    %c0_119 = arith.constant 0 : index
    %278 = tpu.strided_load %arg2[%c0_118, %c81, %c0_119] {strides = array<i32: 1, 2, 1>} : memref<1x256x128xf32, #tpu.memory_space<vmem>>, vector<1x8x128xf32>
    %279 = vector.shape_cast %278 : vector<1x8x128xf32> to vector<8x128xf32>
    %280 = vector.broadcast %0 : vector<1x128xf32> to vector<8x128xf32>
    %281 = arith.mulf %279, %280 : vector<8x128xf32>
    %282 = vector.broadcast %1 : vector<1x128xf32> to vector<8x128xf32>
    %283 = arith.addf %281, %282 : vector<8x128xf32>
    %cst_120 = arith.constant 5.000000e-01 : f32
    %284 = vector.broadcast %cst_120 : f32 to vector<8x128xf32>
    %285 = arith.mulf %284, %283 : vector<8x128xf32>
    %cst_121 = arith.constant 4.471500e-02 : f32
    %286 = vector.broadcast %cst_121 : f32 to vector<8x128xf32>
    %287 = arith.mulf %286, %283 : vector<8x128xf32>
    %288 = arith.mulf %287, %283 : vector<8x128xf32>
    %289 = arith.mulf %288, %283 : vector<8x128xf32>
    %290 = arith.addf %283, %289 : vector<8x128xf32>
    %cst_122 = arith.constant 0.797884583 : f32
    %291 = vector.broadcast %cst_122 : f32 to vector<8x128xf32>
    %292 = arith.mulf %291, %290 : vector<8x128xf32>
    %293 = math.tanh %292 : vector<8x128xf32>
    %cst_123 = arith.constant 1.000000e+00 : f32
    %294 = vector.broadcast %cst_123 : f32 to vector<8x128xf32>
    %295 = arith.addf %294, %293 : vector<8x128xf32>
    %296 = arith.mulf %285, %295 : vector<8x128xf32>
    %c0_124 = arith.constant 0 : index
    %c81_125 = arith.constant 81 : index
    %c0_126 = arith.constant 0 : index
    %297 = tpu.strided_load %arg3[%c0_124, %c81_125, %c0_126] {strides = array<i32: 1, 2, 1>} : memref<1x256x128xf32, #tpu.memory_space<vmem>>, vector<1x8x128xf32>
    %298 = vector.shape_cast %297 : vector<1x8x128xf32> to vector<8x128xf32>
    %299 = arith.addf %296, %298 : vector<8x128xf32>
    %cst_127 = arith.constant 0.70721358 : f32
    %300 = vector.broadcast %cst_127 : f32 to vector<8x128xf32>
    %301 = arith.mulf %299, %300 : vector<8x128xf32>
    %302 = arith.maximumf %229, %253 : vector<8x128xf32>
    %303 = arith.maximumf %277, %301 : vector<8x128xf32>
    %304 = arith.maximumf %302, %303 : vector<8x128xf32>
    %c0_128 = arith.constant 0 : index
    %c16_129 = arith.constant 16 : index
    %c0_130 = arith.constant 0 : index
    %305 = vector.load %arg6[%c0_128, %c16_129, %c0_130] : memref<1x64x128xf32, #tpu.memory_space<vmem>>, vector<1x8x128xf32>
    %306 = vector.shape_cast %305 : vector<1x8x128xf32> to vector<8x128xf32>
    %307 = vector.shape_cast %304 : vector<8x128xf32> to vector<1x8x128xf32>
    tpu.vector_store %arg6[%c0_128, %c16_129, %c0_130], %307 {strides = array<i32>} : memref<1x64x128xf32, #tpu.memory_space<vmem>>, vector<1x8x128xf32>,
    %c0_131 = arith.constant 0 : index
    %c96 = arith.constant 96 : index
    %c0_132 = arith.constant 0 : index
    %308 = tpu.strided_load %arg2[%c0_131, %c96, %c0_132] {strides = array<i32: 1, 2, 1>} : memref<1x256x128xf32, #tpu.memory_space<vmem>>, vector<1x8x128xf32>
    %309 = vector.shape_cast %308 : vector<1x8x128xf32> to vector<8x128xf32>
    %310 = vector.broadcast %0 : vector<1x128xf32> to vector<8x128xf32>
    %311 = arith.mulf %309, %310 : vector<8x128xf32>
    %312 = vector.broadcast %1 : vector<1x128xf32> to vector<8x128xf32>
    %313 = arith.addf %311, %312 : vector<8x128xf32>
    %cst_133 = arith.constant 5.000000e-01 : f32
    %314 = vector.broadcast %cst_133 : f32 to vector<8x128xf32>
    %315 = arith.mulf %314, %313 : vector<8x128xf32>
    %cst_134 = arith.constant 4.471500e-02 : f32
    %316 = vector.broadcast %cst_134 : f32 to vector<8x128xf32>
    %317 = arith.mulf %316, %313 : vector<8x128xf32>
    %318 = arith.mulf %317, %313 : vector<8x128xf32>
    %319 = arith.mulf %318, %313 : vector<8x128xf32>
    %320 = arith.addf %313, %319 : vector<8x128xf32>
    %cst_135 = arith.constant 0.797884583 : f32
    %321 = vector.broadcast %cst_135 : f32 to vector<8x128xf32>
    %322 = arith.mulf %321, %320 : vector<8x128xf32>
    %323 = math.tanh %322 : vector<8x128xf32>
    %cst_136 = arith.constant 1.000000e+00 : f32
    %324 = vector.broadcast %cst_136 : f32 to vector<8x128xf32>
    %325 = arith.addf %324, %323 : vector<8x128xf32>
    %326 = arith.mulf %315, %325 : vector<8x128xf32>
    %c0_137 = arith.constant 0 : index
    %c96_138 = arith.constant 96 : index
    %c0_139 = arith.constant 0 : index
    %327 = tpu.strided_load %arg3[%c0_137, %c96_138, %c0_139] {strides = array<i32: 1, 2, 1>} : memref<1x256x128xf32, #tpu.memory_space<vmem>>, vector<1x8x128xf32>
    %328 = vector.shape_cast %327 : vector<1x8x128xf32> to vector<8x128xf32>
    %329 = arith.addf %326, %328 : vector<8x128xf32>
    %cst_140 = arith.constant 0.70721358 : f32
    %330 = vector.broadcast %cst_140 : f32 to vector<8x128xf32>
    %331 = arith.mulf %329, %330 : vector<8x128xf32>
    %c0_141 = arith.constant 0 : index
    %c97 = arith.constant 97 : index
    %c0_142 = arith.constant 0 : index
    %332 = tpu.strided_load %arg2[%c0_141, %c97, %c0_142] {strides = array<i32: 1, 2, 1>} : memref<1x256x128xf32, #tpu.memory_space<vmem>>, vector<1x8x128xf32>
    %333 = vector.shape_cast %332 : vector<1x8x128xf32> to vector<8x128xf32>
    %334 = vector.broadcast %0 : vector<1x128xf32> to vector<8x128xf32>
    %335 = arith.mulf %333, %334 : vector<8x128xf32>
    %336 = vector.broadcast %1 : vector<1x128xf32> to vector<8x128xf32>
    %337 = arith.addf %335, %336 : vector<8x128xf32>
    %cst_143 = arith.constant 5.000000e-01 : f32
    %338 = vector.broadcast %cst_143 : f32 to vector<8x128xf32>
    %339 = arith.mulf %338, %337 : vector<8x128xf32>
    %cst_144 = arith.constant 4.471500e-02 : f32
    %340 = vector.broadcast %cst_144 : f32 to vector<8x128xf32>
    %341 = arith.mulf %340, %337 : vector<8x128xf32>
    %342 = arith.mulf %341, %337 : vector<8x128xf32>
    %343 = arith.mulf %342, %337 : vector<8x128xf32>
    %344 = arith.addf %337, %343 : vector<8x128xf32>
    %cst_145 = arith.constant 0.797884583 : f32
    %345 = vector.broadcast %cst_145 : f32 to vector<8x128xf32>
    %346 = arith.mulf %345, %344 : vector<8x128xf32>
    %347 = math.tanh %346 : vector<8x128xf32>
    %cst_146 = arith.constant 1.000000e+00 : f32
    %348 = vector.broadcast %cst_146 : f32 to vector<8x128xf32>
    %349 = arith.addf %348, %347 : vector<8x128xf32>
    %350 = arith.mulf %339, %349 : vector<8x128xf32>
    %c0_147 = arith.constant 0 : index
    %c97_148 = arith.constant 97 : index
    %c0_149 = arith.constant 0 : index
    %351 = tpu.strided_load %arg3[%c0_147, %c97_148, %c0_149] {strides = array<i32: 1, 2, 1>} : memref<1x256x128xf32, #tpu.memory_space<vmem>>, vector<1x8x128xf32>
    %352 = vector.shape_cast %351 : vector<1x8x128xf32> to vector<8x128xf32>
    %353 = arith.addf %350, %352 : vector<8x128xf32>
    %cst_150 = arith.constant 0.70721358 : f32
    %354 = vector.broadcast %cst_150 : f32 to vector<8x128xf32>
    %355 = arith.mulf %353, %354 : vector<8x128xf32>
    %c0_151 = arith.constant 0 : index
    %c112 = arith.constant 112 : index
    %c0_152 = arith.constant 0 : index
    %356 = tpu.strided_load %arg2[%c0_151, %c112, %c0_152] {strides = array<i32: 1, 2, 1>} : memref<1x256x128xf32, #tpu.memory_space<vmem>>, vector<1x8x128xf32>
    %357 = vector.shape_cast %356 : vector<1x8x128xf32> to vector<8x128xf32>
    %358 = vector.broadcast %0 : vector<1x128xf32> to vector<8x128xf32>
    %359 = arith.mulf %357, %358 : vector<8x128xf32>
    %360 = vector.broadcast %1 : vector<1x128xf32> to vector<8x128xf32>
    %361 = arith.addf %359, %360 : vector<8x128xf32>
    %cst_153 = arith.constant 5.000000e-01 : f32
    %362 = vector.broadcast %cst_153 : f32 to vector<8x128xf32>
    %363 = arith.mulf %362, %361 : vector<8x128xf32>
    %cst_154 = arith.constant 4.471500e-02 : f32
    %364 = vector.broadcast %cst_154 : f32 to vector<8x128xf32>
    %365 = arith.mulf %364, %361 : vector<8x128xf32>
    %366 = arith.mulf %365, %361 : vector<8x128xf32>
    %367 = arith.mulf %366, %361 : vector<8x128xf32>
    %368 = arith.addf %361, %367 : vector<8x128xf32>
    %cst_155 = arith.constant 0.797884583 : f32
    %369 = vector.broadcast %cst_155 : f32 to vector<8x128xf32>
    %370 = arith.mulf %369, %368 : vector<8x128xf32>
    %371 = math.tanh %370 : vector<8x128xf32>
    %cst_156 = arith.constant 1.000000e+00 : f32
    %372 = vector.broadcast %cst_156 : f32 to vector<8x128xf32>
    %373 = arith.addf %372, %371 : vector<8x128xf32>
    %374 = arith.mulf %363, %373 : vector<8x128xf32>
    %c0_157 = arith.constant 0 : index
    %c112_158 = arith.constant 112 : index
    %c0_159 = arith.constant 0 : index
    %375 = tpu.strided_load %arg3[%c0_157, %c112_158, %c0_159] {strides = array<i32: 1, 2, 1>} : memref<1x256x128xf32, #tpu.memory_space<vmem>>, vector<1x8x128xf32>
    %376 = vector.shape_cast %375 : vector<1x8x128xf32> to vector<8x128xf32>
    %377 = arith.addf %374, %376 : vector<8x128xf32>
    %cst_160 = arith.constant 0.70721358 : f32
    %378 = vector.broadcast %cst_160 : f32 to vector<8x128xf32>
    %379 = arith.mulf %377, %378 : vector<8x128xf32>
    %c0_161 = arith.constant 0 : index
    %c113 = arith.constant 113 : index
    %c0_162 = arith.constant 0 : index
    %380 = tpu.strided_load %arg2[%c0_161, %c113, %c0_162] {strides = array<i32: 1, 2, 1>} : memref<1x256x128xf32, #tpu.memory_space<vmem>>, vector<1x8x128xf32>
    %381 = vector.shape_cast %380 : vector<1x8x128xf32> to vector<8x128xf32>
    %382 = vector.broadcast %0 : vector<1x128xf32> to vector<8x128xf32>
    %383 = arith.mulf %381, %382 : vector<8x128xf32>
    %384 = vector.broadcast %1 : vector<1x128xf32> to vector<8x128xf32>
    %385 = arith.addf %383, %384 : vector<8x128xf32>
    %cst_163 = arith.constant 5.000000e-01 : f32
    %386 = vector.broadcast %cst_163 : f32 to vector<8x128xf32>
    %387 = arith.mulf %386, %385 : vector<8x128xf32>
    %cst_164 = arith.constant 4.471500e-02 : f32
    %388 = vector.broadcast %cst_164 : f32 to vector<8x128xf32>
    %389 = arith.mulf %388, %385 : vector<8x128xf32>
    %390 = arith.mulf %389, %385 : vector<8x128xf32>
    %391 = arith.mulf %390, %385 : vector<8x128xf32>
    %392 = arith.addf %385, %391 : vector<8x128xf32>
    %cst_165 = arith.constant 0.797884583 : f32
    %393 = vector.broadcast %cst_165 : f32 to vector<8x128xf32>
    %394 = arith.mulf %393, %392 : vector<8x128xf32>
    %395 = math.tanh %394 : vector<8x128xf32>
    %cst_166 = arith.constant 1.000000e+00 : f32
    %396 = vector.broadcast %cst_166 : f32 to vector<8x128xf32>
    %397 = arith.addf %396, %395 : vector<8x128xf32>
    %398 = arith.mulf %387, %397 : vector<8x128xf32>
    %c0_167 = arith.constant 0 : index
    %c113_168 = arith.constant 113 : index
    %c0_169 = arith.constant 0 : index
    %399 = tpu.strided_load %arg3[%c0_167, %c113_168, %c0_169] {strides = array<i32: 1, 2, 1>} : memref<1x256x128xf32, #tpu.memory_space<vmem>>, vector<1x8x128xf32>
    %400 = vector.shape_cast %399 : vector<1x8x128xf32> to vector<8x128xf32>
    %401 = arith.addf %398, %400 : vector<8x128xf32>
    %cst_170 = arith.constant 0.70721358 : f32
    %402 = vector.broadcast %cst_170 : f32 to vector<8x128xf32>
    %403 = arith.mulf %401, %402 : vector<8x128xf32>
    %404 = arith.maximumf %331, %355 : vector<8x128xf32>
    %405 = arith.maximumf %379, %403 : vector<8x128xf32>
    %406 = arith.maximumf %404, %405 : vector<8x128xf32>
    %c0_171 = arith.constant 0 : index
    %c24 = arith.constant 24 : index
    %c0_172 = arith.constant 0 : index
    %407 = vector.load %arg6[%c0_171, %c24, %c0_172] : memref<1x64x128xf32, #tpu.memory_space<vmem>>, vector<1x8x128xf32>
    %408 = vector.shape_cast %407 : vector<1x8x128xf32> to vector<8x128xf32>
    %409 = vector.shape_cast %406 : vector<8x128xf32> to vector<1x8x128xf32>
    tpu.vector_store %arg6[%c0_171, %c24, %c0_172], %409 {strides = array<i32>} : memref<1x64x128xf32, #tpu.memory_space<vmem>>, vector<1x8x128xf32>,
    %c0_173 = arith.constant 0 : index
    %c128 = arith.constant 128 : index
    %c0_174 = arith.constant 0 : index
    %410 = tpu.strided_load %arg2[%c0_173, %c128, %c0_174] {strides = array<i32: 1, 2, 1>} : memref<1x256x128xf32, #tpu.memory_space<vmem>>, vector<1x8x128xf32>
    %411 = vector.shape_cast %410 : vector<1x8x128xf32> to vector<8x128xf32>
    %412 = vector.broadcast %0 : vector<1x128xf32> to vector<8x128xf32>
    %413 = arith.mulf %411, %412 : vector<8x128xf32>
    %414 = vector.broadcast %1 : vector<1x128xf32> to vector<8x128xf32>
    %415 = arith.addf %413, %414 : vector<8x128xf32>
    %cst_175 = arith.constant 5.000000e-01 : f32
    %416 = vector.broadcast %cst_175 : f32 to vector<8x128xf32>
    %417 = arith.mulf %416, %415 : vector<8x128xf32>
    %cst_176 = arith.constant 4.471500e-02 : f32
    %418 = vector.broadcast %cst_176 : f32 to vector<8x128xf32>
    %419 = arith.mulf %418, %415 : vector<8x128xf32>
    %420 = arith.mulf %419, %415 : vector<8x128xf32>
    %421 = arith.mulf %420, %415 : vector<8x128xf32>
    %422 = arith.addf %415, %421 : vector<8x128xf32>
    %cst_177 = arith.constant 0.797884583 : f32
    %423 = vector.broadcast %cst_177 : f32 to vector<8x128xf32>
    %424 = arith.mulf %423, %422 : vector<8x128xf32>
    %425 = math.tanh %424 : vector<8x128xf32>
    %cst_178 = arith.constant 1.000000e+00 : f32
    %426 = vector.broadcast %cst_178 : f32 to vector<8x128xf32>
    %427 = arith.addf %426, %425 : vector<8x128xf32>
    %428 = arith.mulf %417, %427 : vector<8x128xf32>
    %c0_179 = arith.constant 0 : index
    %c128_180 = arith.constant 128 : index
    %c0_181 = arith.constant 0 : index
    %429 = tpu.strided_load %arg3[%c0_179, %c128_180, %c0_181] {strides = array<i32: 1, 2, 1>} : memref<1x256x128xf32, #tpu.memory_space<vmem>>, vector<1x8x128xf32>
    %430 = vector.shape_cast %429 : vector<1x8x128xf32> to vector<8x128xf32>
    %431 = arith.addf %428, %430 : vector<8x128xf32>
    %cst_182 = arith.constant 0.70721358 : f32
    %432 = vector.broadcast %cst_182 : f32 to vector<8x128xf32>
    %433 = arith.mulf %431, %432 : vector<8x128xf32>
    %c0_183 = arith.constant 0 : index
    %c129 = arith.constant 129 : index
    %c0_184 = arith.constant 0 : index
    %434 = tpu.strided_load %arg2[%c0_183, %c129, %c0_184] {strides = array<i32: 1, 2, 1>} : memref<1x256x128xf32, #tpu.memory_space<vmem>>, vector<1x8x128xf32>
    %435 = vector.shape_cast %434 : vector<1x8x128xf32> to vector<8x128xf32>
    %436 = vector.broadcast %0 : vector<1x128xf32> to vector<8x128xf32>
    %437 = arith.mulf %435, %436 : vector<8x128xf32>
    %438 = vector.broadcast %1 : vector<1x128xf32> to vector<8x128xf32>
    %439 = arith.addf %437, %438 : vector<8x128xf32>
    %cst_185 = arith.constant 5.000000e-01 : f32
    %440 = vector.broadcast %cst_185 : f32 to vector<8x128xf32>
    %441 = arith.mulf %440, %439 : vector<8x128xf32>
    %cst_186 = arith.constant 4.471500e-02 : f32
    %442 = vector.broadcast %cst_186 : f32 to vector<8x128xf32>
    %443 = arith.mulf %442, %439 : vector<8x128xf32>
    %444 = arith.mulf %443, %439 : vector<8x128xf32>
    %445 = arith.mulf %444, %439 : vector<8x128xf32>
    %446 = arith.addf %439, %445 : vector<8x128xf32>
    %cst_187 = arith.constant 0.797884583 : f32
    %447 = vector.broadcast %cst_187 : f32 to vector<8x128xf32>
    %448 = arith.mulf %447, %446 : vector<8x128xf32>
    %449 = math.tanh %448 : vector<8x128xf32>
    %cst_188 = arith.constant 1.000000e+00 : f32
    %450 = vector.broadcast %cst_188 : f32 to vector<8x128xf32>
    %451 = arith.addf %450, %449 : vector<8x128xf32>
    %452 = arith.mulf %441, %451 : vector<8x128xf32>
    %c0_189 = arith.constant 0 : index
    %c129_190 = arith.constant 129 : index
    %c0_191 = arith.constant 0 : index
    %453 = tpu.strided_load %arg3[%c0_189, %c129_190, %c0_191] {strides = array<i32: 1, 2, 1>} : memref<1x256x128xf32, #tpu.memory_space<vmem>>, vector<1x8x128xf32>
    %454 = vector.shape_cast %453 : vector<1x8x128xf32> to vector<8x128xf32>
    %455 = arith.addf %452, %454 : vector<8x128xf32>
    %cst_192 = arith.constant 0.70721358 : f32
    %456 = vector.broadcast %cst_192 : f32 to vector<8x128xf32>
    %457 = arith.mulf %455, %456 : vector<8x128xf32>
    %c0_193 = arith.constant 0 : index
    %c144 = arith.constant 144 : index
    %c0_194 = arith.constant 0 : index
    %458 = tpu.strided_load %arg2[%c0_193, %c144, %c0_194] {strides = array<i32: 1, 2, 1>} : memref<1x256x128xf32, #tpu.memory_space<vmem>>, vector<1x8x128xf32>
    %459 = vector.shape_cast %458 : vector<1x8x128xf32> to vector<8x128xf32>
    %460 = vector.broadcast %0 : vector<1x128xf32> to vector<8x128xf32>
    %461 = arith.mulf %459, %460 : vector<8x128xf32>
    %462 = vector.broadcast %1 : vector<1x128xf32> to vector<8x128xf32>
    %463 = arith.addf %461, %462 : vector<8x128xf32>
    %cst_195 = arith.constant 5.000000e-01 : f32
    %464 = vector.broadcast %cst_195 : f32 to vector<8x128xf32>
    %465 = arith.mulf %464, %463 : vector<8x128xf32>
    %cst_196 = arith.constant 4.471500e-02 : f32
    %466 = vector.broadcast %cst_196 : f32 to vector<8x128xf32>
    %467 = arith.mulf %466, %463 : vector<8x128xf32>
    %468 = arith.mulf %467, %463 : vector<8x128xf32>
    %469 = arith.mulf %468, %463 : vector<8x128xf32>
    %470 = arith.addf %463, %469 : vector<8x128xf32>
    %cst_197 = arith.constant 0.797884583 : f32
    %471 = vector.broadcast %cst_197 : f32 to vector<8x128xf32>
    %472 = arith.mulf %471, %470 : vector<8x128xf32>
    %473 = math.tanh %472 : vector<8x128xf32>
    %cst_198 = arith.constant 1.000000e+00 : f32
    %474 = vector.broadcast %cst_198 : f32 to vector<8x128xf32>
    %475 = arith.addf %474, %473 : vector<8x128xf32>
    %476 = arith.mulf %465, %475 : vector<8x128xf32>
    %c0_199 = arith.constant 0 : index
    %c144_200 = arith.constant 144 : index
    %c0_201 = arith.constant 0 : index
    %477 = tpu.strided_load %arg3[%c0_199, %c144_200, %c0_201] {strides = array<i32: 1, 2, 1>} : memref<1x256x128xf32, #tpu.memory_space<vmem>>, vector<1x8x128xf32>
    %478 = vector.shape_cast %477 : vector<1x8x128xf32> to vector<8x128xf32>
    %479 = arith.addf %476, %478 : vector<8x128xf32>
    %cst_202 = arith.constant 0.70721358 : f32
    %480 = vector.broadcast %cst_202 : f32 to vector<8x128xf32>
    %481 = arith.mulf %479, %480 : vector<8x128xf32>
    %c0_203 = arith.constant 0 : index
    %c145 = arith.constant 145 : index
    %c0_204 = arith.constant 0 : index
    %482 = tpu.strided_load %arg2[%c0_203, %c145, %c0_204] {strides = array<i32: 1, 2, 1>} : memref<1x256x128xf32, #tpu.memory_space<vmem>>, vector<1x8x128xf32>
    %483 = vector.shape_cast %482 : vector<1x8x128xf32> to vector<8x128xf32>
    %484 = vector.broadcast %0 : vector<1x128xf32> to vector<8x128xf32>
    %485 = arith.mulf %483, %484 : vector<8x128xf32>
    %486 = vector.broadcast %1 : vector<1x128xf32> to vector<8x128xf32>
    %487 = arith.addf %485, %486 : vector<8x128xf32>
    %cst_205 = arith.constant 5.000000e-01 : f32
    %488 = vector.broadcast %cst_205 : f32 to vector<8x128xf32>
    %489 = arith.mulf %488, %487 : vector<8x128xf32>
    %cst_206 = arith.constant 4.471500e-02 : f32
    %490 = vector.broadcast %cst_206 : f32 to vector<8x128xf32>
    %491 = arith.mulf %490, %487 : vector<8x128xf32>
    %492 = arith.mulf %491, %487 : vector<8x128xf32>
    %493 = arith.mulf %492, %487 : vector<8x128xf32>
    %494 = arith.addf %487, %493 : vector<8x128xf32>
    %cst_207 = arith.constant 0.797884583 : f32
    %495 = vector.broadcast %cst_207 : f32 to vector<8x128xf32>
    %496 = arith.mulf %495, %494 : vector<8x128xf32>
    %497 = math.tanh %496 : vector<8x128xf32>
    %cst_208 = arith.constant 1.000000e+00 : f32
    %498 = vector.broadcast %cst_208 : f32 to vector<8x128xf32>
    %499 = arith.addf %498, %497 : vector<8x128xf32>
    %500 = arith.mulf %489, %499 : vector<8x128xf32>
    %c0_209 = arith.constant 0 : index
    %c145_210 = arith.constant 145 : index
    %c0_211 = arith.constant 0 : index
    %501 = tpu.strided_load %arg3[%c0_209, %c145_210, %c0_211] {strides = array<i32: 1, 2, 1>} : memref<1x256x128xf32, #tpu.memory_space<vmem>>, vector<1x8x128xf32>
    %502 = vector.shape_cast %501 : vector<1x8x128xf32> to vector<8x128xf32>
    %503 = arith.addf %500, %502 : vector<8x128xf32>
    %cst_212 = arith.constant 0.70721358 : f32
    %504 = vector.broadcast %cst_212 : f32 to vector<8x128xf32>
    %505 = arith.mulf %503, %504 : vector<8x128xf32>
    %506 = arith.maximumf %433, %457 : vector<8x128xf32>
    %507 = arith.maximumf %481, %505 : vector<8x128xf32>
    %508 = arith.maximumf %506, %507 : vector<8x128xf32>
    %c0_213 = arith.constant 0 : index
    %c32_214 = arith.constant 32 : index
    %c0_215 = arith.constant 0 : index
    %509 = vector.load %arg6[%c0_213, %c32_214, %c0_215] : memref<1x64x128xf32, #tpu.memory_space<vmem>>, vector<1x8x128xf32>
    %510 = vector.shape_cast %509 : vector<1x8x128xf32> to vector<8x128xf32>
    %511 = vector.shape_cast %508 : vector<8x128xf32> to vector<1x8x128xf32>
    tpu.vector_store %arg6[%c0_213, %c32_214, %c0_215], %511 {strides = array<i32>} : memref<1x64x128xf32, #tpu.memory_space<vmem>>, vector<1x8x128xf32>,
    %c0_216 = arith.constant 0 : index
    %c160 = arith.constant 160 : index
    %c0_217 = arith.constant 0 : index
    %512 = tpu.strided_load %arg2[%c0_216, %c160, %c0_217] {strides = array<i32: 1, 2, 1>} : memref<1x256x128xf32, #tpu.memory_space<vmem>>, vector<1x8x128xf32>
    %513 = vector.shape_cast %512 : vector<1x8x128xf32> to vector<8x128xf32>
    %514 = vector.broadcast %0 : vector<1x128xf32> to vector<8x128xf32>
    %515 = arith.mulf %513, %514 : vector<8x128xf32>
    %516 = vector.broadcast %1 : vector<1x128xf32> to vector<8x128xf32>
    %517 = arith.addf %515, %516 : vector<8x128xf32>
    %cst_218 = arith.constant 5.000000e-01 : f32
    %518 = vector.broadcast %cst_218 : f32 to vector<8x128xf32>
    %519 = arith.mulf %518, %517 : vector<8x128xf32>
    %cst_219 = arith.constant 4.471500e-02 : f32
    %520 = vector.broadcast %cst_219 : f32 to vector<8x128xf32>
    %521 = arith.mulf %520, %517 : vector<8x128xf32>
    %522 = arith.mulf %521, %517 : vector<8x128xf32>
    %523 = arith.mulf %522, %517 : vector<8x128xf32>
    %524 = arith.addf %517, %523 : vector<8x128xf32>
    %cst_220 = arith.constant 0.797884583 : f32
    %525 = vector.broadcast %cst_220 : f32 to vector<8x128xf32>
    %526 = arith.mulf %525, %524 : vector<8x128xf32>
    %527 = math.tanh %526 : vector<8x128xf32>
    %cst_221 = arith.constant 1.000000e+00 : f32
    %528 = vector.broadcast %cst_221 : f32 to vector<8x128xf32>
    %529 = arith.addf %528, %527 : vector<8x128xf32>
    %530 = arith.mulf %519, %529 : vector<8x128xf32>
    %c0_222 = arith.constant 0 : index
    %c160_223 = arith.constant 160 : index
    %c0_224 = arith.constant 0 : index
    %531 = tpu.strided_load %arg3[%c0_222, %c160_223, %c0_224] {strides = array<i32: 1, 2, 1>} : memref<1x256x128xf32, #tpu.memory_space<vmem>>, vector<1x8x128xf32>
    %532 = vector.shape_cast %531 : vector<1x8x128xf32> to vector<8x128xf32>
    %533 = arith.addf %530, %532 : vector<8x128xf32>
    %cst_225 = arith.constant 0.70721358 : f32
    %534 = vector.broadcast %cst_225 : f32 to vector<8x128xf32>
    %535 = arith.mulf %533, %534 : vector<8x128xf32>
    %c0_226 = arith.constant 0 : index
    %c161 = arith.constant 161 : index
    %c0_227 = arith.constant 0 : index
    %536 = tpu.strided_load %arg2[%c0_226, %c161, %c0_227] {strides = array<i32: 1, 2, 1>} : memref<1x256x128xf32, #tpu.memory_space<vmem>>, vector<1x8x128xf32>
    %537 = vector.shape_cast %536 : vector<1x8x128xf32> to vector<8x128xf32>
    %538 = vector.broadcast %0 : vector<1x128xf32> to vector<8x128xf32>
    %539 = arith.mulf %537, %538 : vector<8x128xf32>
    %540 = vector.broadcast %1 : vector<1x128xf32> to vector<8x128xf32>
    %541 = arith.addf %539, %540 : vector<8x128xf32>
    %cst_228 = arith.constant 5.000000e-01 : f32
    %542 = vector.broadcast %cst_228 : f32 to vector<8x128xf32>
    %543 = arith.mulf %542, %541 : vector<8x128xf32>
    %cst_229 = arith.constant 4.471500e-02 : f32
    %544 = vector.broadcast %cst_229 : f32 to vector<8x128xf32>
    %545 = arith.mulf %544, %541 : vector<8x128xf32>
    %546 = arith.mulf %545, %541 : vector<8x128xf32>
    %547 = arith.mulf %546, %541 : vector<8x128xf32>
    %548 = arith.addf %541, %547 : vector<8x128xf32>
    %cst_230 = arith.constant 0.797884583 : f32
    %549 = vector.broadcast %cst_230 : f32 to vector<8x128xf32>
    %550 = arith.mulf %549, %548 : vector<8x128xf32>
    %551 = math.tanh %550 : vector<8x128xf32>
    %cst_231 = arith.constant 1.000000e+00 : f32
    %552 = vector.broadcast %cst_231 : f32 to vector<8x128xf32>
    %553 = arith.addf %552, %551 : vector<8x128xf32>
    %554 = arith.mulf %543, %553 : vector<8x128xf32>
    %c0_232 = arith.constant 0 : index
    %c161_233 = arith.constant 161 : index
    %c0_234 = arith.constant 0 : index
    %555 = tpu.strided_load %arg3[%c0_232, %c161_233, %c0_234] {strides = array<i32: 1, 2, 1>} : memref<1x256x128xf32, #tpu.memory_space<vmem>>, vector<1x8x128xf32>
    %556 = vector.shape_cast %555 : vector<1x8x128xf32> to vector<8x128xf32>
    %557 = arith.addf %554, %556 : vector<8x128xf32>
    %cst_235 = arith.constant 0.70721358 : f32
    %558 = vector.broadcast %cst_235 : f32 to vector<8x128xf32>
    %559 = arith.mulf %557, %558 : vector<8x128xf32>
    %c0_236 = arith.constant 0 : index
    %c176 = arith.constant 176 : index
    %c0_237 = arith.constant 0 : index
    %560 = tpu.strided_load %arg2[%c0_236, %c176, %c0_237] {strides = array<i32: 1, 2, 1>} : memref<1x256x128xf32, #tpu.memory_space<vmem>>, vector<1x8x128xf32>
    %561 = vector.shape_cast %560 : vector<1x8x128xf32> to vector<8x128xf32>
    %562 = vector.broadcast %0 : vector<1x128xf32> to vector<8x128xf32>
    %563 = arith.mulf %561, %562 : vector<8x128xf32>
    %564 = vector.broadcast %1 : vector<1x128xf32> to vector<8x128xf32>
    %565 = arith.addf %563, %564 : vector<8x128xf32>
    %cst_238 = arith.constant 5.000000e-01 : f32
    %566 = vector.broadcast %cst_238 : f32 to vector<8x128xf32>
    %567 = arith.mulf %566, %565 : vector<8x128xf32>
    %cst_239 = arith.constant 4.471500e-02 : f32
    %568 = vector.broadcast %cst_239 : f32 to vector<8x128xf32>
    %569 = arith.mulf %568, %565 : vector<8x128xf32>
    %570 = arith.mulf %569, %565 : vector<8x128xf32>
    %571 = arith.mulf %570, %565 : vector<8x128xf32>
    %572 = arith.addf %565, %571 : vector<8x128xf32>
    %cst_240 = arith.constant 0.797884583 : f32
    %573 = vector.broadcast %cst_240 : f32 to vector<8x128xf32>
    %574 = arith.mulf %573, %572 : vector<8x128xf32>
    %575 = math.tanh %574 : vector<8x128xf32>
    %cst_241 = arith.constant 1.000000e+00 : f32
    %576 = vector.broadcast %cst_241 : f32 to vector<8x128xf32>
    %577 = arith.addf %576, %575 : vector<8x128xf32>
    %578 = arith.mulf %567, %577 : vector<8x128xf32>
    %c0_242 = arith.constant 0 : index
    %c176_243 = arith.constant 176 : index
    %c0_244 = arith.constant 0 : index
    %579 = tpu.strided_load %arg3[%c0_242, %c176_243, %c0_244] {strides = array<i32: 1, 2, 1>} : memref<1x256x128xf32, #tpu.memory_space<vmem>>, vector<1x8x128xf32>
    %580 = vector.shape_cast %579 : vector<1x8x128xf32> to vector<8x128xf32>
    %581 = arith.addf %578, %580 : vector<8x128xf32>
    %cst_245 = arith.constant 0.70721358 : f32
    %582 = vector.broadcast %cst_245 : f32 to vector<8x128xf32>
    %583 = arith.mulf %581, %582 : vector<8x128xf32>
    %c0_246 = arith.constant 0 : index
    %c177 = arith.constant 177 : index
    %c0_247 = arith.constant 0 : index
    %584 = tpu.strided_load %arg2[%c0_246, %c177, %c0_247] {strides = array<i32: 1, 2, 1>} : memref<1x256x128xf32, #tpu.memory_space<vmem>>, vector<1x8x128xf32>
    %585 = vector.shape_cast %584 : vector<1x8x128xf32> to vector<8x128xf32>
    %586 = vector.broadcast %0 : vector<1x128xf32> to vector<8x128xf32>
    %587 = arith.mulf %585, %586 : vector<8x128xf32>
    %588 = vector.broadcast %1 : vector<1x128xf32> to vector<8x128xf32>
    %589 = arith.addf %587, %588 : vector<8x128xf32>
    %cst_248 = arith.constant 5.000000e-01 : f32
    %590 = vector.broadcast %cst_248 : f32 to vector<8x128xf32>
    %591 = arith.mulf %590, %589 : vector<8x128xf32>
    %cst_249 = arith.constant 4.471500e-02 : f32
    %592 = vector.broadcast %cst_249 : f32 to vector<8x128xf32>
    %593 = arith.mulf %592, %589 : vector<8x128xf32>
    %594 = arith.mulf %593, %589 : vector<8x128xf32>
    %595 = arith.mulf %594, %589 : vector<8x128xf32>
    %596 = arith.addf %589, %595 : vector<8x128xf32>
    %cst_250 = arith.constant 0.797884583 : f32
    %597 = vector.broadcast %cst_250 : f32 to vector<8x128xf32>
    %598 = arith.mulf %597, %596 : vector<8x128xf32>
    %599 = math.tanh %598 : vector<8x128xf32>
    %cst_251 = arith.constant 1.000000e+00 : f32
    %600 = vector.broadcast %cst_251 : f32 to vector<8x128xf32>
    %601 = arith.addf %600, %599 : vector<8x128xf32>
    %602 = arith.mulf %591, %601 : vector<8x128xf32>
    %c0_252 = arith.constant 0 : index
    %c177_253 = arith.constant 177 : index
    %c0_254 = arith.constant 0 : index
    %603 = tpu.strided_load %arg3[%c0_252, %c177_253, %c0_254] {strides = array<i32: 1, 2, 1>} : memref<1x256x128xf32, #tpu.memory_space<vmem>>, vector<1x8x128xf32>
    %604 = vector.shape_cast %603 : vector<1x8x128xf32> to vector<8x128xf32>
    %605 = arith.addf %602, %604 : vector<8x128xf32>
    %cst_255 = arith.constant 0.70721358 : f32
    %606 = vector.broadcast %cst_255 : f32 to vector<8x128xf32>
    %607 = arith.mulf %605, %606 : vector<8x128xf32>
    %608 = arith.maximumf %535, %559 : vector<8x128xf32>
    %609 = arith.maximumf %583, %607 : vector<8x128xf32>
    %610 = arith.maximumf %608, %609 : vector<8x128xf32>
    %c0_256 = arith.constant 0 : index
    %c40 = arith.constant 40 : index
    %c0_257 = arith.constant 0 : index
    %611 = vector.load %arg6[%c0_256, %c40, %c0_257] : memref<1x64x128xf32, #tpu.memory_space<vmem>>, vector<1x8x128xf32>
    %612 = vector.shape_cast %611 : vector<1x8x128xf32> to vector<8x128xf32>
    %613 = vector.shape_cast %610 : vector<8x128xf32> to vector<1x8x128xf32>
    tpu.vector_store %arg6[%c0_256, %c40, %c0_257], %613 {strides = array<i32>} : memref<1x64x128xf32, #tpu.memory_space<vmem>>, vector<1x8x128xf32>,
    %c0_258 = arith.constant 0 : index
    %c192 = arith.constant 192 : index
    %c0_259 = arith.constant 0 : index
    %614 = tpu.strided_load %arg2[%c0_258, %c192, %c0_259] {strides = array<i32: 1, 2, 1>} : memref<1x256x128xf32, #tpu.memory_space<vmem>>, vector<1x8x128xf32>
    %615 = vector.shape_cast %614 : vector<1x8x128xf32> to vector<8x128xf32>
    %616 = vector.broadcast %0 : vector<1x128xf32> to vector<8x128xf32>
    %617 = arith.mulf %615, %616 : vector<8x128xf32>
    %618 = vector.broadcast %1 : vector<1x128xf32> to vector<8x128xf32>
    %619 = arith.addf %617, %618 : vector<8x128xf32>
    %cst_260 = arith.constant 5.000000e-01 : f32
    %620 = vector.broadcast %cst_260 : f32 to vector<8x128xf32>
    %621 = arith.mulf %620, %619 : vector<8x128xf32>
    %cst_261 = arith.constant 4.471500e-02 : f32
    %622 = vector.broadcast %cst_261 : f32 to vector<8x128xf32>
    %623 = arith.mulf %622, %619 : vector<8x128xf32>
    %624 = arith.mulf %623, %619 : vector<8x128xf32>
    %625 = arith.mulf %624, %619 : vector<8x128xf32>
    %626 = arith.addf %619, %625 : vector<8x128xf32>
    %cst_262 = arith.constant 0.797884583 : f32
    %627 = vector.broadcast %cst_262 : f32 to vector<8x128xf32>
    %628 = arith.mulf %627, %626 : vector<8x128xf32>
    %629 = math.tanh %628 : vector<8x128xf32>
    %cst_263 = arith.constant 1.000000e+00 : f32
    %630 = vector.broadcast %cst_263 : f32 to vector<8x128xf32>
    %631 = arith.addf %630, %629 : vector<8x128xf32>
    %632 = arith.mulf %621, %631 : vector<8x128xf32>
    %c0_264 = arith.constant 0 : index
    %c192_265 = arith.constant 192 : index
    %c0_266 = arith.constant 0 : index
    %633 = tpu.strided_load %arg3[%c0_264, %c192_265, %c0_266] {strides = array<i32: 1, 2, 1>} : memref<1x256x128xf32, #tpu.memory_space<vmem>>, vector<1x8x128xf32>
    %634 = vector.shape_cast %633 : vector<1x8x128xf32> to vector<8x128xf32>
    %635 = arith.addf %632, %634 : vector<8x128xf32>
    %cst_267 = arith.constant 0.70721358 : f32
    %636 = vector.broadcast %cst_267 : f32 to vector<8x128xf32>
    %637 = arith.mulf %635, %636 : vector<8x128xf32>
    %c0_268 = arith.constant 0 : index
    %c193 = arith.constant 193 : index
    %c0_269 = arith.constant 0 : index
    %638 = tpu.strided_load %arg2[%c0_268, %c193, %c0_269] {strides = array<i32: 1, 2, 1>} : memref<1x256x128xf32, #tpu.memory_space<vmem>>, vector<1x8x128xf32>
    %639 = vector.shape_cast %638 : vector<1x8x128xf32> to vector<8x128xf32>
    %640 = vector.broadcast %0 : vector<1x128xf32> to vector<8x128xf32>
    %641 = arith.mulf %639, %640 : vector<8x128xf32>
    %642 = vector.broadcast %1 : vector<1x128xf32> to vector<8x128xf32>
    %643 = arith.addf %641, %642 : vector<8x128xf32>
    %cst_270 = arith.constant 5.000000e-01 : f32
    %644 = vector.broadcast %cst_270 : f32 to vector<8x128xf32>
    %645 = arith.mulf %644, %643 : vector<8x128xf32>
    %cst_271 = arith.constant 4.471500e-02 : f32
    %646 = vector.broadcast %cst_271 : f32 to vector<8x128xf32>
    %647 = arith.mulf %646, %643 : vector<8x128xf32>
    %648 = arith.mulf %647, %643 : vector<8x128xf32>
    %649 = arith.mulf %648, %643 : vector<8x128xf32>
    %650 = arith.addf %643, %649 : vector<8x128xf32>
    %cst_272 = arith.constant 0.797884583 : f32
    %651 = vector.broadcast %cst_272 : f32 to vector<8x128xf32>
    %652 = arith.mulf %651, %650 : vector<8x128xf32>
    %653 = math.tanh %652 : vector<8x128xf32>
    %cst_273 = arith.constant 1.000000e+00 : f32
    %654 = vector.broadcast %cst_273 : f32 to vector<8x128xf32>
    %655 = arith.addf %654, %653 : vector<8x128xf32>
    %656 = arith.mulf %645, %655 : vector<8x128xf32>
    %c0_274 = arith.constant 0 : index
    %c193_275 = arith.constant 193 : index
    %c0_276 = arith.constant 0 : index
    %657 = tpu.strided_load %arg3[%c0_274, %c193_275, %c0_276] {strides = array<i32: 1, 2, 1>} : memref<1x256x128xf32, #tpu.memory_space<vmem>>, vector<1x8x128xf32>
    %658 = vector.shape_cast %657 : vector<1x8x128xf32> to vector<8x128xf32>
    %659 = arith.addf %656, %658 : vector<8x128xf32>
    %cst_277 = arith.constant 0.70721358 : f32
    %660 = vector.broadcast %cst_277 : f32 to vector<8x128xf32>
    %661 = arith.mulf %659, %660 : vector<8x128xf32>
    %c0_278 = arith.constant 0 : index
    %c208 = arith.constant 208 : index
    %c0_279 = arith.constant 0 : index
    %662 = tpu.strided_load %arg2[%c0_278, %c208, %c0_279] {strides = array<i32: 1, 2, 1>} : memref<1x256x128xf32, #tpu.memory_space<vmem>>, vector<1x8x128xf32>
    %663 = vector.shape_cast %662 : vector<1x8x128xf32> to vector<8x128xf32>
    %664 = vector.broadcast %0 : vector<1x128xf32> to vector<8x128xf32>
    %665 = arith.mulf %663, %664 : vector<8x128xf32>
    %666 = vector.broadcast %1 : vector<1x128xf32> to vector<8x128xf32>
    %667 = arith.addf %665, %666 : vector<8x128xf32>
    %cst_280 = arith.constant 5.000000e-01 : f32
    %668 = vector.broadcast %cst_280 : f32 to vector<8x128xf32>
    %669 = arith.mulf %668, %667 : vector<8x128xf32>
    %cst_281 = arith.constant 4.471500e-02 : f32
    %670 = vector.broadcast %cst_281 : f32 to vector<8x128xf32>
    %671 = arith.mulf %670, %667 : vector<8x128xf32>
    %672 = arith.mulf %671, %667 : vector<8x128xf32>
    %673 = arith.mulf %672, %667 : vector<8x128xf32>
    %674 = arith.addf %667, %673 : vector<8x128xf32>
    %cst_282 = arith.constant 0.797884583 : f32
    %675 = vector.broadcast %cst_282 : f32 to vector<8x128xf32>
    %676 = arith.mulf %675, %674 : vector<8x128xf32>
    %677 = math.tanh %676 : vector<8x128xf32>
    %cst_283 = arith.constant 1.000000e+00 : f32
    %678 = vector.broadcast %cst_283 : f32 to vector<8x128xf32>
    %679 = arith.addf %678, %677 : vector<8x128xf32>
    %680 = arith.mulf %669, %679 : vector<8x128xf32>
    %c0_284 = arith.constant 0 : index
    %c208_285 = arith.constant 208 : index
    %c0_286 = arith.constant 0 : index
    %681 = tpu.strided_load %arg3[%c0_284, %c208_285, %c0_286] {strides = array<i32: 1, 2, 1>} : memref<1x256x128xf32, #tpu.memory_space<vmem>>, vector<1x8x128xf32>
    %682 = vector.shape_cast %681 : vector<1x8x128xf32> to vector<8x128xf32>
    %683 = arith.addf %680, %682 : vector<8x128xf32>
    %cst_287 = arith.constant 0.70721358 : f32
    %684 = vector.broadcast %cst_287 : f32 to vector<8x128xf32>
    %685 = arith.mulf %683, %684 : vector<8x128xf32>
    %c0_288 = arith.constant 0 : index
    %c209 = arith.constant 209 : index
    %c0_289 = arith.constant 0 : index
    %686 = tpu.strided_load %arg2[%c0_288, %c209, %c0_289] {strides = array<i32: 1, 2, 1>} : memref<1x256x128xf32, #tpu.memory_space<vmem>>, vector<1x8x128xf32>
    %687 = vector.shape_cast %686 : vector<1x8x128xf32> to vector<8x128xf32>
    %688 = vector.broadcast %0 : vector<1x128xf32> to vector<8x128xf32>
    %689 = arith.mulf %687, %688 : vector<8x128xf32>
    %690 = vector.broadcast %1 : vector<1x128xf32> to vector<8x128xf32>
    %691 = arith.addf %689, %690 : vector<8x128xf32>
    %cst_290 = arith.constant 5.000000e-01 : f32
    %692 = vector.broadcast %cst_290 : f32 to vector<8x128xf32>
    %693 = arith.mulf %692, %691 : vector<8x128xf32>
    %cst_291 = arith.constant 4.471500e-02 : f32
    %694 = vector.broadcast %cst_291 : f32 to vector<8x128xf32>
    %695 = arith.mulf %694, %691 : vector<8x128xf32>
    %696 = arith.mulf %695, %691 : vector<8x128xf32>
    %697 = arith.mulf %696, %691 : vector<8x128xf32>
    %698 = arith.addf %691, %697 : vector<8x128xf32>
    %cst_292 = arith.constant 0.797884583 : f32
    %699 = vector.broadcast %cst_292 : f32 to vector<8x128xf32>
    %700 = arith.mulf %699, %698 : vector<8x128xf32>
    %701 = math.tanh %700 : vector<8x128xf32>
    %cst_293 = arith.constant 1.000000e+00 : f32
    %702 = vector.broadcast %cst_293 : f32 to vector<8x128xf32>
    %703 = arith.addf %702, %701 : vector<8x128xf32>
    %704 = arith.mulf %693, %703 : vector<8x128xf32>
    %c0_294 = arith.constant 0 : index
    %c209_295 = arith.constant 209 : index
    %c0_296 = arith.constant 0 : index
    %705 = tpu.strided_load %arg3[%c0_294, %c209_295, %c0_296] {strides = array<i32: 1, 2, 1>} : memref<1x256x128xf32, #tpu.memory_space<vmem>>, vector<1x8x128xf32>
    %706 = vector.shape_cast %705 : vector<1x8x128xf32> to vector<8x128xf32>
    %707 = arith.addf %704, %706 : vector<8x128xf32>
    %cst_297 = arith.constant 0.70721358 : f32
    %708 = vector.broadcast %cst_297 : f32 to vector<8x128xf32>
    %709 = arith.mulf %707, %708 : vector<8x128xf32>
    %710 = arith.maximumf %637, %661 : vector<8x128xf32>
    %711 = arith.maximumf %685, %709 : vector<8x128xf32>
    %712 = arith.maximumf %710, %711 : vector<8x128xf32>
    %c0_298 = arith.constant 0 : index
    %c48_299 = arith.constant 48 : index
    %c0_300 = arith.constant 0 : index
    %713 = vector.load %arg6[%c0_298, %c48_299, %c0_300] : memref<1x64x128xf32, #tpu.memory_space<vmem>>, vector<1x8x128xf32>
    %714 = vector.shape_cast %713 : vector<1x8x128xf32> to vector<8x128xf32>
    %715 = vector.shape_cast %712 : vector<8x128xf32> to vector<1x8x128xf32>
    tpu.vector_store %arg6[%c0_298, %c48_299, %c0_300], %715 {strides = array<i32>} : memref<1x64x128xf32, #tpu.memory_space<vmem>>, vector<1x8x128xf32>,
    %c0_301 = arith.constant 0 : index
    %c224 = arith.constant 224 : index
    %c0_302 = arith.constant 0 : index
    %716 = tpu.strided_load %arg2[%c0_301, %c224, %c0_302] {strides = array<i32: 1, 2, 1>} : memref<1x256x128xf32, #tpu.memory_space<vmem>>, vector<1x8x128xf32>
    %717 = vector.shape_cast %716 : vector<1x8x128xf32> to vector<8x128xf32>
    %718 = vector.broadcast %0 : vector<1x128xf32> to vector<8x128xf32>
    %719 = arith.mulf %717, %718 : vector<8x128xf32>
    %720 = vector.broadcast %1 : vector<1x128xf32> to vector<8x128xf32>
    %721 = arith.addf %719, %720 : vector<8x128xf32>
    %cst_303 = arith.constant 5.000000e-01 : f32
    %722 = vector.broadcast %cst_303 : f32 to vector<8x128xf32>
    %723 = arith.mulf %722, %721 : vector<8x128xf32>
    %cst_304 = arith.constant 4.471500e-02 : f32
    %724 = vector.broadcast %cst_304 : f32 to vector<8x128xf32>
    %725 = arith.mulf %724, %721 : vector<8x128xf32>
    %726 = arith.mulf %725, %721 : vector<8x128xf32>
    %727 = arith.mulf %726, %721 : vector<8x128xf32>
    %728 = arith.addf %721, %727 : vector<8x128xf32>
    %cst_305 = arith.constant 0.797884583 : f32
    %729 = vector.broadcast %cst_305 : f32 to vector<8x128xf32>
    %730 = arith.mulf %729, %728 : vector<8x128xf32>
    %731 = math.tanh %730 : vector<8x128xf32>
    %cst_306 = arith.constant 1.000000e+00 : f32
    %732 = vector.broadcast %cst_306 : f32 to vector<8x128xf32>
    %733 = arith.addf %732, %731 : vector<8x128xf32>
    %734 = arith.mulf %723, %733 : vector<8x128xf32>
    %c0_307 = arith.constant 0 : index
    %c224_308 = arith.constant 224 : index
    %c0_309 = arith.constant 0 : index
    %735 = tpu.strided_load %arg3[%c0_307, %c224_308, %c0_309] {strides = array<i32: 1, 2, 1>} : memref<1x256x128xf32, #tpu.memory_space<vmem>>, vector<1x8x128xf32>
    %736 = vector.shape_cast %735 : vector<1x8x128xf32> to vector<8x128xf32>
    %737 = arith.addf %734, %736 : vector<8x128xf32>
    %cst_310 = arith.constant 0.70721358 : f32
    %738 = vector.broadcast %cst_310 : f32 to vector<8x128xf32>
    %739 = arith.mulf %737, %738 : vector<8x128xf32>
    %c0_311 = arith.constant 0 : index
    %c225 = arith.constant 225 : index
    %c0_312 = arith.constant 0 : index
    %740 = tpu.strided_load %arg2[%c0_311, %c225, %c0_312] {strides = array<i32: 1, 2, 1>} : memref<1x256x128xf32, #tpu.memory_space<vmem>>, vector<1x8x128xf32>
    %741 = vector.shape_cast %740 : vector<1x8x128xf32> to vector<8x128xf32>
    %742 = vector.broadcast %0 : vector<1x128xf32> to vector<8x128xf32>
    %743 = arith.mulf %741, %742 : vector<8x128xf32>
    %744 = vector.broadcast %1 : vector<1x128xf32> to vector<8x128xf32>
    %745 = arith.addf %743, %744 : vector<8x128xf32>
    %cst_313 = arith.constant 5.000000e-01 : f32
    %746 = vector.broadcast %cst_313 : f32 to vector<8x128xf32>
    %747 = arith.mulf %746, %745 : vector<8x128xf32>
    %cst_314 = arith.constant 4.471500e-02 : f32
    %748 = vector.broadcast %cst_314 : f32 to vector<8x128xf32>
    %749 = arith.mulf %748, %745 : vector<8x128xf32>
    %750 = arith.mulf %749, %745 : vector<8x128xf32>
    %751 = arith.mulf %750, %745 : vector<8x128xf32>
    %752 = arith.addf %745, %751 : vector<8x128xf32>
    %cst_315 = arith.constant 0.797884583 : f32
    %753 = vector.broadcast %cst_315 : f32 to vector<8x128xf32>
    %754 = arith.mulf %753, %752 : vector<8x128xf32>
    %755 = math.tanh %754 : vector<8x128xf32>
    %cst_316 = arith.constant 1.000000e+00 : f32
    %756 = vector.broadcast %cst_316 : f32 to vector<8x128xf32>
    %757 = arith.addf %756, %755 : vector<8x128xf32>
    %758 = arith.mulf %747, %757 : vector<8x128xf32>
    %c0_317 = arith.constant 0 : index
    %c225_318 = arith.constant 225 : index
    %c0_319 = arith.constant 0 : index
    %759 = tpu.strided_load %arg3[%c0_317, %c225_318, %c0_319] {strides = array<i32: 1, 2, 1>} : memref<1x256x128xf32, #tpu.memory_space<vmem>>, vector<1x8x128xf32>
    %760 = vector.shape_cast %759 : vector<1x8x128xf32> to vector<8x128xf32>
    %761 = arith.addf %758, %760 : vector<8x128xf32>
    %cst_320 = arith.constant 0.70721358 : f32
    %762 = vector.broadcast %cst_320 : f32 to vector<8x128xf32>
    %763 = arith.mulf %761, %762 : vector<8x128xf32>
    %c0_321 = arith.constant 0 : index
    %c240 = arith.constant 240 : index
    %c0_322 = arith.constant 0 : index
    %764 = tpu.strided_load %arg2[%c0_321, %c240, %c0_322] {strides = array<i32: 1, 2, 1>} : memref<1x256x128xf32, #tpu.memory_space<vmem>>, vector<1x8x128xf32>
    %765 = vector.shape_cast %764 : vector<1x8x128xf32> to vector<8x128xf32>
    %766 = vector.broadcast %0 : vector<1x128xf32> to vector<8x128xf32>
    %767 = arith.mulf %765, %766 : vector<8x128xf32>
    %768 = vector.broadcast %1 : vector<1x128xf32> to vector<8x128xf32>
    %769 = arith.addf %767, %768 : vector<8x128xf32>
    %cst_323 = arith.constant 5.000000e-01 : f32
    %770 = vector.broadcast %cst_323 : f32 to vector<8x128xf32>
    %771 = arith.mulf %770, %769 : vector<8x128xf32>
    %cst_324 = arith.constant 4.471500e-02 : f32
    %772 = vector.broadcast %cst_324 : f32 to vector<8x128xf32>
    %773 = arith.mulf %772, %769 : vector<8x128xf32>
    %774 = arith.mulf %773, %769 : vector<8x128xf32>
    %775 = arith.mulf %774, %769 : vector<8x128xf32>
    %776 = arith.addf %769, %775 : vector<8x128xf32>
    %cst_325 = arith.constant 0.797884583 : f32
    %777 = vector.broadcast %cst_325 : f32 to vector<8x128xf32>
    %778 = arith.mulf %777, %776 : vector<8x128xf32>
    %779 = math.tanh %778 : vector<8x128xf32>
    %cst_326 = arith.constant 1.000000e+00 : f32
    %780 = vector.broadcast %cst_326 : f32 to vector<8x128xf32>
    %781 = arith.addf %780, %779 : vector<8x128xf32>
    %782 = arith.mulf %771, %781 : vector<8x128xf32>
    %c0_327 = arith.constant 0 : index
    %c240_328 = arith.constant 240 : index
    %c0_329 = arith.constant 0 : index
    %783 = tpu.strided_load %arg3[%c0_327, %c240_328, %c0_329] {strides = array<i32: 1, 2, 1>} : memref<1x256x128xf32, #tpu.memory_space<vmem>>, vector<1x8x128xf32>
    %784 = vector.shape_cast %783 : vector<1x8x128xf32> to vector<8x128xf32>
    %785 = arith.addf %782, %784 : vector<8x128xf32>
    %cst_330 = arith.constant 0.70721358 : f32
    %786 = vector.broadcast %cst_330 : f32 to vector<8x128xf32>
    %787 = arith.mulf %785, %786 : vector<8x128xf32>
    %c0_331 = arith.constant 0 : index
    %c241 = arith.constant 241 : index
    %c0_332 = arith.constant 0 : index
    %788 = tpu.strided_load %arg2[%c0_331, %c241, %c0_332] {strides = array<i32: 1, 2, 1>} : memref<1x256x128xf32, #tpu.memory_space<vmem>>, vector<1x8x128xf32>
    %789 = vector.shape_cast %788 : vector<1x8x128xf32> to vector<8x128xf32>
    %790 = vector.broadcast %0 : vector<1x128xf32> to vector<8x128xf32>
    %791 = arith.mulf %789, %790 : vector<8x128xf32>
    %792 = vector.broadcast %1 : vector<1x128xf32> to vector<8x128xf32>
    %793 = arith.addf %791, %792 : vector<8x128xf32>
    %cst_333 = arith.constant 5.000000e-01 : f32
    %794 = vector.broadcast %cst_333 : f32 to vector<8x128xf32>
    %795 = arith.mulf %794, %793 : vector<8x128xf32>
    %cst_334 = arith.constant 4.471500e-02 : f32
    %796 = vector.broadcast %cst_334 : f32 to vector<8x128xf32>
    %797 = arith.mulf %796, %793 : vector<8x128xf32>
    %798 = arith.mulf %797, %793 : vector<8x128xf32>
    %799 = arith.mulf %798, %793 : vector<8x128xf32>
    %800 = arith.addf %793, %799 : vector<8x128xf32>
    %cst_335 = arith.constant 0.797884583 : f32
    %801 = vector.broadcast %cst_335 : f32 to vector<8x128xf32>
    %802 = arith.mulf %801, %800 : vector<8x128xf32>
    %803 = math.tanh %802 : vector<8x128xf32>
    %cst_336 = arith.constant 1.000000e+00 : f32
    %804 = vector.broadcast %cst_336 : f32 to vector<8x128xf32>
    %805 = arith.addf %804, %803 : vector<8x128xf32>
    %806 = arith.mulf %795, %805 : vector<8x128xf32>
    %c0_337 = arith.constant 0 : index
    %c241_338 = arith.constant 241 : index
    %c0_339 = arith.constant 0 : index
    %807 = tpu.strided_load %arg3[%c0_337, %c241_338, %c0_339] {strides = array<i32: 1, 2, 1>} : memref<1x256x128xf32, #tpu.memory_space<vmem>>, vector<1x8x128xf32>
    %808 = vector.shape_cast %807 : vector<1x8x128xf32> to vector<8x128xf32>
    %809 = arith.addf %806, %808 : vector<8x128xf32>
    %cst_340 = arith.constant 0.70721358 : f32
    %810 = vector.broadcast %cst_340 : f32 to vector<8x128xf32>
    %811 = arith.mulf %809, %810 : vector<8x128xf32>
    %812 = arith.maximumf %739, %763 : vector<8x128xf32>
    %813 = arith.maximumf %787, %811 : vector<8x128xf32>
    %814 = arith.maximumf %812, %813 : vector<8x128xf32>
    %c0_341 = arith.constant 0 : index
    %c56 = arith.constant 56 : index
    %c0_342 = arith.constant 0 : index
    %815 = vector.load %arg6[%c0_341, %c56, %c0_342] : memref<1x64x128xf32, #tpu.memory_space<vmem>>, vector<1x8x128xf32>
    %816 = vector.shape_cast %815 : vector<1x8x128xf32> to vector<8x128xf32>
    %817 = vector.shape_cast %814 : vector<8x128xf32> to vector<1x8x128xf32>
    tpu.vector_store %arg6[%c0_341, %c56, %c0_342], %817 {strides = array<i32>} : memref<1x64x128xf32, #tpu.memory_space<vmem>>, vector<1x8x128xf32>,
    return
  }
  func.func @transform_0(%arg0: i32, %arg1: i32) -> (i32, i32, i32) {
    %c0_i32 = arith.constant 0 : i32
    %c0_i32_0 = arith.constant 0 : i32
    return %arg0, %arg1, %c0_i32 : i32, i32, i32
  }
  func.func @transform_1(%arg0: i32, %arg1: i32) -> (i32, i32, i32) {
    %c0_i32 = arith.constant 0 : i32
    %c0_i32_0 = arith.constant 0 : i32
    return %arg0, %arg1, %c0_i32 : i32, i32, i32
  }
  func.func @transform_2(%arg0: i32, %arg1: i32) -> (i32, i32) {
    %c0_i32 = arith.constant 0 : i32
    %c0_i32_0 = arith.constant 0 : i32
    %c0_i32_1 = arith.constant 0 : i32
    return %c0_i32, %c0_i32_0 : i32, i32
  }
  func.func @transform_3(%arg0: i32, %arg1: i32) -> (i32, i32) {
    %c0_i32 = arith.constant 0 : i32
    %c0_i32_0 = arith.constant 0 : i32
    %c0_i32_1 = arith.constant 0 : i32
    return %c0_i32, %c0_i32_0 : i32, i32
  }
  func.func @transform_4(%arg0: i32, %arg1: i32) -> (i32, i32, i32) {
    %c0_i32 = arith.constant 0 : i32
    %c0_i32_0 = arith.constant 0 : i32
    return %arg0, %arg1, %c0_i32 : i32, i32, i32
  }
}

</mosaic_0001>

<llo_original>
// kernel: unet_down_forward.5
$region0: #{unet_down_forward.5}
  #allocation0 [shape = 'u32[]', space=smem, size = 0x4, offset = 0x4, fixed_abs, tag = 'smem constant byte address 0x4 - core index']
  #allocation1 [shape = 'u32[72,128]{1,0:T(1,128)}', space=vmem, size = 0x9000, scoped, tag = 'internal scratch']
  %s0 = inlined_call_operand.vmem [shape: f32[2,256,128], index: 0, kind: input, shape index: {}]
  %s1 = inlined_call_operand.vmem [shape: f32[1,128], index: 1, kind: input, shape index: {}]
  %s2 = inlined_call_operand.vmem [shape: f32[1,128], index: 2, kind: input, shape index: {}]
  %s3 = inlined_call_operand.vmem [shape: f32[2,256,128], index: 3, kind: output, shape index: {}]
  %s4 = sld [smem:[#allocation0]]
  $region45: #{unet_down_forward.5} parent=0
    _
  %s6 = ssub.s32 1, %s4
  %s7 = scalar_select 0, %s6, %s4
  loop: start=0, step=1, limit=4
  $region2: #{unet_down_forward.5} parent=0 // loop_pre_header
    _
  $region3: #{unet_down_forward.5} parent=0 // loop_header
    %s9 = sphi 0, %s13
    %p10 = scmp.ge.s32.totalorder %s9, 4
    %s16 = sphi 0, %s28
    %s17 = sphi 0, %s24
    %s18 = sphi 0, %s16
    %s19 = sphi 0, %s17
    %s20 = sphi 0, %s18
    %s21 = sphi 0, %s19
    %s33 = sphi 0, %s35
    %s36 = sphi 0, %s33
    %s37 = sphi 0, %s36
    %s53 = sphi 0, %s37
    %s57 = sphi 0, %s57
    %s59 = sphi 0, %s57
    %s60 = sphi 0, %s59
    %s74 = sphi 0, %s60
    %s78 = sphi 0, %s78
    %s80 = sphi 0, %s78
    %s81 = sphi 0, %s80
    %s95 = sphi 0, %s81
    %s103 = sphi 0, %s105
    %s106 = sphi 0, %s103
    %s107 = sphi 0, %s106
    %s123 = sphi 0, %s107
  $region4: #{unet_down_forward.5} parent=0 // loop_header_branch
    %12 = sbr.rel (%p10) target = $region8
  $region5: #{unet_down_forward.5} parent=0 // loop_body
    %s14 = ssub.s32 %s9, 1
    %s15 = ssub.s32 %s9, 2
    %s22 = sadd.s32 1, %s17
    %p23 = scmp.ge.s32.totalorder %s22, 1
    %s24 = scalar_select %p23, 0, %s22
    %s25 = sadd.s32 1, %s16
    %s26 = scalar_select %p23, %s25, %s16
    %p27 = scmp.ge.s32.totalorder %s26, 2
    %s28 = scalar_select %p27, 0, %s26
    %s29 = ssub.s32 %s16, %s28
    %s30 = ssub.s32 %s17, %s24
    %s31 = sor.u32 %s29, %s30
    %p32 = scmp.eq.s32.totalorder %s31, 0
    %s34 = sadd.s32 %s33, 1
    %s35 = scalar_select %p32, %s33, %s34
    %p38 = pneg %p32
    %p39 = scmp.eq.s32.totalorder %s9, 1
    %p40 = por %p38, %p39
    %p41 = scmp.ne.s32.totalorder %s33, %s36
    %p42 = scmp.eq.s32.totalorder %s9, 0
    %p43 = por %p41, %p42
    %p44 = scmp.ne.s32.totalorder %s33, %s36
    %p45 = scmp.eq.s32.totalorder %s14, 1
    %p46 = por %p44, %p45
    %p47 = scmp.ne.s32.totalorder %s36, %s37
    %p48 = scmp.eq.s32.totalorder %s14, 0
    %p49 = por %p47, %p48
    %p50 = scmp.ne.s32.totalorder %s36, %s37
    %p51 = scmp.eq.s32.totalorder %s15, 1
    %p52 = por %p50, %p51
    %p54 = scmp.ne.s32.totalorder %s37, %s53
    %p55 = scmp.eq.s32.totalorder %s15, 0
    %p56 = por %p54, %p55
    %s58 = sadd.s32 %s57, 1
    %p61 = scmp.eq.s32.totalorder %s9, 1
    %p62 = scmp.ne.s32.totalorder %s57, %s59
    %p63 = scmp.eq.s32.totalorder %s9, 0
    %p64 = por %p62, %p63
    %p65 = scmp.ne.s32.totalorder %s57, %s59
    %p66 = scmp.eq.s32.totalorder %s14, 1
    %p67 = por %p65, %p66
    %p68 = scmp.ne.s32.totalorder %s59, %s60
    %p69 = scmp.eq.s32.totalorder %s14, 0
    %p70 = por %p68, %p69
    %p71 = scmp.ne.s32.totalorder %s59, %s60
    %p72 = scmp.eq.s32.totalorder %s15, 1
    %p73 = por %p71, %p72
    %p75 = scmp.ne.s32.totalorder %s60, %s74
    %p76 = scmp.eq.s32.totalorder %s15, 0
    %p77 = por %p75, %p76
    %s79 = sadd.s32 %s78, 1
    %p82 = scmp.eq.s32.totalorder %s9, 1
    %p83 = scmp.ne.s32.totalorder %s78, %s80
    %p84 = scmp.eq.s32.totalorder %s9, 0
    %p85 = por %p83, %p84
    %p86 = scmp.ne.s32.totalorder %s78, %s80
    %p87 = scmp.eq.s32.totalorder %s14, 1
    %p88 = por %p86, %p87
    %p89 = scmp.ne.s32.totalorder %s80, %s81
    %p90 = scmp.eq.s32.totalorder %s14, 0
    %p91 = por %p89, %p90
    %p92 = scmp.ne.s32.totalorder %s80, %s81
    %p93 = scmp.eq.s32.totalorder %s15, 1
    %p94 = por %p92, %p93
    %p96 = scmp.ne.s32.totalorder %s81, %s95
    %p97 = scmp.eq.s32.totalorder %s15, 0
    %p98 = por %p96, %p97
    %s99 = ssub.s32 %s16, %s28
    %s100 = ssub.s32 %s17, %s24
    %s101 = sor.u32 %s99, %s100
    %p102 = scmp.eq.s32.totalorder %s101, 0
    %s104 = sadd.s32 %s103, 1
    %s105 = scalar_select %p102, %s103, %s104
    %p108 = pneg %p102
    %p109 = scmp.eq.s32.totalorder %s9, 1
    %p110 = por %p108, %p109
    %p111 = scmp.ne.s32.totalorder %s103, %s106
    %p112 = scmp.eq.s32.totalorder %s9, 0
    %p113 = por %p111, %p112
    %p114 = scmp.ne.s32.totalorder %s103, %s106
    %p115 = scmp.eq.s32.totalorder %s14, 1
    %p116 = por %p114, %p115
    %p117 = scmp.ne.s32.totalorder %s106, %s107
    %p118 = scmp.eq.s32.totalorder %s14, 0
    %p119 = por %p117, %p118
    %p120 = scmp.ne.s32.totalorder %s106, %s107
    %p121 = scmp.eq.s32.totalorder %s15, 1
    %p122 = por %p120, %p121
    %p124 = scmp.ne.s32.totalorder %s107, %s123
    %p125 = scmp.eq.s32.totalorder %s15, 0
    %p126 = por %p124, %p125
    %p127 = scmp.le.s32.totalorder 1, %s9
    %p128 = scmp.lt.s32.totalorder %s9, 3
    %p129 = pnand %p127, %p128
    %p130 = pneg %p129
    // Predicated region
    $region9: #{unet_down_forward.5} parent=5 // pred_check
      _
    $region10: #{unet_down_forward.5} parent=5 // pred_check_branch
      %132 = sbr.rel (%p129) target = $region12
    $region11: #{unet_down_forward.5} parent=5 // pred_region
      %s133 = ssub.s32 %s9, 1
      // Predicated region
      $region13: #{unet_down_forward.5} parent=11 // pred_check
        %p134 = pneg %p70
      $region14: #{unet_down_forward.5} parent=11 // pred_check_branch
        %136 = sbr.rel (%p134) target = $region16
      $region15: #{unet_down_forward.5} parent=11 // pred_region
        _
      $region16: #{unet_down_forward.5} parent=11 // pred_fallthru
        _
      // Predicated region
      $region17: #{unet_down_forward.5} parent=11 // pred_check
        %p137 = pneg %p91
      $region18: #{unet_down_forward.5} parent=11 // pred_check_branch
        %139 = sbr.rel (%p137) target = $region20
      $region19: #{unet_down_forward.5} parent=11 // pred_region
        _
      $region20: #{unet_down_forward.5} parent=11 // pred_fallthru
        _
    $region12: #{unet_down_forward.5} parent=5 // pred_fallthru
      _
    %p140 = scmp.lt.s32.totalorder %s9, 2
    // Predicated region
    $region21: #{unet_down_forward.5} parent=5 // pred_check
      %p141 = pneg %p140
    $region22: #{unet_down_forward.5} parent=5 // pred_check_branch
      %143 = sbr.rel (%p141) target = $region24
    $region23: #{unet_down_forward.5} parent=5 // pred_region
      // Predicated region
      $region25: #{unet_down_forward.5} parent=23 // pred_check
        %p144 = pneg %p43
      $region26: #{unet_down_forward.5} parent=23 // pred_check_branch
        %146 = sbr.rel (%p144) target = $region28
      $region27: #{unet_down_forward.5} parent=23 // pred_region
        %s147 = smul.u32 32, %s17
        %p148 = scmp.lt.s32.totalorder %s16, 1
        %s149 = scalar_select %p148, %s16, 1
        %p150 = scmp.lt.s32.totalorder %s147, 31
        %s151 = scalar_select %p150, %s147, 31
        %s152 = smul.addr %s149, 32
        %s153 = sadd.s32 %s151, %s152
        %s154 = smul.addr %s153, 8
        %s155 = scalar_lea.vmem %s0, %s154
        %s156 = smul.u32 32, %s17
      $region28: #{unet_down_forward.5} parent=23 // pred_fallthru
        _
    $region24: #{unet_down_forward.5} parent=5 // pred_fallthru
      _
    %p157 = scmp.le.s32.totalorder 1, %s9
    %p158 = scmp.lt.s32.totalorder %s9, 3
    %p159 = pnand %p157, %p158
    %p160 = pneg %p159
    // Predicated region
    $region29: #{unet_down_forward.5} parent=5 // pred_check
      _
    $region30: #{unet_down_forward.5} parent=5 // pred_check_branch
      %162 = sbr.rel (%p159) target = $region32
    $region31: #{unet_down_forward.5} parent=5 // pred_region
      %s163 = ssub.s32 %s9, 1
      %s164 = smul.u32 32, %s19
      %p165 = scmp.lt.s32.totalorder %s18, 1
      %s166 = scalar_select %p165, %s18, 1
      %p167 = scmp.lt.s32.totalorder %s164, 31
      %s168 = scalar_select %p167, %s164, 31
      %s169 = smul.addr %s166, 32
      %s170 = sadd.s32 %s168, %s169
      %s171 = smul.addr %s170, 8
      %s172 = scalar_lea.vmem %s0, %s171
      %p173 = pneg %p49
      %p174 = pneg %p46
      %p175 = pneg %p70
      %p176 = pneg %p67
      %p177 = pneg %p91
      %p178 = pneg %p88
      %p179 = pneg %p119
      %p180 = pneg %p116
      %s181 = smul.u32 32, %s19
      %p182 = scmp.lt.s32.totalorder %s18, 1
      %s183 = scalar_select %p182, %s18, 1
      %p184 = scmp.lt.s32.totalorder %s181, 31
      %s185 = scalar_select %p184, %s181, 31
      %s186 = smul.addr %s183, 32
      %s187 = sadd.s32 %s185, %s186
      %s188 = smul.addr %s187, 8
      %s189 = scalar_lea.vmem %s3, %s188
      %s190 = smul.u32 32, %s19
      %p191 = scmp.lt.s32.totalorder %s18, 1
      %s192 = scalar_select %p191, %s18, 1
      %p193 = scmp.lt.s32.totalorder %s190, 31
      %s194 = scalar_select %p193, %s190, 31
      %s195 = smul.addr %s192, 32
      %s196 = sadd.s32 %s194, %s195
      %s197 = smul.addr %s196, 8
      %s198 = scalar_lea.vmem %s0, %s197
      %s199 = smul.u32 32, %s19
      %s200 = smul.u32 32, %s19
      %p201 = scmp.lt.s32.totalorder %s18, 1
      %s202 = scalar_select %p201, %s18, 1
      %p203 = scmp.lt.s32.totalorder %s200, 31
      %s204 = scalar_select %p203, %s200, 31
      %s205 = smul.addr %s202, 32
      %s206 = sadd.s32 %s204, %s205
      %s207 = smul.addr %s206, 8
      %s208 = scalar_lea.vmem %s3, %s207
      %s209 = smul.u32 32, %s19
      %v210 = vld [vmem:[%s198] sm:$0xff]
      %v211 = vld [vmem:[%s198 + $0x8] sm:$0xff]
      %v212 = vld [vmem:[%s198 + $0x10] sm:$0xff]
      %v213 = vld [vmem:[%s198 + $0x18] sm:$0xff]
      %v214 = vld [vmem:[%s198 + $0x20] sm:$0xff]
      %v215 = vld [vmem:[%s198 + $0x28] sm:$0xff]
      %v216 = vld [vmem:[%s198 + $0x30] sm:$0xff]
      %v217 = vld [vmem:[%s198 + $0x38] sm:$0xff]
      %v218 = vld [vmem:[%s198 + $0x40] sm:$0xff]
      %v219 = vld [vmem:[%s198 + $0x48] sm:$0xff]
      %v220 = vld [vmem:[%s198 + $0x50] sm:$0xff]
      %v221 = vld [vmem:[%s198 + $0x58] sm:$0xff]
      %v222 = vld [vmem:[%s198 + $0x60] sm:$0xff]
      %v223 = vld [vmem:[%s198 + $0x68] sm:$0xff]
      %v224 = vld [vmem:[%s198 + $0x70] sm:$0xff]
      %v225 = vld [vmem:[%s198 + $0x78] sm:$0xff]
      %v226 = vld [vmem:[%s198 + $0x80] sm:$0xff]
      %v227 = vld [vmem:[%s198 + $0x88] sm:$0xff]
      %v228 = vld [vmem:[%s198 + $0x90] sm:$0xff]
      %v229 = vld [vmem:[%s198 + $0x98] sm:$0xff]
      %v230 = vld [vmem:[%s198 + $0xa0] sm:$0xff]
      %v231 = vld [vmem:[%s198 + $0xa8] sm:$0xff]
      %v232 = vld [vmem:[%s198 + $0xb0] sm:$0xff]
      %v233 = vld [vmem:[%s198 + $0xb8] sm:$0xff]
      %v234 = vld [vmem:[%s198 + $0xc0] sm:$0xff]
      %v235 = vld [vmem:[%s198 + $0xc8] sm:$0xff]
      %v236 = vld [vmem:[%s198 + $0xd0] sm:$0xff]
      %v237 = vld [vmem:[%s198 + $0xd8] sm:$0xff]
      %v238 = vld [vmem:[%s198 + $0xe0] sm:$0xff]
      %v239 = vld [vmem:[%s198 + $0xe8] sm:$0xff]
      %v240 = vld [vmem:[%s198 + $0xf0] sm:$0xff]
      %v241 = vld [vmem:[%s198 + $0xf8] sm:$0xff]
      %v242 = vld [vmem:[%s1] sm:$0x1]
      %v244 = vperm.slane %v242, 0
      %v246 = vmul.f32 %v210, %v244
      %v247 = vmul.f32 %v211, %v244
      %v248 = vmul.f32 %v212, %v244
      %v249 = vmul.f32 %v213, %v244
      %v250 = vmul.f32 %v214, %v244
      %v251 = vmul.f32 %v215, %v244
      %v252 = vmul.f32 %v216, %v244
      %v253 = vmul.f32 %v217, %v244
      %v254 = vmul.f32 %v218, %v244
      %v255 = vmul.f32 %v219, %v244
      %v256 = vmul.f32 %v220, %v244
      %v257 = vmul.f32 %v221, %v244
      %v258 = vmul.f32 %v222, %v244
      %v259 = vmul.f32 %v223, %v244
      %v260 = vmul.f32 %v224, %v244
      %v261 = vmul.f32 %v225, %v244
      %v262 = vmul.f32 %v226, %v244
      %v263 = vmul.f32 %v227, %v244
      %v264 = vmul.f32 %v228, %v244
      %v265 = vmul.f32 %v229, %v244
      %v266 = vmul.f32 %v230, %v244
      %v267 = vmul.f32 %v231, %v244
      %v268 = vmul.f32 %v232, %v244
      %v269 = vmul.f32 %v233, %v244
      %v270 = vmul.f32 %v234, %v244
      %v271 = vmul.f32 %v235, %v244
      %v272 = vmul.f32 %v236, %v244
      %v273 = vmul.f32 %v237, %v244
      %v274 = vmul.f32 %v238, %v244
      %v275 = vmul.f32 %v239, %v244
      %v276 = vmul.f32 %v240, %v244
      %v277 = vmul.f32 %v241, %v244
      %v278 = vld [vmem:[%s2] sm:$0x1]
      %v280 = vperm.slane %v278, 0
      %v282 = vadd.f32 %v246, %v280
      %v283 = vadd.f32 %v247, %v280
      %v284 = vadd.f32 %v248, %v280
      %v285 = vadd.f32 %v249, %v280
      %v286 = vadd.f32 %v250, %v280
      %v287 = vadd.f32 %v251, %v280
      %v288 = vadd.f32 %v252, %v280
      %v289 = vadd.f32 %v253, %v280
      %v290 = vadd.f32 %v254, %v280
      %v291 = vadd.f32 %v255, %v280
      %v292 = vadd.f32 %v256, %v280
      %v293 = vadd.f32 %v257, %v280
      %v294 = vadd.f32 %v258, %v280
      %v295 = vadd.f32 %v259, %v280
      %v296 = vadd.f32 %v260, %v280
      %v297 = vadd.f32 %v261, %v280
      %v298 = vadd.f32 %v262, %v280
      %v299 = vadd.f32 %v263, %v280
      %v300 = vadd.f32 %v264, %v280
      %v301 = vadd.f32 %v265, %v280
      %v302 = vadd.f32 %v266, %v280
      %v303 = vadd.f32 %v267, %v280
      %v304 = vadd.f32 %v268, %v280
      %v305 = vadd.f32 %v269, %v280
      %v306 = vadd.f32 %v270, %v280
      %v307 = vadd.f32 %v271, %v280
      %v308 = vadd.f32 %v272, %v280
      %v309 = vadd.f32 %v273, %v280
      %v310 = vadd.f32 %v274, %v280
      %v311 = vadd.f32 %v275, %v280
      %v312 = vadd.f32 %v276, %v280
      %v313 = vadd.f32 %v277, %v280
      %v314 = vmul.f32 %v282, 0.5
      %v315 = vmul.f32 %v283, 0.5
      %v316 = vmul.f32 %v284, 0.5
      %v317 = vmul.f32 %v285, 0.5
      %v318 = vmul.f32 %v286, 0.5
      %v319 = vmul.f32 %v287, 0.5
      %v320 = vmul.f32 %v288, 0.5
      %v321 = vmul.f32 %v289, 0.5
      %v322 = vmul.f32 %v290, 0.5
      %v323 = vmul.f32 %v291, 0.5
      %v324 = vmul.f32 %v292, 0.5
      %v325 = vmul.f32 %v293, 0.5
      %v326 = vmul.f32 %v294, 0.5
      %v327 = vmul.f32 %v295, 0.5
      %v328 = vmul.f32 %v296, 0.5
      %v329 = vmul.f32 %v297, 0.5
      %v330 = vmul.f32 %v298, 0.5
      %v331 = vmul.f32 %v299, 0.5
      %v332 = vmul.f32 %v300, 0.5
      %v333 = vmul.f32 %v301, 0.5
      %v334 = vmul.f32 %v302, 0.5
      %v335 = vmul.f32 %v303, 0.5
      %v336 = vmul.f32 %v304, 0.5
      %v337 = vmul.f32 %v305, 0.5
      %v338 = vmul.f32 %v306, 0.5
      %v339 = vmul.f32 %v307, 0.5
      %v340 = vmul.f32 %v308, 0.5
      %v341 = vmul.f32 %v309, 0.5
      %v342 = vmul.f32 %v310, 0.5
      %v343 = vmul.f32 %v311, 0.5
      %v344 = vmul.f32 %v312, 0.5
      %v345 = vmul.f32 %v313, 0.5
      %v346 = vmul.f32 %v282, 0.044715
      %v347 = vmul.f32 %v283, 0.044715
      %v348 = vmul.f32 %v284, 0.044715
      %v349 = vmul.f32 %v285, 0.044715
      %v350 = vmul.f32 %v286, 0.044715
      %v351 = vmul.f32 %v287, 0.044715
      %v352 = vmul.f32 %v288, 0.044715
      %v353 = vmul.f32 %v289, 0.044715
      %v354 = vmul.f32 %v290, 0.044715
      %v355 = vmul.f32 %v291, 0.044715
      %v356 = vmul.f32 %v292, 0.044715
      %v357 = vmul.f32 %v293, 0.044715
      %v358 = vmul.f32 %v294, 0.044715
      %v359 = vmul.f32 %v295, 0.044715
      %v360 = vmul.f32 %v296, 0.044715
      %v361 = vmul.f32 %v297, 0.044715
      %v362 = vmul.f32 %v298, 0.044715
      %v363 = vmul.f32 %v299, 0.044715
      %v364 = vmul.f32 %v300, 0.044715
      %v365 = vmul.f32 %v301, 0.044715
      %v366 = vmul.f32 %v302, 0.044715
      %v367 = vmul.f32 %v303, 0.044715
      %v368 = vmul.f32 %v304, 0.044715
      %v369 = vmul.f32 %v305, 0.044715
      %v370 = vmul.f32 %v306, 0.044715
      %v371 = vmul.f32 %v307, 0.044715
      %v372 = vmul.f32 %v308, 0.044715
      %v373 = vmul.f32 %v309, 0.044715
      %v374 = vmul.f32 %v310, 0.044715
      %v375 = vmul.f32 %v311, 0.044715
      %v376 = vmul.f32 %v312, 0.044715
      %v377 = vmul.f32 %v313, 0.044715
      %v378 = vmul.f32 %v346, %v282
      %v379 = vmul.f32 %v347, %v283
      %v380 = vmul.f32 %v348, %v284
      %v381 = vmul.f32 %v349, %v285
      %v382 = vmul.f32 %v350, %v286
      %v383 = vmul.f32 %v351, %v287
      %v384 = vmul.f32 %v352, %v288
      %v385 = vmul.f32 %v353, %v289
      %v386 = vmul.f32 %v354, %v290
      %v387 = vmul.f32 %v355, %v291
      %v388 = vmul.f32 %v356, %v292
      %v389 = vmul.f32 %v357, %v293
      %v390 = vmul.f32 %v358, %v294
      %v391 = vmul.f32 %v359, %v295
      %v392 = vmul.f32 %v360, %v296
      %v393 = vmul.f32 %v361, %v297
      %v394 = vmul.f32 %v362, %v298
      %v395 = vmul.f32 %v363, %v299
      %v396 = vmul.f32 %v364, %v300
      %v397 = vmul.f32 %v365, %v301
      %v398 = vmul.f32 %v366, %v302
      %v399 = vmul.f32 %v367, %v303
      %v400 = vmul.f32 %v368, %v304
      %v401 = vmul.f32 %v369, %v305
      %v402 = vmul.f32 %v370, %v306
      %v403 = vmul.f32 %v371, %v307
      %v404 = vmul.f32 %v372, %v308
      %v405 = vmul.f32 %v373, %v309
      %v406 = vmul.f32 %v374, %v310
      %v407 = vmul.f32 %v375, %v311
      %v408 = vmul.f32 %v376, %v312
      %v409 = vmul.f32 %v377, %v313
      %v410 = vmul.f32 %v378, %v282
      %v411 = vmul.f32 %v379, %v283
      %v412 = vmul.f32 %v380, %v284
      %v413 = vmul.f32 %v381, %v285
      %v414 = vmul.f32 %v382, %v286
      %v415 = vmul.f32 %v383, %v287
      %v416 = vmul.f32 %v384, %v288
      %v417 = vmul.f32 %v385, %v289
      %v418 = vmul.f32 %v386, %v290
      %v419 = vmul.f32 %v387, %v291
      %v420 = vmul.f32 %v388, %v292
      %v421 = vmul.f32 %v389, %v293
      %v422 = vmul.f32 %v390, %v294
      %v423 = vmul.f32 %v391, %v295
      %v424 = vmul.f32 %v392, %v296
      %v425 = vmul.f32 %v393, %v297
      %v426 = vmul.f32 %v394, %v298
      %v427 = vmul.f32 %v395, %v299
      %v428 = vmul.f32 %v396, %v300
      %v429 = vmul.f32 %v397, %v301
      %v430 = vmul.f32 %v398, %v302
      %v431 = vmul.f32 %v399, %v303
      %v432 = vmul.f32 %v400, %v304
      %v433 = vmul.f32 %v401, %v305
      %v434 = vmul.f32 %v402, %v306
      %v435 = vmul.f32 %v403, %v307
      %v436 = vmul.f32 %v404, %v308
      %v437 = vmul.f32 %v405, %v309
      %v438 = vmul.f32 %v406, %v310
      %v439 = vmul.f32 %v407, %v311
      %v440 = vmul.f32 %v408, %v312
      %v441 = vmul.f32 %v409, %v313
      %v442 = vadd.f32 %v282, %v410
      %v443 = vadd.f32 %v283, %v411
      %v444 = vadd.f32 %v284, %v412
      %v445 = vadd.f32 %v285, %v413
      %v446 = vadd.f32 %v286, %v414
      %v447 = vadd.f32 %v287, %v415
      %v448 = vadd.f32 %v288, %v416
      %v449 = vadd.f32 %v289, %v417
      %v450 = vadd.f32 %v290, %v418
      %v451 = vadd.f32 %v291, %v419
      %v452 = vadd.f32 %v292, %v420
      %v453 = vadd.f32 %v293, %v421
      %v454 = vadd.f32 %v294, %v422
      %v455 = vadd.f32 %v295, %v423
      %v456 = vadd.f32 %v296, %v424
      %v457 = vadd.f32 %v297, %v425
      %v458 = vadd.f32 %v298, %v426
      %v459 = vadd.f32 %v299, %v427
      %v460 = vadd.f32 %v300, %v428
      %v461 = vadd.f32 %v301, %v429
      %v462 = vadd.f32 %v302, %v430
      %v463 = vadd.f32 %v303, %v431
      %v464 = vadd.f32 %v304, %v432
      %v465 = vadd.f32 %v305, %v433
      %v466 = vadd.f32 %v306, %v434
      %v467 = vadd.f32 %v307, %v435
      %v468 = vadd.f32 %v308, %v436
      %v469 = vadd.f32 %v309, %v437
      %v470 = vadd.f32 %v310, %v438
      %v471 = vadd.f32 %v311, %v439
      %v472 = vadd.f32 %v312, %v440
      %v473 = vadd.f32 %v313, %v441
      %v474 = vmul.f32 %v442, 0.7978846
      %v475 = vmul.f32 %v443, 0.7978846
      %v476 = vmul.f32 %v444, 0.7978846
      %v477 = vmul.f32 %v445, 0.7978846
      %v478 = vmul.f32 %v446, 0.7978846
      %v479 = vmul.f32 %v447, 0.7978846
      %v480 = vmul.f32 %v448, 0.7978846
      %v481 = vmul.f32 %v449, 0.7978846
      %v482 = vmul.f32 %v450, 0.7978846
      %v483 = vmul.f32 %v451, 0.7978846
      %v484 = vmul.f32 %v452, 0.7978846
      %v485 = vmul.f32 %v453, 0.7978846
      %v486 = vmul.f32 %v454, 0.7978846
      %v487 = vmul.f32 %v455, 0.7978846
      %v488 = vmul.f32 %v456, 0.7978846
      %v489 = vmul.f32 %v457, 0.7978846
      %v490 = vmul.f32 %v458, 0.7978846
      %v491 = vmul.f32 %v459, 0.7978846
      %v492 = vmul.f32 %v460, 0.7978846
      %v493 = vmul.f32 %v461, 0.7978846
      %v494 = vmul.f32 %v462, 0.7978846
      %v495 = vmul.f32 %v463, 0.7978846
      %v496 = vmul.f32 %v464, 0.7978846
      %v497 = vmul.f32 %v465, 0.7978846
      %v498 = vmul.f32 %v466, 0.7978846
      %v499 = vmul.f32 %v467, 0.7978846
      %v500 = vmul.f32 %v468, 0.7978846
      %v501 = vmul.f32 %v469, 0.7978846
      %v502 = vmul.f32 %v470, 0.7978846
      %v503 = vmul.f32 %v471, 0.7978846
      %v504 = vmul.f32 %v472, 0.7978846
      %v505 = vmul.f32 %v473, 0.7978846
      %v506 = vtanh.pop %v474
      %v507 = vtanh.pop %v475
      %v508 = vtanh.pop %v476
      %v509 = vtanh.pop %v477
      %v510 = vtanh.pop %v478
      %v511 = vtanh.pop %v479
      %v512 = vtanh.pop %v480
      %v513 = vtanh.pop %v481
      %v514 = vtanh.pop %v482
      %v515 = vtanh.pop %v483
      %v516 = vtanh.pop %v484
      %v517 = vtanh.pop %v485
      %v518 = vtanh.pop %v486
      %v519 = vtanh.pop %v487
      %v520 = vtanh.pop %v488
      %v521 = vtanh.pop %v489
      %v522 = vtanh.pop %v490
      %v523 = vtanh.pop %v491
      %v524 = vtanh.pop %v492
      %v525 = vtanh.pop %v493
      %v526 = vtanh.pop %v494
      %v527 = vtanh.pop %v495
      %v528 = vtanh.pop %v496
      %v529 = vtanh.pop %v497
      %v530 = vtanh.pop %v498
      %v531 = vtanh.pop %v499
      %v532 = vtanh.pop %v500
      %v533 = vtanh.pop %v501
      %v534 = vtanh.pop %v502
      %v535 = vtanh.pop %v503
      %v536 = vtanh.pop %v504
      %v537 = vtanh.pop %v505
      %v538 = vadd.f32 %v506, 1.0
      %v539 = vadd.f32 %v507, 1.0
      %v540 = vadd.f32 %v508, 1.0
      %v541 = vadd.f32 %v509, 1.0
      %v542 = vadd.f32 %v510, 1.0
      %v543 = vadd.f32 %v511, 1.0
      %v544 = vadd.f32 %v512, 1.0
      %v545 = vadd.f32 %v513, 1.0
      %v546 = vadd.f32 %v514, 1.0
      %v547 = vadd.f32 %v515, 1.0
      %v548 = vadd.f32 %v516, 1.0
      %v549 = vadd.f32 %v517, 1.0
      %v550 = vadd.f32 %v518, 1.0
      %v551 = vadd.f32 %v519, 1.0
      %v552 = vadd.f32 %v520, 1.0
      %v553 = vadd.f32 %v521, 1.0
      %v554 = vadd.f32 %v522, 1.0
      %v555 = vadd.f32 %v523, 1.0
      %v556 = vadd.f32 %v524, 1.0
      %v557 = vadd.f32 %v525, 1.0
      %v558 = vadd.f32 %v526, 1.0
      %v559 = vadd.f32 %v527, 1.0
      %v560 = vadd.f32 %v528, 1.0
      %v561 = vadd.f32 %v529, 1.0
      %v562 = vadd.f32 %v530, 1.0
      %v563 = vadd.f32 %v531, 1.0
      %v564 = vadd.f32 %v532, 1.0
      %v565 = vadd.f32 %v533, 1.0
      %v566 = vadd.f32 %v534, 1.0
      %v567 = vadd.f32 %v535, 1.0
      %v568 = vadd.f32 %v536, 1.0
      %v569 = vadd.f32 %v537, 1.0
      %v570 = vmul.f32 %v314, %v538
      %v571 = vmul.f32 %v315, %v539
      %v572 = vmul.f32 %v316, %v540
      %v573 = vmul.f32 %v317, %v541
      %v574 = vmul.f32 %v318, %v542
      %v575 = vmul.f32 %v319, %v543
      %v576 = vmul.f32 %v320, %v544
      %v577 = vmul.f32 %v321, %v545
      %v578 = vmul.f32 %v322, %v546
      %v579 = vmul.f32 %v323, %v547
      %v580 = vmul.f32 %v324, %v548
      %v581 = vmul.f32 %v325, %v549
      %v582 = vmul.f32 %v326, %v550
      %v583 = vmul.f32 %v327, %v551
      %v584 = vmul.f32 %v328, %v552
      %v585 = vmul.f32 %v329, %v553
      %v586 = vmul.f32 %v330, %v554
      %v587 = vmul.f32 %v331, %v555
      %v588 = vmul.f32 %v332, %v556
      %v589 = vmul.f32 %v333, %v557
      %v590 = vmul.f32 %v334, %v558
      %v591 = vmul.f32 %v335, %v559
      %v592 = vmul.f32 %v336, %v560
      %v593 = vmul.f32 %v337, %v561
      %v594 = vmul.f32 %v338, %v562
      %v595 = vmul.f32 %v339, %v563
      %v596 = vmul.f32 %v340, %v564
      %v597 = vmul.f32 %v341, %v565
      %v598 = vmul.f32 %v342, %v566
      %v599 = vmul.f32 %v343, %v567
      %v600 = vmul.f32 %v344, %v568
      %v601 = vmul.f32 %v345, %v569
      %602 = vst [vmem:[%s208] sm:$0xff] %v570
      %603 = vst [vmem:[%s208 + $0x8] sm:$0xff] %v571
      %604 = vst [vmem:[%s208 + $0x10] sm:$0xff] %v572
      %605 = vst [vmem:[%s208 + $0x18] sm:$0xff] %v573
      %606 = vst [vmem:[%s208 + $0x20] sm:$0xff] %v574
      %607 = vst [vmem:[%s208 + $0x28] sm:$0xff] %v575
      %608 = vst [vmem:[%s208 + $0x30] sm:$0xff] %v576
      %609 = vst [vmem:[%s208 + $0x38] sm:$0xff] %v577
      %610 = vst [vmem:[%s208 + $0x40] sm:$0xff] %v578
      %611 = vst [vmem:[%s208 + $0x48] sm:$0xff] %v579
      %612 = vst [vmem:[%s208 + $0x50] sm:$0xff] %v580
      %613 = vst [vmem:[%s208 + $0x58] sm:$0xff] %v581
      %614 = vst [vmem:[%s208 + $0x60] sm:$0xff] %v582
      %615 = vst [vmem:[%s208 + $0x68] sm:$0xff] %v583
      %616 = vst [vmem:[%s208 + $0x70] sm:$0xff] %v584
      %617 = vst [vmem:[%s208 + $0x78] sm:$0xff] %v585
      %618 = vst [vmem:[%s208 + $0x80] sm:$0xff] %v586
      %619 = vst [vmem:[%s208 + $0x88] sm:$0xff] %v587
      %620 = vst [vmem:[%s208 + $0x90] sm:$0xff] %v588
      %621 = vst [vmem:[%s208 + $0x98] sm:$0xff] %v589
      %622 = vst [vmem:[%s208 + $0xa0] sm:$0xff] %v590
      %623 = vst [vmem:[%s208 + $0xa8] sm:$0xff] %v591
      %624 = vst [vmem:[%s208 + $0xb0] sm:$0xff] %v592
      %625 = vst [vmem:[%s208 + $0xb8] sm:$0xff] %v593
      %626 = vst [vmem:[%s208 + $0xc0] sm:$0xff] %v594
      %627 = vst [vmem:[%s208 + $0xc8] sm:$0xff] %v595
      %628 = vst [vmem:[%s208 + $0xd0] sm:$0xff] %v596
      %629 = vst [vmem:[%s208 + $0xd8] sm:$0xff] %v597
      %630 = vst [vmem:[%s208 + $0xe0] sm:$0xff] %v598
      %631 = vst [vmem:[%s208 + $0xe8] sm:$0xff] %v599
      %632 = vst [vmem:[%s208 + $0xf0] sm:$0xff] %v600
      %633 = vst [vmem:[%s208 + $0xf8] sm:$0xff] %v601
      %s634 = smul.u32 32, %s19
      %p635 = scmp.lt.s32.totalorder %s18, 1
      %s636 = scalar_select %p635, %s18, 1
      %p637 = scmp.lt.s32.totalorder %s634, 31
      %s638 = scalar_select %p637, %s634, 31
      %s639 = smul.addr %s636, 32
      %s640 = sadd.s32 %s638, %s639
      %s641 = smul.addr %s640, 8
      %s642 = scalar_lea.vmem %s3, %s641
      // Predicated region
      $region33: #{unet_down_forward.5} parent=31 // pred_check
        %p643 = pneg %p116
      $region34: #{unet_down_forward.5} parent=31 // pred_check_branch
        %645 = sbr.rel (%p643) target = $region36
      $region35: #{unet_down_forward.5} parent=31 // pred_region
        %s646 = smul.u32 32, %s19
      $region36: #{unet_down_forward.5} parent=31 // pred_fallthru
        _
    $region32: #{unet_down_forward.5} parent=5 // pred_fallthru
      _
    %p647 = scmp.le.s32.totalorder 2, %s9
    // Predicated region
    $region37: #{unet_down_forward.5} parent=5 // pred_check
      %p648 = pneg %p647
    $region38: #{unet_down_forward.5} parent=5 // pred_check_branch
      %650 = sbr.rel (%p648) target = $region40
    $region39: #{unet_down_forward.5} parent=5 // pred_region
      %s651 = ssub.s32 %s9, 2
      // Predicated region
      $region41: #{unet_down_forward.5} parent=39 // pred_check
        %p652 = pneg %p122
      $region42: #{unet_down_forward.5} parent=39 // pred_check_branch
        %654 = sbr.rel (%p652) target = $region44
      $region43: #{unet_down_forward.5} parent=39 // pred_region
        %s655 = smul.u32 32, %s21
        %p656 = scmp.lt.s32.totalorder %s20, 1
        %s657 = scalar_select %p656, %s20, 1
        %p658 = scmp.lt.s32.totalorder %s655, 31
        %s659 = scalar_select %p658, %s655, 31
        %s660 = smul.addr %s657, 32
        %s661 = sadd.s32 %s659, %s660
        %s662 = smul.addr %s661, 8
        %s663 = scalar_lea.vmem %s3, %s662
      $region44: #{unet_down_forward.5} parent=39 // pred_fallthru
        _
    $region40: #{unet_down_forward.5} parent=5 // pred_fallthru
      _
  $region6: #{unet_down_forward.5} parent=0 // loop_footer
    %s13 = sadd.s32 1, %s9
  $region7: #{unet_down_forward.5} parent=0 // loop_footer_branch
    %8 = sbr.rel target = $region3
  $region8: #{unet_down_forward.5} parent=0 // loop_exit
    _

// kernel: unet_down_forward.4
$region0: #{unet_down_forward.4}
  #allocation0 [shape = 'u32[]', space=smem, size = 0x4, offset = 0x4, fixed_abs, tag = 'smem constant byte address 0x4 - core index']
  #allocation1 [shape = 'u32[72,128]{1,0:T(1,128)}', space=vmem, size = 0x9000, scoped, tag = 'internal scratch']
  %s0 = inlined_call_operand.vmem [shape: f32[2,18,18,8], index: 0, kind: input, shape index: {}]
  %s1 = inlined_call_operand.vmem [shape: bf16[9,8,128], index: 1, kind: input, shape index: {}]
  %s2 = inlined_call_operand.vmem [shape: f32[1,128], index: 2, kind: input, shape index: {}]
  %s3 = inlined_call_operand.vmem [shape: f32[2,256,128], index: 3, kind: output, shape index: {0}]
  %s4 = inlined_call_operand.vmem [shape: f32[2,2,128], index: 4, kind: output, shape index: {1}]
  %5 = xla_tuple %s3, %s4
  %s6 = sld [smem:[#allocation0]]
  $region53: #{unet_down_forward.4} parent=0
    _
  %s8 = ssub.s32 1, %s6
  %s9 = scalar_select 0, %s8, %s6
  loop: start=0, step=1, limit=4
  $region2: #{unet_down_forward.4} parent=0 // loop_pre_header
    _
  $region3: #{unet_down_forward.4} parent=0 // loop_header
    %s11 = sphi 0, %s15
    %p12 = scmp.ge.s32.totalorder %s11, 4
    %s21 = sphi 0, %s23
    %s24 = sphi 0, %s21
    %s25 = sphi 0, %s24
    %s41 = sphi 0, %s25
    %s45 = sphi 0, %s45
    %s47 = sphi 0, %s45
    %s48 = sphi 0, %s47
    %s62 = sphi 0, %s48
    %s66 = sphi 0, %s66
    %s68 = sphi 0, %s66
    %s69 = sphi 0, %s68
    %s83 = sphi 0, %s69
    %s89 = sphi 0, %s91
    %s92 = sphi 0, %s89
    %s93 = sphi 0, %s92
    %s109 = sphi 0, %s93
    %s115 = sphi 0, %s117
    %s118 = sphi 0, %s115
    %s119 = sphi 0, %s118
    %s135 = sphi 0, %s119
  $region4: #{unet_down_forward.4} parent=0 // loop_header_branch
    %14 = sbr.rel (%p12) target = $region8
  $region5: #{unet_down_forward.4} parent=0 // loop_body
    %s16 = ssub.s32 %s11, 1
    %s17 = ssub.s32 %s11, 2
    %s18 = sadd.s32 %s11, 1
    %s19 = ssub.s32 %s11, %s18
    %p20 = scmp.eq.s32.totalorder %s19, 0
    %s22 = sadd.s32 %s21, 1
    %s23 = scalar_select %p20, %s21, %s22
    %p26 = pneg %p20
    %p27 = scmp.eq.s32.totalorder %s11, 1
    %p28 = por %p26, %p27
    %p29 = scmp.ne.s32.totalorder %s21, %s24
    %p30 = scmp.eq.s32.totalorder %s11, 0
    %p31 = por %p29, %p30
    %p32 = scmp.ne.s32.totalorder %s21, %s24
    %p33 = scmp.eq.s32.totalorder %s16, 1
    %p34 = por %p32, %p33
    %p35 = scmp.ne.s32.totalorder %s24, %s25
    %p36 = scmp.eq.s32.totalorder %s16, 0
    %p37 = por %p35, %p36
    %p38 = scmp.ne.s32.totalorder %s24, %s25
    %p39 = scmp.eq.s32.totalorder %s17, 1
    %p40 = por %p38, %p39
    %p42 = scmp.ne.s32.totalorder %s25, %s41
    %p43 = scmp.eq.s32.totalorder %s17, 0
    %p44 = por %p42, %p43
    %s46 = sadd.s32 %s45, 1
    %p49 = scmp.eq.s32.totalorder %s11, 1
    %p50 = scmp.ne.s32.totalorder %s45, %s47
    %p51 = scmp.eq.s32.totalorder %s11, 0
    %p52 = por %p50, %p51
    %p53 = scmp.ne.s32.totalorder %s45, %s47
    %p54 = scmp.eq.s32.totalorder %s16, 1
    %p55 = por %p53, %p54
    %p56 = scmp.ne.s32.totalorder %s47, %s48
    %p57 = scmp.eq.s32.totalorder %s16, 0
    %p58 = por %p56, %p57
    %p59 = scmp.ne.s32.totalorder %s47, %s48
    %p60 = scmp.eq.s32.totalorder %s17, 1
    %p61 = por %p59, %p60
    %p63 = scmp.ne.s32.totalorder %s48, %s62
    %p64 = scmp.eq.s32.totalorder %s17, 0
    %p65 = por %p63, %p64
    %s67 = sadd.s32 %s66, 1
    %p70 = scmp.eq.s32.totalorder %s11, 1
    %p71 = scmp.ne.s32.totalorder %s66, %s68
    %p72 = scmp.eq.s32.totalorder %s11, 0
    %p73 = por %p71, %p72
    %p74 = scmp.ne.s32.totalorder %s66, %s68
    %p75 = scmp.eq.s32.totalorder %s16, 1
    %p76 = por %p74, %p75
    %p77 = scmp.ne.s32.totalorder %s68, %s69
    %p78 = scmp.eq.s32.totalorder %s16, 0
    %p79 = por %p77, %p78
    %p80 = scmp.ne.s32.totalorder %s68, %s69
    %p81 = scmp.eq.s32.totalorder %s17, 1
    %p82 = por %p80, %p81
    %p84 = scmp.ne.s32.totalorder %s69, %s83
    %p85 = scmp.eq.s32.totalorder %s17, 0
    %p86 = por %p84, %p85
    %s87 = ssub.s32 %s11, %s18
    %p88 = scmp.eq.s32.totalorder %s87, 0
    %s90 = sadd.s32 %s89, 1
    %s91 = scalar_select %p88, %s89, %s90
    %p94 = pneg %p88
    %p95 = scmp.eq.s32.totalorder %s11, 1
    %p96 = por %p94, %p95
    %p97 = scmp.ne.s32.totalorder %s89, %s92
    %p98 = scmp.eq.s32.totalorder %s11, 0
    %p99 = por %p97, %p98
    %p100 = scmp.ne.s32.totalorder %s89, %s92
    %p101 = scmp.eq.s32.totalorder %s16, 1
    %p102 = por %p100, %p101
    %p103 = scmp.ne.s32.totalorder %s92, %s93
    %p104 = scmp.eq.s32.totalorder %s16, 0
    %p105 = por %p103, %p104
    %p106 = scmp.ne.s32.totalorder %s92, %s93
    %p107 = scmp.eq.s32.totalorder %s17, 1
    %p108 = por %p106, %p107
    %p110 = scmp.ne.s32.totalorder %s93, %s109
    %p111 = scmp.eq.s32.totalorder %s17, 0
    %p112 = por %p110, %p111
    %s113 = ssub.s32 %s11, %s18
    %p114 = scmp.eq.s32.totalorder %s113, 0
    %s116 = sadd.s32 %s115, 1
    %s117 = scalar_select %p114, %s115, %s116
    %p120 = pneg %p114
    %p121 = scmp.eq.s32.totalorder %s11, 1
    %p122 = por %p120, %p121
    %p123 = scmp.ne.s32.totalorder %s115, %s118
    %p124 = scmp.eq.s32.totalorder %s11, 0
    %p125 = por %p123, %p124
    %p126 = scmp.ne.s32.totalorder %s115, %s118
    %p127 = scmp.eq.s32.totalorder %s16, 1
    %p128 = por %p126, %p127
    %p129 = scmp.ne.s32.totalorder %s118, %s119
    %p130 = scmp.eq.s32.totalorder %s16, 0
    %p131 = por %p129, %p130
    %p132 = scmp.ne.s32.totalorder %s118, %s119
    %p133 = scmp.eq.s32.totalorder %s17, 1
    %p134 = por %p132, %p133
    %p136 = scmp.ne.s32.totalorder %s119, %s135
    %p137 = scmp.eq.s32.totalorder %s17, 0
    %p138 = por %p136, %p137
    %p139 = scmp.le.s32.totalorder 1, %s11
    %p140 = scmp.lt.s32.totalorder %s11, 3
    %p141 = pnand %p139, %p140
    %p142 = pneg %p141
    // Predicated region
    $region9: #{unet_down_forward.4} parent=5 // pred_check
      _
    $region10: #{unet_down_forward.4} parent=5 // pred_check_branch
      %144 = sbr.rel (%p141) target = $region12
    $region11: #{unet_down_forward.4} parent=5 // pred_region
      %s145 = ssub.s32 %s11, 1
      // Predicated region
      $region13: #{unet_down_forward.4} parent=11 // pred_check
        %p146 = pneg %p58
      $region14: #{unet_down_forward.4} parent=11 // pred_check_branch
        %148 = sbr.rel (%p146) target = $region16
      $region15: #{unet_down_forward.4} parent=11 // pred_region
        _
      $region16: #{unet_down_forward.4} parent=11 // pred_fallthru
        _
      // Predicated region
      $region17: #{unet_down_forward.4} parent=11 // pred_check
        %p149 = pneg %p79
      $region18: #{unet_down_forward.4} parent=11 // pred_check_branch
        %151 = sbr.rel (%p149) target = $region20
      $region19: #{unet_down_forward.4} parent=11 // pred_region
        _
      $region20: #{unet_down_forward.4} parent=11 // pred_fallthru
        _
    $region12: #{unet_down_forward.4} parent=5 // pred_fallthru
      _
    %p152 = scmp.lt.s32.totalorder %s11, 2
    // Predicated region
    $region21: #{unet_down_forward.4} parent=5 // pred_check
      %p153 = pneg %p152
    $region22: #{unet_down_forward.4} parent=5 // pred_check_branch
      %155 = sbr.rel (%p153) target = $region24
    $region23: #{unet_down_forward.4} parent=5 // pred_region
      // Predicated region
      $region25: #{unet_down_forward.4} parent=23 // pred_check
        %p156 = pneg %p31
      $region26: #{unet_down_forward.4} parent=23 // pred_check_branch
        %158 = sbr.rel (%p156) target = $region28
      $region27: #{unet_down_forward.4} parent=23 // pred_region
        %p159 = scmp.lt.s32.totalorder %s11, 1
        %s160 = scalar_select %p159, %s11, 1
        %s161 = smul.addr %s160, 54
        %s162 = smul.addr %s161, 8
        %s163 = scalar_lea.vmem %s0, %s162
      $region28: #{unet_down_forward.4} parent=23 // pred_fallthru
        _
    $region24: #{unet_down_forward.4} parent=5 // pred_fallthru
      _
    %p164 = scmp.le.s32.totalorder 1, %s11
    %p165 = scmp.lt.s32.totalorder %s11, 3
    %p166 = pnand %p164, %p165
    %p167 = pneg %p166
    // Predicated region
    $region29: #{unet_down_forward.4} parent=5 // pred_check
      _
    $region30: #{unet_down_forward.4} parent=5 // pred_check_branch
      %169 = sbr.rel (%p166) target = $region32
    $region31: #{unet_down_forward.4} parent=5 // pred_region
      %s170 = ssub.s32 %s11, 1
      %p171 = scmp.lt.s32.totalorder %s16, 1
      %s172 = scalar_select %p171, %s16, 1
      %s173 = smul.addr %s172, 54
      %s174 = smul.addr %s173, 8
      %s175 = scalar_lea.vmem %s0, %s174
      %p176 = pneg %p37
      %p177 = pneg %p34
      %p178 = pneg %p58
      %p179 = pneg %p55
      %p180 = pneg %p79
      %p181 = pneg %p76
      %p182 = pneg %p105
      %p183 = pneg %p102
      %p184 = scmp.lt.s32.totalorder %s16, 1
      %s185 = scalar_select %p184, %s16, 1
      %s186 = smul.addr %s185, 32
      %s187 = smul.addr %s186, 8
      %s188 = scalar_lea.vmem %s3, %s187
      %p189 = pneg %p131
      %p190 = pneg %p128
      %p191 = scmp.lt.s32.totalorder %s16, 1
      %s192 = scalar_select %p191, %s16, 1
      %s193 = smul.addr %s192, 2
      %s194 = scalar_lea.vmem %s4, %s193
      %p195 = scmp.lt.s32.totalorder %s16, 1
      %s196 = scalar_select %p195, %s16, 1
      %s197 = smul.addr %s196, 54
      %s198 = smul.addr %s197, 8
      %s199 = scalar_lea.vmem %s0, %s198
      %p200 = scmp.lt.s32.totalorder %s16, 1
      %s201 = scalar_select %p200, %s16, 1
      %s202 = smul.addr %s201, 32
      %s203 = smul.addr %s202, 8
      %s204 = scalar_lea.vmem %s3, %s203
      %p205 = scmp.lt.s32.totalorder %s16, 1
      %s206 = scalar_select %p205, %s16, 1
      %s207 = smul.addr %s206, 2
      %s208 = scalar_lea.vmem %s4, %s207
      %v210 = vld [vmem:[%s199] sm:$0xff]
      %v211 = vld [vmem:[%s199 + $0x8] sm:$0xff]
      %v212 = vld [vmem:[%s199 + $0x18] sm:$0xff]
      %v213 = vld [vmem:[%s199 + $0x20] sm:$0xff]
      %v214 = vld [vmem:[%s199 + $0x30] sm:$0xff]
      %v215 = vld [vmem:[%s199 + $0x38] sm:$0xff]
      %v216 = vld [vmem:[%s199 + $0x48] sm:$0xff]
      %v217 = vld [vmem:[%s199 + $0x50] sm:$0xff]
      %v218 = vld [vmem:[%s199 + $0x60] sm:$0xff]
      %v219 = vld [vmem:[%s199 + $0x68] sm:$0xff]
      %v220 = vld [vmem:[%s199 + $0x78] sm:$0xff]
      %v221 = vld [vmem:[%s199 + $0x80] sm:$0xff]
      %v222 = vld [vmem:[%s199 + $0x90] sm:$0xff]
      %v223 = vld [vmem:[%s199 + $0x98] sm:$0xff]
      %v224 = vld [vmem:[%s199 + $0xa8] sm:$0xff]
      %v225 = vld [vmem:[%s199 + $0xb0] sm:$0xff]
      %v226 = vld [vmem:[%s199 + $0xc0] sm:$0xff]
      %v227 = vld [vmem:[%s199 + $0xc8] sm:$0xff]
      %v228 = vld [vmem:[%s199 + $0xd8] sm:$0xff]
      %v229 = vld [vmem:[%s199 + $0xe0] sm:$0xff]
      %v230 = vld [vmem:[%s199 + $0xf0] sm:$0xff]
      %v231 = vld [vmem:[%s199 + $0xf8] sm:$0xff]
      %v232 = vld [vmem:[%s199 + $0x108] sm:$0xff]
      %v233 = vld [vmem:[%s199 + $0x110] sm:$0xff]
      %v234 = vld [vmem:[%s199 + $0x120] sm:$0xff]
      %v235 = vld [vmem:[%s199 + $0x128] sm:$0xff]
      %v236 = vld [vmem:[%s199 + $0x138] sm:$0xff]
      %v237 = vld [vmem:[%s199 + $0x140] sm:$0xff]
      %v238 = vld [vmem:[%s199 + $0x150] sm:$0xff]
      %v239 = vld [vmem:[%s199 + $0x158] sm:$0xff]
      %v240 = vld [vmem:[%s199 + $0x168] sm:$0xff]
      %v241 = vld [vmem:[%s199 + $0x170] sm:$0xff]
      %v242 = vpack.c.bf16 %v211, %v210
      %v243 = vpack.c.bf16 %v213, %v212
      %v244 = vpack.c.bf16 %v215, %v214
      %v245 = vpack.c.bf16 %v217, %v216
      %v246 = vpack.c.bf16 %v219, %v218
      %v247 = vpack.c.bf16 %v221, %v220
      %v248 = vpack.c.bf16 %v223, %v222
      %v249 = vpack.c.bf16 %v225, %v224
      %v250 = vpack.c.bf16 %v227, %v226
      %v251 = vpack.c.bf16 %v229, %v228
      %v252 = vpack.c.bf16 %v231, %v230
      %v253 = vpack.c.bf16 %v233, %v232
      %v254 = vpack.c.bf16 %v235, %v234
      %v255 = vpack.c.bf16 %v237, %v236
      %v256 = vpack.c.bf16 %v239, %v238
      %v257 = vpack.c.bf16 %v241, %v240
      %v258 = vld [vmem:[%s1] sm:$0xf]
      %v259 = vld [vmem:[%s199 + $0x1] sm:$0xff]
      %v260 = vld [vmem:[%s199 + $0x9] sm:$0xff]
      %v261 = vld [vmem:[%s199 + $0x19] sm:$0xff]
      %v262 = vld [vmem:[%s199 + $0x21] sm:$0xff]
      %v263 = vld [vmem:[%s199 + $0x31] sm:$0xff]
      %v264 = vld [vmem:[%s199 + $0x39] sm:$0xff]
      %v265 = vld [vmem:[%s199 + $0x49] sm:$0xff]
      %v266 = vld [vmem:[%s199 + $0x51] sm:$0xff]
      %v267 = vld [vmem:[%s199 + $0x61] sm:$0xff]
      %v268 = vld [vmem:[%s199 + $0x69] sm:$0xff]
      %v269 = vld [vmem:[%s199 + $0x79] sm:$0xff]
      %v270 = vld [vmem:[%s199 + $0x81] sm:$0xff]
      %v271 = vld [vmem:[%s199 + $0x91] sm:$0xff]
      %v272 = vld [vmem:[%s199 + $0x99] sm:$0xff]
      %v273 = vld [vmem:[%s199 + $0xa9] sm:$0xff]
      %v274 = vld [vmem:[%s199 + $0xb1] sm:$0xff]
      %v275 = vld [vmem:[%s199 + $0xc1] sm:$0xff]
      %v276 = vld [vmem:[%s199 + $0xc9] sm:$0xff]
      %v277 = vld [vmem:[%s199 + $0xd9] sm:$0xff]
      %v278 = vld [vmem:[%s199 + $0xe1] sm:$0xff]
      %v279 = vld [vmem:[%s199 + $0xf1] sm:$0xff]
      %v280 = vld [vmem:[%s199 + $0xf9] sm:$0xff]
      %v281 = vld [vmem:[%s199 + $0x109] sm:$0xff]
      %v282 = vld [vmem:[%s199 + $0x111] sm:$0xff]
      %v283 = vld [vmem:[%s199 + $0x121] sm:$0xff]
      %v284 = vld [vmem:[%s199 + $0x129] sm:$0xff]
      %v285 = vld [vmem:[%s199 + $0x139] sm:$0xff]
      %v286 = vld [vmem:[%s199 + $0x141] sm:$0xff]
      %v287 = vld [vmem:[%s199 + $0x151] sm:$0xff]
      %v288 = vld [vmem:[%s199 + $0x159] sm:$0xff]
      %v289 = vld [vmem:[%s199 + $0x169] sm:$0xff]
      %v290 = vld [vmem:[%s199 + $0x171] sm:$0xff]
      %v291 = vpack.c.bf16 %v260, %v259
      %v292 = vpack.c.bf16 %v262, %v261
      %v293 = vpack.c.bf16 %v264, %v263
      %v294 = vpack.c.bf16 %v266, %v265
      %v295 = vpack.c.bf16 %v268, %v267
      %v296 = vpack.c.bf16 %v270, %v269
      %v297 = vpack.c.bf16 %v272, %v271
      %v298 = vpack.c.bf16 %v274, %v273
      %v299 = vpack.c.bf16 %v276, %v275
      %v300 = vpack.c.bf16 %v278, %v277
      %v301 = vpack.c.bf16 %v280, %v279
      %v302 = vpack.c.bf16 %v282, %v281
      %v303 = vpack.c.bf16 %v284, %v283
      %v304 = vpack.c.bf16 %v286, %v285
      %v305 = vpack.c.bf16 %v288, %v287
      %v306 = vpack.c.bf16 %v290, %v289
      %s307 = scalar_lea.vmem %s1, 4
      %v308 = vld [vmem:[%s307] sm:$0xf]
      %vm309 = vcmask 64512
      %v311 = vsel %vm309, %v291, 0
      %v314 = vsel %vm309, %v292, 0
      %v317 = vsel %vm309, %v293, 0
      %v320 = vsel %vm309, %v294, 0
      %v323 = vsel %vm309, %v295, 0
      %v326 = vsel %vm309, %v296, 0
      %v329 = vsel %vm309, %v297, 0
      %v332 = vsel %vm309, %v298, 0
      %v335 = vsel %vm309, %v299, 0
      %v338 = vsel %vm309, %v300, 0
      %v341 = vsel %vm309, %v301, 0
      %v344 = vsel %vm309, %v302, 0
      %v347 = vsel %vm309, %v303, 0
      %v350 = vsel %vm309, %v304, 0
      %v353 = vsel %vm309, %v305, 0
      %v356 = vsel %vm309, %v306, 0
      %vm358 = vcmask 1043456
      %v360 = vsel %vm358, %v308, 0
      %362 = vmatpush.bf16.msra.mxu0 0
      %363 = vmatpush.bf16.msra.mxu0 0
      %364 = vmatpush.bf16.msra.mxu0 0
      %365 = vmatpush.bf16.msra.mxu0 0
      %366 = vmatpush.bf16.msra.mxu0 0
      %367 = vmatpush.bf16.msra.mxu0 0
      %368 = vmatpush.bf16.msra.mxu0 0
      %369 = vmatpush.bf16.msra.mxu0 %v360
      %370 = vmatmul.bf16.gmra.mxu0 %v311
      %v371 = vpop.f32.mrf.mxu0
      %v372 = vadd.f32 0.0, %v371
      %v373 = vpop.f32.mrf.mxu0
      %v374 = vadd.f32 0.0, %v373
      %375 = vmatmul.bf16.gmra.mxu0 %v314
      %v376 = vpop.f32.mrf.mxu0
      %v377 = vadd.f32 0.0, %v376
      %v378 = vpop.f32.mrf.mxu0
      %v379 = vadd.f32 0.0, %v378
      %380 = vmatmul.bf16.gmra.mxu0 %v317
      %v381 = vpop.f32.mrf.mxu0
      %v382 = vadd.f32 0.0, %v381
      %v383 = vpop.f32.mrf.mxu0
      %v384 = vadd.f32 0.0, %v383
      %385 = vmatmul.bf16.gmra.mxu0 %v320
      %v386 = vpop.f32.mrf.mxu0
      %v387 = vadd.f32 0.0, %v386
      %v388 = vpop.f32.mrf.mxu0
      %v389 = vadd.f32 0.0, %v388
      %390 = vmatmul.bf16.gmra.mxu0 %v323
      %v391 = vpop.f32.mrf.mxu0
      %v392 = vadd.f32 0.0, %v391
      %v393 = vpop.f32.mrf.mxu0
      %v394 = vadd.f32 0.0, %v393
      %395 = vmatmul.bf16.gmra.mxu0 %v326
      %v396 = vpop.f32.mrf.mxu0
      %v397 = vadd.f32 0.0, %v396
      %v398 = vpop.f32.mrf.mxu0
      %v399 = vadd.f32 0.0, %v398
      %400 = vmatmul.bf16.gmra.mxu0 %v329
      %v401 = vpop.f32.mrf.mxu0
      %v402 = vadd.f32 0.0, %v401
      %v403 = vpop.f32.mrf.mxu0
      %v404 = vadd.f32 0.0, %v403
      %405 = vmatmul.bf16.gmra.mxu0 %v332
      %v406 = vpop.f32.mrf.mxu0
      %v407 = vadd.f32 0.0, %v406
      %v408 = vpop.f32.mrf.mxu0
      %v409 = vadd.f32 0.0, %v408
      %410 = vmatmul.bf16.gmra.mxu0 %v335
      %v411 = vpop.f32.mrf.mxu0
      %v412 = vadd.f32 0.0, %v411
      %v413 = vpop.f32.mrf.mxu0
      %v414 = vadd.f32 0.0, %v413
      %415 = vmatmul.bf16.gmra.mxu0 %v338
      %v416 = vpop.f32.mrf.mxu0
      %v417 = vadd.f32 0.0, %v416
      %v418 = vpop.f32.mrf.mxu0
      %v419 = vadd.f32 0.0, %v418
      %420 = vmatmul.bf16.gmra.mxu0 %v341
      %v421 = vpop.f32.mrf.mxu0
      %v422 = vadd.f32 0.0, %v421
      %v423 = vpop.f32.mrf.mxu0
      %v424 = vadd.f32 0.0, %v423
      %425 = vmatmul.bf16.gmra.mxu0 %v344
      %v426 = vpop.f32.mrf.mxu0
      %v427 = vadd.f32 0.0, %v426
      %v428 = vpop.f32.mrf.mxu0
      %v429 = vadd.f32 0.0, %v428
      %430 = vmatmul.bf16.gmra.mxu0 %v347
      %v431 = vpop.f32.mrf.mxu0
      %v432 = vadd.f32 0.0, %v431
      %v433 = vpop.f32.mrf.mxu0
      %v434 = vadd.f32 0.0, %v433
      %435 = vmatmul.bf16.gmra.mxu0 %v350
      %v436 = vpop.f32.mrf.mxu0
      %v437 = vadd.f32 0.0, %v436
      %v438 = vpop.f32.mrf.mxu0
      %v439 = vadd.f32 0.0, %v438
      %440 = vmatmul.bf16.gmra.mxu0 %v353
      %v441 = vpop.f32.mrf.mxu0
      %v442 = vadd.f32 0.0, %v441
      %v443 = vpop.f32.mrf.mxu0
      %v444 = vadd.f32 0.0, %v443
      %445 = vmatmul.bf16.gmra.mxu0 %v356
      %v446 = vpop.f32.mrf.mxu0
      %v447 = vadd.f32 0.0, %v446
      %v448 = vpop.f32.mrf.mxu0
      %v449 = vadd.f32 0.0, %v448
      %450 = vdwg.mxu0
      %v452 = vsel %vm309, %v242, 0
      %v455 = vsel %vm309, %v243, 0
      %v458 = vsel %vm309, %v244, 0
      %v461 = vsel %vm309, %v245, 0
      %v464 = vsel %vm309, %v246, 0
      %v467 = vsel %vm309, %v247, 0
      %v470 = vsel %vm309, %v248, 0
      %v473 = vsel %vm309, %v249, 0
      %v476 = vsel %vm309, %v250, 0
      %v479 = vsel %vm309, %v251, 0
      %v482 = vsel %vm309, %v252, 0
      %v485 = vsel %vm309, %v253, 0
      %v488 = vsel %vm309, %v254, 0
      %v491 = vsel %vm309, %v255, 0
      %v494 = vsel %vm309, %v256, 0
      %v497 = vsel %vm309, %v257, 0
      %v500 = vsel %vm358, %v258, 0
      %502 = vmatpush.bf16.msra.mxu0 0
      %503 = vmatpush.bf16.msra.mxu0 0
      %504 = vmatpush.bf16.msra.mxu0 0
      %505 = vmatpush.bf16.msra.mxu0 0
      %506 = vmatpush.bf16.msra.mxu0 0
      %507 = vmatpush.bf16.msra.mxu0 0
      %508 = vmatpush.bf16.msra.mxu0 0
      %509 = vmatpush.bf16.msra.mxu0 %v500
      %510 = vmatmul.bf16.gmra.mxu0 %v452
      %v511 = vpop.f32.mrf.mxu0
      %v512 = vadd.f32 %v372, %v511
      %v513 = vpop.f32.mrf.mxu0
      %v514 = vadd.f32 %v374, %v513
      %515 = vmatmul.bf16.gmra.mxu0 %v455
      %v516 = vpop.f32.mrf.mxu0
      %v517 = vadd.f32 %v377, %v516
      %v518 = vpop.f32.mrf.mxu0
      %v519 = vadd.f32 %v379, %v518
      %520 = vmatmul.bf16.gmra.mxu0 %v458
      %v521 = vpop.f32.mrf.mxu0
      %v522 = vadd.f32 %v382, %v521
      %v523 = vpop.f32.mrf.mxu0
      %v524 = vadd.f32 %v384, %v523
      %525 = vmatmul.bf16.gmra.mxu0 %v461
      %v526 = vpop.f32.mrf.mxu0
      %v527 = vadd.f32 %v387, %v526
      %v528 = vpop.f32.mrf.mxu0
      %v529 = vadd.f32 %v389, %v528
      %530 = vmatmul.bf16.gmra.mxu0 %v464
      %v531 = vpop.f32.mrf.mxu0
      %v532 = vadd.f32 %v392, %v531
      %v533 = vpop.f32.mrf.mxu0
      %v534 = vadd.f32 %v394, %v533
      %535 = vmatmul.bf16.gmra.mxu0 %v467
      %v536 = vpop.f32.mrf.mxu0
      %v537 = vadd.f32 %v397, %v536
      %v538 = vpop.f32.mrf.mxu0
      %v539 = vadd.f32 %v399, %v538
      %540 = vmatmul.bf16.gmra.mxu0 %v470
      %v541 = vpop.f32.mrf.mxu0
      %v542 = vadd.f32 %v402, %v541
      %v543 = vpop.f32.mrf.mxu0
      %v544 = vadd.f32 %v404, %v543
      %545 = vmatmul.bf16.gmra.mxu0 %v473
      %v546 = vpop.f32.mrf.mxu0
      %v547 = vadd.f32 %v407, %v546
      %v548 = vpop.f32.mrf.mxu0
      %v549 = vadd.f32 %v409, %v548
      %550 = vmatmul.bf16.gmra.mxu0 %v476
      %v551 = vpop.f32.mrf.mxu0
      %v552 = vadd.f32 %v412, %v551
      %v553 = vpop.f32.mrf.mxu0
      %v554 = vadd.f32 %v414, %v553
      %555 = vmatmul.bf16.gmra.mxu0 %v479
      %v556 = vpop.f32.mrf.mxu0
      %v557 = vadd.f32 %v417, %v556
      %v558 = vpop.f32.mrf.mxu0
      %v559 = vadd.f32 %v419, %v558
      %560 = vmatmul.bf16.gmra.mxu0 %v482
      %v561 = vpop.f32.mrf.mxu0
      %v562 = vadd.f32 %v422, %v561
      %v563 = vpop.f32.mrf.mxu0
      %v564 = vadd.f32 %v424, %v563
      %565 = vmatmul.bf16.gmra.mxu0 %v485
      %v566 = vpop.f32.mrf.mxu0
      %v567 = vadd.f32 %v427, %v566
      %v568 = vpop.f32.mrf.mxu0
      %v569 = vadd.f32 %v429, %v568
      %570 = vmatmul.bf16.gmra.mxu0 %v488
      %v571 = vpop.f32.mrf.mxu0
      %v572 = vadd.f32 %v432, %v571
      %v573 = vpop.f32.mrf.mxu0
      %v574 = vadd.f32 %v434, %v573
      %575 = vmatmul.bf16.gmra.mxu0 %v491
      %v576 = vpop.f32.mrf.mxu0
      %v577 = vadd.f32 %v437, %v576
      %v578 = vpop.f32.mrf.mxu0
      %v579 = vadd.f32 %v439, %v578
      %580 = vmatmul.bf16.gmra.mxu0 %v494
      %v581 = vpop.f32.mrf.mxu0
      %v582 = vadd.f32 %v442, %v581
      %v583 = vpop.f32.mrf.mxu0
      %v584 = vadd.f32 %v444, %v583
      %585 = vmatmul.bf16.gmra.mxu0 %v497
      %v586 = vpop.f32.mrf.mxu0
      %v587 = vadd.f32 %v447, %v586
      %v588 = vpop.f32.mrf.mxu0
      %v589 = vadd.f32 %v449, %v588
      %590 = vdwg.mxu0
      %v591 = vld [vmem:[%s199 + $0x2] sm:$0xff]
      %v592 = vld [vmem:[%s199 + $0xa] sm:$0xff]
      %v593 = vld [vmem:[%s199 + $0x1a] sm:$0xff]
      %v594 = vld [vmem:[%s199 + $0x22] sm:$0xff]
      %v595 = vld [vmem:[%s199 + $0x32] sm:$0xff]
      %v596 = vld [vmem:[%s199 + $0x3a] sm:$0xff]
      %v597 = vld [vmem:[%s199 + $0x4a] sm:$0xff]
      %v598 = vld [vmem:[%s199 + $0x52] sm:$0xff]
      %v599 = vld [vmem:[%s199 + $0x62] sm:$0xff]
      %v600 = vld [vmem:[%s199 + $0x6a] sm:$0xff]
      %v601 = vld [vmem:[%s199 + $0x7a] sm:$0xff]
      %v602 = vld [vmem:[%s199 + $0x82] sm:$0xff]
      %v603 = vld [vmem:[%s199 + $0x92] sm:$0xff]
      %v604 = vld [vmem:[%s199 + $0x9a] sm:$0xff]
      %v605 = vld [vmem:[%s199 + $0xaa] sm:$0xff]
      %v606 = vld [vmem:[%s199 + $0xb2] sm:$0xff]
      %v607 = vld [vmem:[%s199 + $0xc2] sm:$0xff]
      %v608 = vld [vmem:[%s199 + $0xca] sm:$0xff]
      %v609 = vld [vmem:[%s199 + $0xda] sm:$0xff]
      %v610 = vld [vmem:[%s199 + $0xe2] sm:$0xff]
      %v611 = vld [vmem:[%s199 + $0xf2] sm:$0xff]
      %v612 = vld [vmem:[%s199 + $0xfa] sm:$0xff]
      %v613 = vld [vmem:[%s199 + $0x10a] sm:$0xff]
      %v614 = vld [vmem:[%s199 + $0x112] sm:$0xff]
      %v615 = vld [vmem:[%s199 + $0x122] sm:$0xff]
      %v616 = vld [vmem:[%s199 + $0x12a] sm:$0xff]
      %v617 = vld [vmem:[%s199 + $0x13a] sm:$0xff]
      %v618 = vld [vmem:[%s199 + $0x142] sm:$0xff]
      %v619 = vld [vmem:[%s199 + $0x152] sm:$0xff]
      %v620 = vld [vmem:[%s199 + $0x15a] sm:$0xff]
      %v621 = vld [vmem:[%s199 + $0x16a] sm:$0xff]
      %v622 = vld [vmem:[%s199 + $0x172] sm:$0xff]
      %v623 = vpack.c.bf16 %v592, %v591
      %v624 = vpack.c.bf16 %v594, %v593
      %v625 = vpack.c.bf16 %v596, %v595
      %v626 = vpack.c.bf16 %v598, %v597
      %v627 = vpack.c.bf16 %v600, %v599
      %v628 = vpack.c.bf16 %v602, %v601
      %v629 = vpack.c.bf16 %v604, %v603
      %v630 = vpack.c.bf16 %v606, %v605
      %v631 = vpack.c.bf16 %v608, %v607
      %v632 = vpack.c.bf16 %v610, %v609
      %v633 = vpack.c.bf16 %v612, %v611
      %v634 = vpack.c.bf16 %v614, %v613
      %v635 = vpack.c.bf16 %v616, %v615
      %v636 = vpack.c.bf16 %v618, %v617
      %v637 = vpack.c.bf16 %v620, %v619
      %v638 = vpack.c.bf16 %v622, %v621
      %s639 = scalar_lea.vmem %s1, 8
      %v640 = vld [vmem:[%s639] sm:$0xf]
      %v642 = vsel %vm309, %v623, 0
      %v645 = vsel %vm309, %v624, 0
      %v648 = vsel %vm309, %v625, 0
      %v651 = vsel %vm309, %v626, 0
      %v654 = vsel %vm309, %v627, 0
      %v657 = vsel %vm309, %v628, 0
      %v660 = vsel %vm309, %v629, 0
      %v663 = vsel %vm309, %v630, 0
      %v666 = vsel %vm309, %v631, 0
      %v669 = vsel %vm309, %v632, 0
      %v672 = vsel %vm309, %v633, 0
      %v675 = vsel %vm309, %v634, 0
      %v678 = vsel %vm309, %v635, 0
      %v681 = vsel %vm309, %v636, 0
      %v684 = vsel %vm309, %v637, 0
      %v687 = vsel %vm309, %v638, 0
      %v690 = vsel %vm358, %v640, 0
      %692 = vmatpush.bf16.msra.mxu0 0
      %693 = vmatpush.bf16.msra.mxu0 0
      %694 = vmatpush.bf16.msra.mxu0 0
      %695 = vmatpush.bf16.msra.mxu0 0
      %696 = vmatpush.bf16.msra.mxu0 0
      %697 = vmatpush.bf16.msra.mxu0 0
      %698 = vmatpush.bf16.msra.mxu0 0
      %699 = vmatpush.bf16.msra.mxu0 %v690
      %700 = vmatmul.bf16.gmra.mxu0 %v642
      %v701 = vpop.f32.mrf.mxu0
      %v702 = vadd.f32 0.0, %v701
      %v703 = vpop.f32.mrf.mxu0
      %v704 = vadd.f32 0.0, %v703
      %705 = vmatmul.bf16.gmra.mxu0 %v645
      %v706 = vpop.f32.mrf.mxu0
      %v707 = vadd.f32 0.0, %v706
      %v708 = vpop.f32.mrf.mxu0
      %v709 = vadd.f32 0.0, %v708
      %710 = vmatmul.bf16.gmra.mxu0 %v648
      %v711 = vpop.f32.mrf.mxu0
      %v712 = vadd.f32 0.0, %v711
      %v713 = vpop.f32.mrf.mxu0
      %v714 = vadd.f32 0.0, %v713
      %715 = vmatmul.bf16.gmra.mxu0 %v651
      %v716 = vpop.f32.mrf.mxu0
      %v717 = vadd.f32 0.0, %v716
      %v718 = vpop.f32.mrf.mxu0
      %v719 = vadd.f32 0.0, %v718
      %720 = vmatmul.bf16.gmra.mxu0 %v654
      %v721 = vpop.f32.mrf.mxu0
      %v722 = vadd.f32 0.0, %v721
      %v723 = vpop.f32.mrf.mxu0
      %v724 = vadd.f32 0.0, %v723
      %725 = vmatmul.bf16.gmra.mxu0 %v657
      %v726 = vpop.f32.mrf.mxu0
      %v727 = vadd.f32 0.0, %v726
      %v728 = vpop.f32.mrf.mxu0
      %v729 = vadd.f32 0.0, %v728
      %730 = vmatmul.bf16.gmra.mxu0 %v660
      %v731 = vpop.f32.mrf.mxu0
      %v732 = vadd.f32 0.0, %v731
      %v733 = vpop.f32.mrf.mxu0
      %v734 = vadd.f32 0.0, %v733
      %735 = vmatmul.bf16.gmra.mxu0 %v663
      %v736 = vpop.f32.mrf.mxu0
      %v737 = vadd.f32 0.0, %v736
      %v738 = vpop.f32.mrf.mxu0
      %v739 = vadd.f32 0.0, %v738
      %740 = vmatmul.bf16.gmra.mxu0 %v666
      %v741 = vpop.f32.mrf.mxu0
      %v742 = vadd.f32 0.0, %v741
      %v743 = vpop.f32.mrf.mxu0
      %v744 = vadd.f32 0.0, %v743
      %745 = vmatmul.bf16.gmra.mxu0 %v669
      %v746 = vpop.f32.mrf.mxu0
      %v747 = vadd.f32 0.0, %v746
      %v748 = vpop.f32.mrf.mxu0
      %v749 = vadd.f32 0.0, %v748
      %750 = vmatmul.bf16.gmra.mxu0 %v672
      %v751 = vpop.f32.mrf.mxu0
      %v752 = vadd.f32 0.0, %v751
      %v753 = vpop.f32.mrf.mxu0
      %v754 = vadd.f32 0.0, %v753
      %755 = vmatmul.bf16.gmra.mxu0 %v675
      %v756 = vpop.f32.mrf.mxu0
      %v757 = vadd.f32 0.0, %v756
      %v758 = vpop.f32.mrf.mxu0
      %v759 = vadd.f32 0.0, %v758
      %760 = vmatmul.bf16.gmra.mxu0 %v678
      %v761 = vpop.f32.mrf.mxu0
      %v762 = vadd.f32 0.0, %v761
      %v763 = vpop.f32.mrf.mxu0
      %v764 = vadd.f32 0.0, %v763
      %765 = vmatmul.bf16.gmra.mxu0 %v681
      %v766 = vpop.f32.mrf.mxu0
      %v767 = vadd.f32 0.0, %v766
      %v768 = vpop.f32.mrf.mxu0
      %v769 = vadd.f32 0.0, %v768
      %770 = vmatmul.bf16.gmra.mxu0 %v684
      %v771 = vpop.f32.mrf.mxu0
      %v772 = vadd.f32 0.0, %v771
      %v773 = vpop.f32.mrf.mxu0
      %v774 = vadd.f32 0.0, %v773
      %775 = vmatmul.bf16.gmra.mxu0 %v687
      %v776 = vpop.f32.mrf.mxu0
      %v777 = vadd.f32 0.0, %v776
      %v778 = vpop.f32.mrf.mxu0
      %v779 = vadd.f32 0.0, %v778
      %780 = vdwg.mxu0
      %v781 = vadd.f32 %v512, %v702
      %v782 = vadd.f32 %v514, %v704
      %v783 = vadd.f32 %v517, %v707
      %v784 = vadd.f32 %v519, %v709
      %v785 = vadd.f32 %v522, %v712
      %v786 = vadd.f32 %v524, %v714
      %v787 = vadd.f32 %v527, %v717
      %v788 = vadd.f32 %v529, %v719
      %v789 = vadd.f32 %v532, %v722
      %v790 = vadd.f32 %v534, %v724
      %v791 = vadd.f32 %v537, %v727
      %v792 = vadd.f32 %v539, %v729
      %v793 = vadd.f32 %v542, %v732
      %v794 = vadd.f32 %v544, %v734
      %v795 = vadd.f32 %v547, %v737
      %v796 = vadd.f32 %v549, %v739
      %v797 = vadd.f32 %v552, %v742
      %v798 = vadd.f32 %v554, %v744
      %v799 = vadd.f32 %v557, %v747
      %v800 = vadd.f32 %v559, %v749
      %v801 = vadd.f32 %v562, %v752
      %v802 = vadd.f32 %v564, %v754
      %v803 = vadd.f32 %v567, %v757
      %v804 = vadd.f32 %v569, %v759
      %v805 = vadd.f32 %v572, %v762
      %v806 = vadd.f32 %v574, %v764
      %v807 = vadd.f32 %v577, %v767
      %v808 = vadd.f32 %v579, %v769
      %v809 = vadd.f32 %v582, %v772
      %v810 = vadd.f32 %v584, %v774
      %v811 = vadd.f32 %v587, %v777
      %v812 = vadd.f32 %v589, %v779
      %s813 = scalar_lea.vmem %s199, 24
      %v814 = vld [vmem:[%s813] sm:$0xff]
      %v815 = vld [vmem:[%s813 + $0x8] sm:$0xff]
      %v816 = vld [vmem:[%s813 + $0x18] sm:$0xff]
      %v817 = vld [vmem:[%s813 + $0x20] sm:$0xff]
      %v818 = vld [vmem:[%s813 + $0x30] sm:$0xff]
      %v819 = vld [vmem:[%s813 + $0x38] sm:$0xff]
      %v820 = vld [vmem:[%s813 + $0x48] sm:$0xff]
      %v821 = vld [vmem:[%s813 + $0x50] sm:$0xff]
      %v822 = vld [vmem:[%s813 + $0x60] sm:$0xff]
      %v823 = vld [vmem:[%s813 + $0x68] sm:$0xff]
      %v824 = vld [vmem:[%s813 + $0x78] sm:$0xff]
      %v825 = vld [vmem:[%s813 + $0x80] sm:$0xff]
      %v826 = vld [vmem:[%s813 + $0x90] sm:$0xff]
      %v827 = vld [vmem:[%s813 + $0x98] sm:$0xff]
      %v828 = vld [vmem:[%s813 + $0xa8] sm:$0xff]
      %v829 = vld [vmem:[%s813 + $0xb0] sm:$0xff]
      %v830 = vld [vmem:[%s813 + $0xc0] sm:$0xff]
      %v831 = vld [vmem:[%s813 + $0xc8] sm:$0xff]
      %v832 = vld [vmem:[%s813 + $0xd8] sm:$0xff]
      %v833 = vld [vmem:[%s813 + $0xe0] sm:$0xff]
      %v834 = vld [vmem:[%s813 + $0xf0] sm:$0xff]
      %v835 = vld [vmem:[%s813 + $0xf8] sm:$0xff]
      %v836 = vld [vmem:[%s813 + $0x108] sm:$0xff]
      %v837 = vld [vmem:[%s813 + $0x110] sm:$0xff]
      %v838 = vld [vmem:[%s813 + $0x120] sm:$0xff]
      %v839 = vld [vmem:[%s813 + $0x128] sm:$0xff]
      %v840 = vld [vmem:[%s813 + $0x138] sm:$0xff]
      %v841 = vld [vmem:[%s813 + $0x140] sm:$0xff]
      %v842 = vld [vmem:[%s813 + $0x150] sm:$0xff]
      %v843 = vld [vmem:[%s813 + $0x158] sm:$0xff]
      %v844 = vld [vmem:[%s813 + $0x168] sm:$0xff]
      %v845 = vld [vmem:[%s813 + $0x170] sm:$0xff]
      %v846 = vpack.c.bf16 %v815, %v814
      %v847 = vpack.c.bf16 %v817, %v816
      %v848 = vpack.c.bf16 %v819, %v818
      %v849 = vpack.c.bf16 %v821, %v820
      %v850 = vpack.c.bf16 %v823, %v822
      %v851 = vpack.c.bf16 %v825, %v824
      %v852 = vpack.c.bf16 %v827, %v826
      %v853 = vpack.c.bf16 %v829, %v828
      %v854 = vpack.c.bf16 %v831, %v830
      %v855 = vpack.c.bf16 %v833, %v832
      %v856 = vpack.c.bf16 %v835, %v834
      %v857 = vpack.c.bf16 %v837, %v836
      %v858 = vpack.c.bf16 %v839, %v838
      %v859 = vpack.c.bf16 %v841, %v840
      %v860 = vpack.c.bf16 %v843, %v842
      %v861 = vpack.c.bf16 %v845, %v844
      %s862 = scalar_lea.vmem %s1, 12
      %v863 = vld [vmem:[%s862] sm:$0xf]
      %v865 = vsel %vm309, %v846, 0
      %v868 = vsel %vm309, %v847, 0
      %v871 = vsel %vm309, %v848, 0
      %v874 = vsel %vm309, %v849, 0
      %v877 = vsel %vm309, %v850, 0
      %v880 = vsel %vm309, %v851, 0
      %v883 = vsel %vm309, %v852, 0
      %v886 = vsel %vm309, %v853, 0
      %v889 = vsel %vm309, %v854, 0
      %v892 = vsel %vm309, %v855, 0
      %v895 = vsel %vm309, %v856, 0
      %v898 = vsel %vm309, %v857, 0
      %v901 = vsel %vm309, %v858, 0
      %v904 = vsel %vm309, %v859, 0
      %v907 = vsel %vm309, %v860, 0
      %v910 = vsel %vm309, %v861, 0
      %v913 = vsel %vm358, %v863, 0
      %915 = vmatpush.bf16.msra.mxu0 0
      %916 = vmatpush.bf16.msra.mxu0 0
      %917 = vmatpush.bf16.msra.mxu0 0
      %918 = vmatpush.bf16.msra.mxu0 0
      %919 = vmatpush.bf16.msra.mxu0 0
      %920 = vmatpush.bf16.msra.mxu0 0
      %921 = vmatpush.bf16.msra.mxu0 0
      %922 = vmatpush.bf16.msra.mxu0 %v913
      %923 = vmatmul.bf16.gmra.mxu0 %v865
      %v924 = vpop.f32.mrf.mxu0
      %v925 = vadd.f32 0.0, %v924
      %v926 = vpop.f32.mrf.mxu0
      %v927 = vadd.f32 0.0, %v926
      %928 = vmatmul.bf16.gmra.mxu0 %v868
      %v929 = vpop.f32.mrf.mxu0
      %v930 = vadd.f32 0.0, %v929
      %v931 = vpop.f32.mrf.mxu0
      %v932 = vadd.f32 0.0, %v931
      %933 = vmatmul.bf16.gmra.mxu0 %v871
      %v934 = vpop.f32.mrf.mxu0
      %v935 = vadd.f32 0.0, %v934
      %v936 = vpop.f32.mrf.mxu0
      %v937 = vadd.f32 0.0, %v936
      %938 = vmatmul.bf16.gmra.mxu0 %v874
      %v939 = vpop.f32.mrf.mxu0
      %v940 = vadd.f32 0.0, %v939
      %v941 = vpop.f32.mrf.mxu0
      %v942 = vadd.f32 0.0, %v941
      %943 = vmatmul.bf16.gmra.mxu0 %v877
      %v944 = vpop.f32.mrf.mxu0
      %v945 = vadd.f32 0.0, %v944
      %v946 = vpop.f32.mrf.mxu0
      %v947 = vadd.f32 0.0, %v946
      %948 = vmatmul.bf16.gmra.mxu0 %v880
      %v949 = vpop.f32.mrf.mxu0
      %v950 = vadd.f32 0.0, %v949
      %v951 = vpop.f32.mrf.mxu0
      %v952 = vadd.f32 0.0, %v951
      %953 = vmatmul.bf16.gmra.mxu0 %v883
      %v954 = vpop.f32.mrf.mxu0
      %v955 = vadd.f32 0.0, %v954
      %v956 = vpop.f32.mrf.mxu0
      %v957 = vadd.f32 0.0, %v956
      %958 = vmatmul.bf16.gmra.mxu0 %v886
      %v959 = vpop.f32.mrf.mxu0
      %v960 = vadd.f32 0.0, %v959
      %v961 = vpop.f32.mrf.mxu0
      %v962 = vadd.f32 0.0, %v961
      %963 = vmatmul.bf16.gmra.mxu0 %v889
      %v964 = vpop.f32.mrf.mxu0
      %v965 = vadd.f32 0.0, %v964
      %v966 = vpop.f32.mrf.mxu0
      %v967 = vadd.f32 0.0, %v966
      %968 = vmatmul.bf16.gmra.mxu0 %v892
      %v969 = vpop.f32.mrf.mxu0
      %v970 = vadd.f32 0.0, %v969
      %v971 = vpop.f32.mrf.mxu0
      %v972 = vadd.f32 0.0, %v971
      %973 = vmatmul.bf16.gmra.mxu0 %v895
      %v974 = vpop.f32.mrf.mxu0
      %v975 = vadd.f32 0.0, %v974
      %v976 = vpop.f32.mrf.mxu0
      %v977 = vadd.f32 0.0, %v976
      %978 = vmatmul.bf16.gmra.mxu0 %v898
      %v979 = vpop.f32.mrf.mxu0
      %v980 = vadd.f32 0.0, %v979
      %v981 = vpop.f32.mrf.mxu0
      %v982 = vadd.f32 0.0, %v981
      %983 = vmatmul.bf16.gmra.mxu0 %v901
      %v984 = vpop.f32.mrf.mxu0
      %v985 = vadd.f32 0.0, %v984
      %v986 = vpop.f32.mrf.mxu0
      %v987 = vadd.f32 0.0, %v986
      %988 = vmatmul.bf16.gmra.mxu0 %v904
      %v989 = vpop.f32.mrf.mxu0
      %v990 = vadd.f32 0.0, %v989
      %v991 = vpop.f32.mrf.mxu0
      %v992 = vadd.f32 0.0, %v991
      %993 = vmatmul.bf16.gmra.mxu0 %v907
      %v994 = vpop.f32.mrf.mxu0
      %v995 = vadd.f32 0.0, %v994
      %v996 = vpop.f32.mrf.mxu0
      %v997 = vadd.f32 0.0, %v996
      %998 = vmatmul.bf16.gmra.mxu0 %v910
      %v999 = vpop.f32.mrf.mxu0
      %v1000 = vadd.f32 0.0, %v999
      %v1001 = vpop.f32.mrf.mxu0
      %v1002 = vadd.f32 0.0, %v1001
      %1003 = vdwg.mxu0
      %v1004 = vadd.f32 %v781, %v925
      %v1005 = vadd.f32 %v782, %v927
      %v1006 = vadd.f32 %v783, %v930
      %v1007 = vadd.f32 %v784, %v932
      %v1008 = vadd.f32 %v785, %v935
      %v1009 = vadd.f32 %v786, %v937
      %v1010 = vadd.f32 %v787, %v940
      %v1011 = vadd.f32 %v788, %v942
      %v1012 = vadd.f32 %v789, %v945
      %v1013 = vadd.f32 %v790, %v947
      %v1014 = vadd.f32 %v791, %v950
      %v1015 = vadd.f32 %v792, %v952
      %v1016 = vadd.f32 %v793, %v955
      %v1017 = vadd.f32 %v794, %v957
      %v1018 = vadd.f32 %v795, %v960
      %v1019 = vadd.f32 %v796, %v962
      %v1020 = vadd.f32 %v797, %v965
      %v1021 = vadd.f32 %v798, %v967
      %v1022 = vadd.f32 %v799, %v970
      %v1023 = vadd.f32 %v800, %v972
      %v1024 = vadd.f32 %v801, %v975
      %v1025 = vadd.f32 %v802, %v977
      %v1026 = vadd.f32 %v803, %v980
      %v1027 = vadd.f32 %v804, %v982
      %v1028 = vadd.f32 %v805, %v985
      %v1029 = vadd.f32 %v806, %v987
      %v1030 = vadd.f32 %v807, %v990
      %v1031 = vadd.f32 %v808, %v992
      %v1032 = vadd.f32 %v809, %v995
      %v1033 = vadd.f32 %v810, %v997
      %v1034 = vadd.f32 %v811, %v1000
      %v1035 = vadd.f32 %v812, %v1002
      %v1036 = vld [vmem:[%s813 + $0x1] sm:$0xff]
      %v1037 = vld [vmem:[%s813 + $0x9] sm:$0xff]
      %v1038 = vld [vmem:[%s813 + $0x19] sm:$0xff]
      %v1039 = vld [vmem:[%s813 + $0x21] sm:$0xff]
      %v1040 = vld [vmem:[%s813 + $0x31] sm:$0xff]
      %v1041 = vld [vmem:[%s813 + $0x39] sm:$0xff]
      %v1042 = vld [vmem:[%s813 + $0x49] sm:$0xff]
      %v1043 = vld [vmem:[%s813 + $0x51] sm:$0xff]
      %v1044 = vld [vmem:[%s813 + $0x61] sm:$0xff]
      %v1045 = vld [vmem:[%s813 + $0x69] sm:$0xff]
      %v1046 = vld [vmem:[%s813 + $0x79] sm:$0xff]
      %v1047 = vld [vmem:[%s813 + $0x81] sm:$0xff]
      %v1048 = vld [vmem:[%s813 + $0x91] sm:$0xff]
      %v1049 = vld [vmem:[%s813 + $0x99] sm:$0xff]
      %v1050 = vld [vmem:[%s813 + $0xa9] sm:$0xff]
      %v1051 = vld [vmem:[%s813 + $0xb1] sm:$0xff]
      %v1052 = vld [vmem:[%s813 + $0xc1] sm:$0xff]
      %v1053 = vld [vmem:[%s813 + $0xc9] sm:$0xff]
      %v1054 = vld [vmem:[%s813 + $0xd9] sm:$0xff]
      %v1055 = vld [vmem:[%s813 + $0xe1] sm:$0xff]
      %v1056 = vld [vmem:[%s813 + $0xf1] sm:$0xff]
      %v1057 = vld [vmem:[%s813 + $0xf9] sm:$0xff]
      %v1058 = vld [vmem:[%s813 + $0x109] sm:$0xff]
      %v1059 = vld [vmem:[%s813 + $0x111] sm:$0xff]
      %v1060 = vld [vmem:[%s813 + $0x121] sm:$0xff]
      %v1061 = vld [vmem:[%s813 + $0x129] sm:$0xff]
      %v1062 = vld [vmem:[%s813 + $0x139] sm:$0xff]
      %v1063 = vld [vmem:[%s813 + $0x141] sm:$0xff]
      %v1064 = vld [vmem:[%s813 + $0x151] sm:$0xff]
      %v1065 = vld [vmem:[%s813 + $0x159] sm:$0xff]
      %v1066 = vld [vmem:[%s813 + $0x169] sm:$0xff]
      %v1067 = vld [vmem:[%s813 + $0x171] sm:$0xff]
      %v1068 = vpack.c.bf16 %v1037, %v1036
      %v1069 = vpack.c.bf16 %v1039, %v1038
      %v1070 = vpack.c.bf16 %v1041, %v1040
      %v1071 = vpack.c.bf16 %v1043, %v1042
      %v1072 = vpack.c.bf16 %v1045, %v1044
      %v1073 = vpack.c.bf16 %v1047, %v1046
      %v1074 = vpack.c.bf16 %v1049, %v1048
      %v1075 = vpack.c.bf16 %v1051, %v1050
      %v1076 = vpack.c.bf16 %v1053, %v1052
      %v1077 = vpack.c.bf16 %v1055, %v1054
      %v1078 = vpack.c.bf16 %v1057, %v1056
      %v1079 = vpack.c.bf16 %v1059, %v1058
      %v1080 = vpack.c.bf16 %v1061, %v1060
      %v1081 = vpack.c.bf16 %v1063, %v1062
      %v1082 = vpack.c.bf16 %v1065, %v1064
      %v1083 = vpack.c.bf16 %v1067, %v1066
      %s1084 = scalar_lea.vmem %s1, 16
      %v1085 = vld [vmem:[%s1084] sm:$0xf]
      %v1087 = vsel %vm309, %v1068, 0
      %v1090 = vsel %vm309, %v1069, 0
      %v1093 = vsel %vm309, %v1070, 0
      %v1096 = vsel %vm309, %v1071, 0
      %v1099 = vsel %vm309, %v1072, 0
      %v1102 = vsel %vm309, %v1073, 0
      %v1105 = vsel %vm309, %v1074, 0
      %v1108 = vsel %vm309, %v1075, 0
      %v1111 = vsel %vm309, %v1076, 0
      %v1114 = vsel %vm309, %v1077, 0
      %v1117 = vsel %vm309, %v1078, 0
      %v1120 = vsel %vm309, %v1079, 0
      %v1123 = vsel %vm309, %v1080, 0
      %v1126 = vsel %vm309, %v1081, 0
      %v1129 = vsel %vm309, %v1082, 0
      %v1132 = vsel %vm309, %v1083, 0
      %v1135 = vsel %vm358, %v1085, 0
      %1137 = vmatpush.bf16.msra.mxu0 0
      %1138 = vmatpush.bf16.msra.mxu0 0
      %1139 = vmatpush.bf16.msra.mxu0 0
      %1140 = vmatpush.bf16.msra.mxu0 0
      %1141 = vmatpush.bf16.msra.mxu0 0
      %1142 = vmatpush.bf16.msra.mxu0 0
      %1143 = vmatpush.bf16.msra.mxu0 0
      %1144 = vmatpush.bf16.msra.mxu0 %v1135
      %1145 = vmatmul.bf16.gmra.mxu0 %v1087
      %v1146 = vpop.f32.mrf.mxu0
      %v1147 = vadd.f32 0.0, %v1146
      %v1148 = vpop.f32.mrf.mxu0
      %v1149 = vadd.f32 0.0, %v1148
      %1150 = vmatmul.bf16.gmra.mxu0 %v1090
      %v1151 = vpop.f32.mrf.mxu0
      %v1152 = vadd.f32 0.0, %v1151
      %v1153 = vpop.f32.mrf.mxu0
      %v1154 = vadd.f32 0.0, %v1153
      %1155 = vmatmul.bf16.gmra.mxu0 %v1093
      %v1156 = vpop.f32.mrf.mxu0
      %v1157 = vadd.f32 0.0, %v1156
      %v1158 = vpop.f32.mrf.mxu0
      %v1159 = vadd.f32 0.0, %v1158
      %1160 = vmatmul.bf16.gmra.mxu0 %v1096
      %v1161 = vpop.f32.mrf.mxu0
      %v1162 = vadd.f32 0.0, %v1161
      %v1163 = vpop.f32.mrf.mxu0
      %v1164 = vadd.f32 0.0, %v1163
      %1165 = vmatmul.bf16.gmra.mxu0 %v1099
      %v1166 = vpop.f32.mrf.mxu0
      %v1167 = vadd.f32 0.0, %v1166
      %v1168 = vpop.f32.mrf.mxu0
      %v1169 = vadd.f32 0.0, %v1168
      %1170 = vmatmul.bf16.gmra.mxu0 %v1102
      %v1171 = vpop.f32.mrf.mxu0
      %v1172 = vadd.f32 0.0, %v1171
      %v1173 = vpop.f32.mrf.mxu0
      %v1174 = vadd.f32 0.0, %v1173
      %1175 = vmatmul.bf16.gmra.mxu0 %v1105
      %v1176 = vpop.f32.mrf.mxu0
      %v1177 = vadd.f32 0.0, %v1176
      %v1178 = vpop.f32.mrf.mxu0
      %v1179 = vadd.f32 0.0, %v1178
      %1180 = vmatmul.bf16.gmra.mxu0 %v1108
      %v1181 = vpop.f32.mrf.mxu0
      %v1182 = vadd.f32 0.0, %v1181
      %v1183 = vpop.f32.mrf.mxu0
      %v1184 = vadd.f32 0.0, %v1183
      %1185 = vmatmul.bf16.gmra.mxu0 %v1111
      %v1186 = vpop.f32.mrf.mxu0
      %v1187 = vadd.f32 0.0, %v1186
      %v1188 = vpop.f32.mrf.mxu0
      %v1189 = vadd.f32 0.0, %v1188
      %1190 = vmatmul.bf16.gmra.mxu0 %v1114
      %v1191 = vpop.f32.mrf.mxu0
      %v1192 = vadd.f32 0.0, %v1191
      %v1193 = vpop.f32.mrf.mxu0
      %v1194 = vadd.f32 0.0, %v1193
      %1195 = vmatmul.bf16.gmra.mxu0 %v1117
      %v1196 = vpop.f32.mrf.mxu0
      %v1197 = vadd.f32 0.0, %v1196
      %v1198 = vpop.f32.mrf.mxu0
      %v1199 = vadd.f32 0.0, %v1198
      %1200 = vmatmul.bf16.gmra.mxu0 %v1120
      %v1201 = vpop.f32.mrf.mxu0
      %v1202 = vadd.f32 0.0, %v1201
      %v1203 = vpop.f32.mrf.mxu0
      %v1204 = vadd.f32 0.0, %v1203
      %1205 = vmatmul.bf16.gmra.mxu0 %v1123
      %v1206 = vpop.f32.mrf.mxu0
      %v1207 = vadd.f32 0.0, %v1206
      %v1208 = vpop.f32.mrf.mxu0
      %v1209 = vadd.f32 0.0, %v1208
      %1210 = vmatmul.bf16.gmra.mxu0 %v1126
      %v1211 = vpop.f32.mrf.mxu0
      %v1212 = vadd.f32 0.0, %v1211
      %v1213 = vpop.f32.mrf.mxu0
      %v1214 = vadd.f32 0.0, %v1213
      %1215 = vmatmul.bf16.gmra.mxu0 %v1129
      %v1216 = vpop.f32.mrf.mxu0
      %v1217 = vadd.f32 0.0, %v1216
      %v1218 = vpop.f32.mrf.mxu0
      %v1219 = vadd.f32 0.0, %v1218
      %1220 = vmatmul.bf16.gmra.mxu0 %v1132
      %v1221 = vpop.f32.mrf.mxu0
      %v1222 = vadd.f32 0.0, %v1221
      %v1223 = vpop.f32.mrf.mxu0
      %v1224 = vadd.f32 0.0, %v1223
      %1225 = vdwg.mxu0
      %v1226 = vadd.f32 %v1004, %v1147
      %v1227 = vadd.f32 %v1005, %v1149
      %v1228 = vadd.f32 %v1006, %v1152
      %v1229 = vadd.f32 %v1007, %v1154
      %v1230 = vadd.f32 %v1008, %v1157
      %v1231 = vadd.f32 %v1009, %v1159
      %v1232 = vadd.f32 %v1010, %v1162
      %v1233 = vadd.f32 %v1011, %v1164
      %v1234 = vadd.f32 %v1012, %v1167
      %v1235 = vadd.f32 %v1013, %v1169
      %v1236 = vadd.f32 %v1014, %v1172
      %v1237 = vadd.f32 %v1015, %v1174
      %v1238 = vadd.f32 %v1016, %v1177
      %v1239 = vadd.f32 %v1017, %v1179
      %v1240 = vadd.f32 %v1018, %v1182
      %v1241 = vadd.f32 %v1019, %v1184
      %v1242 = vadd.f32 %v1020, %v1187
      %v1243 = vadd.f32 %v1021, %v1189
      %v1244 = vadd.f32 %v1022, %v1192
      %v1245 = vadd.f32 %v1023, %v1194
      %v1246 = vadd.f32 %v1024, %v1197
      %v1247 = vadd.f32 %v1025, %v1199
      %v1248 = vadd.f32 %v1026, %v1202
      %v1249 = vadd.f32 %v1027, %v1204
      %v1250 = vadd.f32 %v1028, %v1207
      %v1251 = vadd.f32 %v1029, %v1209
      %v1252 = vadd.f32 %v1030, %v1212
      %v1253 = vadd.f32 %v1031, %v1214
      %v1254 = vadd.f32 %v1032, %v1217
      %v1255 = vadd.f32 %v1033, %v1219
      %v1256 = vadd.f32 %v1034, %v1222
      %v1257 = vadd.f32 %v1035, %v1224
      %v1258 = vld [vmem:[%s813 + $0x2] sm:$0xff]
      %v1259 = vld [vmem:[%s813 + $0xa] sm:$0xff]
      %v1260 = vld [vmem:[%s813 + $0x1a] sm:$0xff]
      %v1261 = vld [vmem:[%s813 + $0x22] sm:$0xff]
      %v1262 = vld [vmem:[%s813 + $0x32] sm:$0xff]
      %v1263 = vld [vmem:[%s813 + $0x3a] sm:$0xff]
      %v1264 = vld [vmem:[%s813 + $0x4a] sm:$0xff]
      %v1265 = vld [vmem:[%s813 + $0x52] sm:$0xff]
      %v1266 = vld [vmem:[%s813 + $0x62] sm:$0xff]
      %v1267 = vld [vmem:[%s813 + $0x6a] sm:$0xff]
      %v1268 = vld [vmem:[%s813 + $0x7a] sm:$0xff]
      %v1269 = vld [vmem:[%s813 + $0x82] sm:$0xff]
      %v1270 = vld [vmem:[%s813 + $0x92] sm:$0xff]
      %v1271 = vld [vmem:[%s813 + $0x9a] sm:$0xff]
      %v1272 = vld [vmem:[%s813 + $0xaa] sm:$0xff]
      %v1273 = vld [vmem:[%s813 + $0xb2] sm:$0xff]
      %v1274 = vld [vmem:[%s813 + $0xc2] sm:$0xff]
      %v1275 = vld [vmem:[%s813 + $0xca] sm:$0xff]
      %v1276 = vld [vmem:[%s813 + $0xda] sm:$0xff]
      %v1277 = vld [vmem:[%s813 + $0xe2] sm:$0xff]
      %v1278 = vld [vmem:[%s813 + $0xf2] sm:$0xff]
      %v1279 = vld [vmem:[%s813 + $0xfa] sm:$0xff]
      %v1280 = vld [vmem:[%s813 + $0x10a] sm:$0xff]
      %v1281 = vld [vmem:[%s813 + $0x112] sm:$0xff]
      %v1282 = vld [vmem:[%s813 + $0x122] sm:$0xff]
      %v1283 = vld [vmem:[%s813 + $0x12a] sm:$0xff]
      %v1284 = vld [vmem:[%s813 + $0x13a] sm:$0xff]
      %v1285 = vld [vmem:[%s813 + $0x142] sm:$0xff]
      %v1286 = vld [vmem:[%s813 + $0x152] sm:$0xff]
      %v1287 = vld [vmem:[%s813 + $0x15a] sm:$0xff]
      %v1288 = vld [vmem:[%s813 + $0x16a] sm:$0xff]
      %v1289 = vld [vmem:[%s813 + $0x172] sm:$0xff]
      %v1290 = vpack.c.bf16 %v1259, %v1258
      %v1291 = vpack.c.bf16 %v1261, %v1260
      %v1292 = vpack.c.bf16 %v1263, %v1262
      %v1293 = vpack.c.bf16 %v1265, %v1264
      %v1294 = vpack.c.bf16 %v1267, %v1266
      %v1295 = vpack.c.bf16 %v1269, %v1268
      %v1296 = vpack.c.bf16 %v1271, %v1270
      %v1297 = vpack.c.bf16 %v1273, %v1272
      %v1298 = vpack.c.bf16 %v1275, %v1274
      %v1299 = vpack.c.bf16 %v1277, %v1276
      %v1300 = vpack.c.bf16 %v1279, %v1278
      %v1301 = vpack.c.bf16 %v1281, %v1280
      %v1302 = vpack.c.bf16 %v1283, %v1282
      %v1303 = vpack.c.bf16 %v1285, %v1284
      %v1304 = vpack.c.bf16 %v1287, %v1286
      %v1305 = vpack.c.bf16 %v1289, %v1288
      %s1306 = scalar_lea.vmem %s1, 20
      %v1307 = vld [vmem:[%s1306] sm:$0xf]
      %v1309 = vsel %vm309, %v1290, 0
      %v1312 = vsel %vm309, %v1291, 0
      %v1315 = vsel %vm309, %v1292, 0
      %v1318 = vsel %vm309, %v1293, 0
      %v1321 = vsel %vm309, %v1294, 0
      %v1324 = vsel %vm309, %v1295, 0
      %v1327 = vsel %vm309, %v1296, 0
      %v1330 = vsel %vm309, %v1297, 0
      %v1333 = vsel %vm309, %v1298, 0
      %v1336 = vsel %vm309, %v1299, 0
      %v1339 = vsel %vm309, %v1300, 0
      %v1342 = vsel %vm309, %v1301, 0
      %v1345 = vsel %vm309, %v1302, 0
      %v1348 = vsel %vm309, %v1303, 0
      %v1351 = vsel %vm309, %v1304, 0
      %v1354 = vsel %vm309, %v1305, 0
      %v1357 = vsel %vm358, %v1307, 0
      %1359 = vmatpush.bf16.msra.mxu0 0
      %1360 = vmatpush.bf16.msra.mxu0 0
      %1361 = vmatpush.bf16.msra.mxu0 0
      %1362 = vmatpush.bf16.msra.mxu0 0
      %1363 = vmatpush.bf16.msra.mxu0 0
      %1364 = vmatpush.bf16.msra.mxu0 0
      %1365 = vmatpush.bf16.msra.mxu0 0
      %1366 = vmatpush.bf16.msra.mxu0 %v1357
      %1367 = vmatmul.bf16.gmra.mxu0 %v1309
      %v1368 = vpop.f32.mrf.mxu0
      %v1369 = vadd.f32 0.0, %v1368
      %v1370 = vpop.f32.mrf.mxu0
      %v1371 = vadd.f32 0.0, %v1370
      %1372 = vmatmul.bf16.gmra.mxu0 %v1312
      %v1373 = vpop.f32.mrf.mxu0
      %v1374 = vadd.f32 0.0, %v1373
      %v1375 = vpop.f32.mrf.mxu0
      %v1376 = vadd.f32 0.0, %v1375
      %1377 = vmatmul.bf16.gmra.mxu0 %v1315
      %v1378 = vpop.f32.mrf.mxu0
      %v1379 = vadd.f32 0.0, %v1378
      %v1380 = vpop.f32.mrf.mxu0
      %v1381 = vadd.f32 0.0, %v1380
      %1382 = vmatmul.bf16.gmra.mxu0 %v1318
      %v1383 = vpop.f32.mrf.mxu0
      %v1384 = vadd.f32 0.0, %v1383
      %v1385 = vpop.f32.mrf.mxu0
      %v1386 = vadd.f32 0.0, %v1385
      %1387 = vmatmul.bf16.gmra.mxu0 %v1321
      %v1388 = vpop.f32.mrf.mxu0
      %v1389 = vadd.f32 0.0, %v1388
      %v1390 = vpop.f32.mrf.mxu0
      %v1391 = vadd.f32 0.0, %v1390
      %1392 = vmatmul.bf16.gmra.mxu0 %v1324
      %v1393 = vpop.f32.mrf.mxu0
      %v1394 = vadd.f32 0.0, %v1393
      %v1395 = vpop.f32.mrf.mxu0
      %v1396 = vadd.f32 0.0, %v1395
      %1397 = vmatmul.bf16.gmra.mxu0 %v1327
      %v1398 = vpop.f32.mrf.mxu0
      %v1399 = vadd.f32 0.0, %v1398
      %v1400 = vpop.f32.mrf.mxu0
      %v1401 = vadd.f32 0.0, %v1400
      %1402 = vmatmul.bf16.gmra.mxu0 %v1330
      %v1403 = vpop.f32.mrf.mxu0
      %v1404 = vadd.f32 0.0, %v1403
      %v1405 = vpop.f32.mrf.mxu0
      %v1406 = vadd.f32 0.0, %v1405
      %1407 = vmatmul.bf16.gmra.mxu0 %v1333
      %v1408 = vpop.f32.mrf.mxu0
      %v1409 = vadd.f32 0.0, %v1408
      %v1410 = vpop.f32.mrf.mxu0
      %v1411 = vadd.f32 0.0, %v1410
      %1412 = vmatmul.bf16.gmra.mxu0 %v1336
      %v1413 = vpop.f32.mrf.mxu0
      %v1414 = vadd.f32 0.0, %v1413
      %v1415 = vpop.f32.mrf.mxu0
      %v1416 = vadd.f32 0.0, %v1415
      %1417 = vmatmul.bf16.gmra.mxu0 %v1339
      %v1418 = vpop.f32.mrf.mxu0
      %v1419 = vadd.f32 0.0, %v1418
      %v1420 = vpop.f32.mrf.mxu0
      %v1421 = vadd.f32 0.0, %v1420
      %1422 = vmatmul.bf16.gmra.mxu0 %v1342
      %v1423 = vpop.f32.mrf.mxu0
      %v1424 = vadd.f32 0.0, %v1423
      %v1425 = vpop.f32.mrf.mxu0
      %v1426 = vadd.f32 0.0, %v1425
      %1427 = vmatmul.bf16.gmra.mxu0 %v1345
      %v1428 = vpop.f32.mrf.mxu0
      %v1429 = vadd.f32 0.0, %v1428
      %v1430 = vpop.f32.mrf.mxu0
      %v1431 = vadd.f32 0.0, %v1430
      %1432 = vmatmul.bf16.gmra.mxu0 %v1348
      %v1433 = vpop.f32.mrf.mxu0
      %v1434 = vadd.f32 0.0, %v1433
      %v1435 = vpop.f32.mrf.mxu0
      %v1436 = vadd.f32 0.0, %v1435
      %1437 = vmatmul.bf16.gmra.mxu0 %v1351
      %v1438 = vpop.f32.mrf.mxu0
      %v1439 = vadd.f32 0.0, %v1438
      %v1440 = vpop.f32.mrf.mxu0
      %v1441 = vadd.f32 0.0, %v1440
      %1442 = vmatmul.bf16.gmra.mxu0 %v1354
      %v1443 = vpop.f32.mrf.mxu0
      %v1444 = vadd.f32 0.0, %v1443
      %v1445 = vpop.f32.mrf.mxu0
      %v1446 = vadd.f32 0.0, %v1445
      %1447 = vdwg.mxu0
      %v1448 = vadd.f32 %v1226, %v1369
      %v1449 = vadd.f32 %v1227, %v1371
      %v1450 = vadd.f32 %v1228, %v1374
      %v1451 = vadd.f32 %v1229, %v1376
      %v1452 = vadd.f32 %v1230, %v1379
      %v1453 = vadd.f32 %v1231, %v1381
      %v1454 = vadd.f32 %v1232, %v1384
      %v1455 = vadd.f32 %v1233, %v1386
      %v1456 = vadd.f32 %v1234, %v1389
      %v1457 = vadd.f32 %v1235, %v1391
      %v1458 = vadd.f32 %v1236, %v1394
      %v1459 = vadd.f32 %v1237, %v1396
      %v1460 = vadd.f32 %v1238, %v1399
      %v1461 = vadd.f32 %v1239, %v1401
      %v1462 = vadd.f32 %v1240, %v1404
      %v1463 = vadd.f32 %v1241, %v1406
      %v1464 = vadd.f32 %v1242, %v1409
      %v1465 = vadd.f32 %v1243, %v1411
      %v1466 = vadd.f32 %v1244, %v1414
      %v1467 = vadd.f32 %v1245, %v1416
      %v1468 = vadd.f32 %v1246, %v1419
      %v1469 = vadd.f32 %v1247, %v1421
      %v1470 = vadd.f32 %v1248, %v1424
      %v1471 = vadd.f32 %v1249, %v1426
      %v1472 = vadd.f32 %v1250, %v1429
      %v1473 = vadd.f32 %v1251, %v1431
      %v1474 = vadd.f32 %v1252, %v1434
      %v1475 = vadd.f32 %v1253, %v1436
      %v1476 = vadd.f32 %v1254, %v1439
      %v1477 = vadd.f32 %v1255, %v1441
      %v1478 = vadd.f32 %v1256, %v1444
      %v1479 = vadd.f32 %v1257, %v1446
      %s1480 = scalar_lea.vmem %s199, 48
      %v1481 = vld [vmem:[%s1480] sm:$0xff]
      %v1482 = vld [vmem:[%s1480 + $0x8] sm:$0xff]
      %v1483 = vld [vmem:[%s1480 + $0x18] sm:$0xff]
      %v1484 = vld [vmem:[%s1480 + $0x20] sm:$0xff]
      %v1485 = vld [vmem:[%s1480 + $0x30] sm:$0xff]
      %v1486 = vld [vmem:[%s1480 + $0x38] sm:$0xff]
      %v1487 = vld [vmem:[%s1480 + $0x48] sm:$0xff]
      %v1488 = vld [vmem:[%s1480 + $0x50] sm:$0xff]
      %v1489 = vld [vmem:[%s1480 + $0x60] sm:$0xff]
      %v1490 = vld [vmem:[%s1480 + $0x68] sm:$0xff]
      %v1491 = vld [vmem:[%s1480 + $0x78] sm:$0xff]
      %v1492 = vld [vmem:[%s1480 + $0x80] sm:$0xff]
      %v1493 = vld [vmem:[%s1480 + $0x90] sm:$0xff]
      %v1494 = vld [vmem:[%s1480 + $0x98] sm:$0xff]
      %v1495 = vld [vmem:[%s1480 + $0xa8] sm:$0xff]
      %v1496 = vld [vmem:[%s1480 + $0xb0] sm:$0xff]
      %v1497 = vld [vmem:[%s1480 + $0xc0] sm:$0xff]
      %v1498 = vld [vmem:[%s1480 + $0xc8] sm:$0xff]
      %v1499 = vld [vmem:[%s1480 + $0xd8] sm:$0xff]
      %v1500 = vld [vmem:[%s1480 + $0xe0] sm:$0xff]
      %v1501 = vld [vmem:[%s1480 + $0xf0] sm:$0xff]
      %v1502 = vld [vmem:[%s1480 + $0xf8] sm:$0xff]
      %v1503 = vld [vmem:[%s1480 + $0x108] sm:$0xff]
      %v1504 = vld [vmem:[%s1480 + $0x110] sm:$0xff]
      %v1505 = vld [vmem:[%s1480 + $0x120] sm:$0xff]
      %v1506 = vld [vmem:[%s1480 + $0x128] sm:$0xff]
      %v1507 = vld [vmem:[%s1480 + $0x138] sm:$0xff]
      %v1508 = vld [vmem:[%s1480 + $0x140] sm:$0xff]
      %v1509 = vld [vmem:[%s1480 + $0x150] sm:$0xff]
      %v1510 = vld [vmem:[%s1480 + $0x158] sm:$0xff]
      %v1511 = vld [vmem:[%s1480 + $0x168] sm:$0xff]
      %v1512 = vld [vmem:[%s1480 + $0x170] sm:$0xff]
      %v1513 = vpack.c.bf16 %v1482, %v1481
      %v1514 = vpack.c.bf16 %v1484, %v1483
      %v1515 = vpack.c.bf16 %v1486, %v1485
      %v1516 = vpack.c.bf16 %v1488, %v1487
      %v1517 = vpack.c.bf16 %v1490, %v1489
      %v1518 = vpack.c.bf16 %v1492, %v1491
      %v1519 = vpack.c.bf16 %v1494, %v1493
      %v1520 = vpack.c.bf16 %v1496, %v1495
      %v1521 = vpack.c.bf16 %v1498, %v1497
      %v1522 = vpack.c.bf16 %v1500, %v1499
      %v1523 = vpack.c.bf16 %v1502, %v1501
      %v1524 = vpack.c.bf16 %v1504, %v1503
      %v1525 = vpack.c.bf16 %v1506, %v1505
      %v1526 = vpack.c.bf16 %v1508, %v1507
      %v1527 = vpack.c.bf16 %v1510, %v1509
      %v1528 = vpack.c.bf16 %v1512, %v1511
      %s1529 = scalar_lea.vmem %s1, 24
      %v1530 = vld [vmem:[%s1529] sm:$0xf]
      %v1532 = vsel %vm309, %v1513, 0
      %v1535 = vsel %vm309, %v1514, 0
      %v1538 = vsel %vm309, %v1515, 0
      %v1541 = vsel %vm309, %v1516, 0
      %v1544 = vsel %vm309, %v1517, 0
      %v1547 = vsel %vm309, %v1518, 0
      %v1550 = vsel %vm309, %v1519, 0
      %v1553 = vsel %vm309, %v1520, 0
      %v1556 = vsel %vm309, %v1521, 0
      %v1559 = vsel %vm309, %v1522, 0
      %v1562 = vsel %vm309, %v1523, 0
      %v1565 = vsel %vm309, %v1524, 0
      %v1568 = vsel %vm309, %v1525, 0
      %v1571 = vsel %vm309, %v1526, 0
      %v1574 = vsel %vm309, %v1527, 0
      %v1577 = vsel %vm309, %v1528, 0
      %v1580 = vsel %vm358, %v1530, 0
      %1582 = vmatpush.bf16.msra.mxu0 0
      %1583 = vmatpush.bf16.msra.mxu0 0
      %1584 = vmatpush.bf16.msra.mxu0 0
      %1585 = vmatpush.bf16.msra.mxu0 0
      %1586 = vmatpush.bf16.msra.mxu0 0
      %1587 = vmatpush.bf16.msra.mxu0 0
      %1588 = vmatpush.bf16.msra.mxu0 0
      %1589 = vmatpush.bf16.msra.mxu0 %v1580
      %1590 = vmatmul.bf16.gmra.mxu0 %v1532
      %v1591 = vpop.f32.mrf.mxu0
      %v1592 = vadd.f32 0.0, %v1591
      %v1593 = vpop.f32.mrf.mxu0
      %v1594 = vadd.f32 0.0, %v1593
      %1595 = vmatmul.bf16.gmra.mxu0 %v1535
      %v1596 = vpop.f32.mrf.mxu0
      %v1597 = vadd.f32 0.0, %v1596
      %v1598 = vpop.f32.mrf.mxu0
      %v1599 = vadd.f32 0.0, %v1598
      %1600 = vmatmul.bf16.gmra.mxu0 %v1538
      %v1601 = vpop.f32.mrf.mxu0
      %v1602 = vadd.f32 0.0, %v1601
      %v1603 = vpop.f32.mrf.mxu0
      %v1604 = vadd.f32 0.0, %v1603
      %1605 = vmatmul.bf16.gmra.mxu0 %v1541
      %v1606 = vpop.f32.mrf.mxu0
      %v1607 = vadd.f32 0.0, %v1606
      %v1608 = vpop.f32.mrf.mxu0
      %v1609 = vadd.f32 0.0, %v1608
      %1610 = vmatmul.bf16.gmra.mxu0 %v1544
      %v1611 = vpop.f32.mrf.mxu0
      %v1612 = vadd.f32 0.0, %v1611
      %v1613 = vpop.f32.mrf.mxu0
      %v1614 = vadd.f32 0.0, %v1613
      %1615 = vmatmul.bf16.gmra.mxu0 %v1547
      %v1616 = vpop.f32.mrf.mxu0
      %v1617 = vadd.f32 0.0, %v1616
      %v1618 = vpop.f32.mrf.mxu0
      %v1619 = vadd.f32 0.0, %v1618
      %1620 = vmatmul.bf16.gmra.mxu0 %v1550
      %v1621 = vpop.f32.mrf.mxu0
      %v1622 = vadd.f32 0.0, %v1621
      %v1623 = vpop.f32.mrf.mxu0
      %v1624 = vadd.f32 0.0, %v1623
      %1625 = vmatmul.bf16.gmra.mxu0 %v1553
      %v1626 = vpop.f32.mrf.mxu0
      %v1627 = vadd.f32 0.0, %v1626
      %v1628 = vpop.f32.mrf.mxu0
      %v1629 = vadd.f32 0.0, %v1628
      %1630 = vmatmul.bf16.gmra.mxu0 %v1556
      %v1631 = vpop.f32.mrf.mxu0
      %v1632 = vadd.f32 0.0, %v1631
      %v1633 = vpop.f32.mrf.mxu0
      %v1634 = vadd.f32 0.0, %v1633
      %1635 = vmatmul.bf16.gmra.mxu0 %v1559
      %v1636 = vpop.f32.mrf.mxu0
      %v1637 = vadd.f32 0.0, %v1636
      %v1638 = vpop.f32.mrf.mxu0
      %v1639 = vadd.f32 0.0, %v1638
      %1640 = vmatmul.bf16.gmra.mxu0 %v1562
      %v1641 = vpop.f32.mrf.mxu0
      %v1642 = vadd.f32 0.0, %v1641
      %v1643 = vpop.f32.mrf.mxu0
      %v1644 = vadd.f32 0.0, %v1643
      %1645 = vmatmul.bf16.gmra.mxu0 %v1565
      %v1646 = vpop.f32.mrf.mxu0
      %v1647 = vadd.f32 0.0, %v1646
      %v1648 = vpop.f32.mrf.mxu0
      %v1649 = vadd.f32 0.0, %v1648
      %1650 = vmatmul.bf16.gmra.mxu0 %v1568
      %v1651 = vpop.f32.mrf.mxu0
      %v1652 = vadd.f32 0.0, %v1651
      %v1653 = vpop.f32.mrf.mxu0
      %v1654 = vadd.f32 0.0, %v1653
      %1655 = vmatmul.bf16.gmra.mxu0 %v1571
      %v1656 = vpop.f32.mrf.mxu0
      %v1657 = vadd.f32 0.0, %v1656
      %v1658 = vpop.f32.mrf.mxu0
      %v1659 = vadd.f32 0.0, %v1658
      %1660 = vmatmul.bf16.gmra.mxu0 %v1574
      %v1661 = vpop.f32.mrf.mxu0
      %v1662 = vadd.f32 0.0, %v1661
      %v1663 = vpop.f32.mrf.mxu0
      %v1664 = vadd.f32 0.0, %v1663
      %1665 = vmatmul.bf16.gmra.mxu0 %v1577
      %v1666 = vpop.f32.mrf.mxu0
      %v1667 = vadd.f32 0.0, %v1666
      %v1668 = vpop.f32.mrf.mxu0
      %v1669 = vadd.f32 0.0, %v1668
      %1670 = vdwg.mxu0
      %v1671 = vadd.f32 %v1448, %v1592
      %v1672 = vadd.f32 %v1449, %v1594
      %v1673 = vadd.f32 %v1450, %v1597
      %v1674 = vadd.f32 %v1451, %v1599
      %v1675 = vadd.f32 %v1452, %v1602
      %v1676 = vadd.f32 %v1453, %v1604
      %v1677 = vadd.f32 %v1454, %v1607
      %v1678 = vadd.f32 %v1455, %v1609
      %v1679 = vadd.f32 %v1456, %v1612
      %v1680 = vadd.f32 %v1457, %v1614
      %v1681 = vadd.f32 %v1458, %v1617
      %v1682 = vadd.f32 %v1459, %v1619
      %v1683 = vadd.f32 %v1460, %v1622
      %v1684 = vadd.f32 %v1461, %v1624
      %v1685 = vadd.f32 %v1462, %v1627
      %v1686 = vadd.f32 %v1463, %v1629
      %v1687 = vadd.f32 %v1464, %v1632
      %v1688 = vadd.f32 %v1465, %v1634
      %v1689 = vadd.f32 %v1466, %v1637
      %v1690 = vadd.f32 %v1467, %v1639
      %v1691 = vadd.f32 %v1468, %v1642
      %v1692 = vadd.f32 %v1469, %v1644
      %v1693 = vadd.f32 %v1470, %v1647
      %v1694 = vadd.f32 %v1471, %v1649
      %v1695 = vadd.f32 %v1472, %v1652
      %v1696 = vadd.f32 %v1473, %v1654
      %v1697 = vadd.f32 %v1474, %v1657
      %v1698 = vadd.f32 %v1475, %v1659
      %v1699 = vadd.f32 %v1476, %v1662
      %v1700 = vadd.f32 %v1477, %v1664
      %v1701 = vadd.f32 %v1478, %v1667
      %v1702 = vadd.f32 %v1479, %v1669
      %v1703 = vld [vmem:[%s1480 + $0x1] sm:$0xff]
      %v1704 = vld [vmem:[%s1480 + $0x9] sm:$0xff]
      %v1705 = vld [vmem:[%s1480 + $0x19] sm:$0xff]
      %v1706 = vld [vmem:[%s1480 + $0x21] sm:$0xff]
      %v1707 = vld [vmem:[%s1480 + $0x31] sm:$0xff]
      %v1708 = vld [vmem:[%s1480 + $0x39] sm:$0xff]
      %v1709 = vld [vmem:[%s1480 + $0x49] sm:$0xff]
      %v1710 = vld [vmem:[%s1480 + $0x51] sm:$0xff]
      %v1711 = vld [vmem:[%s1480 + $0x61] sm:$0xff]
      %v1712 = vld [vmem:[%s1480 + $0x69] sm:$0xff]
      %v1713 = vld [vmem:[%s1480 + $0x79] sm:$0xff]
      %v1714 = vld [vmem:[%s1480 + $0x81] sm:$0xff]
      %v1715 = vld [vmem:[%s1480 + $0x91] sm:$0xff]
      %v1716 = vld [vmem:[%s1480 + $0x99] sm:$0xff]
      %v1717 = vld [vmem:[%s1480 + $0xa9] sm:$0xff]
      %v1718 = vld [vmem:[%s1480 + $0xb1] sm:$0xff]
      %v1719 = vld [vmem:[%s1480 + $0xc1] sm:$0xff]
      %v1720 = vld [vmem:[%s1480 + $0xc9] sm:$0xff]
      %v1721 = vld [vmem:[%s1480 + $0xd9] sm:$0xff]
      %v1722 = vld [vmem:[%s1480 + $0xe1] sm:$0xff]
      %v1723 = vld [vmem:[%s1480 + $0xf1] sm:$0xff]
      %v1724 = vld [vmem:[%s1480 + $0xf9] sm:$0xff]
      %v1725 = vld [vmem:[%s1480 + $0x109] sm:$0xff]
      %v1726 = vld [vmem:[%s1480 + $0x111] sm:$0xff]
      %v1727 = vld [vmem:[%s1480 + $0x121] sm:$0xff]
      %v1728 = vld [vmem:[%s1480 + $0x129] sm:$0xff]
      %v1729 = vld [vmem:[%s1480 + $0x139] sm:$0xff]
      %v1730 = vld [vmem:[%s1480 + $0x141] sm:$0xff]
      %v1731 = vld [vmem:[%s1480 + $0x151] sm:$0xff]
      %v1732 = vld [vmem:[%s1480 + $0x159] sm:$0xff]
      %v1733 = vld [vmem:[%s1480 + $0x169] sm:$0xff]
      %v1734 = vld [vmem:[%s1480 + $0x171] sm:$0xff]
      %v1735 = vpack.c.bf16 %v1704, %v1703
      %v1736 = vpack.c.bf16 %v1706, %v1705
      %v1737 = vpack.c.bf16 %v1708, %v1707
      %v1738 = vpack.c.bf16 %v1710, %v1709
      %v1739 = vpack.c.bf16 %v1712, %v1711
      %v1740 = vpack.c.bf16 %v1714, %v1713
      %v1741 = vpack.c.bf16 %v1716, %v1715
      %v1742 = vpack.c.bf16 %v1718, %v1717
      %v1743 = vpack.c.bf16 %v1720, %v1719
      %v1744 = vpack.c.bf16 %v1722, %v1721
      %v1745 = vpack.c.bf16 %v1724, %v1723
      %v1746 = vpack.c.bf16 %v1726, %v1725
      %v1747 = vpack.c.bf16 %v1728, %v1727
      %v1748 = vpack.c.bf16 %v1730, %v1729
      %v1749 = vpack.c.bf16 %v1732, %v1731
      %v1750 = vpack.c.bf16 %v1734, %v1733
      %s1751 = scalar_lea.vmem %s1, 28
      %v1752 = vld [vmem:[%s1751] sm:$0xf]
      %v1754 = vsel %vm309, %v1735, 0
      %v1757 = vsel %vm309, %v1736, 0
      %v1760 = vsel %vm309, %v1737, 0
      %v1763 = vsel %vm309, %v1738, 0
      %v1766 = vsel %vm309, %v1739, 0
      %v1769 = vsel %vm309, %v1740, 0
      %v1772 = vsel %vm309, %v1741, 0
      %v1775 = vsel %vm309, %v1742, 0
      %v1778 = vsel %vm309, %v1743, 0
      %v1781 = vsel %vm309, %v1744, 0
      %v1784 = vsel %vm309, %v1745, 0
      %v1787 = vsel %vm309, %v1746, 0
      %v1790 = vsel %vm309, %v1747, 0
      %v1793 = vsel %vm309, %v1748, 0
      %v1796 = vsel %vm309, %v1749, 0
      %v1799 = vsel %vm309, %v1750, 0
      %v1802 = vsel %vm358, %v1752, 0
      %1804 = vmatpush.bf16.msra.mxu0 0
      %1805 = vmatpush.bf16.msra.mxu0 0
      %1806 = vmatpush.bf16.msra.mxu0 0
      %1807 = vmatpush.bf16.msra.mxu0 0
      %1808 = vmatpush.bf16.msra.mxu0 0
      %1809 = vmatpush.bf16.msra.mxu0 0
      %1810 = vmatpush.bf16.msra.mxu0 0
      %1811 = vmatpush.bf16.msra.mxu0 %v1802
      %1812 = vmatmul.bf16.gmra.mxu0 %v1754
      %v1813 = vpop.f32.mrf.mxu0
      %v1814 = vadd.f32 0.0, %v1813
      %v1815 = vpop.f32.mrf.mxu0
      %v1816 = vadd.f32 0.0, %v1815
      %1817 = vmatmul.bf16.gmra.mxu0 %v1757
      %v1818 = vpop.f32.mrf.mxu0
      %v1819 = vadd.f32 0.0, %v1818
      %v1820 = vpop.f32.mrf.mxu0
      %v1821 = vadd.f32 0.0, %v1820
      %1822 = vmatmul.bf16.gmra.mxu0 %v1760
      %v1823 = vpop.f32.mrf.mxu0
      %v1824 = vadd.f32 0.0, %v1823
      %v1825 = vpop.f32.mrf.mxu0
      %v1826 = vadd.f32 0.0, %v1825
      %1827 = vmatmul.bf16.gmra.mxu0 %v1763
      %v1828 = vpop.f32.mrf.mxu0
      %v1829 = vadd.f32 0.0, %v1828
      %v1830 = vpop.f32.mrf.mxu0
      %v1831 = vadd.f32 0.0, %v1830
      %1832 = vmatmul.bf16.gmra.mxu0 %v1766
      %v1833 = vpop.f32.mrf.mxu0
      %v1834 = vadd.f32 0.0, %v1833
      %v1835 = vpop.f32.mrf.mxu0
      %v1836 = vadd.f32 0.0, %v1835
      %1837 = vmatmul.bf16.gmra.mxu0 %v1769
      %v1838 = vpop.f32.mrf.mxu0
      %v1839 = vadd.f32 0.0, %v1838
      %v1840 = vpop.f32.mrf.mxu0
      %v1841 = vadd.f32 0.0, %v1840
      %1842 = vmatmul.bf16.gmra.mxu0 %v1772
      %v1843 = vpop.f32.mrf.mxu0
      %v1844 = vadd.f32 0.0, %v1843
      %v1845 = vpop.f32.mrf.mxu0
      %v1846 = vadd.f32 0.0, %v1845
      %1847 = vmatmul.bf16.gmra.mxu0 %v1775
      %v1848 = vpop.f32.mrf.mxu0
      %v1849 = vadd.f32 0.0, %v1848
      %v1850 = vpop.f32.mrf.mxu0
      %v1851 = vadd.f32 0.0, %v1850
      %1852 = vmatmul.bf16.gmra.mxu0 %v1778
      %v1853 = vpop.f32.mrf.mxu0
      %v1854 = vadd.f32 0.0, %v1853
      %v1855 = vpop.f32.mrf.mxu0
      %v1856 = vadd.f32 0.0, %v1855
      %1857 = vmatmul.bf16.gmra.mxu0 %v1781
      %v1858 = vpop.f32.mrf.mxu0
      %v1859 = vadd.f32 0.0, %v1858
      %v1860 = vpop.f32.mrf.mxu0
      %v1861 = vadd.f32 0.0, %v1860
      %1862 = vmatmul.bf16.gmra.mxu0 %v1784
      %v1863 = vpop.f32.mrf.mxu0
      %v1864 = vadd.f32 0.0, %v1863
      %v1865 = vpop.f32.mrf.mxu0
      %v1866 = vadd.f32 0.0, %v1865
      %1867 = vmatmul.bf16.gmra.mxu0 %v1787
      %v1868 = vpop.f32.mrf.mxu0
      %v1869 = vadd.f32 0.0, %v1868
      %v1870 = vpop.f32.mrf.mxu0
      %v1871 = vadd.f32 0.0, %v1870
      %1872 = vmatmul.bf16.gmra.mxu0 %v1790
      %v1873 = vpop.f32.mrf.mxu0
      %v1874 = vadd.f32 0.0, %v1873
      %v1875 = vpop.f32.mrf.mxu0
      %v1876 = vadd.f32 0.0, %v1875
      %1877 = vmatmul.bf16.gmra.mxu0 %v1793
      %v1878 = vpop.f32.mrf.mxu0
      %v1879 = vadd.f32 0.0, %v1878
      %v1880 = vpop.f32.mrf.mxu0
      %v1881 = vadd.f32 0.0, %v1880
      %1882 = vmatmul.bf16.gmra.mxu0 %v1796
      %v1883 = vpop.f32.mrf.mxu0
      %v1884 = vadd.f32 0.0, %v1883
      %v1885 = vpop.f32.mrf.mxu0
      %v1886 = vadd.f32 0.0, %v1885
      %1887 = vmatmul.bf16.gmra.mxu0 %v1799
      %v1888 = vpop.f32.mrf.mxu0
      %v1889 = vadd.f32 0.0, %v1888
      %v1890 = vpop.f32.mrf.mxu0
      %v1891 = vadd.f32 0.0, %v1890
      %1892 = vdwg.mxu0
      %v1893 = vadd.f32 %v1671, %v1814
      %v1894 = vadd.f32 %v1672, %v1816
      %v1895 = vadd.f32 %v1673, %v1819
      %v1896 = vadd.f32 %v1674, %v1821
      %v1897 = vadd.f32 %v1675, %v1824
      %v1898 = vadd.f32 %v1676, %v1826
      %v1899 = vadd.f32 %v1677, %v1829
      %v1900 = vadd.f32 %v1678, %v1831
      %v1901 = vadd.f32 %v1679, %v1834
      %v1902 = vadd.f32 %v1680, %v1836
      %v1903 = vadd.f32 %v1681, %v1839
      %v1904 = vadd.f32 %v1682, %v1841
      %v1905 = vadd.f32 %v1683, %v1844
      %v1906 = vadd.f32 %v1684, %v1846
      %v1907 = vadd.f32 %v1685, %v1849
      %v1908 = vadd.f32 %v1686, %v1851
      %v1909 = vadd.f32 %v1687, %v1854
      %v1910 = vadd.f32 %v1688, %v1856
      %v1911 = vadd.f32 %v1689, %v1859
      %v1912 = vadd.f32 %v1690, %v1861
      %v1913 = vadd.f32 %v1691, %v1864
      %v1914 = vadd.f32 %v1692, %v1866
      %v1915 = vadd.f32 %v1693, %v1869
      %v1916 = vadd.f32 %v1694, %v1871
      %v1917 = vadd.f32 %v1695, %v1874
      %v1918 = vadd.f32 %v1696, %v1876
      %v1919 = vadd.f32 %v1697, %v1879
      %v1920 = vadd.f32 %v1698, %v1881
      %v1921 = vadd.f32 %v1699, %v1884
      %v1922 = vadd.f32 %v1700, %v1886
      %v1923 = vadd.f32 %v1701, %v1889
      %v1924 = vadd.f32 %v1702, %v1891
      %v1925 = vld [vmem:[%s1480 + $0x2] sm:$0xff]
      %v1926 = vld [vmem:[%s1480 + $0xa] sm:$0xff]
      %v1927 = vld [vmem:[%s1480 + $0x1a] sm:$0xff]
      %v1928 = vld [vmem:[%s1480 + $0x22] sm:$0xff]
      %v1929 = vld [vmem:[%s1480 + $0x32] sm:$0xff]
      %v1930 = vld [vmem:[%s1480 + $0x3a] sm:$0xff]
      %v1931 = vld [vmem:[%s1480 + $0x4a] sm:$0xff]
      %v1932 = vld [vmem:[%s1480 + $0x52] sm:$0xff]
      %v1933 = vld [vmem:[%s1480 + $0x62] sm:$0xff]
      %v1934 = vld [vmem:[%s1480 + $0x6a] sm:$0xff]
      %v1935 = vld [vmem:[%s1480 + $0x7a] sm:$0xff]
      %v1936 = vld [vmem:[%s1480 + $0x82] sm:$0xff]
      %v1937 = vld [vmem:[%s1480 + $0x92] sm:$0xff]
      %v1938 = vld [vmem:[%s1480 + $0x9a] sm:$0xff]
      %v1939 = vld [vmem:[%s1480 + $0xaa] sm:$0xff]
      %v1940 = vld [vmem:[%s1480 + $0xb2] sm:$0xff]
      %v1941 = vld [vmem:[%s1480 + $0xc2] sm:$0xff]
      %v1942 = vld [vmem:[%s1480 + $0xca] sm:$0xff]
      %v1943 = vld [vmem:[%s1480 + $0xda] sm:$0xff]
      %v1944 = vld [vmem:[%s1480 + $0xe2] sm:$0xff]
      %v1945 = vld [vmem:[%s1480 + $0xf2] sm:$0xff]
      %v1946 = vld [vmem:[%s1480 + $0xfa] sm:$0xff]
      %v1947 = vld [vmem:[%s1480 + $0x10a] sm:$0xff]
      %v1948 = vld [vmem:[%s1480 + $0x112] sm:$0xff]
      %v1949 = vld [vmem:[%s1480 + $0x122] sm:$0xff]
      %v1950 = vld [vmem:[%s1480 + $0x12a] sm:$0xff]
      %v1951 = vld [vmem:[%s1480 + $0x13a] sm:$0xff]
      %v1952 = vld [vmem:[%s1480 + $0x142] sm:$0xff]
      %v1953 = vld [vmem:[%s1480 + $0x152] sm:$0xff]
      %v1954 = vld [vmem:[%s1480 + $0x15a] sm:$0xff]
      %v1955 = vld [vmem:[%s1480 + $0x16a] sm:$0xff]
      %v1956 = vld [vmem:[%s1480 + $0x172] sm:$0xff]
      %v1957 = vpack.c.bf16 %v1926, %v1925
      %v1958 = vpack.c.bf16 %v1928, %v1927
      %v1959 = vpack.c.bf16 %v1930, %v1929
      %v1960 = vpack.c.bf16 %v1932, %v1931
      %v1961 = vpack.c.bf16 %v1934, %v1933
      %v1962 = vpack.c.bf16 %v1936, %v1935
      %v1963 = vpack.c.bf16 %v1938, %v1937
      %v1964 = vpack.c.bf16 %v1940, %v1939
      %v1965 = vpack.c.bf16 %v1942, %v1941
      %v1966 = vpack.c.bf16 %v1944, %v1943
      %v1967 = vpack.c.bf16 %v1946, %v1945
      %v1968 = vpack.c.bf16 %v1948, %v1947
      %v1969 = vpack.c.bf16 %v1950, %v1949
      %v1970 = vpack.c.bf16 %v1952, %v1951
      %v1971 = vpack.c.bf16 %v1954, %v1953
      %v1972 = vpack.c.bf16 %v1956, %v1955
      %s1973 = scalar_lea.vmem %s1, 32
      %v1974 = vld [vmem:[%s1973] sm:$0xf]
      %v1976 = vsel %vm309, %v1957, 0
      %v1979 = vsel %vm309, %v1958, 0
      %v1982 = vsel %vm309, %v1959, 0
      %v1985 = vsel %vm309, %v1960, 0
      %v1988 = vsel %vm309, %v1961, 0
      %v1991 = vsel %vm309, %v1962, 0
      %v1994 = vsel %vm309, %v1963, 0
      %v1997 = vsel %vm309, %v1964, 0
      %v2000 = vsel %vm309, %v1965, 0
      %v2003 = vsel %vm309, %v1966, 0
      %v2006 = vsel %vm309, %v1967, 0
      %v2009 = vsel %vm309, %v1968, 0
      %v2012 = vsel %vm309, %v1969, 0
      %v2015 = vsel %vm309, %v1970, 0
      %v2018 = vsel %vm309, %v1971, 0
      %v2021 = vsel %vm309, %v1972, 0
      %v2024 = vsel %vm358, %v1974, 0
      %2026 = vmatpush.bf16.msra.mxu0 0
      %2027 = vmatpush.bf16.msra.mxu0 0
      %2028 = vmatpush.bf16.msra.mxu0 0
      %2029 = vmatpush.bf16.msra.mxu0 0
      %2030 = vmatpush.bf16.msra.mxu0 0
      %2031 = vmatpush.bf16.msra.mxu0 0
      %2032 = vmatpush.bf16.msra.mxu0 0
      %2033 = vmatpush.bf16.msra.mxu0 %v2024
      %2034 = vmatmul.bf16.gmra.mxu0 %v1976
      %v2035 = vpop.f32.mrf.mxu0
      %v2036 = vadd.f32 0.0, %v2035
      %v2037 = vpop.f32.mrf.mxu0
      %v2038 = vadd.f32 0.0, %v2037
      %2039 = vmatmul.bf16.gmra.mxu0 %v1979
      %v2040 = vpop.f32.mrf.mxu0
      %v2041 = vadd.f32 0.0, %v2040
      %v2042 = vpop.f32.mrf.mxu0
      %v2043 = vadd.f32 0.0, %v2042
      %2044 = vmatmul.bf16.gmra.mxu0 %v1982
      %v2045 = vpop.f32.mrf.mxu0
      %v2046 = vadd.f32 0.0, %v2045
      %v2047 = vpop.f32.mrf.mxu0
      %v2048 = vadd.f32 0.0, %v2047
      %2049 = vmatmul.bf16.gmra.mxu0 %v1985
      %v2050 = vpop.f32.mrf.mxu0
      %v2051 = vadd.f32 0.0, %v2050
      %v2052 = vpop.f32.mrf.mxu0
      %v2053 = vadd.f32 0.0, %v2052
      %2054 = vmatmul.bf16.gmra.mxu0 %v1988
      %v2055 = vpop.f32.mrf.mxu0
      %v2056 = vadd.f32 0.0, %v2055
      %v2057 = vpop.f32.mrf.mxu0
      %v2058 = vadd.f32 0.0, %v2057
      %2059 = vmatmul.bf16.gmra.mxu0 %v1991
      %v2060 = vpop.f32.mrf.mxu0
      %v2061 = vadd.f32 0.0, %v2060
      %v2062 = vpop.f32.mrf.mxu0
      %v2063 = vadd.f32 0.0, %v2062
      %2064 = vmatmul.bf16.gmra.mxu0 %v1994
      %v2065 = vpop.f32.mrf.mxu0
      %v2066 = vadd.f32 0.0, %v2065
      %v2067 = vpop.f32.mrf.mxu0
      %v2068 = vadd.f32 0.0, %v2067
      %2069 = vmatmul.bf16.gmra.mxu0 %v1997
      %v2070 = vpop.f32.mrf.mxu0
      %v2071 = vadd.f32 0.0, %v2070
      %v2072 = vpop.f32.mrf.mxu0
      %v2073 = vadd.f32 0.0, %v2072
      %2074 = vmatmul.bf16.gmra.mxu0 %v2000
      %v2075 = vpop.f32.mrf.mxu0
      %v2076 = vadd.f32 0.0, %v2075
      %v2077 = vpop.f32.mrf.mxu0
      %v2078 = vadd.f32 0.0, %v2077
      %2079 = vmatmul.bf16.gmra.mxu0 %v2003
      %v2080 = vpop.f32.mrf.mxu0
      %v2081 = vadd.f32 0.0, %v2080
      %v2082 = vpop.f32.mrf.mxu0
      %v2083 = vadd.f32 0.0, %v2082
      %2084 = vmatmul.bf16.gmra.mxu0 %v2006
      %v2085 = vpop.f32.mrf.mxu0
      %v2086 = vadd.f32 0.0, %v2085
      %v2087 = vpop.f32.mrf.mxu0
      %v2088 = vadd.f32 0.0, %v2087
      %2089 = vmatmul.bf16.gmra.mxu0 %v2009
      %v2090 = vpop.f32.mrf.mxu0
      %v2091 = vadd.f32 0.0, %v2090
      %v2092 = vpop.f32.mrf.mxu0
      %v2093 = vadd.f32 0.0, %v2092
      %2094 = vmatmul.bf16.gmra.mxu0 %v2012
      %v2095 = vpop.f32.mrf.mxu0
      %v2096 = vadd.f32 0.0, %v2095
      %v2097 = vpop.f32.mrf.mxu0
      %v2098 = vadd.f32 0.0, %v2097
      %2099 = vmatmul.bf16.gmra.mxu0 %v2015
      %v2100 = vpop.f32.mrf.mxu0
      %v2101 = vadd.f32 0.0, %v2100
      %v2102 = vpop.f32.mrf.mxu0
      %v2103 = vadd.f32 0.0, %v2102
      %2104 = vmatmul.bf16.gmra.mxu0 %v2018
      %v2105 = vpop.f32.mrf.mxu0
      %v2106 = vadd.f32 0.0, %v2105
      %v2107 = vpop.f32.mrf.mxu0
      %v2108 = vadd.f32 0.0, %v2107
      %2109 = vmatmul.bf16.gmra.mxu0 %v2021
      %v2110 = vpop.f32.mrf.mxu0
      %v2111 = vadd.f32 0.0, %v2110
      %v2112 = vpop.f32.mrf.mxu0
      %v2113 = vadd.f32 0.0, %v2112
      %2114 = vdwg.mxu0
      %v2115 = vadd.f32 %v1893, %v2036
      %v2116 = vadd.f32 %v1894, %v2038
      %v2117 = vadd.f32 %v1895, %v2041
      %v2118 = vadd.f32 %v1896, %v2043
      %v2119 = vadd.f32 %v1897, %v2046
      %v2120 = vadd.f32 %v1898, %v2048
      %v2121 = vadd.f32 %v1899, %v2051
      %v2122 = vadd.f32 %v1900, %v2053
      %v2123 = vadd.f32 %v1901, %v2056
      %v2124 = vadd.f32 %v1902, %v2058
      %v2125 = vadd.f32 %v1903, %v2061
      %v2126 = vadd.f32 %v1904, %v2063
      %v2127 = vadd.f32 %v1905, %v2066
      %v2128 = vadd.f32 %v1906, %v2068
      %v2129 = vadd.f32 %v1907, %v2071
      %v2130 = vadd.f32 %v1908, %v2073
      %v2131 = vadd.f32 %v1909, %v2076
      %v2132 = vadd.f32 %v1910, %v2078
      %v2133 = vadd.f32 %v1911, %v2081
      %v2134 = vadd.f32 %v1912, %v2083
      %v2135 = vadd.f32 %v1913, %v2086
      %v2136 = vadd.f32 %v1914, %v2088
      %v2137 = vadd.f32 %v1915, %v2091
      %v2138 = vadd.f32 %v1916, %v2093
      %v2139 = vadd.f32 %v1917, %v2096
      %v2140 = vadd.f32 %v1918, %v2098
      %v2141 = vadd.f32 %v1919, %v2101
      %v2142 = vadd.f32 %v1920, %v2103
      %v2143 = vadd.f32 %v1921, %v2106
      %v2144 = vadd.f32 %v1922, %v2108
      %v2145 = vadd.f32 %v1923, %v2111
      %v2146 = vadd.f32 %v1924, %v2113
      %v2147 = vld [vmem:[%s2] sm:$0x1]
      %v2149 = vperm.slane %v2147, 0
      %v2151 = vadd.f32 %v2115, %v2149
      %v2152 = vadd.f32 %v2116, %v2149
      %v2153 = vadd.f32 %v2117, %v2149
      %v2154 = vadd.f32 %v2118, %v2149
      %v2155 = vadd.f32 %v2119, %v2149
      %v2156 = vadd.f32 %v2120, %v2149
      %v2157 = vadd.f32 %v2121, %v2149
      %v2158 = vadd.f32 %v2122, %v2149
      %v2159 = vadd.f32 %v2123, %v2149
      %v2160 = vadd.f32 %v2124, %v2149
      %v2161 = vadd.f32 %v2125, %v2149
      %v2162 = vadd.f32 %v2126, %v2149
      %v2163 = vadd.f32 %v2127, %v2149
      %v2164 = vadd.f32 %v2128, %v2149
      %v2165 = vadd.f32 %v2129, %v2149
      %v2166 = vadd.f32 %v2130, %v2149
      %v2167 = vadd.f32 %v2131, %v2149
      %v2168 = vadd.f32 %v2132, %v2149
      %v2169 = vadd.f32 %v2133, %v2149
      %v2170 = vadd.f32 %v2134, %v2149
      %v2171 = vadd.f32 %v2135, %v2149
      %v2172 = vadd.f32 %v2136, %v2149
      %v2173 = vadd.f32 %v2137, %v2149
      %v2174 = vadd.f32 %v2138, %v2149
      %v2175 = vadd.f32 %v2139, %v2149
      %v2176 = vadd.f32 %v2140, %v2149
      %v2177 = vadd.f32 %v2141, %v2149
      %v2178 = vadd.f32 %v2142, %v2149
      %v2179 = vadd.f32 %v2143, %v2149
      %v2180 = vadd.f32 %v2144, %v2149
      %v2181 = vadd.f32 %v2145, %v2149
      %v2182 = vadd.f32 %v2146, %v2149
      %2183 = vst [vmem:[%s204] sm:$0xff] %v2151
      %2184 = vst [vmem:[%s204 + $0x8] sm:$0xff] %v2152
      %2185 = vst [vmem:[%s204 + $0x10] sm:$0xff] %v2153
      %2186 = vst [vmem:[%s204 + $0x18] sm:$0xff] %v2154
      %2187 = vst [vmem:[%s204 + $0x20] sm:$0xff] %v2155
      %2188 = vst [vmem:[%s204 + $0x28] sm:$0xff] %v2156
      %2189 = vst [vmem:[%s204 + $0x30] sm:$0xff] %v2157
      %2190 = vst [vmem:[%s204 + $0x38] sm:$0xff] %v2158
      %2191 = vst [vmem:[%s204 + $0x40] sm:$0xff] %v2159
      %2192 = vst [vmem:[%s204 + $0x48] sm:$0xff] %v2160
      %2193 = vst [vmem:[%s204 + $0x50] sm:$0xff] %v2161
      %2194 = vst [vmem:[%s204 + $0x58] sm:$0xff] %v2162
      %2195 = vst [vmem:[%s204 + $0x60] sm:$0xff] %v2163
      %2196 = vst [vmem:[%s204 + $0x68] sm:$0xff] %v2164
      %2197 = vst [vmem:[%s204 + $0x70] sm:$0xff] %v2165
      %2198 = vst [vmem:[%s204 + $0x78] sm:$0xff] %v2166
      %2199 = vst [vmem:[%s204 + $0x80] sm:$0xff] %v2167
      %2200 = vst [vmem:[%s204 + $0x88] sm:$0xff] %v2168
      %2201 = vst [vmem:[%s204 + $0x90] sm:$0xff] %v2169
      %2202 = vst [vmem:[%s204 + $0x98] sm:$0xff] %v2170
      %2203 = vst [vmem:[%s204 + $0xa0] sm:$0xff] %v2171
      %2204 = vst [vmem:[%s204 + $0xa8] sm:$0xff] %v2172
      %2205 = vst [vmem:[%s204 + $0xb0] sm:$0xff] %v2173
      %2206 = vst [vmem:[%s204 + $0xb8] sm:$0xff] %v2174
      %2207 = vst [vmem:[%s204 + $0xc0] sm:$0xff] %v2175
      %2208 = vst [vmem:[%s204 + $0xc8] sm:$0xff] %v2176
      %2209 = vst [vmem:[%s204 + $0xd0] sm:$0xff] %v2177
      %2210 = vst [vmem:[%s204 + $0xd8] sm:$0xff] %v2178
      %2211 = vst [vmem:[%s204 + $0xe0] sm:$0xff] %v2179
      %2212 = vst [vmem:[%s204 + $0xe8] sm:$0xff] %v2180
      %2213 = vst [vmem:[%s204 + $0xf0] sm:$0xff] %v2181
      %2214 = vst [vmem:[%s204 + $0xf8] sm:$0xff] %v2182
      %v2215 = vadd.f32 %v2151, %v2152
      %v2216 = vadd.f32 %v2215, %v2153
      %v2217 = vadd.f32 %v2216, %v2154
      %v2218 = vadd.f32 %v2217, %v2155
      %v2219 = vadd.f32 %v2218, %v2156
      %v2220 = vadd.f32 %v2219, %v2157
      %v2221 = vadd.f32 %v2220, %v2158
      %v2222 = vadd.f32 %v2221, %v2159
      %v2223 = vadd.f32 %v2222, %v2160
      %v2224 = vadd.f32 %v2223, %v2161
      %v2225 = vadd.f32 %v2224, %v2162
      %v2226 = vadd.f32 %v2225, %v2163
      %v2227 = vadd.f32 %v2226, %v2164
      %v2228 = vadd.f32 %v2227, %v2165
      %v2229 = vadd.f32 %v2228, %v2166
      %v2230 = vadd.f32 %v2229, %v2167
      %v2231 = vadd.f32 %v2230, %v2168
      %v2232 = vadd.f32 %v2231, %v2169
      %v2233 = vadd.f32 %v2232, %v2170
      %v2234 = vadd.f32 %v2233, %v2171
      %v2235 = vadd.f32 %v2234, %v2172
      %v2236 = vadd.f32 %v2235, %v2173
      %v2237 = vadd.f32 %v2236, %v2174
      %v2238 = vadd.f32 %v2237, %v2175
      %v2239 = vadd.f32 %v2238, %v2176
      %v2240 = vadd.f32 %v2239, %v2177
      %v2241 = vadd.f32 %v2240, %v2178
      %v2242 = vadd.f32 %v2241, %v2179
      %v2243 = vadd.f32 %v2242, %v2180
      %v2244 = vadd.f32 %v2243, %v2181
      %v2245 = vadd.f32 %v2244, %v2182
      %v2246 = vrot.slane %v2245, 4
      %v2247 = vadd.f32 %v2245, %v2246
      %v2248 = vrot.slane %v2247, 2
      %v2249 = vadd.f32 %v2247, %v2248
      %v2250 = vrot.slane %v2249, 1
      %v2251 = vadd.f32 %v2249, %v2250
      %2252 = vst [vmem:[%s208] sm:$0x1] %v2251
      %v2253 = vmul.f32 %v2151, %v2151
      %v2254 = vmul.f32 %v2152, %v2152
      %v2255 = vmul.f32 %v2153, %v2153
      %v2256 = vmul.f32 %v2154, %v2154
      %v2257 = vmul.f32 %v2155, %v2155
      %v2258 = vmul.f32 %v2156, %v2156
      %v2259 = vmul.f32 %v2157, %v2157
      %v2260 = vmul.f32 %v2158, %v2158
      %v2261 = vmul.f32 %v2159, %v2159
      %v2262 = vmul.f32 %v2160, %v2160
      %v2263 = vmul.f32 %v2161, %v2161
      %v2264 = vmul.f32 %v2162, %v2162
      %v2265 = vmul.f32 %v2163, %v2163
      %v2266 = vmul.f32 %v2164, %v2164
      %v2267 = vmul.f32 %v2165, %v2165
      %v2268 = vmul.f32 %v2166, %v2166
      %v2269 = vmul.f32 %v2167, %v2167
      %v2270 = vmul.f32 %v2168, %v2168
      %v2271 = vmul.f32 %v2169, %v2169
      %v2272 = vmul.f32 %v2170, %v2170
      %v2273 = vmul.f32 %v2171, %v2171
      %v2274 = vmul.f32 %v2172, %v2172
      %v2275 = vmul.f32 %v2173, %v2173
      %v2276 = vmul.f32 %v2174, %v2174
      %v2277 = vmul.f32 %v2175, %v2175
      %v2278 = vmul.f32 %v2176, %v2176
      %v2279 = vmul.f32 %v2177, %v2177
      %v2280 = vmul.f32 %v2178, %v2178
      %v2281 = vmul.f32 %v2179, %v2179
      %v2282 = vmul.f32 %v2180, %v2180
      %v2283 = vmul.f32 %v2181, %v2181
      %v2284 = vmul.f32 %v2182, %v2182
      %v2285 = vadd.f32 %v2253, %v2254
      %v2286 = vadd.f32 %v2285, %v2255
      %v2287 = vadd.f32 %v2286, %v2256
      %v2288 = vadd.f32 %v2287, %v2257
      %v2289 = vadd.f32 %v2288, %v2258
      %v2290 = vadd.f32 %v2289, %v2259
      %v2291 = vadd.f32 %v2290, %v2260
      %v2292 = vadd.f32 %v2291, %v2261
      %v2293 = vadd.f32 %v2292, %v2262
      %v2294 = vadd.f32 %v2293, %v2263
      %v2295 = vadd.f32 %v2294, %v2264
      %v2296 = vadd.f32 %v2295, %v2265
      %v2297 = vadd.f32 %v2296, %v2266
      %v2298 = vadd.f32 %v2297, %v2267
      %v2299 = vadd.f32 %v2298, %v2268
      %v2300 = vadd.f32 %v2299, %v2269
      %v2301 = vadd.f32 %v2300, %v2270
      %v2302 = vadd.f32 %v2301, %v2271
      %v2303 = vadd.f32 %v2302, %v2272
      %v2304 = vadd.f32 %v2303, %v2273
      %v2305 = vadd.f32 %v2304, %v2274
      %v2306 = vadd.f32 %v2305, %v2275
      %v2307 = vadd.f32 %v2306, %v2276
      %v2308 = vadd.f32 %v2307, %v2277
      %v2309 = vadd.f32 %v2308, %v2278
      %v2310 = vadd.f32 %v2309, %v2279
      %v2311 = vadd.f32 %v2310, %v2280
      %v2312 = vadd.f32 %v2311, %v2281
      %v2313 = vadd.f32 %v2312, %v2282
      %v2314 = vadd.f32 %v2313, %v2283
      %v2315 = vadd.f32 %v2314, %v2284
      %v2316 = vrot.slane %v2315, 4
      %v2317 = vadd.f32 %v2315, %v2316
      %v2318 = vrot.slane %v2317, 2
      %v2319 = vadd.f32 %v2317, %v2318
      %v2320 = vrot.slane %v2319, 1
      %v2321 = vadd.f32 %v2319, %v2320
      %2322 = vst [vmem:[%s208 + $0x1] sm:$0x1] %v2321
      %p2323 = scmp.lt.s32.totalorder %s16, 1
      %s2324 = scalar_select %p2323, %s16, 1
      %s2325 = smul.addr %s2324, 32
      %s2326 = smul.addr %s2325, 8
      %s2327 = scalar_lea.vmem %s3, %s2326
      %p2328 = scmp.lt.s32.totalorder %s16, 1
      %s2329 = scalar_select %p2328, %s16, 1
      %s2330 = smul.addr %s2329, 2
      %s2331 = scalar_lea.vmem %s4, %s2330
      // Predicated region
      $region33: #{unet_down_forward.4} parent=31 // pred_check
        %p2332 = pneg %p102
      $region34: #{unet_down_forward.4} parent=31 // pred_check_branch
        %2334 = sbr.rel (%p2332) target = $region36
      $region35: #{unet_down_forward.4} parent=31 // pred_region
        _
      $region36: #{unet_down_forward.4} parent=31 // pred_fallthru
        _
      // Predicated region
      $region37: #{unet_down_forward.4} parent=31 // pred_check
        %p2335 = pneg %p128
      $region38: #{unet_down_forward.4} parent=31 // pred_check_branch
        %2337 = sbr.rel (%p2335) target = $region40
      $region39: #{unet_down_forward.4} parent=31 // pred_region
        _
      $region40: #{unet_down_forward.4} parent=31 // pred_fallthru
        _
    $region32: #{unet_down_forward.4} parent=5 // pred_fallthru
      _
    %p2338 = scmp.le.s32.totalorder 2, %s11
    // Predicated region
    $region41: #{unet_down_forward.4} parent=5 // pred_check
      %p2339 = pneg %p2338
    $region42: #{unet_down_forward.4} parent=5 // pred_check_branch
      %2341 = sbr.rel (%p2339) target = $region44
    $region43: #{unet_down_forward.4} parent=5 // pred_region
      %s2342 = ssub.s32 %s11, 2
      // Predicated region
      $region45: #{unet_down_forward.4} parent=43 // pred_check
        %p2343 = pneg %p108
      $region46: #{unet_down_forward.4} parent=43 // pred_check_branch
        %2345 = sbr.rel (%p2343) target = $region48
      $region47: #{unet_down_forward.4} parent=43 // pred_region
        %p2346 = scmp.lt.s32.totalorder %s17, 1
        %s2347 = scalar_select %p2346, %s17, 1
        %s2348 = smul.addr %s2347, 32
        %s2349 = smul.addr %s2348, 8
        %s2350 = scalar_lea.vmem %s3, %s2349
      $region48: #{unet_down_forward.4} parent=43 // pred_fallthru
        _
      // Predicated region
      $region49: #{unet_down_forward.4} parent=43 // pred_check
        %p2351 = pneg %p134
      $region50: #{unet_down_forward.4} parent=43 // pred_check_branch
        %2353 = sbr.rel (%p2351) target = $region52
      $region51: #{unet_down_forward.4} parent=43 // pred_region
        %p2354 = scmp.lt.s32.totalorder %s17, 1
        %s2355 = scalar_select %p2354, %s17, 1
        %s2356 = smul.addr %s2355, 2
        %s2357 = scalar_lea.vmem %s4, %s2356
      $region52: #{unet_down_forward.4} parent=43 // pred_fallthru
        _
    $region44: #{unet_down_forward.4} parent=5 // pred_fallthru
      _
  $region6: #{unet_down_forward.4} parent=0 // loop_footer
    %s15 = sadd.s32 1, %s11
  $region7: #{unet_down_forward.4} parent=0 // loop_footer_branch
    %10 = sbr.rel target = $region3
  $region8: #{unet_down_forward.4} parent=0 // loop_exit
    _

// kernel: unet_down_forward.7
$region0: #{unet_down_forward.7}
  #allocation0 [shape = 'u32[]', space=smem, size = 0x4, offset = 0x4, fixed_abs, tag = 'smem constant byte address 0x4 - core index']
  #allocation1 [shape = 'u32[72,128]{1,0:T(1,128)}', space=vmem, size = 0x9000, scoped, tag = 'internal scratch']
  %s0 = inlined_call_operand.vmem [shape: f32[2,256,128], index: 0, kind: input, shape index: {}]
  %s1 = inlined_call_operand.vmem [shape: f32[2,256,128], index: 1, kind: input, shape index: {}]
  %s2 = inlined_call_operand.vmem [shape: f32[1,128], index: 2, kind: input, shape index: {}]
  %s3 = inlined_call_operand.vmem [shape: f32[1,128], index: 3, kind: input, shape index: {}]
  %s4 = inlined_call_operand.vmem [shape: f32[2,64,128], index: 4, kind: output, shape index: {}]
  %s5 = sld [smem:[#allocation0]]
  $region49: #{unet_down_forward.7} parent=0
    _
  %s7 = ssub.s32 1, %s5
  %s8 = scalar_select 0, %s7, %s5
  loop: start=0, step=1, limit=4
  $region2: #{unet_down_forward.7} parent=0 // loop_pre_header
    _
  $region3: #{unet_down_forward.7} parent=0 // loop_header
    %s10 = sphi 0, %s14
    %p11 = scmp.ge.s32.totalorder %s10, 4
    %s17 = sphi 0, %s29
    %s18 = sphi 0, %s25
    %s19 = sphi 0, %s17
    %s20 = sphi 0, %s18
    %s21 = sphi 0, %s19
    %s22 = sphi 0, %s20
    %s34 = sphi 0, %s36
    %s37 = sphi 0, %s34
    %s38 = sphi 0, %s37
    %s54 = sphi 0, %s38
    %s62 = sphi 0, %s64
    %s65 = sphi 0, %s62
    %s66 = sphi 0, %s65
    %s82 = sphi 0, %s66
    %s86 = sphi 0, %s86
    %s88 = sphi 0, %s86
    %s89 = sphi 0, %s88
    %s103 = sphi 0, %s89
    %s107 = sphi 0, %s107
    %s109 = sphi 0, %s107
    %s110 = sphi 0, %s109
    %s124 = sphi 0, %s110
    %s132 = sphi 0, %s134
    %s135 = sphi 0, %s132
    %s136 = sphi 0, %s135
    %s152 = sphi 0, %s136
  $region4: #{unet_down_forward.7} parent=0 // loop_header_branch
    %13 = sbr.rel (%p11) target = $region8
  $region5: #{unet_down_forward.7} parent=0 // loop_body
    %s15 = ssub.s32 %s10, 1
    %s16 = ssub.s32 %s10, 2
    %s23 = sadd.s32 1, %s18
    %p24 = scmp.ge.s32.totalorder %s23, 1
    %s25 = scalar_select %p24, 0, %s23
    %s26 = sadd.s32 1, %s17
    %s27 = scalar_select %p24, %s26, %s17
    %p28 = scmp.ge.s32.totalorder %s27, 2
    %s29 = scalar_select %p28, 0, %s27
    %s30 = ssub.s32 %s17, %s29
    %s31 = ssub.s32 %s18, %s25
    %s32 = sor.u32 %s30, %s31
    %p33 = scmp.eq.s32.totalorder %s32, 0
    %s35 = sadd.s32 %s34, 1
    %s36 = scalar_select %p33, %s34, %s35
    %p39 = pneg %p33
    %p40 = scmp.eq.s32.totalorder %s10, 1
    %p41 = por %p39, %p40
    %p42 = scmp.ne.s32.totalorder %s34, %s37
    %p43 = scmp.eq.s32.totalorder %s10, 0
    %p44 = por %p42, %p43
    %p45 = scmp.ne.s32.totalorder %s34, %s37
    %p46 = scmp.eq.s32.totalorder %s15, 1
    %p47 = por %p45, %p46
    %p48 = scmp.ne.s32.totalorder %s37, %s38
    %p49 = scmp.eq.s32.totalorder %s15, 0
    %p50 = por %p48, %p49
    %p51 = scmp.ne.s32.totalorder %s37, %s38
    %p52 = scmp.eq.s32.totalorder %s16, 1
    %p53 = por %p51, %p52
    %p55 = scmp.ne.s32.totalorder %s38, %s54
    %p56 = scmp.eq.s32.totalorder %s16, 0
    %p57 = por %p55, %p56
    %s58 = ssub.s32 %s17, %s29
    %s59 = ssub.s32 %s18, %s25
    %s60 = sor.u32 %s58, %s59
    %p61 = scmp.eq.s32.totalorder %s60, 0
    %s63 = sadd.s32 %s62, 1
    %s64 = scalar_select %p61, %s62, %s63
    %p67 = pneg %p61
    %p68 = scmp.eq.s32.totalorder %s10, 1
    %p69 = por %p67, %p68
    %p70 = scmp.ne.s32.totalorder %s62, %s65
    %p71 = scmp.eq.s32.totalorder %s10, 0
    %p72 = por %p70, %p71
    %p73 = scmp.ne.s32.totalorder %s62, %s65
    %p74 = scmp.eq.s32.totalorder %s15, 1
    %p75 = por %p73, %p74
    %p76 = scmp.ne.s32.totalorder %s65, %s66
    %p77 = scmp.eq.s32.totalorder %s15, 0
    %p78 = por %p76, %p77
    %p79 = scmp.ne.s32.totalorder %s65, %s66
    %p80 = scmp.eq.s32.totalorder %s16, 1
    %p81 = por %p79, %p80
    %p83 = scmp.ne.s32.totalorder %s66, %s82
    %p84 = scmp.eq.s32.totalorder %s16, 0
    %p85 = por %p83, %p84
    %s87 = sadd.s32 %s86, 1
    %p90 = scmp.eq.s32.totalorder %s10, 1
    %p91 = scmp.ne.s32.totalorder %s86, %s88
    %p92 = scmp.eq.s32.totalorder %s10, 0
    %p93 = por %p91, %p92
    %p94 = scmp.ne.s32.totalorder %s86, %s88
    %p95 = scmp.eq.s32.totalorder %s15, 1
    %p96 = por %p94, %p95
    %p97 = scmp.ne.s32.totalorder %s88, %s89
    %p98 = scmp.eq.s32.totalorder %s15, 0
    %p99 = por %p97, %p98
    %p100 = scmp.ne.s32.totalorder %s88, %s89
    %p101 = scmp.eq.s32.totalorder %s16, 1
    %p102 = por %p100, %p101
    %p104 = scmp.ne.s32.totalorder %s89, %s103
    %p105 = scmp.eq.s32.totalorder %s16, 0
    %p106 = por %p104, %p105
    %s108 = sadd.s32 %s107, 1
    %p111 = scmp.eq.s32.totalorder %s10, 1
    %p112 = scmp.ne.s32.totalorder %s107, %s109
    %p113 = scmp.eq.s32.totalorder %s10, 0
    %p114 = por %p112, %p113
    %p115 = scmp.ne.s32.totalorder %s107, %s109
    %p116 = scmp.eq.s32.totalorder %s15, 1
    %p117 = por %p115, %p116
    %p118 = scmp.ne.s32.totalorder %s109, %s110
    %p119 = scmp.eq.s32.totalorder %s15, 0
    %p120 = por %p118, %p119
    %p121 = scmp.ne.s32.totalorder %s109, %s110
    %p122 = scmp.eq.s32.totalorder %s16, 1
    %p123 = por %p121, %p122
    %p125 = scmp.ne.s32.totalorder %s110, %s124
    %p126 = scmp.eq.s32.totalorder %s16, 0
    %p127 = por %p125, %p126
    %s128 = ssub.s32 %s17, %s29
    %s129 = ssub.s32 %s18, %s25
    %s130 = sor.u32 %s128, %s129
    %p131 = scmp.eq.s32.totalorder %s130, 0
    %s133 = sadd.s32 %s132, 1
    %s134 = scalar_select %p131, %s132, %s133
    %p137 = pneg %p131
    %p138 = scmp.eq.s32.totalorder %s10, 1
    %p139 = por %p137, %p138
    %p140 = scmp.ne.s32.totalorder %s132, %s135
    %p141 = scmp.eq.s32.totalorder %s10, 0
    %p142 = por %p140, %p141
    %p143 = scmp.ne.s32.totalorder %s132, %s135
    %p144 = scmp.eq.s32.totalorder %s15, 1
    %p145 = por %p143, %p144
    %p146 = scmp.ne.s32.totalorder %s135, %s136
    %p147 = scmp.eq.s32.totalorder %s15, 0
    %p148 = por %p146, %p147
    %p149 = scmp.ne.s32.totalorder %s135, %s136
    %p150 = scmp.eq.s32.totalorder %s16, 1
    %p151 = por %p149, %p150
    %p153 = scmp.ne.s32.totalorder %s136, %s152
    %p154 = scmp.eq.s32.totalorder %s16, 0
    %p155 = por %p153, %p154
    %p156 = scmp.le.s32.totalorder 1, %s10
    %p157 = scmp.lt.s32.totalorder %s10, 3
    %p158 = pnand %p156, %p157
    %p159 = pneg %p158
    // Predicated region
    $region9: #{unet_down_forward.7} parent=5 // pred_check
      _
    $region10: #{unet_down_forward.7} parent=5 // pred_check_branch
      %161 = sbr.rel (%p158) target = $region12
    $region11: #{unet_down_forward.7} parent=5 // pred_region
      %s162 = ssub.s32 %s10, 1
      // Predicated region
      $region13: #{unet_down_forward.7} parent=11 // pred_check
        %p163 = pneg %p99
      $region14: #{unet_down_forward.7} parent=11 // pred_check_branch
        %165 = sbr.rel (%p163) target = $region16
      $region15: #{unet_down_forward.7} parent=11 // pred_region
        _
      $region16: #{unet_down_forward.7} parent=11 // pred_fallthru
        _
      // Predicated region
      $region17: #{unet_down_forward.7} parent=11 // pred_check
        %p166 = pneg %p120
      $region18: #{unet_down_forward.7} parent=11 // pred_check_branch
        %168 = sbr.rel (%p166) target = $region20
      $region19: #{unet_down_forward.7} parent=11 // pred_region
        _
      $region20: #{unet_down_forward.7} parent=11 // pred_fallthru
        _
    $region12: #{unet_down_forward.7} parent=5 // pred_fallthru
      _
    %p169 = scmp.lt.s32.totalorder %s10, 2
    // Predicated region
    $region21: #{unet_down_forward.7} parent=5 // pred_check
      %p170 = pneg %p169
    $region22: #{unet_down_forward.7} parent=5 // pred_check_branch
      %172 = sbr.rel (%p170) target = $region24
    $region23: #{unet_down_forward.7} parent=5 // pred_region
      // Predicated region
      $region25: #{unet_down_forward.7} parent=23 // pred_check
        %p173 = pneg %p44
      $region26: #{unet_down_forward.7} parent=23 // pred_check_branch
        %175 = sbr.rel (%p173) target = $region28
      $region27: #{unet_down_forward.7} parent=23 // pred_region
        %s176 = smul.u32 32, %s18
        %p177 = scmp.lt.s32.totalorder %s17, 1
        %s178 = scalar_select %p177, %s17, 1
        %p179 = scmp.lt.s32.totalorder %s176, 31
        %s180 = scalar_select %p179, %s176, 31
        %s181 = smul.addr %s178, 32
        %s182 = sadd.s32 %s180, %s181
        %s183 = smul.addr %s182, 8
        %s184 = scalar_lea.vmem %s0, %s183
        %s185 = smul.u32 32, %s18
      $region28: #{unet_down_forward.7} parent=23 // pred_fallthru
        _
      // Predicated region
      $region29: #{unet_down_forward.7} parent=23 // pred_check
        %p186 = pneg %p72
      $region30: #{unet_down_forward.7} parent=23 // pred_check_branch
        %188 = sbr.rel (%p186) target = $region32
      $region31: #{unet_down_forward.7} parent=23 // pred_region
        %s189 = smul.u32 32, %s18
        %p190 = scmp.lt.s32.totalorder %s17, 1
        %s191 = scalar_select %p190, %s17, 1
        %p192 = scmp.lt.s32.totalorder %s189, 31
        %s193 = scalar_select %p192, %s189, 31
        %s194 = smul.addr %s191, 32
        %s195 = sadd.s32 %s193, %s194
        %s196 = smul.addr %s195, 8
        %s197 = scalar_lea.vmem %s1, %s196
        %s198 = smul.u32 32, %s18
      $region32: #{unet_down_forward.7} parent=23 // pred_fallthru
        _
    $region24: #{unet_down_forward.7} parent=5 // pred_fallthru
      _
    %p199 = scmp.le.s32.totalorder 1, %s10
    %p200 = scmp.lt.s32.totalorder %s10, 3
    %p201 = pnand %p199, %p200
    %p202 = pneg %p201
    // Predicated region
    $region33: #{unet_down_forward.7} parent=5 // pred_check
      _
    $region34: #{unet_down_forward.7} parent=5 // pred_check_branch
      %204 = sbr.rel (%p201) target = $region36
    $region35: #{unet_down_forward.7} parent=5 // pred_region
      %s205 = ssub.s32 %s10, 1
      %s206 = smul.u32 32, %s20
      %p207 = scmp.lt.s32.totalorder %s19, 1
      %s208 = scalar_select %p207, %s19, 1
      %p209 = scmp.lt.s32.totalorder %s206, 31
      %s210 = scalar_select %p209, %s206, 31
      %s211 = smul.addr %s208, 32
      %s212 = sadd.s32 %s210, %s211
      %s213 = smul.addr %s212, 8
      %s214 = scalar_lea.vmem %s0, %s213
      %p215 = pneg %p50
      %p216 = pneg %p47
      %s217 = smul.u32 32, %s20
      %p218 = scmp.lt.s32.totalorder %s19, 1
      %s219 = scalar_select %p218, %s19, 1
      %p220 = scmp.lt.s32.totalorder %s217, 31
      %s221 = scalar_select %p220, %s217, 31
      %s222 = smul.addr %s219, 32
      %s223 = sadd.s32 %s221, %s222
      %s224 = smul.addr %s223, 8
      %s225 = scalar_lea.vmem %s1, %s224
      %p226 = pneg %p78
      %p227 = pneg %p75
      %p228 = pneg %p99
      %p229 = pneg %p96
      %p230 = pneg %p120
      %p231 = pneg %p117
      %p232 = pneg %p148
      %p233 = pneg %p145
      %s234 = smul.u32 8, %s20
      %p235 = scmp.lt.s32.totalorder %s19, 1
      %s236 = scalar_select %p235, %s19, 1
      %p237 = scmp.lt.s32.totalorder %s234, 7
      %s238 = scalar_select %p237, %s234, 7
      %s239 = smul.addr %s236, 8
      %s240 = sadd.s32 %s238, %s239
      %s241 = smul.addr %s240, 8
      %s242 = scalar_lea.vmem %s4, %s241
      %s243 = smul.u32 32, %s20
      %p244 = scmp.lt.s32.totalorder %s19, 1
      %s245 = scalar_select %p244, %s19, 1
      %p246 = scmp.lt.s32.totalorder %s243, 31
      %s247 = scalar_select %p246, %s243, 31
      %s248 = smul.addr %s245, 32
      %s249 = sadd.s32 %s247, %s248
      %s250 = smul.addr %s249, 8
      %s251 = scalar_lea.vmem %s0, %s250
      %s252 = smul.u32 32, %s20
      %s253 = smul.u32 32, %s20
      %p254 = scmp.lt.s32.totalorder %s19, 1
      %s255 = scalar_select %p254, %s19, 1
      %p256 = scmp.lt.s32.totalorder %s253, 31
      %s257 = scalar_select %p256, %s253, 31
      %s258 = smul.addr %s255, 32
      %s259 = sadd.s32 %s257, %s258
      %s260 = smul.addr %s259, 8
      %s261 = scalar_lea.vmem %s1, %s260
      %s262 = smul.u32 32, %s20
      %s263 = smul.u32 8, %s20
      %p264 = scmp.lt.s32.totalorder %s19, 1
      %s265 = scalar_select %p264, %s19, 1
      %p266 = scmp.lt.s32.totalorder %s263, 7
      %s267 = scalar_select %p266, %s263, 7
      %s268 = smul.addr %s265, 8
      %s269 = sadd.s32 %s267, %s268
      %s270 = smul.addr %s269, 8
      %s271 = scalar_lea.vmem %s4, %s270
      %s272 = smul.u32 8, %s20
      %v273 = vld [vmem:[%s2] sm:$0x1]
      %v274 = vld [vmem:[%s3] sm:$0x1]
      %v275 = vld [vmem:[%s251] ss:$2 sm:$0xff]
      %v277 = vperm.slane %v273, 0
      %v279 = vmul.f32 %v275, %v277
      %v281 = vperm.slane %v274, 0
      %v283 = vadd.f32 %v279, %v281
      %v284 = vmul.f32 %v283, 0.5
      %v285 = vmul.f32 %v283, 0.044715
      %v286 = vmul.f32 %v285, %v283
      %v287 = vmul.f32 %v286, %v283
      %v288 = vadd.f32 %v283, %v287
      %v289 = vmul.f32 %v288, 0.7978846
      %v290 = vtanh.pop %v289
      %v291 = vadd.f32 %v290, 1.0
      %v292 = vmul.f32 %v284, %v291
      %v293 = vld [vmem:[%s261] ss:$2 sm:$0xff]
      %v294 = vadd.f32 %v292, %v293
      %v295 = vmul.f32 %v294, 0.7072136
      %s296 = scalar_lea.vmem %s251, 1
      %v297 = vld [vmem:[%s296] ss:$2 sm:$0xff]
      %v298 = vmul.f32 %v297, %v277
      %v299 = vadd.f32 %v298, %v281
      %v300 = vmul.f32 %v299, 0.5
      %v301 = vmul.f32 %v299, 0.044715
      %v302 = vmul.f32 %v301, %v299
      %v303 = vmul.f32 %v302, %v299
      %v304 = vadd.f32 %v299, %v303
      %v305 = vmul.f32 %v304, 0.7978846
      %v306 = vtanh.pop %v305
      %v307 = vadd.f32 %v306, 1.0
      %v308 = vmul.f32 %v300, %v307
      %s309 = scalar_lea.vmem %s261, 1
      %v310 = vld [vmem:[%s309] ss:$2 sm:$0xff]
      %v311 = vadd.f32 %v308, %v310
      %v312 = vmul.f32 %v311, 0.7072136
      %s313 = scalar_lea.vmem %s251, 16
      %v314 = vld [vmem:[%s313] ss:$2 sm:$0xff]
      %v315 = vmul.f32 %v314, %v277
      %v316 = vadd.f32 %v315, %v281
      %v317 = vmul.f32 %v316, 0.5
      %v318 = vmul.f32 %v316, 0.044715
      %v319 = vmul.f32 %v318, %v316
      %v320 = vmul.f32 %v319, %v316
      %v321 = vadd.f32 %v316, %v320
      %v322 = vmul.f32 %v321, 0.7978846
      %v323 = vtanh.pop %v322
      %v324 = vadd.f32 %v323, 1.0
      %v325 = vmul.f32 %v317, %v324
      %s326 = scalar_lea.vmem %s261, 16
      %v327 = vld [vmem:[%s326] ss:$2 sm:$0xff]
      %v328 = vadd.f32 %v325, %v327
      %v329 = vmul.f32 %v328, 0.7072136
      %s330 = scalar_lea.vmem %s251, 17
      %v331 = vld [vmem:[%s330] ss:$2 sm:$0xff]
      %v332 = vmul.f32 %v331, %v277
      %v333 = vadd.f32 %v332, %v281
      %v334 = vmul.f32 %v333, 0.5
      %v335 = vmul.f32 %v333, 0.044715
      %v336 = vmul.f32 %v335, %v333
      %v337 = vmul.f32 %v336, %v333
      %v338 = vadd.f32 %v333, %v337
      %v339 = vmul.f32 %v338, 0.7978846
      %v340 = vtanh.pop %v339
      %v341 = vadd.f32 %v340, 1.0
      %v342 = vmul.f32 %v334, %v341
      %s343 = scalar_lea.vmem %s261, 17
      %v344 = vld [vmem:[%s343] ss:$2 sm:$0xff]
      %v345 = vadd.f32 %v342, %v344
      %v346 = vmul.f32 %v345, 0.7072136
      %v347 = vmax.f32 %v295, %v312
      %v348 = vmax.f32 %v329, %v346
      %v349 = vmax.f32 %v347, %v348
      %350 = vst [vmem:[%s271] sm:$0xff] %v349
      %s351 = scalar_lea.vmem %s251, 32
      %v352 = vld [vmem:[%s351] ss:$2 sm:$0xff]
      %v353 = vmul.f32 %v352, %v277
      %v354 = vadd.f32 %v353, %v281
      %v355 = vmul.f32 %v354, 0.5
      %v356 = vmul.f32 %v354, 0.044715
      %v357 = vmul.f32 %v356, %v354
      %v358 = vmul.f32 %v357, %v354
      %v359 = vadd.f32 %v354, %v358
      %v360 = vmul.f32 %v359, 0.7978846
      %v361 = vtanh.pop %v360
      %v362 = vadd.f32 %v361, 1.0
      %v363 = vmul.f32 %v355, %v362
      %s364 = scalar_lea.vmem %s261, 32
      %v365 = vld [vmem:[%s364] ss:$2 sm:$0xff]
      %v366 = vadd.f32 %v363, %v365
      %v367 = vmul.f32 %v366, 0.7072136
      %s368 = scalar_lea.vmem %s251, 33
      %v369 = vld [vmem:[%s368] ss:$2 sm:$0xff]
      %v370 = vmul.f32 %v369, %v277
      %v371 = vadd.f32 %v370, %v281
      %v372 = vmul.f32 %v371, 0.5
      %v373 = vmul.f32 %v371, 0.044715
      %v374 = vmul.f32 %v373, %v371
      %v375 = vmul.f32 %v374, %v371
      %v376 = vadd.f32 %v371, %v375
      %v377 = vmul.f32 %v376, 0.7978846
      %v378 = vtanh.pop %v377
      %v379 = vadd.f32 %v378, 1.0
      %v380 = vmul.f32 %v372, %v379
      %s381 = scalar_lea.vmem %s261, 33
      %v382 = vld [vmem:[%s381] ss:$2 sm:$0xff]
      %v383 = vadd.f32 %v380, %v382
      %v384 = vmul.f32 %v383, 0.7072136
      %s385 = scalar_lea.vmem %s251, 48
      %v386 = vld [vmem:[%s385] ss:$2 sm:$0xff]
      %v387 = vmul.f32 %v386, %v277
      %v388 = vadd.f32 %v387, %v281
      %v389 = vmul.f32 %v388, 0.5
      %v390 = vmul.f32 %v388, 0.044715
      %v391 = vmul.f32 %v390, %v388
      %v392 = vmul.f32 %v391, %v388
      %v393 = vadd.f32 %v388, %v392
      %v394 = vmul.f32 %v393, 0.7978846
      %v395 = vtanh.pop %v394
      %v396 = vadd.f32 %v395, 1.0
      %v397 = vmul.f32 %v389, %v396
      %s398 = scalar_lea.vmem %s261, 48
      %v399 = vld [vmem:[%s398] ss:$2 sm:$0xff]
      %v400 = vadd.f32 %v397, %v399
      %v401 = vmul.f32 %v400, 0.7072136
      %s402 = scalar_lea.vmem %s251, 49
      %v403 = vld [vmem:[%s402] ss:$2 sm:$0xff]
      %v404 = vmul.f32 %v403, %v277
      %v405 = vadd.f32 %v404, %v281
      %v406 = vmul.f32 %v405, 0.5
      %v407 = vmul.f32 %v405, 0.044715
      %v408 = vmul.f32 %v407, %v405
      %v409 = vmul.f32 %v408, %v405
      %v410 = vadd.f32 %v405, %v409
      %v411 = vmul.f32 %v410, 0.7978846
      %v412 = vtanh.pop %v411
      %v413 = vadd.f32 %v412, 1.0
      %v414 = vmul.f32 %v406, %v413
      %s415 = scalar_lea.vmem %s261, 49
      %v416 = vld [vmem:[%s415] ss:$2 sm:$0xff]
      %v417 = vadd.f32 %v414, %v416
      %v418 = vmul.f32 %v417, 0.7072136
      %v419 = vmax.f32 %v367, %v384
      %v420 = vmax.f32 %v401, %v418
      %v421 = vmax.f32 %v419, %v420
      %422 = vst [vmem:[%s271 + $0x8] sm:$0xff] %v421
      %s423 = scalar_lea.vmem %s251, 64
      %v424 = vld [vmem:[%s423] ss:$2 sm:$0xff]
      %v425 = vmul.f32 %v424, %v277
      %v426 = vadd.f32 %v425, %v281
      %v427 = vmul.f32 %v426, 0.5
      %v428 = vmul.f32 %v426, 0.044715
      %v429 = vmul.f32 %v428, %v426
      %v430 = vmul.f32 %v429, %v426
      %v431 = vadd.f32 %v426, %v430
      %v432 = vmul.f32 %v431, 0.7978846
      %v433 = vtanh.pop %v432
      %v434 = vadd.f32 %v433, 1.0
      %v435 = vmul.f32 %v427, %v434
      %s436 = scalar_lea.vmem %s261, 64
      %v437 = vld [vmem:[%s436] ss:$2 sm:$0xff]
      %v438 = vadd.f32 %v435, %v437
      %v439 = vmul.f32 %v438, 0.7072136
      %s440 = scalar_lea.vmem %s251, 65
      %v441 = vld [vmem:[%s440] ss:$2 sm:$0xff]
      %v442 = vmul.f32 %v441, %v277
      %v443 = vadd.f32 %v442, %v281
      %v444 = vmul.f32 %v443, 0.5
      %v445 = vmul.f32 %v443, 0.044715
      %v446 = vmul.f32 %v445, %v443
      %v447 = vmul.f32 %v446, %v443
      %v448 = vadd.f32 %v443, %v447
      %v449 = vmul.f32 %v448, 0.7978846
      %v450 = vtanh.pop %v449
      %v451 = vadd.f32 %v450, 1.0
      %v452 = vmul.f32 %v444, %v451
      %s453 = scalar_lea.vmem %s261, 65
      %v454 = vld [vmem:[%s453] ss:$2 sm:$0xff]
      %v455 = vadd.f32 %v452, %v454
      %v456 = vmul.f32 %v455, 0.7072136
      %s457 = scalar_lea.vmem %s251, 80
      %v458 = vld [vmem:[%s457] ss:$2 sm:$0xff]
      %v459 = vmul.f32 %v458, %v277
      %v460 = vadd.f32 %v459, %v281
      %v461 = vmul.f32 %v460, 0.5
      %v462 = vmul.f32 %v460, 0.044715
      %v463 = vmul.f32 %v462, %v460
      %v464 = vmul.f32 %v463, %v460
      %v465 = vadd.f32 %v460, %v464
      %v466 = vmul.f32 %v465, 0.7978846
      %v467 = vtanh.pop %v466
      %v468 = vadd.f32 %v467, 1.0
      %v469 = vmul.f32 %v461, %v468
      %s470 = scalar_lea.vmem %s261, 80
      %v471 = vld [vmem:[%s470] ss:$2 sm:$0xff]
      %v472 = vadd.f32 %v469, %v471
      %v473 = vmul.f32 %v472, 0.7072136
      %s474 = scalar_lea.vmem %s251, 81
      %v475 = vld [vmem:[%s474] ss:$2 sm:$0xff]
      %v476 = vmul.f32 %v475, %v277
      %v477 = vadd.f32 %v476, %v281
      %v478 = vmul.f32 %v477, 0.5
      %v479 = vmul.f32 %v477, 0.044715
      %v480 = vmul.f32 %v479, %v477
      %v481 = vmul.f32 %v480, %v477
      %v482 = vadd.f32 %v477, %v481
      %v483 = vmul.f32 %v482, 0.7978846
      %v484 = vtanh.pop %v483
      %v485 = vadd.f32 %v484, 1.0
      %v486 = vmul.f32 %v478, %v485
      %s487 = scalar_lea.vmem %s261, 81
      %v488 = vld [vmem:[%s487] ss:$2 sm:$0xff]
      %v489 = vadd.f32 %v486, %v488
      %v490 = vmul.f32 %v489, 0.7072136
      %v491 = vmax.f32 %v439, %v456
      %v492 = vmax.f32 %v473, %v490
      %v493 = vmax.f32 %v491, %v492
      %494 = vst [vmem:[%s271 + $0x10] sm:$0xff] %v493
      %s495 = scalar_lea.vmem %s251, 96
      %v496 = vld [vmem:[%s495] ss:$2 sm:$0xff]
      %v497 = vmul.f32 %v496, %v277
      %v498 = vadd.f32 %v497, %v281
      %v499 = vmul.f32 %v498, 0.5
      %v500 = vmul.f32 %v498, 0.044715
      %v501 = vmul.f32 %v500, %v498
      %v502 = vmul.f32 %v501, %v498
      %v503 = vadd.f32 %v498, %v502
      %v504 = vmul.f32 %v503, 0.7978846
      %v505 = vtanh.pop %v504
      %v506 = vadd.f32 %v505, 1.0
      %v507 = vmul.f32 %v499, %v506
      %s508 = scalar_lea.vmem %s261, 96
      %v509 = vld [vmem:[%s508] ss:$2 sm:$0xff]
      %v510 = vadd.f32 %v507, %v509
      %v511 = vmul.f32 %v510, 0.7072136
      %s512 = scalar_lea.vmem %s251, 97
      %v513 = vld [vmem:[%s512] ss:$2 sm:$0xff]
      %v514 = vmul.f32 %v513, %v277
      %v515 = vadd.f32 %v514, %v281
      %v516 = vmul.f32 %v515, 0.5
      %v517 = vmul.f32 %v515, 0.044715
      %v518 = vmul.f32 %v517, %v515
      %v519 = vmul.f32 %v518, %v515
      %v520 = vadd.f32 %v515, %v519
      %v521 = vmul.f32 %v520, 0.7978846
      %v522 = vtanh.pop %v521
      %v523 = vadd.f32 %v522, 1.0
      %v524 = vmul.f32 %v516, %v523
      %s525 = scalar_lea.vmem %s261, 97
      %v526 = vld [vmem:[%s525] ss:$2 sm:$0xff]
      %v527 = vadd.f32 %v524, %v526
      %v528 = vmul.f32 %v527, 0.7072136
      %s529 = scalar_lea.vmem %s251, 112
      %v530 = vld [vmem:[%s529] ss:$2 sm:$0xff]
      %v531 = vmul.f32 %v530, %v277
      %v532 = vadd.f32 %v531, %v281
      %v533 = vmul.f32 %v532, 0.5
      %v534 = vmul.f32 %v532, 0.044715
      %v535 = vmul.f32 %v534, %v532
      %v536 = vmul.f32 %v535, %v532
      %v537 = vadd.f32 %v532, %v536
      %v538 = vmul.f32 %v537, 0.7978846
      %v539 = vtanh.pop %v538
      %v540 = vadd.f32 %v539, 1.0
      %v541 = vmul.f32 %v533, %v540
      %s542 = scalar_lea.vmem %s261, 112
      %v543 = vld [vmem:[%s542] ss:$2 sm:$0xff]
      %v544 = vadd.f32 %v541, %v543
      %v545 = vmul.f32 %v544, 0.7072136
      %s546 = scalar_lea.vmem %s251, 113
      %v547 = vld [vmem:[%s546] ss:$2 sm:$0xff]
      %v548 = vmul.f32 %v547, %v277
      %v549 = vadd.f32 %v548, %v281
      %v550 = vmul.f32 %v549, 0.5
      %v551 = vmul.f32 %v549, 0.044715
      %v552 = vmul.f32 %v551, %v549
      %v553 = vmul.f32 %v552, %v549
      %v554 = vadd.f32 %v549, %v553
      %v555 = vmul.f32 %v554, 0.7978846
      %v556 = vtanh.pop %v555
      %v557 = vadd.f32 %v556, 1.0
      %v558 = vmul.f32 %v550, %v557
      %s559 = scalar_lea.vmem %s261, 113
      %v560 = vld [vmem:[%s559] ss:$2 sm:$0xff]
      %v561 = vadd.f32 %v558, %v560
      %v562 = vmul.f32 %v561, 0.7072136
      %v563 = vmax.f32 %v511, %v528
      %v564 = vmax.f32 %v545, %v562
      %v565 = vmax.f32 %v563, %v564
      %566 = vst [vmem:[%s271 + $0x18] sm:$0xff] %v565
      %s567 = scalar_lea.vmem %s251, 128
      %v568 = vld [vmem:[%s567] ss:$2 sm:$0xff]
      %v569 = vmul.f32 %v568, %v277
      %v570 = vadd.f32 %v569, %v281
      %v571 = vmul.f32 %v570, 0.5
      %v572 = vmul.f32 %v570, 0.044715
      %v573 = vmul.f32 %v572, %v570
      %v574 = vmul.f32 %v573, %v570
      %v575 = vadd.f32 %v570, %v574
      %v576 = vmul.f32 %v575, 0.7978846
      %v577 = vtanh.pop %v576
      %v578 = vadd.f32 %v577, 1.0
      %v579 = vmul.f32 %v571, %v578
      %s580 = scalar_lea.vmem %s261, 128
      %v581 = vld [vmem:[%s580] ss:$2 sm:$0xff]
      %v582 = vadd.f32 %v579, %v581
      %v583 = vmul.f32 %v582, 0.7072136
      %s584 = scalar_lea.vmem %s251, 129
      %v585 = vld [vmem:[%s584] ss:$2 sm:$0xff]
      %v586 = vmul.f32 %v585, %v277
      %v587 = vadd.f32 %v586, %v281
      %v588 = vmul.f32 %v587, 0.5
      %v589 = vmul.f32 %v587, 0.044715
      %v590 = vmul.f32 %v589, %v587
      %v591 = vmul.f32 %v590, %v587
      %v592 = vadd.f32 %v587, %v591
      %v593 = vmul.f32 %v592, 0.7978846
      %v594 = vtanh.pop %v593
      %v595 = vadd.f32 %v594, 1.0
      %v596 = vmul.f32 %v588, %v595
      %s597 = scalar_lea.vmem %s261, 129
      %v598 = vld [vmem:[%s597] ss:$2 sm:$0xff]
      %v599 = vadd.f32 %v596, %v598
      %v600 = vmul.f32 %v599, 0.7072136
      %s601 = scalar_lea.vmem %s251, 144
      %v602 = vld [vmem:[%s601] ss:$2 sm:$0xff]
      %v603 = vmul.f32 %v602, %v277
      %v604 = vadd.f32 %v603, %v281
      %v605 = vmul.f32 %v604, 0.5
      %v606 = vmul.f32 %v604, 0.044715
      %v607 = vmul.f32 %v606, %v604
      %v608 = vmul.f32 %v607, %v604
      %v609 = vadd.f32 %v604, %v608
      %v610 = vmul.f32 %v609, 0.7978846
      %v611 = vtanh.pop %v610
      %v612 = vadd.f32 %v611, 1.0
      %v613 = vmul.f32 %v605, %v612
      %s614 = scalar_lea.vmem %s261, 144
      %v615 = vld [vmem:[%s614] ss:$2 sm:$0xff]
      %v616 = vadd.f32 %v613, %v615
      %v617 = vmul.f32 %v616, 0.7072136
      %s618 = scalar_lea.vmem %s251, 145
      %v619 = vld [vmem:[%s618] ss:$2 sm:$0xff]
      %v620 = vmul.f32 %v619, %v277
      %v621 = vadd.f32 %v620, %v281
      %v622 = vmul.f32 %v621, 0.5
      %v623 = vmul.f32 %v621, 0.044715
      %v624 = vmul.f32 %v623, %v621
      %v625 = vmul.f32 %v624, %v621
      %v626 = vadd.f32 %v621, %v625
      %v627 = vmul.f32 %v626, 0.7978846
      %v628 = vtanh.pop %v627
      %v629 = vadd.f32 %v628, 1.0
      %v630 = vmul.f32 %v622, %v629
      %s631 = scalar_lea.vmem %s261, 145
      %v632 = vld [vmem:[%s631] ss:$2 sm:$0xff]
      %v633 = vadd.f32 %v630, %v632
      %v634 = vmul.f32 %v633, 0.7072136
      %v635 = vmax.f32 %v583, %v600
      %v636 = vmax.f32 %v617, %v634
      %v637 = vmax.f32 %v635, %v636
      %638 = vst [vmem:[%s271 + $0x20] sm:$0xff] %v637
      %s639 = scalar_lea.vmem %s251, 160
      %v640 = vld [vmem:[%s639] ss:$2 sm:$0xff]
      %v641 = vmul.f32 %v640, %v277
      %v642 = vadd.f32 %v641, %v281
      %v643 = vmul.f32 %v642, 0.5
      %v644 = vmul.f32 %v642, 0.044715
      %v645 = vmul.f32 %v644, %v642
      %v646 = vmul.f32 %v645, %v642
      %v647 = vadd.f32 %v642, %v646
      %v648 = vmul.f32 %v647, 0.7978846
      %v649 = vtanh.pop %v648
      %v650 = vadd.f32 %v649, 1.0
      %v651 = vmul.f32 %v643, %v650
      %s652 = scalar_lea.vmem %s261, 160
      %v653 = vld [vmem:[%s652] ss:$2 sm:$0xff]
      %v654 = vadd.f32 %v651, %v653
      %v655 = vmul.f32 %v654, 0.7072136
      %s656 = scalar_lea.vmem %s251, 161
      %v657 = vld [vmem:[%s656] ss:$2 sm:$0xff]
      %v658 = vmul.f32 %v657, %v277
      %v659 = vadd.f32 %v658, %v281
      %v660 = vmul.f32 %v659, 0.5
      %v661 = vmul.f32 %v659, 0.044715
      %v662 = vmul.f32 %v661, %v659
      %v663 = vmul.f32 %v662, %v659
      %v664 = vadd.f32 %v659, %v663
      %v665 = vmul.f32 %v664, 0.7978846
      %v666 = vtanh.pop %v665
      %v667 = vadd.f32 %v666, 1.0
      %v668 = vmul.f32 %v660, %v667
      %s669 = scalar_lea.vmem %s261, 161
      %v670 = vld [vmem:[%s669] ss:$2 sm:$0xff]
      %v671 = vadd.f32 %v668, %v670
      %v672 = vmul.f32 %v671, 0.7072136
      %s673 = scalar_lea.vmem %s251, 176
      %v674 = vld [vmem:[%s673] ss:$2 sm:$0xff]
      %v675 = vmul.f32 %v674, %v277
      %v676 = vadd.f32 %v675, %v281
      %v677 = vmul.f32 %v676, 0.5
      %v678 = vmul.f32 %v676, 0.044715
      %v679 = vmul.f32 %v678, %v676
      %v680 = vmul.f32 %v679, %v676
      %v681 = vadd.f32 %v676, %v680
      %v682 = vmul.f32 %v681, 0.7978846
      %v683 = vtanh.pop %v682
      %v684 = vadd.f32 %v683, 1.0
      %v685 = vmul.f32 %v677, %v684
      %s686 = scalar_lea.vmem %s261, 176
      %v687 = vld [vmem:[%s686] ss:$2 sm:$0xff]
      %v688 = vadd.f32 %v685, %v687
      %v689 = vmul.f32 %v688, 0.7072136
      %s690 = scalar_lea.vmem %s251, 177
      %v691 = vld [vmem:[%s690] ss:$2 sm:$0xff]
      %v692 = vmul.f32 %v691, %v277
      %v693 = vadd.f32 %v692, %v281
      %v694 = vmul.f32 %v693, 0.5
      %v695 = vmul.f32 %v693, 0.044715
      %v696 = vmul.f32 %v695, %v693
      %v697 = vmul.f32 %v696, %v693
      %v698 = vadd.f32 %v693, %v697
      %v699 = vmul.f32 %v698, 0.7978846
      %v700 = vtanh.pop %v699
      %v701 = vadd.f32 %v700, 1.0
      %v702 = vmul.f32 %v694, %v701
      %s703 = scalar_lea.vmem %s261, 177
      %v704 = vld [vmem:[%s703] ss:$2 sm:$0xff]
      %v705 = vadd.f32 %v702, %v704
      %v706 = vmul.f32 %v705, 0.7072136
      %v707 = vmax.f32 %v655, %v672
      %v708 = vmax.f32 %v689, %v706
      %v709 = vmax.f32 %v707, %v708
      %710 = vst [vmem:[%s271 + $0x28] sm:$0xff] %v709
      %s711 = scalar_lea.vmem %s251, 192
      %v712 = vld [vmem:[%s711] ss:$2 sm:$0xff]
      %v713 = vmul.f32 %v712, %v277
      %v714 = vadd.f32 %v713, %v281
      %v715 = vmul.f32 %v714, 0.5
      %v716 = vmul.f32 %v714, 0.044715
      %v717 = vmul.f32 %v716, %v714
      %v718 = vmul.f32 %v717, %v714
      %v719 = vadd.f32 %v714, %v718
      %v720 = vmul.f32 %v719, 0.7978846
      %v721 = vtanh.pop %v720
      %v722 = vadd.f32 %v721, 1.0
      %v723 = vmul.f32 %v715, %v722
      %s724 = scalar_lea.vmem %s261, 192
      %v725 = vld [vmem:[%s724] ss:$2 sm:$0xff]
      %v726 = vadd.f32 %v723, %v725
      %v727 = vmul.f32 %v726, 0.7072136
      %s728 = scalar_lea.vmem %s251, 193
      %v729 = vld [vmem:[%s728] ss:$2 sm:$0xff]
      %v730 = vmul.f32 %v729, %v277
      %v731 = vadd.f32 %v730, %v281
      %v732 = vmul.f32 %v731, 0.5
      %v733 = vmul.f32 %v731, 0.044715
      %v734 = vmul.f32 %v733, %v731
      %v735 = vmul.f32 %v734, %v731
      %v736 = vadd.f32 %v731, %v735
      %v737 = vmul.f32 %v736, 0.7978846
      %v738 = vtanh.pop %v737
      %v739 = vadd.f32 %v738, 1.0
      %v740 = vmul.f32 %v732, %v739
      %s741 = scalar_lea.vmem %s261, 193
      %v742 = vld [vmem:[%s741] ss:$2 sm:$0xff]
      %v743 = vadd.f32 %v740, %v742
      %v744 = vmul.f32 %v743, 0.7072136
      %s745 = scalar_lea.vmem %s251, 208
      %v746 = vld [vmem:[%s745] ss:$2 sm:$0xff]
      %v747 = vmul.f32 %v746, %v277
      %v748 = vadd.f32 %v747, %v281
      %v749 = vmul.f32 %v748, 0.5
      %v750 = vmul.f32 %v748, 0.044715
      %v751 = vmul.f32 %v750, %v748
      %v752 = vmul.f32 %v751, %v748
      %v753 = vadd.f32 %v748, %v752
      %v754 = vmul.f32 %v753, 0.7978846
      %v755 = vtanh.pop %v754
      %v756 = vadd.f32 %v755, 1.0
      %v757 = vmul.f32 %v749, %v756
      %s758 = scalar_lea.vmem %s261, 208
      %v759 = vld [vmem:[%s758] ss:$2 sm:$0xff]
      %v760 = vadd.f32 %v757, %v759
      %v761 = vmul.f32 %v760, 0.7072136
      %s762 = scalar_lea.vmem %s251, 209
      %v763 = vld [vmem:[%s762] ss:$2 sm:$0xff]
      %v764 = vmul.f32 %v763, %v277
      %v765 = vadd.f32 %v764, %v281
      %v766 = vmul.f32 %v765, 0.5
      %v767 = vmul.f32 %v765, 0.044715
      %v768 = vmul.f32 %v767, %v765
      %v769 = vmul.f32 %v768, %v765
      %v770 = vadd.f32 %v765, %v769
      %v771 = vmul.f32 %v770, 0.7978846
      %v772 = vtanh.pop %v771
      %v773 = vadd.f32 %v772, 1.0
      %v774 = vmul.f32 %v766, %v773
      %s775 = scalar_lea.vmem %s261, 209
      %v776 = vld [vmem:[%s775] ss:$2 sm:$0xff]
      %v777 = vadd.f32 %v774, %v776
      %v778 = vmul.f32 %v777, 0.7072136
      %v779 = vmax.f32 %v727, %v744
      %v780 = vmax.f32 %v761, %v778
      %v781 = vmax.f32 %v779, %v780
      %782 = vst [vmem:[%s271 + $0x30] sm:$0xff] %v781
      %s783 = scalar_lea.vmem %s251, 224
      %v784 = vld [vmem:[%s783] ss:$2 sm:$0xff]
      %v785 = vmul.f32 %v784, %v277
      %v786 = vadd.f32 %v785, %v281
      %v787 = vmul.f32 %v786, 0.5
      %v788 = vmul.f32 %v786, 0.044715
      %v789 = vmul.f32 %v788, %v786
      %v790 = vmul.f32 %v789, %v786
      %v791 = vadd.f32 %v786, %v790
      %v792 = vmul.f32 %v791, 0.7978846
      %v793 = vtanh.pop %v792
      %v794 = vadd.f32 %v793, 1.0
      %v795 = vmul.f32 %v787, %v794
      %s796 = scalar_lea.vmem %s261, 224
      %v797 = vld [vmem:[%s796] ss:$2 sm:$0xff]
      %v798 = vadd.f32 %v795, %v797
      %v799 = vmul.f32 %v798, 0.7072136
      %s800 = scalar_lea.vmem %s251, 225
      %v801 = vld [vmem:[%s800] ss:$2 sm:$0xff]
      %v802 = vmul.f32 %v801, %v277
      %v803 = vadd.f32 %v802, %v281
      %v804 = vmul.f32 %v803, 0.5
      %v805 = vmul.f32 %v803, 0.044715
      %v806 = vmul.f32 %v805, %v803
      %v807 = vmul.f32 %v806, %v803
      %v808 = vadd.f32 %v803, %v807
      %v809 = vmul.f32 %v808, 0.7978846
      %v810 = vtanh.pop %v809
      %v811 = vadd.f32 %v810, 1.0
      %v812 = vmul.f32 %v804, %v811
      %s813 = scalar_lea.vmem %s261, 225
      %v814 = vld [vmem:[%s813] ss:$2 sm:$0xff]
      %v815 = vadd.f32 %v812, %v814
      %v816 = vmul.f32 %v815, 0.7072136
      %s817 = scalar_lea.vmem %s251, 240
      %v818 = vld [vmem:[%s817] ss:$2 sm:$0xff]
      %v819 = vmul.f32 %v818, %v277
      %v820 = vadd.f32 %v819, %v281
      %v821 = vmul.f32 %v820, 0.5
      %v822 = vmul.f32 %v820, 0.044715
      %v823 = vmul.f32 %v822, %v820
      %v824 = vmul.f32 %v823, %v820
      %v825 = vadd.f32 %v820, %v824
      %v826 = vmul.f32 %v825, 0.7978846
      %v827 = vtanh.pop %v826
      %v828 = vadd.f32 %v827, 1.0
      %v829 = vmul.f32 %v821, %v828
      %s830 = scalar_lea.vmem %s261, 240
      %v831 = vld [vmem:[%s830] ss:$2 sm:$0xff]
      %v832 = vadd.f32 %v829, %v831
      %v833 = vmul.f32 %v832, 0.7072136
      %s834 = scalar_lea.vmem %s251, 241
      %v835 = vld [vmem:[%s834] ss:$2 sm:$0xff]
      %v836 = vmul.f32 %v835, %v277
      %v837 = vadd.f32 %v836, %v281
      %v838 = vmul.f32 %v837, 0.5
      %v839 = vmul.f32 %v837, 0.044715
      %v840 = vmul.f32 %v839, %v837
      %v841 = vmul.f32 %v840, %v837
      %v842 = vadd.f32 %v837, %v841
      %v843 = vmul.f32 %v842, 0.7978846
      %v844 = vtanh.pop %v843
      %v845 = vadd.f32 %v844, 1.0
      %v846 = vmul.f32 %v838, %v845
      %s847 = scalar_lea.vmem %s261, 241
      %v848 = vld [vmem:[%s847] ss:$2 sm:$0xff]
      %v849 = vadd.f32 %v846, %v848
      %v850 = vmul.f32 %v849, 0.7072136
      %v851 = vmax.f32 %v799, %v816
      %v852 = vmax.f32 %v833, %v850
      %v853 = vmax.f32 %v851, %v852
      %854 = vst [vmem:[%s271 + $0x38] sm:$0xff] %v853
      %s855 = smul.u32 8, %s20
      %p856 = scmp.lt.s32.totalorder %s19, 1
      %s857 = scalar_select %p856, %s19, 1
      %p858 = scmp.lt.s32.totalorder %s855, 7
      %s859 = scalar_select %p858, %s855, 7
      %s860 = smul.addr %s857, 8
      %s861 = sadd.s32 %s859, %s860
      %s862 = smul.addr %s861, 8
      %s863 = scalar_lea.vmem %s4, %s862
      // Predicated region
      $region37: #{unet_down_forward.7} parent=35 // pred_check
        %p864 = pneg %p145
      $region38: #{unet_down_forward.7} parent=35 // pred_check_branch
        %866 = sbr.rel (%p864) target = $region40
      $region39: #{unet_down_forward.7} parent=35 // pred_region
        %s867 = smul.u32 8, %s20
      $region40: #{unet_down_forward.7} parent=35 // pred_fallthru
        _
    $region36: #{unet_down_forward.7} parent=5 // pred_fallthru
      _
    %p868 = scmp.le.s32.totalorder 2, %s10
    // Predicated region
    $region41: #{unet_down_forward.7} parent=5 // pred_check
      %p869 = pneg %p868
    $region42: #{unet_down_forward.7} parent=5 // pred_check_branch
      %871 = sbr.rel (%p869) target = $region44
    $region43: #{unet_down_forward.7} parent=5 // pred_region
      %s872 = ssub.s32 %s10, 2
      // Predicated region
      $region45: #{unet_down_forward.7} parent=43 // pred_check
        %p873 = pneg %p151
      $region46: #{unet_down_forward.7} parent=43 // pred_check_branch
        %875 = sbr.rel (%p873) target = $region48
      $region47: #{unet_down_forward.7} parent=43 // pred_region
        %s876 = smul.u32 8, %s22
        %p877 = scmp.lt.s32.totalorder %s21, 1
        %s878 = scalar_select %p877, %s21, 1
        %p879 = scmp.lt.s32.totalorder %s876, 7
        %s880 = scalar_select %p879, %s876, 7
        %s881 = smul.addr %s878, 8
        %s882 = sadd.s32 %s880, %s881
        %s883 = smul.addr %s882, 8
        %s884 = scalar_lea.vmem %s4, %s883
      $region48: #{unet_down_forward.7} parent=43 // pred_fallthru
        _
    $region44: #{unet_down_forward.7} parent=5 // pred_fallthru
      _
  $region6: #{unet_down_forward.7} parent=0 // loop_footer
    %s14 = sadd.s32 1, %s10
  $region7: #{unet_down_forward.7} parent=0 // loop_footer_branch
    %9 = sbr.rel target = $region3
  $region8: #{unet_down_forward.7} parent=0 // loop_exit
    _

// kernel: unet_down_forward.6
$region0: #{unet_down_forward.6}
  #allocation0 [shape = 'u32[]', space=smem, size = 0x4, offset = 0x4, fixed_abs, tag = 'smem constant byte address 0x4 - core index']
  #allocation1 [shape = 'u32[72,128]{1,0:T(1,128)}', space=vmem, size = 0x9000, scoped, tag = 'internal scratch']
  %s0 = inlined_call_operand.vmem [shape: bf16[2,18,18,128], index: 0, kind: input, shape index: {}]
  %s1 = inlined_call_operand.vmem [shape: bf16[9,128,128], index: 1, kind: input, shape index: {}]
  %s2 = inlined_call_operand.vmem [shape: f32[1,128], index: 2, kind: input, shape index: {}]
  %s3 = inlined_call_operand.vmem [shape: f32[2,256,128], index: 3, kind: output, shape index: {0}]
  %s4 = inlined_call_operand.vmem [shape: f32[2,2,128], index: 4, kind: output, shape index: {1}]
  %5 = xla_tuple %s3, %s4
  %s6 = sld [smem:[#allocation0]]
  $region53: #{unet_down_forward.6} parent=0
    _
  %s8 = ssub.s32 1, %s6
  %s9 = scalar_select 0, %s8, %s6
  loop: start=0, step=1, limit=4
  $region2: #{unet_down_forward.6} parent=0 // loop_pre_header
    _
  $region3: #{unet_down_forward.6} parent=0 // loop_header
    %s11 = sphi 0, %s15
    %p12 = scmp.ge.s32.totalorder %s11, 4
    %s21 = sphi 0, %s23
    %s24 = sphi 0, %s21
    %s25 = sphi 0, %s24
    %s41 = sphi 0, %s25
    %s45 = sphi 0, %s45
    %s47 = sphi 0, %s45
    %s48 = sphi 0, %s47
    %s62 = sphi 0, %s48
    %s66 = sphi 0, %s66
    %s68 = sphi 0, %s66
    %s69 = sphi 0, %s68
    %s83 = sphi 0, %s69
    %s89 = sphi 0, %s91
    %s92 = sphi 0, %s89
    %s93 = sphi 0, %s92
    %s109 = sphi 0, %s93
    %s115 = sphi 0, %s117
    %s118 = sphi 0, %s115
    %s119 = sphi 0, %s118
    %s135 = sphi 0, %s119
  $region4: #{unet_down_forward.6} parent=0 // loop_header_branch
    %14 = sbr.rel (%p12) target = $region8
  $region5: #{unet_down_forward.6} parent=0 // loop_body
    %s16 = ssub.s32 %s11, 1
    %s17 = ssub.s32 %s11, 2
    %s18 = sadd.s32 %s11, 1
    %s19 = ssub.s32 %s11, %s18
    %p20 = scmp.eq.s32.totalorder %s19, 0
    %s22 = sadd.s32 %s21, 1
    %s23 = scalar_select %p20, %s21, %s22
    %p26 = pneg %p20
    %p27 = scmp.eq.s32.totalorder %s11, 1
    %p28 = por %p26, %p27
    %p29 = scmp.ne.s32.totalorder %s21, %s24
    %p30 = scmp.eq.s32.totalorder %s11, 0
    %p31 = por %p29, %p30
    %p32 = scmp.ne.s32.totalorder %s21, %s24
    %p33 = scmp.eq.s32.totalorder %s16, 1
    %p34 = por %p32, %p33
    %p35 = scmp.ne.s32.totalorder %s24, %s25
    %p36 = scmp.eq.s32.totalorder %s16, 0
    %p37 = por %p35, %p36
    %p38 = scmp.ne.s32.totalorder %s24, %s25
    %p39 = scmp.eq.s32.totalorder %s17, 1
    %p40 = por %p38, %p39
    %p42 = scmp.ne.s32.totalorder %s25, %s41
    %p43 = scmp.eq.s32.totalorder %s17, 0
    %p44 = por %p42, %p43
    %s46 = sadd.s32 %s45, 1
    %p49 = scmp.eq.s32.totalorder %s11, 1
    %p50 = scmp.ne.s32.totalorder %s45, %s47
    %p51 = scmp.eq.s32.totalorder %s11, 0
    %p52 = por %p50, %p51
    %p53 = scmp.ne.s32.totalorder %s45, %s47
    %p54 = scmp.eq.s32.totalorder %s16, 1
    %p55 = por %p53, %p54
    %p56 = scmp.ne.s32.totalorder %s47, %s48
    %p57 = scmp.eq.s32.totalorder %s16, 0
    %p58 = por %p56, %p57
    %p59 = scmp.ne.s32.totalorder %s47, %s48
    %p60 = scmp.eq.s32.totalorder %s17, 1
    %p61 = por %p59, %p60
    %p63 = scmp.ne.s32.totalorder %s48, %s62
    %p64 = scmp.eq.s32.totalorder %s17, 0
    %p65 = por %p63, %p64
    %s67 = sadd.s32 %s66, 1
    %p70 = scmp.eq.s32.totalorder %s11, 1
    %p71 = scmp.ne.s32.totalorder %s66, %s68
    %p72 = scmp.eq.s32.totalorder %s11, 0
    %p73 = por %p71, %p72
    %p74 = scmp.ne.s32.totalorder %s66, %s68
    %p75 = scmp.eq.s32.totalorder %s16, 1
    %p76 = por %p74, %p75
    %p77 = scmp.ne.s32.totalorder %s68, %s69
    %p78 = scmp.eq.s32.totalorder %s16, 0
    %p79 = por %p77, %p78
    %p80 = scmp.ne.s32.totalorder %s68, %s69
    %p81 = scmp.eq.s32.totalorder %s17, 1
    %p82 = por %p80, %p81
    %p84 = scmp.ne.s32.totalorder %s69, %s83
    %p85 = scmp.eq.s32.totalorder %s17, 0
    %p86 = por %p84, %p85
    %s87 = ssub.s32 %s11, %s18
    %p88 = scmp.eq.s32.totalorder %s87, 0
    %s90 = sadd.s32 %s89, 1
    %s91 = scalar_select %p88, %s89, %s90
    %p94 = pneg %p88
    %p95 = scmp.eq.s32.totalorder %s11, 1
    %p96 = por %p94, %p95
    %p97 = scmp.ne.s32.totalorder %s89, %s92
    %p98 = scmp.eq.s32.totalorder %s11, 0
    %p99 = por %p97, %p98
    %p100 = scmp.ne.s32.totalorder %s89, %s92
    %p101 = scmp.eq.s32.totalorder %s16, 1
    %p102 = por %p100, %p101
    %p103 = scmp.ne.s32.totalorder %s92, %s93
    %p104 = scmp.eq.s32.totalorder %s16, 0
    %p105 = por %p103, %p104
    %p106 = scmp.ne.s32.totalorder %s92, %s93
    %p107 = scmp.eq.s32.totalorder %s17, 1
    %p108 = por %p106, %p107
    %p110 = scmp.ne.s32.totalorder %s93, %s109
    %p111 = scmp.eq.s32.totalorder %s17, 0
    %p112 = por %p110, %p111
    %s113 = ssub.s32 %s11, %s18
    %p114 = scmp.eq.s32.totalorder %s113, 0
    %s116 = sadd.s32 %s115, 1
    %s117 = scalar_select %p114, %s115, %s116
    %p120 = pneg %p114
    %p121 = scmp.eq.s32.totalorder %s11, 1
    %p122 = por %p120, %p121
    %p123 = scmp.ne.s32.totalorder %s115, %s118
    %p124 = scmp.eq.s32.totalorder %s11, 0
    %p125 = por %p123, %p124
    %p126 = scmp.ne.s32.totalorder %s115, %s118
    %p127 = scmp.eq.s32.totalorder %s16, 1
    %p128 = por %p126, %p127
    %p129 = scmp.ne.s32.totalorder %s118, %s119
    %p130 = scmp.eq.s32.totalorder %s16, 0
    %p131 = por %p129, %p130
    %p132 = scmp.ne.s32.totalorder %s118, %s119
    %p133 = scmp.eq.s32.totalorder %s17, 1
    %p134 = por %p132, %p133
    %p136 = scmp.ne.s32.totalorder %s119, %s135
    %p137 = scmp.eq.s32.totalorder %s17, 0
    %p138 = por %p136, %p137
    %p139 = scmp.le.s32.totalorder 1, %s11
    %p140 = scmp.lt.s32.totalorder %s11, 3
    %p141 = pnand %p139, %p140
    %p142 = pneg %p141
    // Predicated region
    $region9: #{unet_down_forward.6} parent=5 // pred_check
      _
    $region10: #{unet_down_forward.6} parent=5 // pred_check_branch
      %144 = sbr.rel (%p141) target = $region12
    $region11: #{unet_down_forward.6} parent=5 // pred_region
      %s145 = ssub.s32 %s11, 1
      // Predicated region
      $region13: #{unet_down_forward.6} parent=11 // pred_check
        %p146 = pneg %p58
      $region14: #{unet_down_forward.6} parent=11 // pred_check_branch
        %148 = sbr.rel (%p146) target = $region16
      $region15: #{unet_down_forward.6} parent=11 // pred_region
        _
      $region16: #{unet_down_forward.6} parent=11 // pred_fallthru
        _
      // Predicated region
      $region17: #{unet_down_forward.6} parent=11 // pred_check
        %p149 = pneg %p79
      $region18: #{unet_down_forward.6} parent=11 // pred_check_branch
        %151 = sbr.rel (%p149) target = $region20
      $region19: #{unet_down_forward.6} parent=11 // pred_region
        _
      $region20: #{unet_down_forward.6} parent=11 // pred_fallthru
        _
    $region12: #{unet_down_forward.6} parent=5 // pred_fallthru
      _
    %p152 = scmp.lt.s32.totalorder %s11, 2
    // Predicated region
    $region21: #{unet_down_forward.6} parent=5 // pred_check
      %p153 = pneg %p152
    $region22: #{unet_down_forward.6} parent=5 // pred_check_branch
      %155 = sbr.rel (%p153) target = $region24
    $region23: #{unet_down_forward.6} parent=5 // pred_region
      // Predicated region
      $region25: #{unet_down_forward.6} parent=23 // pred_check
        %p156 = pneg %p31
      $region26: #{unet_down_forward.6} parent=23 // pred_check_branch
        %158 = sbr.rel (%p156) target = $region28
      $region27: #{unet_down_forward.6} parent=23 // pred_region
        %p159 = scmp.lt.s32.totalorder %s11, 1
        %s160 = scalar_select %p159, %s11, 1
        %s161 = smul.addr %s160, 54
        %s162 = smul.addr %s161, 4
        %s163 = scalar_lea.vmem %s0, %s162
      $region28: #{unet_down_forward.6} parent=23 // pred_fallthru
        _
    $region24: #{unet_down_forward.6} parent=5 // pred_fallthru
      _
    %p164 = scmp.le.s32.totalorder 1, %s11
    %p165 = scmp.lt.s32.totalorder %s11, 3
    %p166 = pnand %p164, %p165
    %p167 = pneg %p166
    // Predicated region
    $region29: #{unet_down_forward.6} parent=5 // pred_check
      _
    $region30: #{unet_down_forward.6} parent=5 // pred_check_branch
      %169 = sbr.rel (%p166) target = $region32
    $region31: #{unet_down_forward.6} parent=5 // pred_region
      %s170 = ssub.s32 %s11, 1
      %p171 = scmp.lt.s32.totalorder %s16, 1
      %s172 = scalar_select %p171, %s16, 1
      %s173 = smul.addr %s172, 54
      %s174 = smul.addr %s173, 4
      %s175 = scalar_lea.vmem %s0, %s174
      %p176 = pneg %p37
      %p177 = pneg %p34
      %p178 = pneg %p58
      %p179 = pneg %p55
      %p180 = pneg %p79
      %p181 = pneg %p76
      %p182 = pneg %p105
      %p183 = pneg %p102
      %p184 = scmp.lt.s32.totalorder %s16, 1
      %s185 = scalar_select %p184, %s16, 1
      %s186 = smul.addr %s185, 32
      %s187 = smul.addr %s186, 8
      %s188 = scalar_lea.vmem %s3, %s187
      %p189 = pneg %p131
      %p190 = pneg %p128
      %p191 = scmp.lt.s32.totalorder %s16, 1
      %s192 = scalar_select %p191, %s16, 1
      %s193 = smul.addr %s192, 2
      %s194 = scalar_lea.vmem %s4, %s193
      %p195 = scmp.lt.s32.totalorder %s16, 1
      %s196 = scalar_select %p195, %s16, 1
      %s197 = smul.addr %s196, 54
      %s198 = smul.addr %s197, 4
      %s199 = scalar_lea.vmem %s0, %s198
      %p200 = scmp.lt.s32.totalorder %s16, 1
      %s201 = scalar_select %p200, %s16, 1
      %s202 = smul.addr %s201, 32
      %s203 = smul.addr %s202, 8
      %s204 = scalar_lea.vmem %s3, %s203
      %p205 = scmp.lt.s32.totalorder %s16, 1
      %s206 = scalar_select %p205, %s16, 1
      %s207 = smul.addr %s206, 2
      %s208 = scalar_lea.vmem %s4, %s207
      %v209 = vld [vmem:[%s199] sm:$0xf]
      %v210 = vld [vmem:[%s199 + $0x4] sm:$0xf]
      %v211 = vld [vmem:[%s199 + $0xc] sm:$0xf]
      %v212 = vld [vmem:[%s199 + $0x10] sm:$0xf]
      %v213 = vld [vmem:[%s199 + $0x18] sm:$0xf]
      %v214 = vld [vmem:[%s199 + $0x1c] sm:$0xf]
      %v215 = vld [vmem:[%s199 + $0x24] sm:$0xf]
      %v216 = vld [vmem:[%s199 + $0x28] sm:$0xf]
      %v217 = vld [vmem:[%s199 + $0x30] sm:$0xf]
      %v218 = vld [vmem:[%s199 + $0x34] sm:$0xf]
      %v219 = vld [vmem:[%s199 + $0x3c] sm:$0xf]
      %v220 = vld [vmem:[%s199 + $0x40] sm:$0xf]
      %v221 = vld [vmem:[%s199 + $0x48] sm:$0xf]
      %v222 = vld [vmem:[%s199 + $0x4c] sm:$0xf]
      %v223 = vld [vmem:[%s199 + $0x54] sm:$0xf]
      %v224 = vld [vmem:[%s199 + $0x58] sm:$0xf]
      %v225 = vld [vmem:[%s199 + $0x60] sm:$0xf]
      %v226 = vld [vmem:[%s199 + $0x64] sm:$0xf]
      %v227 = vld [vmem:[%s199 + $0x6c] sm:$0xf]
      %v228 = vld [vmem:[%s199 + $0x70] sm:$0xf]
      %v229 = vld [vmem:[%s199 + $0x78] sm:$0xf]
      %v230 = vld [vmem:[%s199 + $0x7c] sm:$0xf]
      %v231 = vld [vmem:[%s199 + $0x84] sm:$0xf]
      %v232 = vld [vmem:[%s199 + $0x88] sm:$0xf]
      %v233 = vld [vmem:[%s199 + $0x90] sm:$0xf]
      %v234 = vld [vmem:[%s199 + $0x94] sm:$0xf]
      %v235 = vld [vmem:[%s199 + $0x9c] sm:$0xf]
      %v236 = vld [vmem:[%s199 + $0xa0] sm:$0xf]
      %v237 = vld [vmem:[%s199 + $0xa8] sm:$0xf]
      %v238 = vld [vmem:[%s199 + $0xac] sm:$0xf]
      %v239 = vld [vmem:[%s199 + $0xb4] sm:$0xf]
      %v240 = vld [vmem:[%s199 + $0xb8] sm:$0xf]
      %v241 = vld [vmem:[%s1] sm:$0xf]
      %v242 = vld [vmem:[%s1 + $0x4] sm:$0xf]
      %v243 = vld [vmem:[%s1 + $0x8] sm:$0xf]
      %v244 = vld [vmem:[%s1 + $0xc] sm:$0xf]
      %v245 = vld [vmem:[%s1 + $0x10] sm:$0xf]
      %v246 = vld [vmem:[%s1 + $0x14] sm:$0xf]
      %v247 = vld [vmem:[%s1 + $0x18] sm:$0xf]
      %v248 = vld [vmem:[%s1 + $0x1c] sm:$0xf]
      %v249 = vld [vmem:[%s1 + $0x20] sm:$0xf]
      %v250 = vld [vmem:[%s1 + $0x24] sm:$0xf]
      %v251 = vld [vmem:[%s1 + $0x28] sm:$0xf]
      %v252 = vld [vmem:[%s1 + $0x2c] sm:$0xf]
      %v253 = vld [vmem:[%s1 + $0x30] sm:$0xf]
      %v254 = vld [vmem:[%s1 + $0x34] sm:$0xf]
      %v255 = vld [vmem:[%s1 + $0x38] sm:$0xf]
      %v256 = vld [vmem:[%s1 + $0x3c] sm:$0xf]
      %v257 = vld [vmem:[%s199 + $0x8] sm:$0x1]
      %v258 = vld [vmem:[%s199 + $0x14] sm:$0x1]
      %v259 = vld [vmem:[%s199 + $0x20] sm:$0x1]
      %v260 = vld [vmem:[%s199 + $0x2c] sm:$0x1]
      %v261 = vld [vmem:[%s199 + $0x38] sm:$0x1]
      %v262 = vld [vmem:[%s199 + $0x44] sm:$0x1]
      %v263 = vld [vmem:[%s199 + $0x50] sm:$0x1]
      %v264 = vld [vmem:[%s199 + $0x5c] sm:$0x1]
      %v265 = vld [vmem:[%s199 + $0x68] sm:$0x1]
      %v266 = vld [vmem:[%s199 + $0x74] sm:$0x1]
      %v267 = vld [vmem:[%s199 + $0x80] sm:$0x1]
      %v268 = vld [vmem:[%s199 + $0x8c] sm:$0x1]
      %v269 = vld [vmem:[%s199 + $0x98] sm:$0x1]
      %v270 = vld [vmem:[%s199 + $0xa4] sm:$0x1]
      %v271 = vld [vmem:[%s199 + $0xb0] sm:$0x1]
      %v272 = vld [vmem:[%s199 + $0xbc] sm:$0x1]
      %vm273 = vsmask.f32 3328
      %vm274 = vsmask.f32 7440
      %vm275 = vmor %vm273, %vm274
      %v277 = vshrl.u32 %v209, 16
      %v279 = vrot.slane %v277, 4
      %v280 = vshll.u32 %v209, 16
      %v282 = vrot.slane %v280, 5
      %v283 = vor.u32 %v279, %v282
      %v284 = vrot.slane %v283, 4
      %v286 = vshll.u32 %v210, 16
      %v288 = vrot.slane %v286, 5
      %v289 = vsel %vm275, %v284, %v288
      %v290 = vshrl.u32 %v210, 16
      %v292 = vrot.slane %v290, 4
      %v293 = vor.u32 %v292, %v288
      %v294 = vrot.slane %v293, 4
      %v296 = vshll.u32 %v257, 16
      %v298 = vrot.slane %v296, 5
      %v299 = vsel %vm275, %v294, %v298
      %v301 = vshrl.u32 %v211, 16
      %v303 = vrot.slane %v301, 4
      %v304 = vshll.u32 %v211, 16
      %v306 = vrot.slane %v304, 5
      %v307 = vor.u32 %v303, %v306
      %v308 = vrot.slane %v307, 4
      %v310 = vshll.u32 %v212, 16
      %v312 = vrot.slane %v310, 5
      %v313 = vsel %vm275, %v308, %v312
      %v314 = vshrl.u32 %v212, 16
      %v316 = vrot.slane %v314, 4
      %v317 = vor.u32 %v316, %v312
      %v318 = vrot.slane %v317, 4
      %v320 = vshll.u32 %v258, 16
      %v322 = vrot.slane %v320, 5
      %v323 = vsel %vm275, %v318, %v322
      %v325 = vshrl.u32 %v213, 16
      %v327 = vrot.slane %v325, 4
      %v328 = vshll.u32 %v213, 16
      %v330 = vrot.slane %v328, 5
      %v331 = vor.u32 %v327, %v330
      %v332 = vrot.slane %v331, 4
      %v334 = vshll.u32 %v214, 16
      %v336 = vrot.slane %v334, 5
      %v337 = vsel %vm275, %v332, %v336
      %v338 = vshrl.u32 %v214, 16
      %v340 = vrot.slane %v338, 4
      %v341 = vor.u32 %v340, %v336
      %v342 = vrot.slane %v341, 4
      %v344 = vshll.u32 %v259, 16
      %v346 = vrot.slane %v344, 5
      %v347 = vsel %vm275, %v342, %v346
      %v349 = vshrl.u32 %v215, 16
      %v351 = vrot.slane %v349, 4
      %v352 = vshll.u32 %v215, 16
      %v354 = vrot.slane %v352, 5
      %v355 = vor.u32 %v351, %v354
      %v356 = vrot.slane %v355, 4
      %v358 = vshll.u32 %v216, 16
      %v360 = vrot.slane %v358, 5
      %v361 = vsel %vm275, %v356, %v360
      %v362 = vshrl.u32 %v216, 16
      %v364 = vrot.slane %v362, 4
      %v365 = vor.u32 %v364, %v360
      %v366 = vrot.slane %v365, 4
      %v368 = vshll.u32 %v260, 16
      %v370 = vrot.slane %v368, 5
      %v371 = vsel %vm275, %v366, %v370
      %v373 = vshrl.u32 %v217, 16
      %v375 = vrot.slane %v373, 4
      %v376 = vshll.u32 %v217, 16
      %v378 = vrot.slane %v376, 5
      %v379 = vor.u32 %v375, %v378
      %v380 = vrot.slane %v379, 4
      %v382 = vshll.u32 %v218, 16
      %v384 = vrot.slane %v382, 5
      %v385 = vsel %vm275, %v380, %v384
      %v386 = vshrl.u32 %v218, 16
      %v388 = vrot.slane %v386, 4
      %v389 = vor.u32 %v388, %v384
      %v390 = vrot.slane %v389, 4
      %v392 = vshll.u32 %v261, 16
      %v394 = vrot.slane %v392, 5
      %v395 = vsel %vm275, %v390, %v394
      %v397 = vshrl.u32 %v219, 16
      %v399 = vrot.slane %v397, 4
      %v400 = vshll.u32 %v219, 16
      %v402 = vrot.slane %v400, 5
      %v403 = vor.u32 %v399, %v402
      %v404 = vrot.slane %v403, 4
      %v406 = vshll.u32 %v220, 16
      %v408 = vrot.slane %v406, 5
      %v409 = vsel %vm275, %v404, %v408
      %v410 = vshrl.u32 %v220, 16
      %v412 = vrot.slane %v410, 4
      %v413 = vor.u32 %v412, %v408
      %v414 = vrot.slane %v413, 4
      %v416 = vshll.u32 %v262, 16
      %v418 = vrot.slane %v416, 5
      %v419 = vsel %vm275, %v414, %v418
      %v421 = vshrl.u32 %v221, 16
      %v423 = vrot.slane %v421, 4
      %v424 = vshll.u32 %v221, 16
      %v426 = vrot.slane %v424, 5
      %v427 = vor.u32 %v423, %v426
      %v428 = vrot.slane %v427, 4
      %v430 = vshll.u32 %v222, 16
      %v432 = vrot.slane %v430, 5
      %v433 = vsel %vm275, %v428, %v432
      %v434 = vshrl.u32 %v222, 16
      %v436 = vrot.slane %v434, 4
      %v437 = vor.u32 %v436, %v432
      %v438 = vrot.slane %v437, 4
      %v440 = vshll.u32 %v263, 16
      %v442 = vrot.slane %v440, 5
      %v443 = vsel %vm275, %v438, %v442
      %v445 = vshrl.u32 %v223, 16
      %v447 = vrot.slane %v445, 4
      %v448 = vshll.u32 %v223, 16
      %v450 = vrot.slane %v448, 5
      %v451 = vor.u32 %v447, %v450
      %v452 = vrot.slane %v451, 4
      %v454 = vshll.u32 %v224, 16
      %v456 = vrot.slane %v454, 5
      %v457 = vsel %vm275, %v452, %v456
      %v458 = vshrl.u32 %v224, 16
      %v460 = vrot.slane %v458, 4
      %v461 = vor.u32 %v460, %v456
      %v462 = vrot.slane %v461, 4
      %v464 = vshll.u32 %v264, 16
      %v466 = vrot.slane %v464, 5
      %v467 = vsel %vm275, %v462, %v466
      %v469 = vshrl.u32 %v225, 16
      %v471 = vrot.slane %v469, 4
      %v472 = vshll.u32 %v225, 16
      %v474 = vrot.slane %v472, 5
      %v475 = vor.u32 %v471, %v474
      %v476 = vrot.slane %v475, 4
      %v478 = vshll.u32 %v226, 16
      %v480 = vrot.slane %v478, 5
      %v481 = vsel %vm275, %v476, %v480
      %v482 = vshrl.u32 %v226, 16
      %v484 = vrot.slane %v482, 4
      %v485 = vor.u32 %v484, %v480
      %v486 = vrot.slane %v485, 4
      %v488 = vshll.u32 %v265, 16
      %v490 = vrot.slane %v488, 5
      %v491 = vsel %vm275, %v486, %v490
      %v493 = vshrl.u32 %v227, 16
      %v495 = vrot.slane %v493, 4
      %v496 = vshll.u32 %v227, 16
      %v498 = vrot.slane %v496, 5
      %v499 = vor.u32 %v495, %v498
      %v500 = vrot.slane %v499, 4
      %v502 = vshll.u32 %v228, 16
      %v504 = vrot.slane %v502, 5
      %v505 = vsel %vm275, %v500, %v504
      %v506 = vshrl.u32 %v228, 16
      %v508 = vrot.slane %v506, 4
      %v509 = vor.u32 %v508, %v504
      %v510 = vrot.slane %v509, 4
      %v512 = vshll.u32 %v266, 16
      %v514 = vrot.slane %v512, 5
      %v515 = vsel %vm275, %v510, %v514
      %v517 = vshrl.u32 %v229, 16
      %v519 = vrot.slane %v517, 4
      %v520 = vshll.u32 %v229, 16
      %v522 = vrot.slane %v520, 5
      %v523 = vor.u32 %v519, %v522
      %v524 = vrot.slane %v523, 4
      %v526 = vshll.u32 %v230, 16
      %v528 = vrot.slane %v526, 5
      %v529 = vsel %vm275, %v524, %v528
      %v530 = vshrl.u32 %v230, 16
      %v532 = vrot.slane %v530, 4
      %v533 = vor.u32 %v532, %v528
      %v534 = vrot.slane %v533, 4
      %v536 = vshll.u32 %v267, 16
      %v538 = vrot.slane %v536, 5
      %v539 = vsel %vm275, %v534, %v538
      %v541 = vshrl.u32 %v231, 16
      %v543 = vrot.slane %v541, 4
      %v544 = vshll.u32 %v231, 16
      %v546 = vrot.slane %v544, 5
      %v547 = vor.u32 %v543, %v546
      %v548 = vrot.slane %v547, 4
      %v550 = vshll.u32 %v232, 16
      %v552 = vrot.slane %v550, 5
      %v553 = vsel %vm275, %v548, %v552
      %v554 = vshrl.u32 %v232, 16
      %v556 = vrot.slane %v554, 4
      %v557 = vor.u32 %v556, %v552
      %v558 = vrot.slane %v557, 4
      %v560 = vshll.u32 %v268, 16
      %v562 = vrot.slane %v560, 5
      %v563 = vsel %vm275, %v558, %v562
      %v565 = vshrl.u32 %v233, 16
      %v567 = vrot.slane %v565, 4
      %v568 = vshll.u32 %v233, 16
      %v570 = vrot.slane %v568, 5
      %v571 = vor.u32 %v567, %v570
      %v572 = vrot.slane %v571, 4
      %v574 = vshll.u32 %v234, 16
      %v576 = vrot.slane %v574, 5
      %v577 = vsel %vm275, %v572, %v576
      %v578 = vshrl.u32 %v234, 16
      %v580 = vrot.slane %v578, 4
      %v581 = vor.u32 %v580, %v576
      %v582 = vrot.slane %v581, 4
      %v584 = vshll.u32 %v269, 16
      %v586 = vrot.slane %v584, 5
      %v587 = vsel %vm275, %v582, %v586
      %v589 = vshrl.u32 %v235, 16
      %v591 = vrot.slane %v589, 4
      %v592 = vshll.u32 %v235, 16
      %v594 = vrot.slane %v592, 5
      %v595 = vor.u32 %v591, %v594
      %v596 = vrot.slane %v595, 4
      %v598 = vshll.u32 %v236, 16
      %v600 = vrot.slane %v598, 5
      %v601 = vsel %vm275, %v596, %v600
      %v602 = vshrl.u32 %v236, 16
      %v604 = vrot.slane %v602, 4
      %v605 = vor.u32 %v604, %v600
      %v606 = vrot.slane %v605, 4
      %v608 = vshll.u32 %v270, 16
      %v610 = vrot.slane %v608, 5
      %v611 = vsel %vm275, %v606, %v610
      %v613 = vshrl.u32 %v237, 16
      %v615 = vrot.slane %v613, 4
      %v616 = vshll.u32 %v237, 16
      %v618 = vrot.slane %v616, 5
      %v619 = vor.u32 %v615, %v618
      %v620 = vrot.slane %v619, 4
      %v622 = vshll.u32 %v238, 16
      %v624 = vrot.slane %v622, 5
      %v625 = vsel %vm275, %v620, %v624
      %v626 = vshrl.u32 %v238, 16
      %v628 = vrot.slane %v626, 4
      %v629 = vor.u32 %v628, %v624
      %v630 = vrot.slane %v629, 4
      %v632 = vshll.u32 %v271, 16
      %v634 = vrot.slane %v632, 5
      %v635 = vsel %vm275, %v630, %v634
      %v637 = vshrl.u32 %v239, 16
      %v639 = vrot.slane %v637, 4
      %v640 = vshll.u32 %v239, 16
      %v642 = vrot.slane %v640, 5
      %v643 = vor.u32 %v639, %v642
      %v644 = vrot.slane %v643, 4
      %v646 = vshll.u32 %v240, 16
      %v648 = vrot.slane %v646, 5
      %v649 = vsel %vm275, %v644, %v648
      %v650 = vshrl.u32 %v240, 16
      %v652 = vrot.slane %v650, 4
      %v653 = vor.u32 %v652, %v648
      %v654 = vrot.slane %v653, 4
      %v656 = vshll.u32 %v272, 16
      %v658 = vrot.slane %v656, 5
      %v659 = vsel %vm275, %v654, %v658
      %s660 = scalar_lea.vmem %s1, 64
      %v661 = vld [vmem:[%s660] sm:$0xf]
      %v662 = vld [vmem:[%s660 + $0x4] sm:$0xf]
      %v663 = vld [vmem:[%s660 + $0x8] sm:$0xf]
      %v664 = vld [vmem:[%s660 + $0xc] sm:$0xf]
      %v665 = vld [vmem:[%s660 + $0x10] sm:$0xf]
      %v666 = vld [vmem:[%s660 + $0x14] sm:$0xf]
      %v667 = vld [vmem:[%s660 + $0x18] sm:$0xf]
      %v668 = vld [vmem:[%s660 + $0x1c] sm:$0xf]
      %v669 = vld [vmem:[%s660 + $0x20] sm:$0xf]
      %v670 = vld [vmem:[%s660 + $0x24] sm:$0xf]
      %v671 = vld [vmem:[%s660 + $0x28] sm:$0xf]
      %v672 = vld [vmem:[%s660 + $0x2c] sm:$0xf]
      %v673 = vld [vmem:[%s660 + $0x30] sm:$0xf]
      %v674 = vld [vmem:[%s660 + $0x34] sm:$0xf]
      %v675 = vld [vmem:[%s660 + $0x38] sm:$0xf]
      %v676 = vld [vmem:[%s660 + $0x3c] sm:$0xf]
      %v677 = vunpack.c.l.b16 %v289
      %v678 = vunpack.c.l.b16 %v299
      %v679 = vunpack.c.l.b16 %v313
      %v680 = vunpack.c.l.b16 %v323
      %v681 = vunpack.c.l.b16 %v337
      %v682 = vunpack.c.l.b16 %v347
      %v683 = vunpack.c.l.b16 %v361
      %v684 = vunpack.c.l.b16 %v371
      %v685 = vunpack.c.l.b16 %v385
      %v686 = vunpack.c.l.b16 %v395
      %v687 = vunpack.c.l.b16 %v409
      %v688 = vunpack.c.l.b16 %v419
      %v689 = vunpack.c.l.b16 %v433
      %v690 = vunpack.c.l.b16 %v443
      %v691 = vunpack.c.l.b16 %v457
      %v692 = vunpack.c.l.b16 %v467
      %v693 = vunpack.c.l.b16 %v481
      %v694 = vunpack.c.l.b16 %v491
      %v695 = vunpack.c.l.b16 %v505
      %v696 = vunpack.c.l.b16 %v515
      %v697 = vunpack.c.l.b16 %v529
      %v698 = vunpack.c.l.b16 %v539
      %v699 = vunpack.c.l.b16 %v553
      %v700 = vunpack.c.l.b16 %v563
      %v701 = vunpack.c.l.b16 %v577
      %v702 = vunpack.c.l.b16 %v587
      %v703 = vunpack.c.l.b16 %v601
      %v704 = vunpack.c.l.b16 %v611
      %v705 = vunpack.c.l.b16 %v625
      %v706 = vunpack.c.l.b16 %v635
      %v707 = vunpack.c.l.b16 %v649
      %v708 = vunpack.c.l.b16 %v659
      %v709 = vpack.c.b16 %v678, %v677
      %v710 = vpack.c.b16 %v680, %v679
      %v711 = vpack.c.b16 %v682, %v681
      %v712 = vpack.c.b16 %v684, %v683
      %v713 = vpack.c.b16 %v686, %v685
      %v714 = vpack.c.b16 %v688, %v687
      %v715 = vpack.c.b16 %v690, %v689
      %v716 = vpack.c.b16 %v692, %v691
      %v717 = vpack.c.b16 %v694, %v693
      %v718 = vpack.c.b16 %v696, %v695
      %v719 = vpack.c.b16 %v698, %v697
      %v720 = vpack.c.b16 %v700, %v699
      %v721 = vpack.c.b16 %v702, %v701
      %v722 = vpack.c.b16 %v704, %v703
      %v723 = vpack.c.b16 %v706, %v705
      %v724 = vpack.c.b16 %v708, %v707
      %v757 = vunpack.c.l.b16 %v661
      %v758 = vunpack.c.l.b16 %v662
      %v759 = vunpack.c.l.b16 %v663
      %v760 = vunpack.c.l.b16 %v664
      %v761 = vunpack.c.l.b16 %v665
      %v762 = vunpack.c.l.b16 %v666
      %v763 = vunpack.c.l.b16 %v667
      %v764 = vunpack.c.l.b16 %v668
      %v765 = vunpack.c.l.b16 %v669
      %v766 = vunpack.c.l.b16 %v670
      %v767 = vunpack.c.l.b16 %v671
      %v768 = vunpack.c.l.b16 %v672
      %v769 = vunpack.c.l.b16 %v673
      %v770 = vunpack.c.l.b16 %v674
      %v771 = vunpack.c.l.b16 %v675
      %v772 = vunpack.c.l.b16 %v676
      %v773 = vpack.c.b16 %v758, %v757
      %v774 = vpack.c.b16 %v760, %v759
      %v775 = vpack.c.b16 %v762, %v761
      %v776 = vpack.c.b16 %v764, %v763
      %v777 = vpack.c.b16 %v766, %v765
      %v778 = vpack.c.b16 %v768, %v767
      %v779 = vpack.c.b16 %v770, %v769
      %v780 = vpack.c.b16 %v772, %v771
      %789 = vmatpush.bf16.msra.mxu0 %v780
      %790 = vmatpush.bf16.msra.mxu0 %v779
      %791 = vmatpush.bf16.msra.mxu0 %v778
      %792 = vmatpush.bf16.msra.mxu0 %v777
      %793 = vmatpush.bf16.msra.mxu0 %v776
      %794 = vmatpush.bf16.msra.mxu0 %v775
      %795 = vmatpush.bf16.msra.mxu0 %v774
      %796 = vmatpush.bf16.msra.mxu0 %v773
      %797 = vmatmul.bf16.gmra.mxu0 %v709
      %v798 = vpop.f32.mrf.mxu0
      %v799 = vadd.f32 0.0, %v798
      %v800 = vpop.f32.mrf.mxu0
      %v801 = vadd.f32 0.0, %v800
      %802 = vmatmul.bf16.gmra.mxu0 %v710
      %v803 = vpop.f32.mrf.mxu0
      %v804 = vadd.f32 0.0, %v803
      %v805 = vpop.f32.mrf.mxu0
      %v806 = vadd.f32 0.0, %v805
      %807 = vmatmul.bf16.gmra.mxu0 %v711
      %v808 = vpop.f32.mrf.mxu0
      %v809 = vadd.f32 0.0, %v808
      %v810 = vpop.f32.mrf.mxu0
      %v811 = vadd.f32 0.0, %v810
      %812 = vmatmul.bf16.gmra.mxu0 %v712
      %v813 = vpop.f32.mrf.mxu0
      %v814 = vadd.f32 0.0, %v813
      %v815 = vpop.f32.mrf.mxu0
      %v816 = vadd.f32 0.0, %v815
      %817 = vmatmul.bf16.gmra.mxu0 %v713
      %v818 = vpop.f32.mrf.mxu0
      %v819 = vadd.f32 0.0, %v818
      %v820 = vpop.f32.mrf.mxu0
      %v821 = vadd.f32 0.0, %v820
      %822 = vmatmul.bf16.gmra.mxu0 %v714
      %v823 = vpop.f32.mrf.mxu0
      %v824 = vadd.f32 0.0, %v823
      %v825 = vpop.f32.mrf.mxu0
      %v826 = vadd.f32 0.0, %v825
      %827 = vmatmul.bf16.gmra.mxu0 %v715
      %v828 = vpop.f32.mrf.mxu0
      %v829 = vadd.f32 0.0, %v828
      %v830 = vpop.f32.mrf.mxu0
      %v831 = vadd.f32 0.0, %v830
      %832 = vmatmul.bf16.gmra.mxu0 %v716
      %v833 = vpop.f32.mrf.mxu0
      %v834 = vadd.f32 0.0, %v833
      %v835 = vpop.f32.mrf.mxu0
      %v836 = vadd.f32 0.0, %v835
      %837 = vmatmul.bf16.gmra.mxu0 %v717
      %v838 = vpop.f32.mrf.mxu0
      %v839 = vadd.f32 0.0, %v838
      %v840 = vpop.f32.mrf.mxu0
      %v841 = vadd.f32 0.0, %v840
      %842 = vmatmul.bf16.gmra.mxu0 %v718
      %v843 = vpop.f32.mrf.mxu0
      %v844 = vadd.f32 0.0, %v843
      %v845 = vpop.f32.mrf.mxu0
      %v846 = vadd.f32 0.0, %v845
      %847 = vmatmul.bf16.gmra.mxu0 %v719
      %v848 = vpop.f32.mrf.mxu0
      %v849 = vadd.f32 0.0, %v848
      %v850 = vpop.f32.mrf.mxu0
      %v851 = vadd.f32 0.0, %v850
      %852 = vmatmul.bf16.gmra.mxu0 %v720
      %v853 = vpop.f32.mrf.mxu0
      %v854 = vadd.f32 0.0, %v853
      %v855 = vpop.f32.mrf.mxu0
      %v856 = vadd.f32 0.0, %v855
      %857 = vmatmul.bf16.gmra.mxu0 %v721
      %v858 = vpop.f32.mrf.mxu0
      %v859 = vadd.f32 0.0, %v858
      %v860 = vpop.f32.mrf.mxu0
      %v861 = vadd.f32 0.0, %v860
      %862 = vmatmul.bf16.gmra.mxu0 %v722
      %v863 = vpop.f32.mrf.mxu0
      %v864 = vadd.f32 0.0, %v863
      %v865 = vpop.f32.mrf.mxu0
      %v866 = vadd.f32 0.0, %v865
      %867 = vmatmul.bf16.gmra.mxu0 %v723
      %v868 = vpop.f32.mrf.mxu0
      %v869 = vadd.f32 0.0, %v868
      %v870 = vpop.f32.mrf.mxu0
      %v871 = vadd.f32 0.0, %v870
      %872 = vmatmul.bf16.gmra.mxu0 %v724
      %v873 = vpop.f32.mrf.mxu0
      %v874 = vadd.f32 0.0, %v873
      %v875 = vpop.f32.mrf.mxu0
      %v876 = vadd.f32 0.0, %v875
      %877 = vdwg.mxu0
      %v910 = vunpack.c.l.b16 %v209
      %v911 = vunpack.c.l.b16 %v210
      %v912 = vunpack.c.l.b16 %v211
      %v913 = vunpack.c.l.b16 %v212
      %v914 = vunpack.c.l.b16 %v213
      %v915 = vunpack.c.l.b16 %v214
      %v916 = vunpack.c.l.b16 %v215
      %v917 = vunpack.c.l.b16 %v216
      %v918 = vunpack.c.l.b16 %v217
      %v919 = vunpack.c.l.b16 %v218
      %v920 = vunpack.c.l.b16 %v219
      %v921 = vunpack.c.l.b16 %v220
      %v922 = vunpack.c.l.b16 %v221
      %v923 = vunpack.c.l.b16 %v222
      %v924 = vunpack.c.l.b16 %v223
      %v925 = vunpack.c.l.b16 %v224
      %v926 = vunpack.c.l.b16 %v225
      %v927 = vunpack.c.l.b16 %v226
      %v928 = vunpack.c.l.b16 %v227
      %v929 = vunpack.c.l.b16 %v228
      %v930 = vunpack.c.l.b16 %v229
      %v931 = vunpack.c.l.b16 %v230
      %v932 = vunpack.c.l.b16 %v231
      %v933 = vunpack.c.l.b16 %v232
      %v934 = vunpack.c.l.b16 %v233
      %v935 = vunpack.c.l.b16 %v234
      %v936 = vunpack.c.l.b16 %v235
      %v937 = vunpack.c.l.b16 %v236
      %v938 = vunpack.c.l.b16 %v237
      %v939 = vunpack.c.l.b16 %v238
      %v940 = vunpack.c.l.b16 %v239
      %v941 = vunpack.c.l.b16 %v240
      %v942 = vpack.c.b16 %v911, %v910
      %v943 = vpack.c.b16 %v913, %v912
      %v944 = vpack.c.b16 %v915, %v914
      %v945 = vpack.c.b16 %v917, %v916
      %v946 = vpack.c.b16 %v919, %v918
      %v947 = vpack.c.b16 %v921, %v920
      %v948 = vpack.c.b16 %v923, %v922
      %v949 = vpack.c.b16 %v925, %v924
      %v950 = vpack.c.b16 %v927, %v926
      %v951 = vpack.c.b16 %v929, %v928
      %v952 = vpack.c.b16 %v931, %v930
      %v953 = vpack.c.b16 %v933, %v932
      %v954 = vpack.c.b16 %v935, %v934
      %v955 = vpack.c.b16 %v937, %v936
      %v956 = vpack.c.b16 %v939, %v938
      %v957 = vpack.c.b16 %v941, %v940
      %v990 = vunpack.c.l.b16 %v241
      %v991 = vunpack.c.l.b16 %v242
      %v992 = vunpack.c.l.b16 %v243
      %v993 = vunpack.c.l.b16 %v244
      %v994 = vunpack.c.l.b16 %v245
      %v995 = vunpack.c.l.b16 %v246
      %v996 = vunpack.c.l.b16 %v247
      %v997 = vunpack.c.l.b16 %v248
      %v998 = vunpack.c.l.b16 %v249
      %v999 = vunpack.c.l.b16 %v250
      %v1000 = vunpack.c.l.b16 %v251
      %v1001 = vunpack.c.l.b16 %v252
      %v1002 = vunpack.c.l.b16 %v253
      %v1003 = vunpack.c.l.b16 %v254
      %v1004 = vunpack.c.l.b16 %v255
      %v1005 = vunpack.c.l.b16 %v256
      %v1006 = vpack.c.b16 %v991, %v990
      %v1007 = vpack.c.b16 %v993, %v992
      %v1008 = vpack.c.b16 %v995, %v994
      %v1009 = vpack.c.b16 %v997, %v996
      %v1010 = vpack.c.b16 %v999, %v998
      %v1011 = vpack.c.b16 %v1001, %v1000
      %v1012 = vpack.c.b16 %v1003, %v1002
      %v1013 = vpack.c.b16 %v1005, %v1004
      %1022 = vmatpush.bf16.msra.mxu0 %v1013
      %1023 = vmatpush.bf16.msra.mxu0 %v1012
      %1024 = vmatpush.bf16.msra.mxu0 %v1011
      %1025 = vmatpush.bf16.msra.mxu0 %v1010
      %1026 = vmatpush.bf16.msra.mxu0 %v1009
      %1027 = vmatpush.bf16.msra.mxu0 %v1008
      %1028 = vmatpush.bf16.msra.mxu0 %v1007
      %1029 = vmatpush.bf16.msra.mxu0 %v1006
      %1030 = vmatmul.bf16.gmra.mxu0 %v942
      %v1031 = vpop.f32.mrf.mxu0
      %v1032 = vadd.f32 %v799, %v1031
      %v1033 = vpop.f32.mrf.mxu0
      %v1034 = vadd.f32 %v801, %v1033
      %1035 = vmatmul.bf16.gmra.mxu0 %v943
      %v1036 = vpop.f32.mrf.mxu0
      %v1037 = vadd.f32 %v804, %v1036
      %v1038 = vpop.f32.mrf.mxu0
      %v1039 = vadd.f32 %v806, %v1038
      %1040 = vmatmul.bf16.gmra.mxu0 %v944
      %v1041 = vpop.f32.mrf.mxu0
      %v1042 = vadd.f32 %v809, %v1041
      %v1043 = vpop.f32.mrf.mxu0
      %v1044 = vadd.f32 %v811, %v1043
      %1045 = vmatmul.bf16.gmra.mxu0 %v945
      %v1046 = vpop.f32.mrf.mxu0
      %v1047 = vadd.f32 %v814, %v1046
      %v1048 = vpop.f32.mrf.mxu0
      %v1049 = vadd.f32 %v816, %v1048
      %1050 = vmatmul.bf16.gmra.mxu0 %v946
      %v1051 = vpop.f32.mrf.mxu0
      %v1052 = vadd.f32 %v819, %v1051
      %v1053 = vpop.f32.mrf.mxu0
      %v1054 = vadd.f32 %v821, %v1053
      %1055 = vmatmul.bf16.gmra.mxu0 %v947
      %v1056 = vpop.f32.mrf.mxu0
      %v1057 = vadd.f32 %v824, %v1056
      %v1058 = vpop.f32.mrf.mxu0
      %v1059 = vadd.f32 %v826, %v1058
      %1060 = vmatmul.bf16.gmra.mxu0 %v948
      %v1061 = vpop.f32.mrf.mxu0
      %v1062 = vadd.f32 %v829, %v1061
      %v1063 = vpop.f32.mrf.mxu0
      %v1064 = vadd.f32 %v831, %v1063
      %1065 = vmatmul.bf16.gmra.mxu0 %v949
      %v1066 = vpop.f32.mrf.mxu0
      %v1067 = vadd.f32 %v834, %v1066
      %v1068 = vpop.f32.mrf.mxu0
      %v1069 = vadd.f32 %v836, %v1068
      %1070 = vmatmul.bf16.gmra.mxu0 %v950
      %v1071 = vpop.f32.mrf.mxu0
      %v1072 = vadd.f32 %v839, %v1071
      %v1073 = vpop.f32.mrf.mxu0
      %v1074 = vadd.f32 %v841, %v1073
      %1075 = vmatmul.bf16.gmra.mxu0 %v951
      %v1076 = vpop.f32.mrf.mxu0
      %v1077 = vadd.f32 %v844, %v1076
      %v1078 = vpop.f32.mrf.mxu0
      %v1079 = vadd.f32 %v846, %v1078
      %1080 = vmatmul.bf16.gmra.mxu0 %v952
      %v1081 = vpop.f32.mrf.mxu0
      %v1082 = vadd.f32 %v849, %v1081
      %v1083 = vpop.f32.mrf.mxu0
      %v1084 = vadd.f32 %v851, %v1083
      %1085 = vmatmul.bf16.gmra.mxu0 %v953
      %v1086 = vpop.f32.mrf.mxu0
      %v1087 = vadd.f32 %v854, %v1086
      %v1088 = vpop.f32.mrf.mxu0
      %v1089 = vadd.f32 %v856, %v1088
      %1090 = vmatmul.bf16.gmra.mxu0 %v954
      %v1091 = vpop.f32.mrf.mxu0
      %v1092 = vadd.f32 %v859, %v1091
      %v1093 = vpop.f32.mrf.mxu0
      %v1094 = vadd.f32 %v861, %v1093
      %1095 = vmatmul.bf16.gmra.mxu0 %v955
      %v1096 = vpop.f32.mrf.mxu0
      %v1097 = vadd.f32 %v864, %v1096
      %v1098 = vpop.f32.mrf.mxu0
      %v1099 = vadd.f32 %v866, %v1098
      %1100 = vmatmul.bf16.gmra.mxu0 %v956
      %v1101 = vpop.f32.mrf.mxu0
      %v1102 = vadd.f32 %v869, %v1101
      %v1103 = vpop.f32.mrf.mxu0
      %v1104 = vadd.f32 %v871, %v1103
      %1105 = vmatmul.bf16.gmra.mxu0 %v957
      %v1106 = vpop.f32.mrf.mxu0
      %v1107 = vadd.f32 %v874, %v1106
      %v1108 = vpop.f32.mrf.mxu0
      %v1109 = vadd.f32 %v876, %v1108
      %1110 = vdwg.mxu0
      %v1111 = vld [vmem:[%s199] sm:$0xe]
      %v1112 = vld [vmem:[%s199 + $0xc] sm:$0xe]
      %v1113 = vld [vmem:[%s199 + $0x18] sm:$0xe]
      %v1114 = vld [vmem:[%s199 + $0x24] sm:$0xe]
      %v1115 = vld [vmem:[%s199 + $0x30] sm:$0xe]
      %v1116 = vld [vmem:[%s199 + $0x3c] sm:$0xe]
      %v1117 = vld [vmem:[%s199 + $0x48] sm:$0xe]
      %v1118 = vld [vmem:[%s199 + $0x54] sm:$0xe]
      %v1119 = vld [vmem:[%s199 + $0x60] sm:$0xe]
      %v1120 = vld [vmem:[%s199 + $0x6c] sm:$0xe]
      %v1121 = vld [vmem:[%s199 + $0x78] sm:$0xe]
      %v1122 = vld [vmem:[%s199 + $0x84] sm:$0xe]
      %v1123 = vld [vmem:[%s199 + $0x90] sm:$0xe]
      %v1124 = vld [vmem:[%s199 + $0x9c] sm:$0xe]
      %v1125 = vld [vmem:[%s199 + $0xa8] sm:$0xe]
      %v1126 = vld [vmem:[%s199 + $0xb4] sm:$0xe]
      %vm1159 = vcmask 1042432
      %vm1160 = vcmask 1046532
      %vm1161 = vmor %vm1159, %vm1160
      %v1162 = vrot.slane %v1111, 5
      %v1163 = vrot.slane %v1162, 4
      %v1164 = vrot.slane %v210, 5
      %v1165 = vsel %vm1161, %v1163, %v1164
      %v1166 = vrot.slane %v1164, 4
      %v1167 = vrot.slane %v257, 5
      %v1168 = vsel %vm1161, %v1166, %v1167
      %v1169 = vrot.slane %v1112, 5
      %v1170 = vrot.slane %v1169, 4
      %v1171 = vrot.slane %v212, 5
      %v1172 = vsel %vm1161, %v1170, %v1171
      %v1173 = vrot.slane %v1171, 4
      %v1174 = vrot.slane %v258, 5
      %v1175 = vsel %vm1161, %v1173, %v1174
      %v1176 = vrot.slane %v1113, 5
      %v1177 = vrot.slane %v1176, 4
      %v1178 = vrot.slane %v214, 5
      %v1179 = vsel %vm1161, %v1177, %v1178
      %v1180 = vrot.slane %v1178, 4
      %v1181 = vrot.slane %v259, 5
      %v1182 = vsel %vm1161, %v1180, %v1181
      %v1183 = vrot.slane %v1114, 5
      %v1184 = vrot.slane %v1183, 4
      %v1185 = vrot.slane %v216, 5
      %v1186 = vsel %vm1161, %v1184, %v1185
      %v1187 = vrot.slane %v1185, 4
      %v1188 = vrot.slane %v260, 5
      %v1189 = vsel %vm1161, %v1187, %v1188
      %v1190 = vrot.slane %v1115, 5
      %v1191 = vrot.slane %v1190, 4
      %v1192 = vrot.slane %v218, 5
      %v1193 = vsel %vm1161, %v1191, %v1192
      %v1194 = vrot.slane %v1192, 4
      %v1195 = vrot.slane %v261, 5
      %v1196 = vsel %vm1161, %v1194, %v1195
      %v1197 = vrot.slane %v1116, 5
      %v1198 = vrot.slane %v1197, 4
      %v1199 = vrot.slane %v220, 5
      %v1200 = vsel %vm1161, %v1198, %v1199
      %v1201 = vrot.slane %v1199, 4
      %v1202 = vrot.slane %v262, 5
      %v1203 = vsel %vm1161, %v1201, %v1202
      %v1204 = vrot.slane %v1117, 5
      %v1205 = vrot.slane %v1204, 4
      %v1206 = vrot.slane %v222, 5
      %v1207 = vsel %vm1161, %v1205, %v1206
      %v1208 = vrot.slane %v1206, 4
      %v1209 = vrot.slane %v263, 5
      %v1210 = vsel %vm1161, %v1208, %v1209
      %v1211 = vrot.slane %v1118, 5
      %v1212 = vrot.slane %v1211, 4
      %v1213 = vrot.slane %v224, 5
      %v1214 = vsel %vm1161, %v1212, %v1213
      %v1215 = vrot.slane %v1213, 4
      %v1216 = vrot.slane %v264, 5
      %v1217 = vsel %vm1161, %v1215, %v1216
      %v1218 = vrot.slane %v1119, 5
      %v1219 = vrot.slane %v1218, 4
      %v1220 = vrot.slane %v226, 5
      %v1221 = vsel %vm1161, %v1219, %v1220
      %v1222 = vrot.slane %v1220, 4
      %v1223 = vrot.slane %v265, 5
      %v1224 = vsel %vm1161, %v1222, %v1223
      %v1225 = vrot.slane %v1120, 5
      %v1226 = vrot.slane %v1225, 4
      %v1227 = vrot.slane %v228, 5
      %v1228 = vsel %vm1161, %v1226, %v1227
      %v1229 = vrot.slane %v1227, 4
      %v1230 = vrot.slane %v266, 5
      %v1231 = vsel %vm1161, %v1229, %v1230
      %v1232 = vrot.slane %v1121, 5
      %v1233 = vrot.slane %v1232, 4
      %v1234 = vrot.slane %v230, 5
      %v1235 = vsel %vm1161, %v1233, %v1234
      %v1236 = vrot.slane %v1234, 4
      %v1237 = vrot.slane %v267, 5
      %v1238 = vsel %vm1161, %v1236, %v1237
      %v1239 = vrot.slane %v1122, 5
      %v1240 = vrot.slane %v1239, 4
      %v1241 = vrot.slane %v232, 5
      %v1242 = vsel %vm1161, %v1240, %v1241
      %v1243 = vrot.slane %v1241, 4
      %v1244 = vrot.slane %v268, 5
      %v1245 = vsel %vm1161, %v1243, %v1244
      %v1246 = vrot.slane %v1123, 5
      %v1247 = vrot.slane %v1246, 4
      %v1248 = vrot.slane %v234, 5
      %v1249 = vsel %vm1161, %v1247, %v1248
      %v1250 = vrot.slane %v1248, 4
      %v1251 = vrot.slane %v269, 5
      %v1252 = vsel %vm1161, %v1250, %v1251
      %v1253 = vrot.slane %v1124, 5
      %v1254 = vrot.slane %v1253, 4
      %v1255 = vrot.slane %v236, 5
      %v1256 = vsel %vm1161, %v1254, %v1255
      %v1257 = vrot.slane %v1255, 4
      %v1258 = vrot.slane %v270, 5
      %v1259 = vsel %vm1161, %v1257, %v1258
      %v1260 = vrot.slane %v1125, 5
      %v1261 = vrot.slane %v1260, 4
      %v1262 = vrot.slane %v238, 5
      %v1263 = vsel %vm1161, %v1261, %v1262
      %v1264 = vrot.slane %v1262, 4
      %v1265 = vrot.slane %v271, 5
      %v1266 = vsel %vm1161, %v1264, %v1265
      %v1267 = vrot.slane %v1126, 5
      %v1268 = vrot.slane %v1267, 4
      %v1269 = vrot.slane %v240, 5
      %v1270 = vsel %vm1161, %v1268, %v1269
      %v1271 = vrot.slane %v1269, 4
      %v1272 = vrot.slane %v272, 5
      %v1273 = vsel %vm1161, %v1271, %v1272
      %s1274 = scalar_lea.vmem %s1, 128
      %v1275 = vld [vmem:[%s1274] sm:$0xf]
      %v1276 = vld [vmem:[%s1274 + $0x4] sm:$0xf]
      %v1277 = vld [vmem:[%s1274 + $0x8] sm:$0xf]
      %v1278 = vld [vmem:[%s1274 + $0xc] sm:$0xf]
      %v1279 = vld [vmem:[%s1274 + $0x10] sm:$0xf]
      %v1280 = vld [vmem:[%s1274 + $0x14] sm:$0xf]
      %v1281 = vld [vmem:[%s1274 + $0x18] sm:$0xf]
      %v1282 = vld [vmem:[%s1274 + $0x1c] sm:$0xf]
      %v1283 = vld [vmem:[%s1274 + $0x20] sm:$0xf]
      %v1284 = vld [vmem:[%s1274 + $0x24] sm:$0xf]
      %v1285 = vld [vmem:[%s1274 + $0x28] sm:$0xf]
      %v1286 = vld [vmem:[%s1274 + $0x2c] sm:$0xf]
      %v1287 = vld [vmem:[%s1274 + $0x30] sm:$0xf]
      %v1288 = vld [vmem:[%s1274 + $0x34] sm:$0xf]
      %v1289 = vld [vmem:[%s1274 + $0x38] sm:$0xf]
      %v1290 = vld [vmem:[%s1274 + $0x3c] sm:$0xf]
      %v1291 = vunpack.c.l.b16 %v1165
      %v1292 = vunpack.c.l.b16 %v1168
      %v1293 = vunpack.c.l.b16 %v1172
      %v1294 = vunpack.c.l.b16 %v1175
      %v1295 = vunpack.c.l.b16 %v1179
      %v1296 = vunpack.c.l.b16 %v1182
      %v1297 = vunpack.c.l.b16 %v1186
      %v1298 = vunpack.c.l.b16 %v1189
      %v1299 = vunpack.c.l.b16 %v1193
      %v1300 = vunpack.c.l.b16 %v1196
      %v1301 = vunpack.c.l.b16 %v1200
      %v1302 = vunpack.c.l.b16 %v1203
      %v1303 = vunpack.c.l.b16 %v1207
      %v1304 = vunpack.c.l.b16 %v1210
      %v1305 = vunpack.c.l.b16 %v1214
      %v1306 = vunpack.c.l.b16 %v1217
      %v1307 = vunpack.c.l.b16 %v1221
      %v1308 = vunpack.c.l.b16 %v1224
      %v1309 = vunpack.c.l.b16 %v1228
      %v1310 = vunpack.c.l.b16 %v1231
      %v1311 = vunpack.c.l.b16 %v1235
      %v1312 = vunpack.c.l.b16 %v1238
      %v1313 = vunpack.c.l.b16 %v1242
      %v1314 = vunpack.c.l.b16 %v1245
      %v1315 = vunpack.c.l.b16 %v1249
      %v1316 = vunpack.c.l.b16 %v1252
      %v1317 = vunpack.c.l.b16 %v1256
      %v1318 = vunpack.c.l.b16 %v1259
      %v1319 = vunpack.c.l.b16 %v1263
      %v1320 = vunpack.c.l.b16 %v1266
      %v1321 = vunpack.c.l.b16 %v1270
      %v1322 = vunpack.c.l.b16 %v1273
      %v1323 = vpack.c.b16 %v1292, %v1291
      %v1324 = vpack.c.b16 %v1294, %v1293
      %v1325 = vpack.c.b16 %v1296, %v1295
      %v1326 = vpack.c.b16 %v1298, %v1297
      %v1327 = vpack.c.b16 %v1300, %v1299
      %v1328 = vpack.c.b16 %v1302, %v1301
      %v1329 = vpack.c.b16 %v1304, %v1303
      %v1330 = vpack.c.b16 %v1306, %v1305
      %v1331 = vpack.c.b16 %v1308, %v1307
      %v1332 = vpack.c.b16 %v1310, %v1309
      %v1333 = vpack.c.b16 %v1312, %v1311
      %v1334 = vpack.c.b16 %v1314, %v1313
      %v1335 = vpack.c.b16 %v1316, %v1315
      %v1336 = vpack.c.b16 %v1318, %v1317
      %v1337 = vpack.c.b16 %v1320, %v1319
      %v1338 = vpack.c.b16 %v1322, %v1321
      %v1371 = vunpack.c.l.b16 %v1275
      %v1372 = vunpack.c.l.b16 %v1276
      %v1373 = vunpack.c.l.b16 %v1277
      %v1374 = vunpack.c.l.b16 %v1278
      %v1375 = vunpack.c.l.b16 %v1279
      %v1376 = vunpack.c.l.b16 %v1280
      %v1377 = vunpack.c.l.b16 %v1281
      %v1378 = vunpack.c.l.b16 %v1282
      %v1379 = vunpack.c.l.b16 %v1283
      %v1380 = vunpack.c.l.b16 %v1284
      %v1381 = vunpack.c.l.b16 %v1285
      %v1382 = vunpack.c.l.b16 %v1286
      %v1383 = vunpack.c.l.b16 %v1287
      %v1384 = vunpack.c.l.b16 %v1288
      %v1385 = vunpack.c.l.b16 %v1289
      %v1386 = vunpack.c.l.b16 %v1290
      %v1387 = vpack.c.b16 %v1372, %v1371
      %v1388 = vpack.c.b16 %v1374, %v1373
      %v1389 = vpack.c.b16 %v1376, %v1375
      %v1390 = vpack.c.b16 %v1378, %v1377
      %v1391 = vpack.c.b16 %v1380, %v1379
      %v1392 = vpack.c.b16 %v1382, %v1381
      %v1393 = vpack.c.b16 %v1384, %v1383
      %v1394 = vpack.c.b16 %v1386, %v1385
      %1403 = vmatpush.bf16.msra.mxu0 %v1394
      %1404 = vmatpush.bf16.msra.mxu0 %v1393
      %1405 = vmatpush.bf16.msra.mxu0 %v1392
      %1406 = vmatpush.bf16.msra.mxu0 %v1391
      %1407 = vmatpush.bf16.msra.mxu0 %v1390
      %1408 = vmatpush.bf16.msra.mxu0 %v1389
      %1409 = vmatpush.bf16.msra.mxu0 %v1388
      %1410 = vmatpush.bf16.msra.mxu0 %v1387
      %1411 = vmatmul.bf16.gmra.mxu0 %v1323
      %v1412 = vpop.f32.mrf.mxu0
      %v1413 = vadd.f32 0.0, %v1412
      %v1414 = vpop.f32.mrf.mxu0
      %v1415 = vadd.f32 0.0, %v1414
      %1416 = vmatmul.bf16.gmra.mxu0 %v1324
      %v1417 = vpop.f32.mrf.mxu0
      %v1418 = vadd.f32 0.0, %v1417
      %v1419 = vpop.f32.mrf.mxu0
      %v1420 = vadd.f32 0.0, %v1419
      %1421 = vmatmul.bf16.gmra.mxu0 %v1325
      %v1422 = vpop.f32.mrf.mxu0
      %v1423 = vadd.f32 0.0, %v1422
      %v1424 = vpop.f32.mrf.mxu0
      %v1425 = vadd.f32 0.0, %v1424
      %1426 = vmatmul.bf16.gmra.mxu0 %v1326
      %v1427 = vpop.f32.mrf.mxu0
      %v1428 = vadd.f32 0.0, %v1427
      %v1429 = vpop.f32.mrf.mxu0
      %v1430 = vadd.f32 0.0, %v1429
      %1431 = vmatmul.bf16.gmra.mxu0 %v1327
      %v1432 = vpop.f32.mrf.mxu0
      %v1433 = vadd.f32 0.0, %v1432
      %v1434 = vpop.f32.mrf.mxu0
      %v1435 = vadd.f32 0.0, %v1434
      %1436 = vmatmul.bf16.gmra.mxu0 %v1328
      %v1437 = vpop.f32.mrf.mxu0
      %v1438 = vadd.f32 0.0, %v1437
      %v1439 = vpop.f32.mrf.mxu0
      %v1440 = vadd.f32 0.0, %v1439
      %1441 = vmatmul.bf16.gmra.mxu0 %v1329
      %v1442 = vpop.f32.mrf.mxu0
      %v1443 = vadd.f32 0.0, %v1442
      %v1444 = vpop.f32.mrf.mxu0
      %v1445 = vadd.f32 0.0, %v1444
      %1446 = vmatmul.bf16.gmra.mxu0 %v1330
      %v1447 = vpop.f32.mrf.mxu0
      %v1448 = vadd.f32 0.0, %v1447
      %v1449 = vpop.f32.mrf.mxu0
      %v1450 = vadd.f32 0.0, %v1449
      %1451 = vmatmul.bf16.gmra.mxu0 %v1331
      %v1452 = vpop.f32.mrf.mxu0
      %v1453 = vadd.f32 0.0, %v1452
      %v1454 = vpop.f32.mrf.mxu0
      %v1455 = vadd.f32 0.0, %v1454
      %1456 = vmatmul.bf16.gmra.mxu0 %v1332
      %v1457 = vpop.f32.mrf.mxu0
      %v1458 = vadd.f32 0.0, %v1457
      %v1459 = vpop.f32.mrf.mxu0
      %v1460 = vadd.f32 0.0, %v1459
      %1461 = vmatmul.bf16.gmra.mxu0 %v1333
      %v1462 = vpop.f32.mrf.mxu0
      %v1463 = vadd.f32 0.0, %v1462
      %v1464 = vpop.f32.mrf.mxu0
      %v1465 = vadd.f32 0.0, %v1464
      %1466 = vmatmul.bf16.gmra.mxu0 %v1334
      %v1467 = vpop.f32.mrf.mxu0
      %v1468 = vadd.f32 0.0, %v1467
      %v1469 = vpop.f32.mrf.mxu0
      %v1470 = vadd.f32 0.0, %v1469
      %1471 = vmatmul.bf16.gmra.mxu0 %v1335
      %v1472 = vpop.f32.mrf.mxu0
      %v1473 = vadd.f32 0.0, %v1472
      %v1474 = vpop.f32.mrf.mxu0
      %v1475 = vadd.f32 0.0, %v1474
      %1476 = vmatmul.bf16.gmra.mxu0 %v1336
      %v1477 = vpop.f32.mrf.mxu0
      %v1478 = vadd.f32 0.0, %v1477
      %v1479 = vpop.f32.mrf.mxu0
      %v1480 = vadd.f32 0.0, %v1479
      %1481 = vmatmul.bf16.gmra.mxu0 %v1337
      %v1482 = vpop.f32.mrf.mxu0
      %v1483 = vadd.f32 0.0, %v1482
      %v1484 = vpop.f32.mrf.mxu0
      %v1485 = vadd.f32 0.0, %v1484
      %1486 = vmatmul.bf16.gmra.mxu0 %v1338
      %v1487 = vpop.f32.mrf.mxu0
      %v1488 = vadd.f32 0.0, %v1487
      %v1489 = vpop.f32.mrf.mxu0
      %v1490 = vadd.f32 0.0, %v1489
      %1491 = vdwg.mxu0
      %v1492 = vadd.f32 %v1032, %v1413
      %v1493 = vadd.f32 %v1034, %v1415
      %v1494 = vadd.f32 %v1037, %v1418
      %v1495 = vadd.f32 %v1039, %v1420
      %v1496 = vadd.f32 %v1042, %v1423
      %v1497 = vadd.f32 %v1044, %v1425
      %v1498 = vadd.f32 %v1047, %v1428
      %v1499 = vadd.f32 %v1049, %v1430
      %v1500 = vadd.f32 %v1052, %v1433
      %v1501 = vadd.f32 %v1054, %v1435
      %v1502 = vadd.f32 %v1057, %v1438
      %v1503 = vadd.f32 %v1059, %v1440
      %v1504 = vadd.f32 %v1062, %v1443
      %v1505 = vadd.f32 %v1064, %v1445
      %v1506 = vadd.f32 %v1067, %v1448
      %v1507 = vadd.f32 %v1069, %v1450
      %v1508 = vadd.f32 %v1072, %v1453
      %v1509 = vadd.f32 %v1074, %v1455
      %v1510 = vadd.f32 %v1077, %v1458
      %v1511 = vadd.f32 %v1079, %v1460
      %v1512 = vadd.f32 %v1082, %v1463
      %v1513 = vadd.f32 %v1084, %v1465
      %v1514 = vadd.f32 %v1087, %v1468
      %v1515 = vadd.f32 %v1089, %v1470
      %v1516 = vadd.f32 %v1092, %v1473
      %v1517 = vadd.f32 %v1094, %v1475
      %v1518 = vadd.f32 %v1097, %v1478
      %v1519 = vadd.f32 %v1099, %v1480
      %v1520 = vadd.f32 %v1102, %v1483
      %v1521 = vadd.f32 %v1104, %v1485
      %v1522 = vadd.f32 %v1107, %v1488
      %v1523 = vadd.f32 %v1109, %v1490
      %s1524 = scalar_lea.vmem %s199, 12
      %v1525 = vld [vmem:[%s1524] sm:$0xf]
      %v1526 = vld [vmem:[%s1524 + $0x4] sm:$0xf]
      %v1527 = vld [vmem:[%s1524 + $0xc] sm:$0xf]
      %v1528 = vld [vmem:[%s1524 + $0x10] sm:$0xf]
      %v1529 = vld [vmem:[%s1524 + $0x18] sm:$0xf]
      %v1530 = vld [vmem:[%s1524 + $0x1c] sm:$0xf]
      %v1531 = vld [vmem:[%s1524 + $0x24] sm:$0xf]
      %v1532 = vld [vmem:[%s1524 + $0x28] sm:$0xf]
      %v1533 = vld [vmem:[%s1524 + $0x30] sm:$0xf]
      %v1534 = vld [vmem:[%s1524 + $0x34] sm:$0xf]
      %v1535 = vld [vmem:[%s1524 + $0x3c] sm:$0xf]
      %v1536 = vld [vmem:[%s1524 + $0x40] sm:$0xf]
      %v1537 = vld [vmem:[%s1524 + $0x48] sm:$0xf]
      %v1538 = vld [vmem:[%s1524 + $0x4c] sm:$0xf]
      %v1539 = vld [vmem:[%s1524 + $0x54] sm:$0xf]
      %v1540 = vld [vmem:[%s1524 + $0x58] sm:$0xf]
      %v1541 = vld [vmem:[%s1524 + $0x60] sm:$0xf]
      %v1542 = vld [vmem:[%s1524 + $0x64] sm:$0xf]
      %v1543 = vld [vmem:[%s1524 + $0x6c] sm:$0xf]
      %v1544 = vld [vmem:[%s1524 + $0x70] sm:$0xf]
      %v1545 = vld [vmem:[%s1524 + $0x78] sm:$0xf]
      %v1546 = vld [vmem:[%s1524 + $0x7c] sm:$0xf]
      %v1547 = vld [vmem:[%s1524 + $0x84] sm:$0xf]
      %v1548 = vld [vmem:[%s1524 + $0x88] sm:$0xf]
      %v1549 = vld [vmem:[%s1524 + $0x90] sm:$0xf]
      %v1550 = vld [vmem:[%s1524 + $0x94] sm:$0xf]
      %v1551 = vld [vmem:[%s1524 + $0x9c] sm:$0xf]
      %v1552 = vld [vmem:[%s1524 + $0xa0] sm:$0xf]
      %v1553 = vld [vmem:[%s1524 + $0xa8] sm:$0xf]
      %v1554 = vld [vmem:[%s1524 + $0xac] sm:$0xf]
      %v1555 = vld [vmem:[%s1524 + $0xb4] sm:$0xf]
      %v1556 = vld [vmem:[%s1524 + $0xb8] sm:$0xf]
      %s1557 = scalar_lea.vmem %s1, 192
      %v1558 = vld [vmem:[%s1557] sm:$0xf]
      %v1559 = vld [vmem:[%s1557 + $0x4] sm:$0xf]
      %v1560 = vld [vmem:[%s1557 + $0x8] sm:$0xf]
      %v1561 = vld [vmem:[%s1557 + $0xc] sm:$0xf]
      %v1562 = vld [vmem:[%s1557 + $0x10] sm:$0xf]
      %v1563 = vld [vmem:[%s1557 + $0x14] sm:$0xf]
      %v1564 = vld [vmem:[%s1557 + $0x18] sm:$0xf]
      %v1565 = vld [vmem:[%s1557 + $0x1c] sm:$0xf]
      %v1566 = vld [vmem:[%s1557 + $0x20] sm:$0xf]
      %v1567 = vld [vmem:[%s1557 + $0x24] sm:$0xf]
      %v1568 = vld [vmem:[%s1557 + $0x28] sm:$0xf]
      %v1569 = vld [vmem:[%s1557 + $0x2c] sm:$0xf]
      %v1570 = vld [vmem:[%s1557 + $0x30] sm:$0xf]
      %v1571 = vld [vmem:[%s1557 + $0x34] sm:$0xf]
      %v1572 = vld [vmem:[%s1557 + $0x38] sm:$0xf]
      %v1573 = vld [vmem:[%s1557 + $0x3c] sm:$0xf]
      %v1606 = vunpack.c.l.b16 %v1525
      %v1607 = vunpack.c.l.b16 %v1526
      %v1608 = vunpack.c.l.b16 %v1527
      %v1609 = vunpack.c.l.b16 %v1528
      %v1610 = vunpack.c.l.b16 %v1529
      %v1611 = vunpack.c.l.b16 %v1530
      %v1612 = vunpack.c.l.b16 %v1531
      %v1613 = vunpack.c.l.b16 %v1532
      %v1614 = vunpack.c.l.b16 %v1533
      %v1615 = vunpack.c.l.b16 %v1534
      %v1616 = vunpack.c.l.b16 %v1535
      %v1617 = vunpack.c.l.b16 %v1536
      %v1618 = vunpack.c.l.b16 %v1537
      %v1619 = vunpack.c.l.b16 %v1538
      %v1620 = vunpack.c.l.b16 %v1539
      %v1621 = vunpack.c.l.b16 %v1540
      %v1622 = vunpack.c.l.b16 %v1541
      %v1623 = vunpack.c.l.b16 %v1542
      %v1624 = vunpack.c.l.b16 %v1543
      %v1625 = vunpack.c.l.b16 %v1544
      %v1626 = vunpack.c.l.b16 %v1545
      %v1627 = vunpack.c.l.b16 %v1546
      %v1628 = vunpack.c.l.b16 %v1547
      %v1629 = vunpack.c.l.b16 %v1548
      %v1630 = vunpack.c.l.b16 %v1549
      %v1631 = vunpack.c.l.b16 %v1550
      %v1632 = vunpack.c.l.b16 %v1551
      %v1633 = vunpack.c.l.b16 %v1552
      %v1634 = vunpack.c.l.b16 %v1553
      %v1635 = vunpack.c.l.b16 %v1554
      %v1636 = vunpack.c.l.b16 %v1555
      %v1637 = vunpack.c.l.b16 %v1556
      %v1638 = vpack.c.b16 %v1607, %v1606
      %v1639 = vpack.c.b16 %v1609, %v1608
      %v1640 = vpack.c.b16 %v1611, %v1610
      %v1641 = vpack.c.b16 %v1613, %v1612
      %v1642 = vpack.c.b16 %v1615, %v1614
      %v1643 = vpack.c.b16 %v1617, %v1616
      %v1644 = vpack.c.b16 %v1619, %v1618
      %v1645 = vpack.c.b16 %v1621, %v1620
      %v1646 = vpack.c.b16 %v1623, %v1622
      %v1647 = vpack.c.b16 %v1625, %v1624
      %v1648 = vpack.c.b16 %v1627, %v1626
      %v1649 = vpack.c.b16 %v1629, %v1628
      %v1650 = vpack.c.b16 %v1631, %v1630
      %v1651 = vpack.c.b16 %v1633, %v1632
      %v1652 = vpack.c.b16 %v1635, %v1634
      %v1653 = vpack.c.b16 %v1637, %v1636
      %v1686 = vunpack.c.l.b16 %v1558
      %v1687 = vunpack.c.l.b16 %v1559
      %v1688 = vunpack.c.l.b16 %v1560
      %v1689 = vunpack.c.l.b16 %v1561
      %v1690 = vunpack.c.l.b16 %v1562
      %v1691 = vunpack.c.l.b16 %v1563
      %v1692 = vunpack.c.l.b16 %v1564
      %v1693 = vunpack.c.l.b16 %v1565
      %v1694 = vunpack.c.l.b16 %v1566
      %v1695 = vunpack.c.l.b16 %v1567
      %v1696 = vunpack.c.l.b16 %v1568
      %v1697 = vunpack.c.l.b16 %v1569
      %v1698 = vunpack.c.l.b16 %v1570
      %v1699 = vunpack.c.l.b16 %v1571
      %v1700 = vunpack.c.l.b16 %v1572
      %v1701 = vunpack.c.l.b16 %v1573
      %v1702 = vpack.c.b16 %v1687, %v1686
      %v1703 = vpack.c.b16 %v1689, %v1688
      %v1704 = vpack.c.b16 %v1691, %v1690
      %v1705 = vpack.c.b16 %v1693, %v1692
      %v1706 = vpack.c.b16 %v1695, %v1694
      %v1707 = vpack.c.b16 %v1697, %v1696
      %v1708 = vpack.c.b16 %v1699, %v1698
      %v1709 = vpack.c.b16 %v1701, %v1700
      %1718 = vmatpush.bf16.msra.mxu0 %v1709
      %1719 = vmatpush.bf16.msra.mxu0 %v1708
      %1720 = vmatpush.bf16.msra.mxu0 %v1707
      %1721 = vmatpush.bf16.msra.mxu0 %v1706
      %1722 = vmatpush.bf16.msra.mxu0 %v1705
      %1723 = vmatpush.bf16.msra.mxu0 %v1704
      %1724 = vmatpush.bf16.msra.mxu0 %v1703
      %1725 = vmatpush.bf16.msra.mxu0 %v1702
      %1726 = vmatmul.bf16.gmra.mxu0 %v1638
      %v1727 = vpop.f32.mrf.mxu0
      %v1728 = vadd.f32 0.0, %v1727
      %v1729 = vpop.f32.mrf.mxu0
      %v1730 = vadd.f32 0.0, %v1729
      %1731 = vmatmul.bf16.gmra.mxu0 %v1639
      %v1732 = vpop.f32.mrf.mxu0
      %v1733 = vadd.f32 0.0, %v1732
      %v1734 = vpop.f32.mrf.mxu0
      %v1735 = vadd.f32 0.0, %v1734
      %1736 = vmatmul.bf16.gmra.mxu0 %v1640
      %v1737 = vpop.f32.mrf.mxu0
      %v1738 = vadd.f32 0.0, %v1737
      %v1739 = vpop.f32.mrf.mxu0
      %v1740 = vadd.f32 0.0, %v1739
      %1741 = vmatmul.bf16.gmra.mxu0 %v1641
      %v1742 = vpop.f32.mrf.mxu0
      %v1743 = vadd.f32 0.0, %v1742
      %v1744 = vpop.f32.mrf.mxu0
      %v1745 = vadd.f32 0.0, %v1744
      %1746 = vmatmul.bf16.gmra.mxu0 %v1642
      %v1747 = vpop.f32.mrf.mxu0
      %v1748 = vadd.f32 0.0, %v1747
      %v1749 = vpop.f32.mrf.mxu0
      %v1750 = vadd.f32 0.0, %v1749
      %1751 = vmatmul.bf16.gmra.mxu0 %v1643
      %v1752 = vpop.f32.mrf.mxu0
      %v1753 = vadd.f32 0.0, %v1752
      %v1754 = vpop.f32.mrf.mxu0
      %v1755 = vadd.f32 0.0, %v1754
      %1756 = vmatmul.bf16.gmra.mxu0 %v1644
      %v1757 = vpop.f32.mrf.mxu0
      %v1758 = vadd.f32 0.0, %v1757
      %v1759 = vpop.f32.mrf.mxu0
      %v1760 = vadd.f32 0.0, %v1759
      %1761 = vmatmul.bf16.gmra.mxu0 %v1645
      %v1762 = vpop.f32.mrf.mxu0
      %v1763 = vadd.f32 0.0, %v1762
      %v1764 = vpop.f32.mrf.mxu0
      %v1765 = vadd.f32 0.0, %v1764
      %1766 = vmatmul.bf16.gmra.mxu0 %v1646
      %v1767 = vpop.f32.mrf.mxu0
      %v1768 = vadd.f32 0.0, %v1767
      %v1769 = vpop.f32.mrf.mxu0
      %v1770 = vadd.f32 0.0, %v1769
      %1771 = vmatmul.bf16.gmra.mxu0 %v1647
      %v1772 = vpop.f32.mrf.mxu0
      %v1773 = vadd.f32 0.0, %v1772
      %v1774 = vpop.f32.mrf.mxu0
      %v1775 = vadd.f32 0.0, %v1774
      %1776 = vmatmul.bf16.gmra.mxu0 %v1648
      %v1777 = vpop.f32.mrf.mxu0
      %v1778 = vadd.f32 0.0, %v1777
      %v1779 = vpop.f32.mrf.mxu0
      %v1780 = vadd.f32 0.0, %v1779
      %1781 = vmatmul.bf16.gmra.mxu0 %v1649
      %v1782 = vpop.f32.mrf.mxu0
      %v1783 = vadd.f32 0.0, %v1782
      %v1784 = vpop.f32.mrf.mxu0
      %v1785 = vadd.f32 0.0, %v1784
      %1786 = vmatmul.bf16.gmra.mxu0 %v1650
      %v1787 = vpop.f32.mrf.mxu0
      %v1788 = vadd.f32 0.0, %v1787
      %v1789 = vpop.f32.mrf.mxu0
      %v1790 = vadd.f32 0.0, %v1789
      %1791 = vmatmul.bf16.gmra.mxu0 %v1651
      %v1792 = vpop.f32.mrf.mxu0
      %v1793 = vadd.f32 0.0, %v1792
      %v1794 = vpop.f32.mrf.mxu0
      %v1795 = vadd.f32 0.0, %v1794
      %1796 = vmatmul.bf16.gmra.mxu0 %v1652
      %v1797 = vpop.f32.mrf.mxu0
      %v1798 = vadd.f32 0.0, %v1797
      %v1799 = vpop.f32.mrf.mxu0
      %v1800 = vadd.f32 0.0, %v1799
      %1801 = vmatmul.bf16.gmra.mxu0 %v1653
      %v1802 = vpop.f32.mrf.mxu0
      %v1803 = vadd.f32 0.0, %v1802
      %v1804 = vpop.f32.mrf.mxu0
      %v1805 = vadd.f32 0.0, %v1804
      %1806 = vdwg.mxu0
      %v1807 = vadd.f32 %v1492, %v1728
      %v1808 = vadd.f32 %v1493, %v1730
      %v1809 = vadd.f32 %v1494, %v1733
      %v1810 = vadd.f32 %v1495, %v1735
      %v1811 = vadd.f32 %v1496, %v1738
      %v1812 = vadd.f32 %v1497, %v1740
      %v1813 = vadd.f32 %v1498, %v1743
      %v1814 = vadd.f32 %v1499, %v1745
      %v1815 = vadd.f32 %v1500, %v1748
      %v1816 = vadd.f32 %v1501, %v1750
      %v1817 = vadd.f32 %v1502, %v1753
      %v1818 = vadd.f32 %v1503, %v1755
      %v1819 = vadd.f32 %v1504, %v1758
      %v1820 = vadd.f32 %v1505, %v1760
      %v1821 = vadd.f32 %v1506, %v1763
      %v1822 = vadd.f32 %v1507, %v1765
      %v1823 = vadd.f32 %v1508, %v1768
      %v1824 = vadd.f32 %v1509, %v1770
      %v1825 = vadd.f32 %v1510, %v1773
      %v1826 = vadd.f32 %v1511, %v1775
      %v1827 = vadd.f32 %v1512, %v1778
      %v1828 = vadd.f32 %v1513, %v1780
      %v1829 = vadd.f32 %v1514, %v1783
      %v1830 = vadd.f32 %v1515, %v1785
      %v1831 = vadd.f32 %v1516, %v1788
      %v1832 = vadd.f32 %v1517, %v1790
      %v1833 = vadd.f32 %v1518, %v1793
      %v1834 = vadd.f32 %v1519, %v1795
      %v1835 = vadd.f32 %v1520, %v1798
      %v1836 = vadd.f32 %v1521, %v1800
      %v1837 = vadd.f32 %v1522, %v1803
      %v1838 = vadd.f32 %v1523, %v1805
      %v1839 = vld [vmem:[%s1524] sm:$0xf]
      %v1840 = vld [vmem:[%s1524 + $0x4] sm:$0xf]
      %v1841 = vld [vmem:[%s1524 + $0x8] sm:$0x1]
      %v1842 = vld [vmem:[%s1524 + $0xc] sm:$0xf]
      %v1843 = vld [vmem:[%s1524 + $0x10] sm:$0xf]
      %v1844 = vld [vmem:[%s1524 + $0x14] sm:$0x1]
      %v1845 = vld [vmem:[%s1524 + $0x18] sm:$0xf]
      %v1846 = vld [vmem:[%s1524 + $0x1c] sm:$0xf]
      %v1847 = vld [vmem:[%s1524 + $0x20] sm:$0x1]
      %v1848 = vld [vmem:[%s1524 + $0x24] sm:$0xf]
      %v1849 = vld [vmem:[%s1524 + $0x28] sm:$0xf]
      %v1850 = vld [vmem:[%s1524 + $0x2c] sm:$0x1]
      %v1851 = vld [vmem:[%s1524 + $0x30] sm:$0xf]
      %v1852 = vld [vmem:[%s1524 + $0x34] sm:$0xf]
      %v1853 = vld [vmem:[%s1524 + $0x38] sm:$0x1]
      %v1854 = vld [vmem:[%s1524 + $0x3c] sm:$0xf]
      %v1855 = vld [vmem:[%s1524 + $0x40] sm:$0xf]
      %v1856 = vld [vmem:[%s1524 + $0x44] sm:$0x1]
      %v1857 = vld [vmem:[%s1524 + $0x48] sm:$0xf]
      %v1858 = vld [vmem:[%s1524 + $0x4c] sm:$0xf]
      %v1859 = vld [vmem:[%s1524 + $0x50] sm:$0x1]
      %v1860 = vld [vmem:[%s1524 + $0x54] sm:$0xf]
      %v1861 = vld [vmem:[%s1524 + $0x58] sm:$0xf]
      %v1862 = vld [vmem:[%s1524 + $0x5c] sm:$0x1]
      %v1863 = vld [vmem:[%s1524 + $0x60] sm:$0xf]
      %v1864 = vld [vmem:[%s1524 + $0x64] sm:$0xf]
      %v1865 = vld [vmem:[%s1524 + $0x68] sm:$0x1]
      %v1866 = vld [vmem:[%s1524 + $0x6c] sm:$0xf]
      %v1867 = vld [vmem:[%s1524 + $0x70] sm:$0xf]
      %v1868 = vld [vmem:[%s1524 + $0x74] sm:$0x1]
      %v1869 = vld [vmem:[%s1524 + $0x78] sm:$0xf]
      %v1870 = vld [vmem:[%s1524 + $0x7c] sm:$0xf]
      %v1871 = vld [vmem:[%s1524 + $0x80] sm:$0x1]
      %v1872 = vld [vmem:[%s1524 + $0x84] sm:$0xf]
      %v1873 = vld [vmem:[%s1524 + $0x88] sm:$0xf]
      %v1874 = vld [vmem:[%s1524 + $0x8c] sm:$0x1]
      %v1875 = vld [vmem:[%s1524 + $0x90] sm:$0xf]
      %v1876 = vld [vmem:[%s1524 + $0x94] sm:$0xf]
      %v1877 = vld [vmem:[%s1524 + $0x98] sm:$0x1]
      %v1878 = vld [vmem:[%s1524 + $0x9c] sm:$0xf]
      %v1879 = vld [vmem:[%s1524 + $0xa0] sm:$0xf]
      %v1880 = vld [vmem:[%s1524 + $0xa4] sm:$0x1]
      %v1881 = vld [vmem:[%s1524 + $0xa8] sm:$0xf]
      %v1882 = vld [vmem:[%s1524 + $0xac] sm:$0xf]
      %v1883 = vld [vmem:[%s1524 + $0xb0] sm:$0x1]
      %v1884 = vld [vmem:[%s1524 + $0xb4] sm:$0xf]
      %v1885 = vld [vmem:[%s1524 + $0xb8] sm:$0xf]
      %v1886 = vld [vmem:[%s1524 + $0xbc] sm:$0x1]
      %v1888 = vshrl.u32 %v1839, 16
      %v1890 = vrot.slane %v1888, 4
      %v1891 = vshll.u32 %v1839, 16
      %v1893 = vrot.slane %v1891, 5
      %v1894 = vor.u32 %v1890, %v1893
      %v1895 = vrot.slane %v1894, 4
      %v1897 = vshll.u32 %v1840, 16
      %v1899 = vrot.slane %v1897, 5
      %v1900 = vsel %vm275, %v1895, %v1899
      %v1901 = vshrl.u32 %v1840, 16
      %v1903 = vrot.slane %v1901, 4
      %v1904 = vor.u32 %v1903, %v1899
      %v1905 = vrot.slane %v1904, 4
      %v1907 = vshll.u32 %v1841, 16
      %v1909 = vrot.slane %v1907, 5
      %v1910 = vsel %vm275, %v1905, %v1909
      %v1912 = vshrl.u32 %v1842, 16
      %v1914 = vrot.slane %v1912, 4
      %v1915 = vshll.u32 %v1842, 16
      %v1917 = vrot.slane %v1915, 5
      %v1918 = vor.u32 %v1914, %v1917
      %v1919 = vrot.slane %v1918, 4
      %v1921 = vshll.u32 %v1843, 16
      %v1923 = vrot.slane %v1921, 5
      %v1924 = vsel %vm275, %v1919, %v1923
      %v1925 = vshrl.u32 %v1843, 16
      %v1927 = vrot.slane %v1925, 4
      %v1928 = vor.u32 %v1927, %v1923
      %v1929 = vrot.slane %v1928, 4
      %v1931 = vshll.u32 %v1844, 16
      %v1933 = vrot.slane %v1931, 5
      %v1934 = vsel %vm275, %v1929, %v1933
      %v1936 = vshrl.u32 %v1845, 16
      %v1938 = vrot.slane %v1936, 4
      %v1939 = vshll.u32 %v1845, 16
      %v1941 = vrot.slane %v1939, 5
      %v1942 = vor.u32 %v1938, %v1941
      %v1943 = vrot.slane %v1942, 4
      %v1945 = vshll.u32 %v1846, 16
      %v1947 = vrot.slane %v1945, 5
      %v1948 = vsel %vm275, %v1943, %v1947
      %v1949 = vshrl.u32 %v1846, 16
      %v1951 = vrot.slane %v1949, 4
      %v1952 = vor.u32 %v1951, %v1947
      %v1953 = vrot.slane %v1952, 4
      %v1955 = vshll.u32 %v1847, 16
      %v1957 = vrot.slane %v1955, 5
      %v1958 = vsel %vm275, %v1953, %v1957
      %v1960 = vshrl.u32 %v1848, 16
      %v1962 = vrot.slane %v1960, 4
      %v1963 = vshll.u32 %v1848, 16
      %v1965 = vrot.slane %v1963, 5
      %v1966 = vor.u32 %v1962, %v1965
      %v1967 = vrot.slane %v1966, 4
      %v1969 = vshll.u32 %v1849, 16
      %v1971 = vrot.slane %v1969, 5
      %v1972 = vsel %vm275, %v1967, %v1971
      %v1973 = vshrl.u32 %v1849, 16
      %v1975 = vrot.slane %v1973, 4
      %v1976 = vor.u32 %v1975, %v1971
      %v1977 = vrot.slane %v1976, 4
      %v1979 = vshll.u32 %v1850, 16
      %v1981 = vrot.slane %v1979, 5
      %v1982 = vsel %vm275, %v1977, %v1981
      %v1984 = vshrl.u32 %v1851, 16
      %v1986 = vrot.slane %v1984, 4
      %v1987 = vshll.u32 %v1851, 16
      %v1989 = vrot.slane %v1987, 5
      %v1990 = vor.u32 %v1986, %v1989
      %v1991 = vrot.slane %v1990, 4
      %v1993 = vshll.u32 %v1852, 16
      %v1995 = vrot.slane %v1993, 5
      %v1996 = vsel %vm275, %v1991, %v1995
      %v1997 = vshrl.u32 %v1852, 16
      %v1999 = vrot.slane %v1997, 4
      %v2000 = vor.u32 %v1999, %v1995
      %v2001 = vrot.slane %v2000, 4
      %v2003 = vshll.u32 %v1853, 16
      %v2005 = vrot.slane %v2003, 5
      %v2006 = vsel %vm275, %v2001, %v2005
      %v2008 = vshrl.u32 %v1854, 16
      %v2010 = vrot.slane %v2008, 4
      %v2011 = vshll.u32 %v1854, 16
      %v2013 = vrot.slane %v2011, 5
      %v2014 = vor.u32 %v2010, %v2013
      %v2015 = vrot.slane %v2014, 4
      %v2017 = vshll.u32 %v1855, 16
      %v2019 = vrot.slane %v2017, 5
      %v2020 = vsel %vm275, %v2015, %v2019
      %v2021 = vshrl.u32 %v1855, 16
      %v2023 = vrot.slane %v2021, 4
      %v2024 = vor.u32 %v2023, %v2019
      %v2025 = vrot.slane %v2024, 4
      %v2027 = vshll.u32 %v1856, 16
      %v2029 = vrot.slane %v2027, 5
      %v2030 = vsel %vm275, %v2025, %v2029
      %v2032 = vshrl.u32 %v1857, 16
      %v2034 = vrot.slane %v2032, 4
      %v2035 = vshll.u32 %v1857, 16
      %v2037 = vrot.slane %v2035, 5
      %v2038 = vor.u32 %v2034, %v2037
      %v2039 = vrot.slane %v2038, 4
      %v2041 = vshll.u32 %v1858, 16
      %v2043 = vrot.slane %v2041, 5
      %v2044 = vsel %vm275, %v2039, %v2043
      %v2045 = vshrl.u32 %v1858, 16
      %v2047 = vrot.slane %v2045, 4
      %v2048 = vor.u32 %v2047, %v2043
      %v2049 = vrot.slane %v2048, 4
      %v2051 = vshll.u32 %v1859, 16
      %v2053 = vrot.slane %v2051, 5
      %v2054 = vsel %vm275, %v2049, %v2053
      %v2056 = vshrl.u32 %v1860, 16
      %v2058 = vrot.slane %v2056, 4
      %v2059 = vshll.u32 %v1860, 16
      %v2061 = vrot.slane %v2059, 5
      %v2062 = vor.u32 %v2058, %v2061
      %v2063 = vrot.slane %v2062, 4
      %v2065 = vshll.u32 %v1861, 16
      %v2067 = vrot.slane %v2065, 5
      %v2068 = vsel %vm275, %v2063, %v2067
      %v2069 = vshrl.u32 %v1861, 16
      %v2071 = vrot.slane %v2069, 4
      %v2072 = vor.u32 %v2071, %v2067
      %v2073 = vrot.slane %v2072, 4
      %v2075 = vshll.u32 %v1862, 16
      %v2077 = vrot.slane %v2075, 5
      %v2078 = vsel %vm275, %v2073, %v2077
      %v2080 = vshrl.u32 %v1863, 16
      %v2082 = vrot.slane %v2080, 4
      %v2083 = vshll.u32 %v1863, 16
      %v2085 = vrot.slane %v2083, 5
      %v2086 = vor.u32 %v2082, %v2085
      %v2087 = vrot.slane %v2086, 4
      %v2089 = vshll.u32 %v1864, 16
      %v2091 = vrot.slane %v2089, 5
      %v2092 = vsel %vm275, %v2087, %v2091
      %v2093 = vshrl.u32 %v1864, 16
      %v2095 = vrot.slane %v2093, 4
      %v2096 = vor.u32 %v2095, %v2091
      %v2097 = vrot.slane %v2096, 4
      %v2099 = vshll.u32 %v1865, 16
      %v2101 = vrot.slane %v2099, 5
      %v2102 = vsel %vm275, %v2097, %v2101
      %v2104 = vshrl.u32 %v1866, 16
      %v2106 = vrot.slane %v2104, 4
      %v2107 = vshll.u32 %v1866, 16
      %v2109 = vrot.slane %v2107, 5
      %v2110 = vor.u32 %v2106, %v2109
      %v2111 = vrot.slane %v2110, 4
      %v2113 = vshll.u32 %v1867, 16
      %v2115 = vrot.slane %v2113, 5
      %v2116 = vsel %vm275, %v2111, %v2115
      %v2117 = vshrl.u32 %v1867, 16
      %v2119 = vrot.slane %v2117, 4
      %v2120 = vor.u32 %v2119, %v2115
      %v2121 = vrot.slane %v2120, 4
      %v2123 = vshll.u32 %v1868, 16
      %v2125 = vrot.slane %v2123, 5
      %v2126 = vsel %vm275, %v2121, %v2125
      %v2128 = vshrl.u32 %v1869, 16
      %v2130 = vrot.slane %v2128, 4
      %v2131 = vshll.u32 %v1869, 16
      %v2133 = vrot.slane %v2131, 5
      %v2134 = vor.u32 %v2130, %v2133
      %v2135 = vrot.slane %v2134, 4
      %v2137 = vshll.u32 %v1870, 16
      %v2139 = vrot.slane %v2137, 5
      %v2140 = vsel %vm275, %v2135, %v2139
      %v2141 = vshrl.u32 %v1870, 16
      %v2143 = vrot.slane %v2141, 4
      %v2144 = vor.u32 %v2143, %v2139
      %v2145 = vrot.slane %v2144, 4
      %v2147 = vshll.u32 %v1871, 16
      %v2149 = vrot.slane %v2147, 5
      %v2150 = vsel %vm275, %v2145, %v2149
      %v2152 = vshrl.u32 %v1872, 16
      %v2154 = vrot.slane %v2152, 4
      %v2155 = vshll.u32 %v1872, 16
      %v2157 = vrot.slane %v2155, 5
      %v2158 = vor.u32 %v2154, %v2157
      %v2159 = vrot.slane %v2158, 4
      %v2161 = vshll.u32 %v1873, 16
      %v2163 = vrot.slane %v2161, 5
      %v2164 = vsel %vm275, %v2159, %v2163
      %v2165 = vshrl.u32 %v1873, 16
      %v2167 = vrot.slane %v2165, 4
      %v2168 = vor.u32 %v2167, %v2163
      %v2169 = vrot.slane %v2168, 4
      %v2171 = vshll.u32 %v1874, 16
      %v2173 = vrot.slane %v2171, 5
      %v2174 = vsel %vm275, %v2169, %v2173
      %v2176 = vshrl.u32 %v1875, 16
      %v2178 = vrot.slane %v2176, 4
      %v2179 = vshll.u32 %v1875, 16
      %v2181 = vrot.slane %v2179, 5
      %v2182 = vor.u32 %v2178, %v2181
      %v2183 = vrot.slane %v2182, 4
      %v2185 = vshll.u32 %v1876, 16
      %v2187 = vrot.slane %v2185, 5
      %v2188 = vsel %vm275, %v2183, %v2187
      %v2189 = vshrl.u32 %v1876, 16
      %v2191 = vrot.slane %v2189, 4
      %v2192 = vor.u32 %v2191, %v2187
      %v2193 = vrot.slane %v2192, 4
      %v2195 = vshll.u32 %v1877, 16
      %v2197 = vrot.slane %v2195, 5
      %v2198 = vsel %vm275, %v2193, %v2197
      %v2200 = vshrl.u32 %v1878, 16
      %v2202 = vrot.slane %v2200, 4
      %v2203 = vshll.u32 %v1878, 16
      %v2205 = vrot.slane %v2203, 5
      %v2206 = vor.u32 %v2202, %v2205
      %v2207 = vrot.slane %v2206, 4
      %v2209 = vshll.u32 %v1879, 16
      %v2211 = vrot.slane %v2209, 5
      %v2212 = vsel %vm275, %v2207, %v2211
      %v2213 = vshrl.u32 %v1879, 16
      %v2215 = vrot.slane %v2213, 4
      %v2216 = vor.u32 %v2215, %v2211
      %v2217 = vrot.slane %v2216, 4
      %v2219 = vshll.u32 %v1880, 16
      %v2221 = vrot.slane %v2219, 5
      %v2222 = vsel %vm275, %v2217, %v2221
      %v2224 = vshrl.u32 %v1881, 16
      %v2226 = vrot.slane %v2224, 4
      %v2227 = vshll.u32 %v1881, 16
      %v2229 = vrot.slane %v2227, 5
      %v2230 = vor.u32 %v2226, %v2229
      %v2231 = vrot.slane %v2230, 4
      %v2233 = vshll.u32 %v1882, 16
      %v2235 = vrot.slane %v2233, 5
      %v2236 = vsel %vm275, %v2231, %v2235
      %v2237 = vshrl.u32 %v1882, 16
      %v2239 = vrot.slane %v2237, 4
      %v2240 = vor.u32 %v2239, %v2235
      %v2241 = vrot.slane %v2240, 4
      %v2243 = vshll.u32 %v1883, 16
      %v2245 = vrot.slane %v2243, 5
      %v2246 = vsel %vm275, %v2241, %v2245
      %v2248 = vshrl.u32 %v1884, 16
      %v2250 = vrot.slane %v2248, 4
      %v2251 = vshll.u32 %v1884, 16
      %v2253 = vrot.slane %v2251, 5
      %v2254 = vor.u32 %v2250, %v2253
      %v2255 = vrot.slane %v2254, 4
      %v2257 = vshll.u32 %v1885, 16
      %v2259 = vrot.slane %v2257, 5
      %v2260 = vsel %vm275, %v2255, %v2259
      %v2261 = vshrl.u32 %v1885, 16
      %v2263 = vrot.slane %v2261, 4
      %v2264 = vor.u32 %v2263, %v2259
      %v2265 = vrot.slane %v2264, 4
      %v2267 = vshll.u32 %v1886, 16
      %v2269 = vrot.slane %v2267, 5
      %v2270 = vsel %vm275, %v2265, %v2269
      %s2271 = scalar_lea.vmem %s1, 256
      %v2272 = vld [vmem:[%s2271] sm:$0xf]
      %v2273 = vld [vmem:[%s2271 + $0x4] sm:$0xf]
      %v2274 = vld [vmem:[%s2271 + $0x8] sm:$0xf]
      %v2275 = vld [vmem:[%s2271 + $0xc] sm:$0xf]
      %v2276 = vld [vmem:[%s2271 + $0x10] sm:$0xf]
      %v2277 = vld [vmem:[%s2271 + $0x14] sm:$0xf]
      %v2278 = vld [vmem:[%s2271 + $0x18] sm:$0xf]
      %v2279 = vld [vmem:[%s2271 + $0x1c] sm:$0xf]
      %v2280 = vld [vmem:[%s2271 + $0x20] sm:$0xf]
      %v2281 = vld [vmem:[%s2271 + $0x24] sm:$0xf]
      %v2282 = vld [vmem:[%s2271 + $0x28] sm:$0xf]
      %v2283 = vld [vmem:[%s2271 + $0x2c] sm:$0xf]
      %v2284 = vld [vmem:[%s2271 + $0x30] sm:$0xf]
      %v2285 = vld [vmem:[%s2271 + $0x34] sm:$0xf]
      %v2286 = vld [vmem:[%s2271 + $0x38] sm:$0xf]
      %v2287 = vld [vmem:[%s2271 + $0x3c] sm:$0xf]
      %v2288 = vunpack.c.l.b16 %v1900
      %v2289 = vunpack.c.l.b16 %v1910
      %v2290 = vunpack.c.l.b16 %v1924
      %v2291 = vunpack.c.l.b16 %v1934
      %v2292 = vunpack.c.l.b16 %v1948
      %v2293 = vunpack.c.l.b16 %v1958
      %v2294 = vunpack.c.l.b16 %v1972
      %v2295 = vunpack.c.l.b16 %v1982
      %v2296 = vunpack.c.l.b16 %v1996
      %v2297 = vunpack.c.l.b16 %v2006
      %v2298 = vunpack.c.l.b16 %v2020
      %v2299 = vunpack.c.l.b16 %v2030
      %v2300 = vunpack.c.l.b16 %v2044
      %v2301 = vunpack.c.l.b16 %v2054
      %v2302 = vunpack.c.l.b16 %v2068
      %v2303 = vunpack.c.l.b16 %v2078
      %v2304 = vunpack.c.l.b16 %v2092
      %v2305 = vunpack.c.l.b16 %v2102
      %v2306 = vunpack.c.l.b16 %v2116
      %v2307 = vunpack.c.l.b16 %v2126
      %v2308 = vunpack.c.l.b16 %v2140
      %v2309 = vunpack.c.l.b16 %v2150
      %v2310 = vunpack.c.l.b16 %v2164
      %v2311 = vunpack.c.l.b16 %v2174
      %v2312 = vunpack.c.l.b16 %v2188
      %v2313 = vunpack.c.l.b16 %v2198
      %v2314 = vunpack.c.l.b16 %v2212
      %v2315 = vunpack.c.l.b16 %v2222
      %v2316 = vunpack.c.l.b16 %v2236
      %v2317 = vunpack.c.l.b16 %v2246
      %v2318 = vunpack.c.l.b16 %v2260
      %v2319 = vunpack.c.l.b16 %v2270
      %v2320 = vpack.c.b16 %v2289, %v2288
      %v2321 = vpack.c.b16 %v2291, %v2290
      %v2322 = vpack.c.b16 %v2293, %v2292
      %v2323 = vpack.c.b16 %v2295, %v2294
      %v2324 = vpack.c.b16 %v2297, %v2296
      %v2325 = vpack.c.b16 %v2299, %v2298
      %v2326 = vpack.c.b16 %v2301, %v2300
      %v2327 = vpack.c.b16 %v2303, %v2302
      %v2328 = vpack.c.b16 %v2305, %v2304
      %v2329 = vpack.c.b16 %v2307, %v2306
      %v2330 = vpack.c.b16 %v2309, %v2308
      %v2331 = vpack.c.b16 %v2311, %v2310
      %v2332 = vpack.c.b16 %v2313, %v2312
      %v2333 = vpack.c.b16 %v2315, %v2314
      %v2334 = vpack.c.b16 %v2317, %v2316
      %v2335 = vpack.c.b16 %v2319, %v2318
      %v2368 = vunpack.c.l.b16 %v2272
      %v2369 = vunpack.c.l.b16 %v2273
      %v2370 = vunpack.c.l.b16 %v2274
      %v2371 = vunpack.c.l.b16 %v2275
      %v2372 = vunpack.c.l.b16 %v2276
      %v2373 = vunpack.c.l.b16 %v2277
      %v2374 = vunpack.c.l.b16 %v2278
      %v2375 = vunpack.c.l.b16 %v2279
      %v2376 = vunpack.c.l.b16 %v2280
      %v2377 = vunpack.c.l.b16 %v2281
      %v2378 = vunpack.c.l.b16 %v2282
      %v2379 = vunpack.c.l.b16 %v2283
      %v2380 = vunpack.c.l.b16 %v2284
      %v2381 = vunpack.c.l.b16 %v2285
      %v2382 = vunpack.c.l.b16 %v2286
      %v2383 = vunpack.c.l.b16 %v2287
      %v2384 = vpack.c.b16 %v2369, %v2368
      %v2385 = vpack.c.b16 %v2371, %v2370
      %v2386 = vpack.c.b16 %v2373, %v2372
      %v2387 = vpack.c.b16 %v2375, %v2374
      %v2388 = vpack.c.b16 %v2377, %v2376
      %v2389 = vpack.c.b16 %v2379, %v2378
      %v2390 = vpack.c.b16 %v2381, %v2380
      %v2391 = vpack.c.b16 %v2383, %v2382
      %2400 = vmatpush.bf16.msra.mxu0 %v2391
      %2401 = vmatpush.bf16.msra.mxu0 %v2390
      %2402 = vmatpush.bf16.msra.mxu0 %v2389
      %2403 = vmatpush.bf16.msra.mxu0 %v2388
      %2404 = vmatpush.bf16.msra.mxu0 %v2387
      %2405 = vmatpush.bf16.msra.mxu0 %v2386
      %2406 = vmatpush.bf16.msra.mxu0 %v2385
      %2407 = vmatpush.bf16.msra.mxu0 %v2384
      %2408 = vmatmul.bf16.gmra.mxu0 %v2320
      %v2409 = vpop.f32.mrf.mxu0
      %v2410 = vadd.f32 0.0, %v2409
      %v2411 = vpop.f32.mrf.mxu0
      %v2412 = vadd.f32 0.0, %v2411
      %2413 = vmatmul.bf16.gmra.mxu0 %v2321
      %v2414 = vpop.f32.mrf.mxu0
      %v2415 = vadd.f32 0.0, %v2414
      %v2416 = vpop.f32.mrf.mxu0
      %v2417 = vadd.f32 0.0, %v2416
      %2418 = vmatmul.bf16.gmra.mxu0 %v2322
      %v2419 = vpop.f32.mrf.mxu0
      %v2420 = vadd.f32 0.0, %v2419
      %v2421 = vpop.f32.mrf.mxu0
      %v2422 = vadd.f32 0.0, %v2421
      %2423 = vmatmul.bf16.gmra.mxu0 %v2323
      %v2424 = vpop.f32.mrf.mxu0
      %v2425 = vadd.f32 0.0, %v2424
      %v2426 = vpop.f32.mrf.mxu0
      %v2427 = vadd.f32 0.0, %v2426
      %2428 = vmatmul.bf16.gmra.mxu0 %v2324
      %v2429 = vpop.f32.mrf.mxu0
      %v2430 = vadd.f32 0.0, %v2429
      %v2431 = vpop.f32.mrf.mxu0
      %v2432 = vadd.f32 0.0, %v2431
      %2433 = vmatmul.bf16.gmra.mxu0 %v2325
      %v2434 = vpop.f32.mrf.mxu0
      %v2435 = vadd.f32 0.0, %v2434
      %v2436 = vpop.f32.mrf.mxu0
      %v2437 = vadd.f32 0.0, %v2436
      %2438 = vmatmul.bf16.gmra.mxu0 %v2326
      %v2439 = vpop.f32.mrf.mxu0
      %v2440 = vadd.f32 0.0, %v2439
      %v2441 = vpop.f32.mrf.mxu0
      %v2442 = vadd.f32 0.0, %v2441
      %2443 = vmatmul.bf16.gmra.mxu0 %v2327
      %v2444 = vpop.f32.mrf.mxu0
      %v2445 = vadd.f32 0.0, %v2444
      %v2446 = vpop.f32.mrf.mxu0
      %v2447 = vadd.f32 0.0, %v2446
      %2448 = vmatmul.bf16.gmra.mxu0 %v2328
      %v2449 = vpop.f32.mrf.mxu0
      %v2450 = vadd.f32 0.0, %v2449
      %v2451 = vpop.f32.mrf.mxu0
      %v2452 = vadd.f32 0.0, %v2451
      %2453 = vmatmul.bf16.gmra.mxu0 %v2329
      %v2454 = vpop.f32.mrf.mxu0
      %v2455 = vadd.f32 0.0, %v2454
      %v2456 = vpop.f32.mrf.mxu0
      %v2457 = vadd.f32 0.0, %v2456
      %2458 = vmatmul.bf16.gmra.mxu0 %v2330
      %v2459 = vpop.f32.mrf.mxu0
      %v2460 = vadd.f32 0.0, %v2459
      %v2461 = vpop.f32.mrf.mxu0
      %v2462 = vadd.f32 0.0, %v2461
      %2463 = vmatmul.bf16.gmra.mxu0 %v2331
      %v2464 = vpop.f32.mrf.mxu0
      %v2465 = vadd.f32 0.0, %v2464
      %v2466 = vpop.f32.mrf.mxu0
      %v2467 = vadd.f32 0.0, %v2466
      %2468 = vmatmul.bf16.gmra.mxu0 %v2332
      %v2469 = vpop.f32.mrf.mxu0
      %v2470 = vadd.f32 0.0, %v2469
      %v2471 = vpop.f32.mrf.mxu0
      %v2472 = vadd.f32 0.0, %v2471
      %2473 = vmatmul.bf16.gmra.mxu0 %v2333
      %v2474 = vpop.f32.mrf.mxu0
      %v2475 = vadd.f32 0.0, %v2474
      %v2476 = vpop.f32.mrf.mxu0
      %v2477 = vadd.f32 0.0, %v2476
      %2478 = vmatmul.bf16.gmra.mxu0 %v2334
      %v2479 = vpop.f32.mrf.mxu0
      %v2480 = vadd.f32 0.0, %v2479
      %v2481 = vpop.f32.mrf.mxu0
      %v2482 = vadd.f32 0.0, %v2481
      %2483 = vmatmul.bf16.gmra.mxu0 %v2335
      %v2484 = vpop.f32.mrf.mxu0
      %v2485 = vadd.f32 0.0, %v2484
      %v2486 = vpop.f32.mrf.mxu0
      %v2487 = vadd.f32 0.0, %v2486
      %2488 = vdwg.mxu0
      %v2489 = vadd.f32 %v1807, %v2410
      %v2490 = vadd.f32 %v1808, %v2412
      %v2491 = vadd.f32 %v1809, %v2415
      %v2492 = vadd.f32 %v1810, %v2417
      %v2493 = vadd.f32 %v1811, %v2420
      %v2494 = vadd.f32 %v1812, %v2422
      %v2495 = vadd.f32 %v1813, %v2425
      %v2496 = vadd.f32 %v1814, %v2427
      %v2497 = vadd.f32 %v1815, %v2430
      %v2498 = vadd.f32 %v1816, %v2432
      %v2499 = vadd.f32 %v1817, %v2435
      %v2500 = vadd.f32 %v1818, %v2437
      %v2501 = vadd.f32 %v1819, %v2440
      %v2502 = vadd.f32 %v1820, %v2442
      %v2503 = vadd.f32 %v1821, %v2445
      %v2504 = vadd.f32 %v1822, %v2447
      %v2505 = vadd.f32 %v1823, %v2450
      %v2506 = vadd.f32 %v1824, %v2452
      %v2507 = vadd.f32 %v1825, %v2455
      %v2508 = vadd.f32 %v1826, %v2457
      %v2509 = vadd.f32 %v1827, %v2460
      %v2510 = vadd.f32 %v1828, %v2462
      %v2511 = vadd.f32 %v1829, %v2465
      %v2512 = vadd.f32 %v1830, %v2467
      %v2513 = vadd.f32 %v1831, %v2470
      %v2514 = vadd.f32 %v1832, %v2472
      %v2515 = vadd.f32 %v1833, %v2475
      %v2516 = vadd.f32 %v1834, %v2477
      %v2517 = vadd.f32 %v1835, %v2480
      %v2518 = vadd.f32 %v1836, %v2482
      %v2519 = vadd.f32 %v1837, %v2485
      %v2520 = vadd.f32 %v1838, %v2487
      %v2521 = vld [vmem:[%s1524] sm:$0xe]
      %v2522 = vld [vmem:[%s1524 + $0xc] sm:$0xe]
      %v2523 = vld [vmem:[%s1524 + $0x18] sm:$0xe]
      %v2524 = vld [vmem:[%s1524 + $0x24] sm:$0xe]
      %v2525 = vld [vmem:[%s1524 + $0x30] sm:$0xe]
      %v2526 = vld [vmem:[%s1524 + $0x3c] sm:$0xe]
      %v2527 = vld [vmem:[%s1524 + $0x48] sm:$0xe]
      %v2528 = vld [vmem:[%s1524 + $0x54] sm:$0xe]
      %v2529 = vld [vmem:[%s1524 + $0x60] sm:$0xe]
      %v2530 = vld [vmem:[%s1524 + $0x6c] sm:$0xe]
      %v2531 = vld [vmem:[%s1524 + $0x78] sm:$0xe]
      %v2532 = vld [vmem:[%s1524 + $0x84] sm:$0xe]
      %v2533 = vld [vmem:[%s1524 + $0x90] sm:$0xe]
      %v2534 = vld [vmem:[%s1524 + $0x9c] sm:$0xe]
      %v2535 = vld [vmem:[%s1524 + $0xa8] sm:$0xe]
      %v2536 = vld [vmem:[%s1524 + $0xb4] sm:$0xe]
      %v2585 = vrot.slane %v2521, 5
      %v2586 = vrot.slane %v2585, 4
      %v2587 = vrot.slane %v1840, 5
      %v2588 = vsel %vm1161, %v2586, %v2587
      %v2589 = vrot.slane %v2587, 4
      %v2590 = vrot.slane %v1841, 5
      %v2591 = vsel %vm1161, %v2589, %v2590
      %v2592 = vrot.slane %v2522, 5
      %v2593 = vrot.slane %v2592, 4
      %v2594 = vrot.slane %v1843, 5
      %v2595 = vsel %vm1161, %v2593, %v2594
      %v2596 = vrot.slane %v2594, 4
      %v2597 = vrot.slane %v1844, 5
      %v2598 = vsel %vm1161, %v2596, %v2597
      %v2599 = vrot.slane %v2523, 5
      %v2600 = vrot.slane %v2599, 4
      %v2601 = vrot.slane %v1846, 5
      %v2602 = vsel %vm1161, %v2600, %v2601
      %v2603 = vrot.slane %v2601, 4
      %v2604 = vrot.slane %v1847, 5
      %v2605 = vsel %vm1161, %v2603, %v2604
      %v2606 = vrot.slane %v2524, 5
      %v2607 = vrot.slane %v2606, 4
      %v2608 = vrot.slane %v1849, 5
      %v2609 = vsel %vm1161, %v2607, %v2608
      %v2610 = vrot.slane %v2608, 4
      %v2611 = vrot.slane %v1850, 5
      %v2612 = vsel %vm1161, %v2610, %v2611
      %v2613 = vrot.slane %v2525, 5
      %v2614 = vrot.slane %v2613, 4
      %v2615 = vrot.slane %v1852, 5
      %v2616 = vsel %vm1161, %v2614, %v2615
      %v2617 = vrot.slane %v2615, 4
      %v2618 = vrot.slane %v1853, 5
      %v2619 = vsel %vm1161, %v2617, %v2618
      %v2620 = vrot.slane %v2526, 5
      %v2621 = vrot.slane %v2620, 4
      %v2622 = vrot.slane %v1855, 5
      %v2623 = vsel %vm1161, %v2621, %v2622
      %v2624 = vrot.slane %v2622, 4
      %v2625 = vrot.slane %v1856, 5
      %v2626 = vsel %vm1161, %v2624, %v2625
      %v2627 = vrot.slane %v2527, 5
      %v2628 = vrot.slane %v2627, 4
      %v2629 = vrot.slane %v1858, 5
      %v2630 = vsel %vm1161, %v2628, %v2629
      %v2631 = vrot.slane %v2629, 4
      %v2632 = vrot.slane %v1859, 5
      %v2633 = vsel %vm1161, %v2631, %v2632
      %v2634 = vrot.slane %v2528, 5
      %v2635 = vrot.slane %v2634, 4
      %v2636 = vrot.slane %v1861, 5
      %v2637 = vsel %vm1161, %v2635, %v2636
      %v2638 = vrot.slane %v2636, 4
      %v2639 = vrot.slane %v1862, 5
      %v2640 = vsel %vm1161, %v2638, %v2639
      %v2641 = vrot.slane %v2529, 5
      %v2642 = vrot.slane %v2641, 4
      %v2643 = vrot.slane %v1864, 5
      %v2644 = vsel %vm1161, %v2642, %v2643
      %v2645 = vrot.slane %v2643, 4
      %v2646 = vrot.slane %v1865, 5
      %v2647 = vsel %vm1161, %v2645, %v2646
      %v2648 = vrot.slane %v2530, 5
      %v2649 = vrot.slane %v2648, 4
      %v2650 = vrot.slane %v1867, 5
      %v2651 = vsel %vm1161, %v2649, %v2650
      %v2652 = vrot.slane %v2650, 4
      %v2653 = vrot.slane %v1868, 5
      %v2654 = vsel %vm1161, %v2652, %v2653
      %v2655 = vrot.slane %v2531, 5
      %v2656 = vrot.slane %v2655, 4
      %v2657 = vrot.slane %v1870, 5
      %v2658 = vsel %vm1161, %v2656, %v2657
      %v2659 = vrot.slane %v2657, 4
      %v2660 = vrot.slane %v1871, 5
      %v2661 = vsel %vm1161, %v2659, %v2660
      %v2662 = vrot.slane %v2532, 5
      %v2663 = vrot.slane %v2662, 4
      %v2664 = vrot.slane %v1873, 5
      %v2665 = vsel %vm1161, %v2663, %v2664
      %v2666 = vrot.slane %v2664, 4
      %v2667 = vrot.slane %v1874, 5
      %v2668 = vsel %vm1161, %v2666, %v2667
      %v2669 = vrot.slane %v2533, 5
      %v2670 = vrot.slane %v2669, 4
      %v2671 = vrot.slane %v1876, 5
      %v2672 = vsel %vm1161, %v2670, %v2671
      %v2673 = vrot.slane %v2671, 4
      %v2674 = vrot.slane %v1877, 5
      %v2675 = vsel %vm1161, %v2673, %v2674
      %v2676 = vrot.slane %v2534, 5
      %v2677 = vrot.slane %v2676, 4
      %v2678 = vrot.slane %v1879, 5
      %v2679 = vsel %vm1161, %v2677, %v2678
      %v2680 = vrot.slane %v2678, 4
      %v2681 = vrot.slane %v1880, 5
      %v2682 = vsel %vm1161, %v2680, %v2681
      %v2683 = vrot.slane %v2535, 5
      %v2684 = vrot.slane %v2683, 4
      %v2685 = vrot.slane %v1882, 5
      %v2686 = vsel %vm1161, %v2684, %v2685
      %v2687 = vrot.slane %v2685, 4
      %v2688 = vrot.slane %v1883, 5
      %v2689 = vsel %vm1161, %v2687, %v2688
      %v2690 = vrot.slane %v2536, 5
      %v2691 = vrot.slane %v2690, 4
      %v2692 = vrot.slane %v1885, 5
      %v2693 = vsel %vm1161, %v2691, %v2692
      %v2694 = vrot.slane %v2692, 4
      %v2695 = vrot.slane %v1886, 5
      %v2696 = vsel %vm1161, %v2694, %v2695
      %s2697 = scalar_lea.vmem %s1, 320
      %v2698 = vld [vmem:[%s2697] sm:$0xf]
      %v2699 = vld [vmem:[%s2697 + $0x4] sm:$0xf]
      %v2700 = vld [vmem:[%s2697 + $0x8] sm:$0xf]
      %v2701 = vld [vmem:[%s2697 + $0xc] sm:$0xf]
      %v2702 = vld [vmem:[%s2697 + $0x10] sm:$0xf]
      %v2703 = vld [vmem:[%s2697 + $0x14] sm:$0xf]
      %v2704 = vld [vmem:[%s2697 + $0x18] sm:$0xf]
      %v2705 = vld [vmem:[%s2697 + $0x1c] sm:$0xf]
      %v2706 = vld [vmem:[%s2697 + $0x20] sm:$0xf]
      %v2707 = vld [vmem:[%s2697 + $0x24] sm:$0xf]
      %v2708 = vld [vmem:[%s2697 + $0x28] sm:$0xf]
      %v2709 = vld [vmem:[%s2697 + $0x2c] sm:$0xf]
      %v2710 = vld [vmem:[%s2697 + $0x30] sm:$0xf]
      %v2711 = vld [vmem:[%s2697 + $0x34] sm:$0xf]
      %v2712 = vld [vmem:[%s2697 + $0x38] sm:$0xf]
      %v2713 = vld [vmem:[%s2697 + $0x3c] sm:$0xf]
      %v2714 = vunpack.c.l.b16 %v2588
      %v2715 = vunpack.c.l.b16 %v2591
      %v2716 = vunpack.c.l.b16 %v2595
      %v2717 = vunpack.c.l.b16 %v2598
      %v2718 = vunpack.c.l.b16 %v2602
      %v2719 = vunpack.c.l.b16 %v2605
      %v2720 = vunpack.c.l.b16 %v2609
      %v2721 = vunpack.c.l.b16 %v2612
      %v2722 = vunpack.c.l.b16 %v2616
      %v2723 = vunpack.c.l.b16 %v2619
      %v2724 = vunpack.c.l.b16 %v2623
      %v2725 = vunpack.c.l.b16 %v2626
      %v2726 = vunpack.c.l.b16 %v2630
      %v2727 = vunpack.c.l.b16 %v2633
      %v2728 = vunpack.c.l.b16 %v2637
      %v2729 = vunpack.c.l.b16 %v2640
      %v2730 = vunpack.c.l.b16 %v2644
      %v2731 = vunpack.c.l.b16 %v2647
      %v2732 = vunpack.c.l.b16 %v2651
      %v2733 = vunpack.c.l.b16 %v2654
      %v2734 = vunpack.c.l.b16 %v2658
      %v2735 = vunpack.c.l.b16 %v2661
      %v2736 = vunpack.c.l.b16 %v2665
      %v2737 = vunpack.c.l.b16 %v2668
      %v2738 = vunpack.c.l.b16 %v2672
      %v2739 = vunpack.c.l.b16 %v2675
      %v2740 = vunpack.c.l.b16 %v2679
      %v2741 = vunpack.c.l.b16 %v2682
      %v2742 = vunpack.c.l.b16 %v2686
      %v2743 = vunpack.c.l.b16 %v2689
      %v2744 = vunpack.c.l.b16 %v2693
      %v2745 = vunpack.c.l.b16 %v2696
      %v2746 = vpack.c.b16 %v2715, %v2714
      %v2747 = vpack.c.b16 %v2717, %v2716
      %v2748 = vpack.c.b16 %v2719, %v2718
      %v2749 = vpack.c.b16 %v2721, %v2720
      %v2750 = vpack.c.b16 %v2723, %v2722
      %v2751 = vpack.c.b16 %v2725, %v2724
      %v2752 = vpack.c.b16 %v2727, %v2726
      %v2753 = vpack.c.b16 %v2729, %v2728
      %v2754 = vpack.c.b16 %v2731, %v2730
      %v2755 = vpack.c.b16 %v2733, %v2732
      %v2756 = vpack.c.b16 %v2735, %v2734
      %v2757 = vpack.c.b16 %v2737, %v2736
      %v2758 = vpack.c.b16 %v2739, %v2738
      %v2759 = vpack.c.b16 %v2741, %v2740
      %v2760 = vpack.c.b16 %v2743, %v2742
      %v2761 = vpack.c.b16 %v2745, %v2744
      %v2794 = vunpack.c.l.b16 %v2698
      %v2795 = vunpack.c.l.b16 %v2699
      %v2796 = vunpack.c.l.b16 %v2700
      %v2797 = vunpack.c.l.b16 %v2701
      %v2798 = vunpack.c.l.b16 %v2702
      %v2799 = vunpack.c.l.b16 %v2703
      %v2800 = vunpack.c.l.b16 %v2704
      %v2801 = vunpack.c.l.b16 %v2705
      %v2802 = vunpack.c.l.b16 %v2706
      %v2803 = vunpack.c.l.b16 %v2707
      %v2804 = vunpack.c.l.b16 %v2708
      %v2805 = vunpack.c.l.b16 %v2709
      %v2806 = vunpack.c.l.b16 %v2710
      %v2807 = vunpack.c.l.b16 %v2711
      %v2808 = vunpack.c.l.b16 %v2712
      %v2809 = vunpack.c.l.b16 %v2713
      %v2810 = vpack.c.b16 %v2795, %v2794
      %v2811 = vpack.c.b16 %v2797, %v2796
      %v2812 = vpack.c.b16 %v2799, %v2798
      %v2813 = vpack.c.b16 %v2801, %v2800
      %v2814 = vpack.c.b16 %v2803, %v2802
      %v2815 = vpack.c.b16 %v2805, %v2804
      %v2816 = vpack.c.b16 %v2807, %v2806
      %v2817 = vpack.c.b16 %v2809, %v2808
      %2826 = vmatpush.bf16.msra.mxu0 %v2817
      %2827 = vmatpush.bf16.msra.mxu0 %v2816
      %2828 = vmatpush.bf16.msra.mxu0 %v2815
      %2829 = vmatpush.bf16.msra.mxu0 %v2814
      %2830 = vmatpush.bf16.msra.mxu0 %v2813
      %2831 = vmatpush.bf16.msra.mxu0 %v2812
      %2832 = vmatpush.bf16.msra.mxu0 %v2811
      %2833 = vmatpush.bf16.msra.mxu0 %v2810
      %2834 = vmatmul.bf16.gmra.mxu0 %v2746
      %v2835 = vpop.f32.mrf.mxu0
      %v2836 = vadd.f32 0.0, %v2835
      %v2837 = vpop.f32.mrf.mxu0
      %v2838 = vadd.f32 0.0, %v2837
      %2839 = vmatmul.bf16.gmra.mxu0 %v2747
      %v2840 = vpop.f32.mrf.mxu0
      %v2841 = vadd.f32 0.0, %v2840
      %v2842 = vpop.f32.mrf.mxu0
      %v2843 = vadd.f32 0.0, %v2842
      %2844 = vmatmul.bf16.gmra.mxu0 %v2748
      %v2845 = vpop.f32.mrf.mxu0
      %v2846 = vadd.f32 0.0, %v2845
      %v2847 = vpop.f32.mrf.mxu0
      %v2848 = vadd.f32 0.0, %v2847
      %2849 = vmatmul.bf16.gmra.mxu0 %v2749
      %v2850 = vpop.f32.mrf.mxu0
      %v2851 = vadd.f32 0.0, %v2850
      %v2852 = vpop.f32.mrf.mxu0
      %v2853 = vadd.f32 0.0, %v2852
      %2854 = vmatmul.bf16.gmra.mxu0 %v2750
      %v2855 = vpop.f32.mrf.mxu0
      %v2856 = vadd.f32 0.0, %v2855
      %v2857 = vpop.f32.mrf.mxu0
      %v2858 = vadd.f32 0.0, %v2857
      %2859 = vmatmul.bf16.gmra.mxu0 %v2751
      %v2860 = vpop.f32.mrf.mxu0
      %v2861 = vadd.f32 0.0, %v2860
      %v2862 = vpop.f32.mrf.mxu0
      %v2863 = vadd.f32 0.0, %v2862
      %2864 = vmatmul.bf16.gmra.mxu0 %v2752
      %v2865 = vpop.f32.mrf.mxu0
      %v2866 = vadd.f32 0.0, %v2865
      %v2867 = vpop.f32.mrf.mxu0
      %v2868 = vadd.f32 0.0, %v2867
      %2869 = vmatmul.bf16.gmra.mxu0 %v2753
      %v2870 = vpop.f32.mrf.mxu0
      %v2871 = vadd.f32 0.0, %v2870
      %v2872 = vpop.f32.mrf.mxu0
      %v2873 = vadd.f32 0.0, %v2872
      %2874 = vmatmul.bf16.gmra.mxu0 %v2754
      %v2875 = vpop.f32.mrf.mxu0
      %v2876 = vadd.f32 0.0, %v2875
      %v2877 = vpop.f32.mrf.mxu0
      %v2878 = vadd.f32 0.0, %v2877
      %2879 = vmatmul.bf16.gmra.mxu0 %v2755
      %v2880 = vpop.f32.mrf.mxu0
      %v2881 = vadd.f32 0.0, %v2880
      %v2882 = vpop.f32.mrf.mxu0
      %v2883 = vadd.f32 0.0, %v2882
      %2884 = vmatmul.bf16.gmra.mxu0 %v2756
      %v2885 = vpop.f32.mrf.mxu0
      %v2886 = vadd.f32 0.0, %v2885
      %v2887 = vpop.f32.mrf.mxu0
      %v2888 = vadd.f32 0.0, %v2887
      %2889 = vmatmul.bf16.gmra.mxu0 %v2757
      %v2890 = vpop.f32.mrf.mxu0
      %v2891 = vadd.f32 0.0, %v2890
      %v2892 = vpop.f32.mrf.mxu0
      %v2893 = vadd.f32 0.0, %v2892
      %2894 = vmatmul.bf16.gmra.mxu0 %v2758
      %v2895 = vpop.f32.mrf.mxu0
      %v2896 = vadd.f32 0.0, %v2895
      %v2897 = vpop.f32.mrf.mxu0
      %v2898 = vadd.f32 0.0, %v2897
      %2899 = vmatmul.bf16.gmra.mxu0 %v2759
      %v2900 = vpop.f32.mrf.mxu0
      %v2901 = vadd.f32 0.0, %v2900
      %v2902 = vpop.f32.mrf.mxu0
      %v2903 = vadd.f32 0.0, %v2902
      %2904 = vmatmul.bf16.gmra.mxu0 %v2760
      %v2905 = vpop.f32.mrf.mxu0
      %v2906 = vadd.f32 0.0, %v2905
      %v2907 = vpop.f32.mrf.mxu0
      %v2908 = vadd.f32 0.0, %v2907
      %2909 = vmatmul.bf16.gmra.mxu0 %v2761
      %v2910 = vpop.f32.mrf.mxu0
      %v2911 = vadd.f32 0.0, %v2910
      %v2912 = vpop.f32.mrf.mxu0
      %v2913 = vadd.f32 0.0, %v2912
      %2914 = vdwg.mxu0
      %v2915 = vadd.f32 %v2489, %v2836
      %v2916 = vadd.f32 %v2490, %v2838
      %v2917 = vadd.f32 %v2491, %v2841
      %v2918 = vadd.f32 %v2492, %v2843
      %v2919 = vadd.f32 %v2493, %v2846
      %v2920 = vadd.f32 %v2494, %v2848
      %v2921 = vadd.f32 %v2495, %v2851
      %v2922 = vadd.f32 %v2496, %v2853
      %v2923 = vadd.f32 %v2497, %v2856
      %v2924 = vadd.f32 %v2498, %v2858
      %v2925 = vadd.f32 %v2499, %v2861
      %v2926 = vadd.f32 %v2500, %v2863
      %v2927 = vadd.f32 %v2501, %v2866
      %v2928 = vadd.f32 %v2502, %v2868
      %v2929 = vadd.f32 %v2503, %v2871
      %v2930 = vadd.f32 %v2504, %v2873
      %v2931 = vadd.f32 %v2505, %v2876
      %v2932 = vadd.f32 %v2506, %v2878
      %v2933 = vadd.f32 %v2507, %v2881
      %v2934 = vadd.f32 %v2508, %v2883
      %v2935 = vadd.f32 %v2509, %v2886
      %v2936 = vadd.f32 %v2510, %v2888
      %v2937 = vadd.f32 %v2511, %v2891
      %v2938 = vadd.f32 %v2512, %v2893
      %v2939 = vadd.f32 %v2513, %v2896
      %v2940 = vadd.f32 %v2514, %v2898
      %v2941 = vadd.f32 %v2515, %v2901
      %v2942 = vadd.f32 %v2516, %v2903
      %v2943 = vadd.f32 %v2517, %v2906
      %v2944 = vadd.f32 %v2518, %v2908
      %v2945 = vadd.f32 %v2519, %v2911
      %v2946 = vadd.f32 %v2520, %v2913
      %s2947 = scalar_lea.vmem %s199, 24
      %v2948 = vld [vmem:[%s2947] sm:$0xf]
      %v2949 = vld [vmem:[%s2947 + $0x4] sm:$0xf]
      %v2950 = vld [vmem:[%s2947 + $0xc] sm:$0xf]
      %v2951 = vld [vmem:[%s2947 + $0x10] sm:$0xf]
      %v2952 = vld [vmem:[%s2947 + $0x18] sm:$0xf]
      %v2953 = vld [vmem:[%s2947 + $0x1c] sm:$0xf]
      %v2954 = vld [vmem:[%s2947 + $0x24] sm:$0xf]
      %v2955 = vld [vmem:[%s2947 + $0x28] sm:$0xf]
      %v2956 = vld [vmem:[%s2947 + $0x30] sm:$0xf]
      %v2957 = vld [vmem:[%s2947 + $0x34] sm:$0xf]
      %v2958 = vld [vmem:[%s2947 + $0x3c] sm:$0xf]
      %v2959 = vld [vmem:[%s2947 + $0x40] sm:$0xf]
      %v2960 = vld [vmem:[%s2947 + $0x48] sm:$0xf]
      %v2961 = vld [vmem:[%s2947 + $0x4c] sm:$0xf]
      %v2962 = vld [vmem:[%s2947 + $0x54] sm:$0xf]
      %v2963 = vld [vmem:[%s2947 + $0x58] sm:$0xf]
      %v2964 = vld [vmem:[%s2947 + $0x60] sm:$0xf]
      %v2965 = vld [vmem:[%s2947 + $0x64] sm:$0xf]
      %v2966 = vld [vmem:[%s2947 + $0x6c] sm:$0xf]
      %v2967 = vld [vmem:[%s2947 + $0x70] sm:$0xf]
      %v2968 = vld [vmem:[%s2947 + $0x78] sm:$0xf]
      %v2969 = vld [vmem:[%s2947 + $0x7c] sm:$0xf]
      %v2970 = vld [vmem:[%s2947 + $0x84] sm:$0xf]
      %v2971 = vld [vmem:[%s2947 + $0x88] sm:$0xf]
      %v2972 = vld [vmem:[%s2947 + $0x90] sm:$0xf]
      %v2973 = vld [vmem:[%s2947 + $0x94] sm:$0xf]
      %v2974 = vld [vmem:[%s2947 + $0x9c] sm:$0xf]
      %v2975 = vld [vmem:[%s2947 + $0xa0] sm:$0xf]
      %v2976 = vld [vmem:[%s2947 + $0xa8] sm:$0xf]
      %v2977 = vld [vmem:[%s2947 + $0xac] sm:$0xf]
      %v2978 = vld [vmem:[%s2947 + $0xb4] sm:$0xf]
      %v2979 = vld [vmem:[%s2947 + $0xb8] sm:$0xf]
      %s2980 = scalar_lea.vmem %s1, 384
      %v2981 = vld [vmem:[%s2980] sm:$0xf]
      %v2982 = vld [vmem:[%s2980 + $0x4] sm:$0xf]
      %v2983 = vld [vmem:[%s2980 + $0x8] sm:$0xf]
      %v2984 = vld [vmem:[%s2980 + $0xc] sm:$0xf]
      %v2985 = vld [vmem:[%s2980 + $0x10] sm:$0xf]
      %v2986 = vld [vmem:[%s2980 + $0x14] sm:$0xf]
      %v2987 = vld [vmem:[%s2980 + $0x18] sm:$0xf]
      %v2988 = vld [vmem:[%s2980 + $0x1c] sm:$0xf]
      %v2989 = vld [vmem:[%s2980 + $0x20] sm:$0xf]
      %v2990 = vld [vmem:[%s2980 + $0x24] sm:$0xf]
      %v2991 = vld [vmem:[%s2980 + $0x28] sm:$0xf]
      %v2992 = vld [vmem:[%s2980 + $0x2c] sm:$0xf]
      %v2993 = vld [vmem:[%s2980 + $0x30] sm:$0xf]
      %v2994 = vld [vmem:[%s2980 + $0x34] sm:$0xf]
      %v2995 = vld [vmem:[%s2980 + $0x38] sm:$0xf]
      %v2996 = vld [vmem:[%s2980 + $0x3c] sm:$0xf]
      %v3029 = vunpack.c.l.b16 %v2948
      %v3030 = vunpack.c.l.b16 %v2949
      %v3031 = vunpack.c.l.b16 %v2950
      %v3032 = vunpack.c.l.b16 %v2951
      %v3033 = vunpack.c.l.b16 %v2952
      %v3034 = vunpack.c.l.b16 %v2953
      %v3035 = vunpack.c.l.b16 %v2954
      %v3036 = vunpack.c.l.b16 %v2955
      %v3037 = vunpack.c.l.b16 %v2956
      %v3038 = vunpack.c.l.b16 %v2957
      %v3039 = vunpack.c.l.b16 %v2958
      %v3040 = vunpack.c.l.b16 %v2959
      %v3041 = vunpack.c.l.b16 %v2960
      %v3042 = vunpack.c.l.b16 %v2961
      %v3043 = vunpack.c.l.b16 %v2962
      %v3044 = vunpack.c.l.b16 %v2963
      %v3045 = vunpack.c.l.b16 %v2964
      %v3046 = vunpack.c.l.b16 %v2965
      %v3047 = vunpack.c.l.b16 %v2966
      %v3048 = vunpack.c.l.b16 %v2967
      %v3049 = vunpack.c.l.b16 %v2968
      %v3050 = vunpack.c.l.b16 %v2969
      %v3051 = vunpack.c.l.b16 %v2970
      %v3052 = vunpack.c.l.b16 %v2971
      %v3053 = vunpack.c.l.b16 %v2972
      %v3054 = vunpack.c.l.b16 %v2973
      %v3055 = vunpack.c.l.b16 %v2974
      %v3056 = vunpack.c.l.b16 %v2975
      %v3057 = vunpack.c.l.b16 %v2976
      %v3058 = vunpack.c.l.b16 %v2977
      %v3059 = vunpack.c.l.b16 %v2978
      %v3060 = vunpack.c.l.b16 %v2979
      %v3061 = vpack.c.b16 %v3030, %v3029
      %v3062 = vpack.c.b16 %v3032, %v3031
      %v3063 = vpack.c.b16 %v3034, %v3033
      %v3064 = vpack.c.b16 %v3036, %v3035
      %v3065 = vpack.c.b16 %v3038, %v3037
      %v3066 = vpack.c.b16 %v3040, %v3039
      %v3067 = vpack.c.b16 %v3042, %v3041
      %v3068 = vpack.c.b16 %v3044, %v3043
      %v3069 = vpack.c.b16 %v3046, %v3045
      %v3070 = vpack.c.b16 %v3048, %v3047
      %v3071 = vpack.c.b16 %v3050, %v3049
      %v3072 = vpack.c.b16 %v3052, %v3051
      %v3073 = vpack.c.b16 %v3054, %v3053
      %v3074 = vpack.c.b16 %v3056, %v3055
      %v3075 = vpack.c.b16 %v3058, %v3057
      %v3076 = vpack.c.b16 %v3060, %v3059
      %v3109 = vunpack.c.l.b16 %v2981
      %v3110 = vunpack.c.l.b16 %v2982
      %v3111 = vunpack.c.l.b16 %v2983
      %v3112 = vunpack.c.l.b16 %v2984
      %v3113 = vunpack.c.l.b16 %v2985
      %v3114 = vunpack.c.l.b16 %v2986
      %v3115 = vunpack.c.l.b16 %v2987
      %v3116 = vunpack.c.l.b16 %v2988
      %v3117 = vunpack.c.l.b16 %v2989
      %v3118 = vunpack.c.l.b16 %v2990
      %v3119 = vunpack.c.l.b16 %v2991
      %v3120 = vunpack.c.l.b16 %v2992
      %v3121 = vunpack.c.l.b16 %v2993
      %v3122 = vunpack.c.l.b16 %v2994
      %v3123 = vunpack.c.l.b16 %v2995
      %v3124 = vunpack.c.l.b16 %v2996
      %v3125 = vpack.c.b16 %v3110, %v3109
      %v3126 = vpack.c.b16 %v3112, %v3111
      %v3127 = vpack.c.b16 %v3114, %v3113
      %v3128 = vpack.c.b16 %v3116, %v3115
      %v3129 = vpack.c.b16 %v3118, %v3117
      %v3130 = vpack.c.b16 %v3120, %v3119
      %v3131 = vpack.c.b16 %v3122, %v3121
      %v3132 = vpack.c.b16 %v3124, %v3123
      %3141 = vmatpush.bf16.msra.mxu0 %v3132
      %3142 = vmatpush.bf16.msra.mxu0 %v3131
      %3143 = vmatpush.bf16.msra.mxu0 %v3130
      %3144 = vmatpush.bf16.msra.mxu0 %v3129
      %3145 = vmatpush.bf16.msra.mxu0 %v3128
      %3146 = vmatpush.bf16.msra.mxu0 %v3127
      %3147 = vmatpush.bf16.msra.mxu0 %v3126
      %3148 = vmatpush.bf16.msra.mxu0 %v3125
      %3149 = vmatmul.bf16.gmra.mxu0 %v3061
      %v3150 = vpop.f32.mrf.mxu0
      %v3151 = vadd.f32 0.0, %v3150
      %v3152 = vpop.f32.mrf.mxu0
      %v3153 = vadd.f32 0.0, %v3152
      %3154 = vmatmul.bf16.gmra.mxu0 %v3062
      %v3155 = vpop.f32.mrf.mxu0
      %v3156 = vadd.f32 0.0, %v3155
      %v3157 = vpop.f32.mrf.mxu0
      %v3158 = vadd.f32 0.0, %v3157
      %3159 = vmatmul.bf16.gmra.mxu0 %v3063
      %v3160 = vpop.f32.mrf.mxu0
      %v3161 = vadd.f32 0.0, %v3160
      %v3162 = vpop.f32.mrf.mxu0
      %v3163 = vadd.f32 0.0, %v3162
      %3164 = vmatmul.bf16.gmra.mxu0 %v3064
      %v3165 = vpop.f32.mrf.mxu0
      %v3166 = vadd.f32 0.0, %v3165
      %v3167 = vpop.f32.mrf.mxu0
      %v3168 = vadd.f32 0.0, %v3167
      %3169 = vmatmul.bf16.gmra.mxu0 %v3065
      %v3170 = vpop.f32.mrf.mxu0
      %v3171 = vadd.f32 0.0, %v3170
      %v3172 = vpop.f32.mrf.mxu0
      %v3173 = vadd.f32 0.0, %v3172
      %3174 = vmatmul.bf16.gmra.mxu0 %v3066
      %v3175 = vpop.f32.mrf.mxu0
      %v3176 = vadd.f32 0.0, %v3175
      %v3177 = vpop.f32.mrf.mxu0
      %v3178 = vadd.f32 0.0, %v3177
      %3179 = vmatmul.bf16.gmra.mxu0 %v3067
      %v3180 = vpop.f32.mrf.mxu0
      %v3181 = vadd.f32 0.0, %v3180
      %v3182 = vpop.f32.mrf.mxu0
      %v3183 = vadd.f32 0.0, %v3182
      %3184 = vmatmul.bf16.gmra.mxu0 %v3068
      %v3185 = vpop.f32.mrf.mxu0
      %v3186 = vadd.f32 0.0, %v3185
      %v3187 = vpop.f32.mrf.mxu0
      %v3188 = vadd.f32 0.0, %v3187
      %3189 = vmatmul.bf16.gmra.mxu0 %v3069
      %v3190 = vpop.f32.mrf.mxu0
      %v3191 = vadd.f32 0.0, %v3190
      %v3192 = vpop.f32.mrf.mxu0
      %v3193 = vadd.f32 0.0, %v3192
      %3194 = vmatmul.bf16.gmra.mxu0 %v3070
      %v3195 = vpop.f32.mrf.mxu0
      %v3196 = vadd.f32 0.0, %v3195
      %v3197 = vpop.f32.mrf.mxu0
      %v3198 = vadd.f32 0.0, %v3197
      %3199 = vmatmul.bf16.gmra.mxu0 %v3071
      %v3200 = vpop.f32.mrf.mxu0
      %v3201 = vadd.f32 0.0, %v3200
      %v3202 = vpop.f32.mrf.mxu0
      %v3203 = vadd.f32 0.0, %v3202
      %3204 = vmatmul.bf16.gmra.mxu0 %v3072
      %v3205 = vpop.f32.mrf.mxu0
      %v3206 = vadd.f32 0.0, %v3205
      %v3207 = vpop.f32.mrf.mxu0
      %v3208 = vadd.f32 0.0, %v3207
      %3209 = vmatmul.bf16.gmra.mxu0 %v3073
      %v3210 = vpop.f32.mrf.mxu0
      %v3211 = vadd.f32 0.0, %v3210
      %v3212 = vpop.f32.mrf.mxu0
      %v3213 = vadd.f32 0.0, %v3212
      %3214 = vmatmul.bf16.gmra.mxu0 %v3074
      %v3215 = vpop.f32.mrf.mxu0
      %v3216 = vadd.f32 0.0, %v3215
      %v3217 = vpop.f32.mrf.mxu0
      %v3218 = vadd.f32 0.0, %v3217
      %3219 = vmatmul.bf16.gmra.mxu0 %v3075
      %v3220 = vpop.f32.mrf.mxu0
      %v3221 = vadd.f32 0.0, %v3220
      %v3222 = vpop.f32.mrf.mxu0
      %v3223 = vadd.f32 0.0, %v3222
      %3224 = vmatmul.bf16.gmra.mxu0 %v3076
      %v3225 = vpop.f32.mrf.mxu0
      %v3226 = vadd.f32 0.0, %v3225
      %v3227 = vpop.f32.mrf.mxu0
      %v3228 = vadd.f32 0.0, %v3227
      %3229 = vdwg.mxu0
      %v3230 = vadd.f32 %v2915, %v3151
      %v3231 = vadd.f32 %v2916, %v3153
      %v3232 = vadd.f32 %v2917, %v3156
      %v3233 = vadd.f32 %v2918, %v3158
      %v3234 = vadd.f32 %v2919, %v3161
      %v3235 = vadd.f32 %v2920, %v3163
      %v3236 = vadd.f32 %v2921, %v3166
      %v3237 = vadd.f32 %v2922, %v3168
      %v3238 = vadd.f32 %v2923, %v3171
      %v3239 = vadd.f32 %v2924, %v3173
      %v3240 = vadd.f32 %v2925, %v3176
      %v3241 = vadd.f32 %v2926, %v3178
      %v3242 = vadd.f32 %v2927, %v3181
      %v3243 = vadd.f32 %v2928, %v3183
      %v3244 = vadd.f32 %v2929, %v3186
      %v3245 = vadd.f32 %v2930, %v3188
      %v3246 = vadd.f32 %v2931, %v3191
      %v3247 = vadd.f32 %v2932, %v3193
      %v3248 = vadd.f32 %v2933, %v3196
      %v3249 = vadd.f32 %v2934, %v3198
      %v3250 = vadd.f32 %v2935, %v3201
      %v3251 = vadd.f32 %v2936, %v3203
      %v3252 = vadd.f32 %v2937, %v3206
      %v3253 = vadd.f32 %v2938, %v3208
      %v3254 = vadd.f32 %v2939, %v3211
      %v3255 = vadd.f32 %v2940, %v3213
      %v3256 = vadd.f32 %v2941, %v3216
      %v3257 = vadd.f32 %v2942, %v3218
      %v3258 = vadd.f32 %v2943, %v3221
      %v3259 = vadd.f32 %v2944, %v3223
      %v3260 = vadd.f32 %v2945, %v3226
      %v3261 = vadd.f32 %v2946, %v3228
      %v3262 = vld [vmem:[%s2947] sm:$0xf]
      %v3263 = vld [vmem:[%s2947 + $0x4] sm:$0xf]
      %v3264 = vld [vmem:[%s2947 + $0x8] sm:$0x1]
      %v3265 = vld [vmem:[%s2947 + $0xc] sm:$0xf]
      %v3266 = vld [vmem:[%s2947 + $0x10] sm:$0xf]
      %v3267 = vld [vmem:[%s2947 + $0x14] sm:$0x1]
      %v3268 = vld [vmem:[%s2947 + $0x18] sm:$0xf]
      %v3269 = vld [vmem:[%s2947 + $0x1c] sm:$0xf]
      %v3270 = vld [vmem:[%s2947 + $0x20] sm:$0x1]
      %v3271 = vld [vmem:[%s2947 + $0x24] sm:$0xf]
      %v3272 = vld [vmem:[%s2947 + $0x28] sm:$0xf]
      %v3273 = vld [vmem:[%s2947 + $0x2c] sm:$0x1]
      %v3274 = vld [vmem:[%s2947 + $0x30] sm:$0xf]
      %v3275 = vld [vmem:[%s2947 + $0x34] sm:$0xf]
      %v3276 = vld [vmem:[%s2947 + $0x38] sm:$0x1]
      %v3277 = vld [vmem:[%s2947 + $0x3c] sm:$0xf]
      %v3278 = vld [vmem:[%s2947 + $0x40] sm:$0xf]
      %v3279 = vld [vmem:[%s2947 + $0x44] sm:$0x1]
      %v3280 = vld [vmem:[%s2947 + $0x48] sm:$0xf]
      %v3281 = vld [vmem:[%s2947 + $0x4c] sm:$0xf]
      %v3282 = vld [vmem:[%s2947 + $0x50] sm:$0x1]
      %v3283 = vld [vmem:[%s2947 + $0x54] sm:$0xf]
      %v3284 = vld [vmem:[%s2947 + $0x58] sm:$0xf]
      %v3285 = vld [vmem:[%s2947 + $0x5c] sm:$0x1]
      %v3286 = vld [vmem:[%s2947 + $0x60] sm:$0xf]
      %v3287 = vld [vmem:[%s2947 + $0x64] sm:$0xf]
      %v3288 = vld [vmem:[%s2947 + $0x68] sm:$0x1]
      %v3289 = vld [vmem:[%s2947 + $0x6c] sm:$0xf]
      %v3290 = vld [vmem:[%s2947 + $0x70] sm:$0xf]
      %v3291 = vld [vmem:[%s2947 + $0x74] sm:$0x1]
      %v3292 = vld [vmem:[%s2947 + $0x78] sm:$0xf]
      %v3293 = vld [vmem:[%s2947 + $0x7c] sm:$0xf]
      %v3294 = vld [vmem:[%s2947 + $0x80] sm:$0x1]
      %v3295 = vld [vmem:[%s2947 + $0x84] sm:$0xf]
      %v3296 = vld [vmem:[%s2947 + $0x88] sm:$0xf]
      %v3297 = vld [vmem:[%s2947 + $0x8c] sm:$0x1]
      %v3298 = vld [vmem:[%s2947 + $0x90] sm:$0xf]
      %v3299 = vld [vmem:[%s2947 + $0x94] sm:$0xf]
      %v3300 = vld [vmem:[%s2947 + $0x98] sm:$0x1]
      %v3301 = vld [vmem:[%s2947 + $0x9c] sm:$0xf]
      %v3302 = vld [vmem:[%s2947 + $0xa0] sm:$0xf]
      %v3303 = vld [vmem:[%s2947 + $0xa4] sm:$0x1]
      %v3304 = vld [vmem:[%s2947 + $0xa8] sm:$0xf]
      %v3305 = vld [vmem:[%s2947 + $0xac] sm:$0xf]
      %v3306 = vld [vmem:[%s2947 + $0xb0] sm:$0x1]
      %v3307 = vld [vmem:[%s2947 + $0xb4] sm:$0xf]
      %v3308 = vld [vmem:[%s2947 + $0xb8] sm:$0xf]
      %v3309 = vld [vmem:[%s2947 + $0xbc] sm:$0x1]
      %v3311 = vshrl.u32 %v3262, 16
      %v3313 = vrot.slane %v3311, 4
      %v3314 = vshll.u32 %v3262, 16
      %v3316 = vrot.slane %v3314, 5
      %v3317 = vor.u32 %v3313, %v3316
      %v3318 = vrot.slane %v3317, 4
      %v3320 = vshll.u32 %v3263, 16
      %v3322 = vrot.slane %v3320, 5
      %v3323 = vsel %vm275, %v3318, %v3322
      %v3324 = vshrl.u32 %v3263, 16
      %v3326 = vrot.slane %v3324, 4
      %v3327 = vor.u32 %v3326, %v3322
      %v3328 = vrot.slane %v3327, 4
      %v3330 = vshll.u32 %v3264, 16
      %v3332 = vrot.slane %v3330, 5
      %v3333 = vsel %vm275, %v3328, %v3332
      %v3335 = vshrl.u32 %v3265, 16
      %v3337 = vrot.slane %v3335, 4
      %v3338 = vshll.u32 %v3265, 16
      %v3340 = vrot.slane %v3338, 5
      %v3341 = vor.u32 %v3337, %v3340
      %v3342 = vrot.slane %v3341, 4
      %v3344 = vshll.u32 %v3266, 16
      %v3346 = vrot.slane %v3344, 5
      %v3347 = vsel %vm275, %v3342, %v3346
      %v3348 = vshrl.u32 %v3266, 16
      %v3350 = vrot.slane %v3348, 4
      %v3351 = vor.u32 %v3350, %v3346
      %v3352 = vrot.slane %v3351, 4
      %v3354 = vshll.u32 %v3267, 16
      %v3356 = vrot.slane %v3354, 5
      %v3357 = vsel %vm275, %v3352, %v3356
      %v3359 = vshrl.u32 %v3268, 16
      %v3361 = vrot.slane %v3359, 4
      %v3362 = vshll.u32 %v3268, 16
      %v3364 = vrot.slane %v3362, 5
      %v3365 = vor.u32 %v3361, %v3364
      %v3366 = vrot.slane %v3365, 4
      %v3368 = vshll.u32 %v3269, 16
      %v3370 = vrot.slane %v3368, 5
      %v3371 = vsel %vm275, %v3366, %v3370
      %v3372 = vshrl.u32 %v3269, 16
      %v3374 = vrot.slane %v3372, 4
      %v3375 = vor.u32 %v3374, %v3370
      %v3376 = vrot.slane %v3375, 4
      %v3378 = vshll.u32 %v3270, 16
      %v3380 = vrot.slane %v3378, 5
      %v3381 = vsel %vm275, %v3376, %v3380
      %v3383 = vshrl.u32 %v3271, 16
      %v3385 = vrot.slane %v3383, 4
      %v3386 = vshll.u32 %v3271, 16
      %v3388 = vrot.slane %v3386, 5
      %v3389 = vor.u32 %v3385, %v3388
      %v3390 = vrot.slane %v3389, 4
      %v3392 = vshll.u32 %v3272, 16
      %v3394 = vrot.slane %v3392, 5
      %v3395 = vsel %vm275, %v3390, %v3394
      %v3396 = vshrl.u32 %v3272, 16
      %v3398 = vrot.slane %v3396, 4
      %v3399 = vor.u32 %v3398, %v3394
      %v3400 = vrot.slane %v3399, 4
      %v3402 = vshll.u32 %v3273, 16
      %v3404 = vrot.slane %v3402, 5
      %v3405 = vsel %vm275, %v3400, %v3404
      %v3407 = vshrl.u32 %v3274, 16
      %v3409 = vrot.slane %v3407, 4
      %v3410 = vshll.u32 %v3274, 16
      %v3412 = vrot.slane %v3410, 5
      %v3413 = vor.u32 %v3409, %v3412
      %v3414 = vrot.slane %v3413, 4
      %v3416 = vshll.u32 %v3275, 16
      %v3418 = vrot.slane %v3416, 5
      %v3419 = vsel %vm275, %v3414, %v3418
      %v3420 = vshrl.u32 %v3275, 16
      %v3422 = vrot.slane %v3420, 4
      %v3423 = vor.u32 %v3422, %v3418
      %v3424 = vrot.slane %v3423, 4
      %v3426 = vshll.u32 %v3276, 16
      %v3428 = vrot.slane %v3426, 5
      %v3429 = vsel %vm275, %v3424, %v3428
      %v3431 = vshrl.u32 %v3277, 16
      %v3433 = vrot.slane %v3431, 4
      %v3434 = vshll.u32 %v3277, 16
      %v3436 = vrot.slane %v3434, 5
      %v3437 = vor.u32 %v3433, %v3436
      %v3438 = vrot.slane %v3437, 4
      %v3440 = vshll.u32 %v3278, 16
      %v3442 = vrot.slane %v3440, 5
      %v3443 = vsel %vm275, %v3438, %v3442
      %v3444 = vshrl.u32 %v3278, 16
      %v3446 = vrot.slane %v3444, 4
      %v3447 = vor.u32 %v3446, %v3442
      %v3448 = vrot.slane %v3447, 4
      %v3450 = vshll.u32 %v3279, 16
      %v3452 = vrot.slane %v3450, 5
      %v3453 = vsel %vm275, %v3448, %v3452
      %v3455 = vshrl.u32 %v3280, 16
      %v3457 = vrot.slane %v3455, 4
      %v3458 = vshll.u32 %v3280, 16
      %v3460 = vrot.slane %v3458, 5
      %v3461 = vor.u32 %v3457, %v3460
      %v3462 = vrot.slane %v3461, 4
      %v3464 = vshll.u32 %v3281, 16
      %v3466 = vrot.slane %v3464, 5
      %v3467 = vsel %vm275, %v3462, %v3466
      %v3468 = vshrl.u32 %v3281, 16
      %v3470 = vrot.slane %v3468, 4
      %v3471 = vor.u32 %v3470, %v3466
      %v3472 = vrot.slane %v3471, 4
      %v3474 = vshll.u32 %v3282, 16
      %v3476 = vrot.slane %v3474, 5
      %v3477 = vsel %vm275, %v3472, %v3476
      %v3479 = vshrl.u32 %v3283, 16
      %v3481 = vrot.slane %v3479, 4
      %v3482 = vshll.u32 %v3283, 16
      %v3484 = vrot.slane %v3482, 5
      %v3485 = vor.u32 %v3481, %v3484
      %v3486 = vrot.slane %v3485, 4
      %v3488 = vshll.u32 %v3284, 16
      %v3490 = vrot.slane %v3488, 5
      %v3491 = vsel %vm275, %v3486, %v3490
      %v3492 = vshrl.u32 %v3284, 16
      %v3494 = vrot.slane %v3492, 4
      %v3495 = vor.u32 %v3494, %v3490
      %v3496 = vrot.slane %v3495, 4
      %v3498 = vshll.u32 %v3285, 16
      %v3500 = vrot.slane %v3498, 5
      %v3501 = vsel %vm275, %v3496, %v3500
      %v3503 = vshrl.u32 %v3286, 16
      %v3505 = vrot.slane %v3503, 4
      %v3506 = vshll.u32 %v3286, 16
      %v3508 = vrot.slane %v3506, 5
      %v3509 = vor.u32 %v3505, %v3508
      %v3510 = vrot.slane %v3509, 4
      %v3512 = vshll.u32 %v3287, 16
      %v3514 = vrot.slane %v3512, 5
      %v3515 = vsel %vm275, %v3510, %v3514
      %v3516 = vshrl.u32 %v3287, 16
      %v3518 = vrot.slane %v3516, 4
      %v3519 = vor.u32 %v3518, %v3514
      %v3520 = vrot.slane %v3519, 4
      %v3522 = vshll.u32 %v3288, 16
      %v3524 = vrot.slane %v3522, 5
      %v3525 = vsel %vm275, %v3520, %v3524
      %v3527 = vshrl.u32 %v3289, 16
      %v3529 = vrot.slane %v3527, 4
      %v3530 = vshll.u32 %v3289, 16
      %v3532 = vrot.slane %v3530, 5
      %v3533 = vor.u32 %v3529, %v3532
      %v3534 = vrot.slane %v3533, 4
      %v3536 = vshll.u32 %v3290, 16
      %v3538 = vrot.slane %v3536, 5
      %v3539 = vsel %vm275, %v3534, %v3538
      %v3540 = vshrl.u32 %v3290, 16
      %v3542 = vrot.slane %v3540, 4
      %v3543 = vor.u32 %v3542, %v3538
      %v3544 = vrot.slane %v3543, 4
      %v3546 = vshll.u32 %v3291, 16
      %v3548 = vrot.slane %v3546, 5
      %v3549 = vsel %vm275, %v3544, %v3548
      %v3551 = vshrl.u32 %v3292, 16
      %v3553 = vrot.slane %v3551, 4
      %v3554 = vshll.u32 %v3292, 16
      %v3556 = vrot.slane %v3554, 5
      %v3557 = vor.u32 %v3553, %v3556
      %v3558 = vrot.slane %v3557, 4
      %v3560 = vshll.u32 %v3293, 16
      %v3562 = vrot.slane %v3560, 5
      %v3563 = vsel %vm275, %v3558, %v3562
      %v3564 = vshrl.u32 %v3293, 16
      %v3566 = vrot.slane %v3564, 4
      %v3567 = vor.u32 %v3566, %v3562
      %v3568 = vrot.slane %v3567, 4
      %v3570 = vshll.u32 %v3294, 16
      %v3572 = vrot.slane %v3570, 5
      %v3573 = vsel %vm275, %v3568, %v3572
      %v3575 = vshrl.u32 %v3295, 16
      %v3577 = vrot.slane %v3575, 4
      %v3578 = vshll.u32 %v3295, 16
      %v3580 = vrot.slane %v3578, 5
      %v3581 = vor.u32 %v3577, %v3580
      %v3582 = vrot.slane %v3581, 4
      %v3584 = vshll.u32 %v3296, 16
      %v3586 = vrot.slane %v3584, 5
      %v3587 = vsel %vm275, %v3582, %v3586
      %v3588 = vshrl.u32 %v3296, 16
      %v3590 = vrot.slane %v3588, 4
      %v3591 = vor.u32 %v3590, %v3586
      %v3592 = vrot.slane %v3591, 4
      %v3594 = vshll.u32 %v3297, 16
      %v3596 = vrot.slane %v3594, 5
      %v3597 = vsel %vm275, %v3592, %v3596
      %v3599 = vshrl.u32 %v3298, 16
      %v3601 = vrot.slane %v3599, 4
      %v3602 = vshll.u32 %v3298, 16
      %v3604 = vrot.slane %v3602, 5
      %v3605 = vor.u32 %v3601, %v3604
      %v3606 = vrot.slane %v3605, 4
      %v3608 = vshll.u32 %v3299, 16
      %v3610 = vrot.slane %v3608, 5
      %v3611 = vsel %vm275, %v3606, %v3610
      %v3612 = vshrl.u32 %v3299, 16
      %v3614 = vrot.slane %v3612, 4
      %v3615 = vor.u32 %v3614, %v3610
      %v3616 = vrot.slane %v3615, 4
      %v3618 = vshll.u32 %v3300, 16
      %v3620 = vrot.slane %v3618, 5
      %v3621 = vsel %vm275, %v3616, %v3620
      %v3623 = vshrl.u32 %v3301, 16
      %v3625 = vrot.slane %v3623, 4
      %v3626 = vshll.u32 %v3301, 16
      %v3628 = vrot.slane %v3626, 5
      %v3629 = vor.u32 %v3625, %v3628
      %v3630 = vrot.slane %v3629, 4
      %v3632 = vshll.u32 %v3302, 16
      %v3634 = vrot.slane %v3632, 5
      %v3635 = vsel %vm275, %v3630, %v3634
      %v3636 = vshrl.u32 %v3302, 16
      %v3638 = vrot.slane %v3636, 4
      %v3639 = vor.u32 %v3638, %v3634
      %v3640 = vrot.slane %v3639, 4
      %v3642 = vshll.u32 %v3303, 16
      %v3644 = vrot.slane %v3642, 5
      %v3645 = vsel %vm275, %v3640, %v3644
      %v3647 = vshrl.u32 %v3304, 16
      %v3649 = vrot.slane %v3647, 4
      %v3650 = vshll.u32 %v3304, 16
      %v3652 = vrot.slane %v3650, 5
      %v3653 = vor.u32 %v3649, %v3652
      %v3654 = vrot.slane %v3653, 4
      %v3656 = vshll.u32 %v3305, 16
      %v3658 = vrot.slane %v3656, 5
      %v3659 = vsel %vm275, %v3654, %v3658
      %v3660 = vshrl.u32 %v3305, 16
      %v3662 = vrot.slane %v3660, 4
      %v3663 = vor.u32 %v3662, %v3658
      %v3664 = vrot.slane %v3663, 4
      %v3666 = vshll.u32 %v3306, 16
      %v3668 = vrot.slane %v3666, 5
      %v3669 = vsel %vm275, %v3664, %v3668
      %v3671 = vshrl.u32 %v3307, 16
      %v3673 = vrot.slane %v3671, 4
      %v3674 = vshll.u32 %v3307, 16
      %v3676 = vrot.slane %v3674, 5
      %v3677 = vor.u32 %v3673, %v3676
      %v3678 = vrot.slane %v3677, 4
      %v3680 = vshll.u32 %v3308, 16
      %v3682 = vrot.slane %v3680, 5
      %v3683 = vsel %vm275, %v3678, %v3682
      %v3684 = vshrl.u32 %v3308, 16
      %v3686 = vrot.slane %v3684, 4
      %v3687 = vor.u32 %v3686, %v3682
      %v3688 = vrot.slane %v3687, 4
      %v3690 = vshll.u32 %v3309, 16
      %v3692 = vrot.slane %v3690, 5
      %v3693 = vsel %vm275, %v3688, %v3692
      %s3694 = scalar_lea.vmem %s1, 448
      %v3695 = vld [vmem:[%s3694] sm:$0xf]
      %v3696 = vld [vmem:[%s3694 + $0x4] sm:$0xf]
      %v3697 = vld [vmem:[%s3694 + $0x8] sm:$0xf]
      %v3698 = vld [vmem:[%s3694 + $0xc] sm:$0xf]
      %v3699 = vld [vmem:[%s3694 + $0x10] sm:$0xf]
      %v3700 = vld [vmem:[%s3694 + $0x14] sm:$0xf]
      %v3701 = vld [vmem:[%s3694 + $0x18] sm:$0xf]
      %v3702 = vld [vmem:[%s3694 + $0x1c] sm:$0xf]
      %v3703 = vld [vmem:[%s3694 + $0x20] sm:$0xf]
      %v3704 = vld [vmem:[%s3694 + $0x24] sm:$0xf]
      %v3705 = vld [vmem:[%s3694 + $0x28] sm:$0xf]
      %v3706 = vld [vmem:[%s3694 + $0x2c] sm:$0xf]
      %v3707 = vld [vmem:[%s3694 + $0x30] sm:$0xf]
      %v3708 = vld [vmem:[%s3694 + $0x34] sm:$0xf]
      %v3709 = vld [vmem:[%s3694 + $0x38] sm:$0xf]
      %v3710 = vld [vmem:[%s3694 + $0x3c] sm:$0xf]
      %v3711 = vunpack.c.l.b16 %v3323
      %v3712 = vunpack.c.l.b16 %v3333
      %v3713 = vunpack.c.l.b16 %v3347
      %v3714 = vunpack.c.l.b16 %v3357
      %v3715 = vunpack.c.l.b16 %v3371
      %v3716 = vunpack.c.l.b16 %v3381
      %v3717 = vunpack.c.l.b16 %v3395
      %v3718 = vunpack.c.l.b16 %v3405
      %v3719 = vunpack.c.l.b16 %v3419
      %v3720 = vunpack.c.l.b16 %v3429
      %v3721 = vunpack.c.l.b16 %v3443
      %v3722 = vunpack.c.l.b16 %v3453
      %v3723 = vunpack.c.l.b16 %v3467
      %v3724 = vunpack.c.l.b16 %v3477
      %v3725 = vunpack.c.l.b16 %v3491
      %v3726 = vunpack.c.l.b16 %v3501
      %v3727 = vunpack.c.l.b16 %v3515
      %v3728 = vunpack.c.l.b16 %v3525
      %v3729 = vunpack.c.l.b16 %v3539
      %v3730 = vunpack.c.l.b16 %v3549
      %v3731 = vunpack.c.l.b16 %v3563
      %v3732 = vunpack.c.l.b16 %v3573
      %v3733 = vunpack.c.l.b16 %v3587
      %v3734 = vunpack.c.l.b16 %v3597
      %v3735 = vunpack.c.l.b16 %v3611
      %v3736 = vunpack.c.l.b16 %v3621
      %v3737 = vunpack.c.l.b16 %v3635
      %v3738 = vunpack.c.l.b16 %v3645
      %v3739 = vunpack.c.l.b16 %v3659
      %v3740 = vunpack.c.l.b16 %v3669
      %v3741 = vunpack.c.l.b16 %v3683
      %v3742 = vunpack.c.l.b16 %v3693
      %v3743 = vpack.c.b16 %v3712, %v3711
      %v3744 = vpack.c.b16 %v3714, %v3713
      %v3745 = vpack.c.b16 %v3716, %v3715
      %v3746 = vpack.c.b16 %v3718, %v3717
      %v3747 = vpack.c.b16 %v3720, %v3719
      %v3748 = vpack.c.b16 %v3722, %v3721
      %v3749 = vpack.c.b16 %v3724, %v3723
      %v3750 = vpack.c.b16 %v3726, %v3725
      %v3751 = vpack.c.b16 %v3728, %v3727
      %v3752 = vpack.c.b16 %v3730, %v3729
      %v3753 = vpack.c.b16 %v3732, %v3731
      %v3754 = vpack.c.b16 %v3734, %v3733
      %v3755 = vpack.c.b16 %v3736, %v3735
      %v3756 = vpack.c.b16 %v3738, %v3737
      %v3757 = vpack.c.b16 %v3740, %v3739
      %v3758 = vpack.c.b16 %v3742, %v3741
      %v3791 = vunpack.c.l.b16 %v3695
      %v3792 = vunpack.c.l.b16 %v3696
      %v3793 = vunpack.c.l.b16 %v3697
      %v3794 = vunpack.c.l.b16 %v3698
      %v3795 = vunpack.c.l.b16 %v3699
      %v3796 = vunpack.c.l.b16 %v3700
      %v3797 = vunpack.c.l.b16 %v3701
      %v3798 = vunpack.c.l.b16 %v3702
      %v3799 = vunpack.c.l.b16 %v3703
      %v3800 = vunpack.c.l.b16 %v3704
      %v3801 = vunpack.c.l.b16 %v3705
      %v3802 = vunpack.c.l.b16 %v3706
      %v3803 = vunpack.c.l.b16 %v3707
      %v3804 = vunpack.c.l.b16 %v3708
      %v3805 = vunpack.c.l.b16 %v3709
      %v3806 = vunpack.c.l.b16 %v3710
      %v3807 = vpack.c.b16 %v3792, %v3791
      %v3808 = vpack.c.b16 %v3794, %v3793
      %v3809 = vpack.c.b16 %v3796, %v3795
      %v3810 = vpack.c.b16 %v3798, %v3797
      %v3811 = vpack.c.b16 %v3800, %v3799
      %v3812 = vpack.c.b16 %v3802, %v3801
      %v3813 = vpack.c.b16 %v3804, %v3803
      %v3814 = vpack.c.b16 %v3806, %v3805
      %3823 = vmatpush.bf16.msra.mxu0 %v3814
      %3824 = vmatpush.bf16.msra.mxu0 %v3813
      %3825 = vmatpush.bf16.msra.mxu0 %v3812
      %3826 = vmatpush.bf16.msra.mxu0 %v3811
      %3827 = vmatpush.bf16.msra.mxu0 %v3810
      %3828 = vmatpush.bf16.msra.mxu0 %v3809
      %3829 = vmatpush.bf16.msra.mxu0 %v3808
      %3830 = vmatpush.bf16.msra.mxu0 %v3807
      %3831 = vmatmul.bf16.gmra.mxu0 %v3743
      %v3832 = vpop.f32.mrf.mxu0
      %v3833 = vadd.f32 0.0, %v3832
      %v3834 = vpop.f32.mrf.mxu0
      %v3835 = vadd.f32 0.0, %v3834
      %3836 = vmatmul.bf16.gmra.mxu0 %v3744
      %v3837 = vpop.f32.mrf.mxu0
      %v3838 = vadd.f32 0.0, %v3837
      %v3839 = vpop.f32.mrf.mxu0
      %v3840 = vadd.f32 0.0, %v3839
      %3841 = vmatmul.bf16.gmra.mxu0 %v3745
      %v3842 = vpop.f32.mrf.mxu0
      %v3843 = vadd.f32 0.0, %v3842
      %v3844 = vpop.f32.mrf.mxu0
      %v3845 = vadd.f32 0.0, %v3844
      %3846 = vmatmul.bf16.gmra.mxu0 %v3746
      %v3847 = vpop.f32.mrf.mxu0
      %v3848 = vadd.f32 0.0, %v3847
      %v3849 = vpop.f32.mrf.mxu0
      %v3850 = vadd.f32 0.0, %v3849
      %3851 = vmatmul.bf16.gmra.mxu0 %v3747
      %v3852 = vpop.f32.mrf.mxu0
      %v3853 = vadd.f32 0.0, %v3852
      %v3854 = vpop.f32.mrf.mxu0
      %v3855 = vadd.f32 0.0, %v3854
      %3856 = vmatmul.bf16.gmra.mxu0 %v3748
      %v3857 = vpop.f32.mrf.mxu0
      %v3858 = vadd.f32 0.0, %v3857
      %v3859 = vpop.f32.mrf.mxu0
      %v3860 = vadd.f32 0.0, %v3859
      %3861 = vmatmul.bf16.gmra.mxu0 %v3749
      %v3862 = vpop.f32.mrf.mxu0
      %v3863 = vadd.f32 0.0, %v3862
      %v3864 = vpop.f32.mrf.mxu0
      %v3865 = vadd.f32 0.0, %v3864
      %3866 = vmatmul.bf16.gmra.mxu0 %v3750
      %v3867 = vpop.f32.mrf.mxu0
      %v3868 = vadd.f32 0.0, %v3867
      %v3869 = vpop.f32.mrf.mxu0
      %v3870 = vadd.f32 0.0, %v3869
      %3871 = vmatmul.bf16.gmra.mxu0 %v3751
      %v3872 = vpop.f32.mrf.mxu0
      %v3873 = vadd.f32 0.0, %v3872
      %v3874 = vpop.f32.mrf.mxu0
      %v3875 = vadd.f32 0.0, %v3874
      %3876 = vmatmul.bf16.gmra.mxu0 %v3752
      %v3877 = vpop.f32.mrf.mxu0
      %v3878 = vadd.f32 0.0, %v3877
      %v3879 = vpop.f32.mrf.mxu0
      %v3880 = vadd.f32 0.0, %v3879
      %3881 = vmatmul.bf16.gmra.mxu0 %v3753
      %v3882 = vpop.f32.mrf.mxu0
      %v3883 = vadd.f32 0.0, %v3882
      %v3884 = vpop.f32.mrf.mxu0
      %v3885 = vadd.f32 0.0, %v3884
      %3886 = vmatmul.bf16.gmra.mxu0 %v3754
      %v3887 = vpop.f32.mrf.mxu0
      %v3888 = vadd.f32 0.0, %v3887
      %v3889 = vpop.f32.mrf.mxu0
      %v3890 = vadd.f32 0.0, %v3889
      %3891 = vmatmul.bf16.gmra.mxu0 %v3755
      %v3892 = vpop.f32.mrf.mxu0
      %v3893 = vadd.f32 0.0, %v3892
      %v3894 = vpop.f32.mrf.mxu0
      %v3895 = vadd.f32 0.0, %v3894
      %3896 = vmatmul.bf16.gmra.mxu0 %v3756
      %v3897 = vpop.f32.mrf.mxu0
      %v3898 = vadd.f32 0.0, %v3897
      %v3899 = vpop.f32.mrf.mxu0
      %v3900 = vadd.f32 0.0, %v3899
      %3901 = vmatmul.bf16.gmra.mxu0 %v3757
      %v3902 = vpop.f32.mrf.mxu0
      %v3903 = vadd.f32 0.0, %v3902
      %v3904 = vpop.f32.mrf.mxu0
      %v3905 = vadd.f32 0.0, %v3904
      %3906 = vmatmul.bf16.gmra.mxu0 %v3758
      %v3907 = vpop.f32.mrf.mxu0
      %v3908 = vadd.f32 0.0, %v3907
      %v3909 = vpop.f32.mrf.mxu0
      %v3910 = vadd.f32 0.0, %v3909
      %3911 = vdwg.mxu0
      %v3912 = vadd.f32 %v3230, %v3833
      %v3913 = vadd.f32 %v3231, %v3835
      %v3914 = vadd.f32 %v3232, %v3838
      %v3915 = vadd.f32 %v3233, %v3840
      %v3916 = vadd.f32 %v3234, %v3843
      %v3917 = vadd.f32 %v3235, %v3845
      %v3918 = vadd.f32 %v3236, %v3848
      %v3919 = vadd.f32 %v3237, %v3850
      %v3920 = vadd.f32 %v3238, %v3853
      %v3921 = vadd.f32 %v3239, %v3855
      %v3922 = vadd.f32 %v3240, %v3858
      %v3923 = vadd.f32 %v3241, %v3860
      %v3924 = vadd.f32 %v3242, %v3863
      %v3925 = vadd.f32 %v3243, %v3865
      %v3926 = vadd.f32 %v3244, %v3868
      %v3927 = vadd.f32 %v3245, %v3870
      %v3928 = vadd.f32 %v3246, %v3873
      %v3929 = vadd.f32 %v3247, %v3875
      %v3930 = vadd.f32 %v3248, %v3878
      %v3931 = vadd.f32 %v3249, %v3880
      %v3932 = vadd.f32 %v3250, %v3883
      %v3933 = vadd.f32 %v3251, %v3885
      %v3934 = vadd.f32 %v3252, %v3888
      %v3935 = vadd.f32 %v3253, %v3890
      %v3936 = vadd.f32 %v3254, %v3893
      %v3937 = vadd.f32 %v3255, %v3895
      %v3938 = vadd.f32 %v3256, %v3898
      %v3939 = vadd.f32 %v3257, %v3900
      %v3940 = vadd.f32 %v3258, %v3903
      %v3941 = vadd.f32 %v3259, %v3905
      %v3942 = vadd.f32 %v3260, %v3908
      %v3943 = vadd.f32 %v3261, %v3910
      %v3944 = vld [vmem:[%s2947] sm:$0xe]
      %v3945 = vld [vmem:[%s2947 + $0xc] sm:$0xe]
      %v3946 = vld [vmem:[%s2947 + $0x18] sm:$0xe]
      %v3947 = vld [vmem:[%s2947 + $0x24] sm:$0xe]
      %v3948 = vld [vmem:[%s2947 + $0x30] sm:$0xe]
      %v3949 = vld [vmem:[%s2947 + $0x3c] sm:$0xe]
      %v3950 = vld [vmem:[%s2947 + $0x48] sm:$0xe]
      %v3951 = vld [vmem:[%s2947 + $0x54] sm:$0xe]
      %v3952 = vld [vmem:[%s2947 + $0x60] sm:$0xe]
      %v3953 = vld [vmem:[%s2947 + $0x6c] sm:$0xe]
      %v3954 = vld [vmem:[%s2947 + $0x78] sm:$0xe]
      %v3955 = vld [vmem:[%s2947 + $0x84] sm:$0xe]
      %v3956 = vld [vmem:[%s2947 + $0x90] sm:$0xe]
      %v3957 = vld [vmem:[%s2947 + $0x9c] sm:$0xe]
      %v3958 = vld [vmem:[%s2947 + $0xa8] sm:$0xe]
      %v3959 = vld [vmem:[%s2947 + $0xb4] sm:$0xe]
      %v4008 = vrot.slane %v3944, 5
      %v4009 = vrot.slane %v4008, 4
      %v4010 = vrot.slane %v3263, 5
      %v4011 = vsel %vm1161, %v4009, %v4010
      %v4012 = vrot.slane %v4010, 4
      %v4013 = vrot.slane %v3264, 5
      %v4014 = vsel %vm1161, %v4012, %v4013
      %v4015 = vrot.slane %v3945, 5
      %v4016 = vrot.slane %v4015, 4
      %v4017 = vrot.slane %v3266, 5
      %v4018 = vsel %vm1161, %v4016, %v4017
      %v4019 = vrot.slane %v4017, 4
      %v4020 = vrot.slane %v3267, 5
      %v4021 = vsel %vm1161, %v4019, %v4020
      %v4022 = vrot.slane %v3946, 5
      %v4023 = vrot.slane %v4022, 4
      %v4024 = vrot.slane %v3269, 5
      %v4025 = vsel %vm1161, %v4023, %v4024
      %v4026 = vrot.slane %v4024, 4
      %v4027 = vrot.slane %v3270, 5
      %v4028 = vsel %vm1161, %v4026, %v4027
      %v4029 = vrot.slane %v3947, 5
      %v4030 = vrot.slane %v4029, 4
      %v4031 = vrot.slane %v3272, 5
      %v4032 = vsel %vm1161, %v4030, %v4031
      %v4033 = vrot.slane %v4031, 4
      %v4034 = vrot.slane %v3273, 5
      %v4035 = vsel %vm1161, %v4033, %v4034
      %v4036 = vrot.slane %v3948, 5
      %v4037 = vrot.slane %v4036, 4
      %v4038 = vrot.slane %v3275, 5
      %v4039 = vsel %vm1161, %v4037, %v4038
      %v4040 = vrot.slane %v4038, 4
      %v4041 = vrot.slane %v3276, 5
      %v4042 = vsel %vm1161, %v4040, %v4041
      %v4043 = vrot.slane %v3949, 5
      %v4044 = vrot.slane %v4043, 4
      %v4045 = vrot.slane %v3278, 5
      %v4046 = vsel %vm1161, %v4044, %v4045
      %v4047 = vrot.slane %v4045, 4
      %v4048 = vrot.slane %v3279, 5
      %v4049 = vsel %vm1161, %v4047, %v4048
      %v4050 = vrot.slane %v3950, 5
      %v4051 = vrot.slane %v4050, 4
      %v4052 = vrot.slane %v3281, 5
      %v4053 = vsel %vm1161, %v4051, %v4052
      %v4054 = vrot.slane %v4052, 4
      %v4055 = vrot.slane %v3282, 5
      %v4056 = vsel %vm1161, %v4054, %v4055
      %v4057 = vrot.slane %v3951, 5
      %v4058 = vrot.slane %v4057, 4
      %v4059 = vrot.slane %v3284, 5
      %v4060 = vsel %vm1161, %v4058, %v4059
      %v4061 = vrot.slane %v4059, 4
      %v4062 = vrot.slane %v3285, 5
      %v4063 = vsel %vm1161, %v4061, %v4062
      %v4064 = vrot.slane %v3952, 5
      %v4065 = vrot.slane %v4064, 4
      %v4066 = vrot.slane %v3287, 5
      %v4067 = vsel %vm1161, %v4065, %v4066
      %v4068 = vrot.slane %v4066, 4
      %v4069 = vrot.slane %v3288, 5
      %v4070 = vsel %vm1161, %v4068, %v4069
      %v4071 = vrot.slane %v3953, 5
      %v4072 = vrot.slane %v4071, 4
      %v4073 = vrot.slane %v3290, 5
      %v4074 = vsel %vm1161, %v4072, %v4073
      %v4075 = vrot.slane %v4073, 4
      %v4076 = vrot.slane %v3291, 5
      %v4077 = vsel %vm1161, %v4075, %v4076
      %v4078 = vrot.slane %v3954, 5
      %v4079 = vrot.slane %v4078, 4
      %v4080 = vrot.slane %v3293, 5
      %v4081 = vsel %vm1161, %v4079, %v4080
      %v4082 = vrot.slane %v4080, 4
      %v4083 = vrot.slane %v3294, 5
      %v4084 = vsel %vm1161, %v4082, %v4083
      %v4085 = vrot.slane %v3955, 5
      %v4086 = vrot.slane %v4085, 4
      %v4087 = vrot.slane %v3296, 5
      %v4088 = vsel %vm1161, %v4086, %v4087
      %v4089 = vrot.slane %v4087, 4
      %v4090 = vrot.slane %v3297, 5
      %v4091 = vsel %vm1161, %v4089, %v4090
      %v4092 = vrot.slane %v3956, 5
      %v4093 = vrot.slane %v4092, 4
      %v4094 = vrot.slane %v3299, 5
      %v4095 = vsel %vm1161, %v4093, %v4094
      %v4096 = vrot.slane %v4094, 4
      %v4097 = vrot.slane %v3300, 5
      %v4098 = vsel %vm1161, %v4096, %v4097
      %v4099 = vrot.slane %v3957, 5
      %v4100 = vrot.slane %v4099, 4
      %v4101 = vrot.slane %v3302, 5
      %v4102 = vsel %vm1161, %v4100, %v4101
      %v4103 = vrot.slane %v4101, 4
      %v4104 = vrot.slane %v3303, 5
      %v4105 = vsel %vm1161, %v4103, %v4104
      %v4106 = vrot.slane %v3958, 5
      %v4107 = vrot.slane %v4106, 4
      %v4108 = vrot.slane %v3305, 5
      %v4109 = vsel %vm1161, %v4107, %v4108
      %v4110 = vrot.slane %v4108, 4
      %v4111 = vrot.slane %v3306, 5
      %v4112 = vsel %vm1161, %v4110, %v4111
      %v4113 = vrot.slane %v3959, 5
      %v4114 = vrot.slane %v4113, 4
      %v4115 = vrot.slane %v3308, 5
      %v4116 = vsel %vm1161, %v4114, %v4115
      %v4117 = vrot.slane %v4115, 4
      %v4118 = vrot.slane %v3309, 5
      %v4119 = vsel %vm1161, %v4117, %v4118
      %s4120 = scalar_lea.vmem %s1, 512
      %v4121 = vld [vmem:[%s4120] sm:$0xf]
      %v4122 = vld [vmem:[%s4120 + $0x4] sm:$0xf]
      %v4123 = vld [vmem:[%s4120 + $0x8] sm:$0xf]
      %v4124 = vld [vmem:[%s4120 + $0xc] sm:$0xf]
      %v4125 = vld [vmem:[%s4120 + $0x10] sm:$0xf]
      %v4126 = vld [vmem:[%s4120 + $0x14] sm:$0xf]
      %v4127 = vld [vmem:[%s4120 + $0x18] sm:$0xf]
      %v4128 = vld [vmem:[%s4120 + $0x1c] sm:$0xf]
      %v4129 = vld [vmem:[%s4120 + $0x20] sm:$0xf]
      %v4130 = vld [vmem:[%s4120 + $0x24] sm:$0xf]
      %v4131 = vld [vmem:[%s4120 + $0x28] sm:$0xf]
      %v4132 = vld [vmem:[%s4120 + $0x2c] sm:$0xf]
      %v4133 = vld [vmem:[%s4120 + $0x30] sm:$0xf]
      %v4134 = vld [vmem:[%s4120 + $0x34] sm:$0xf]
      %v4135 = vld [vmem:[%s4120 + $0x38] sm:$0xf]
      %v4136 = vld [vmem:[%s4120 + $0x3c] sm:$0xf]
      %v4137 = vunpack.c.l.b16 %v4011
      %v4138 = vunpack.c.l.b16 %v4014
      %v4139 = vunpack.c.l.b16 %v4018
      %v4140 = vunpack.c.l.b16 %v4021
      %v4141 = vunpack.c.l.b16 %v4025
      %v4142 = vunpack.c.l.b16 %v4028
      %v4143 = vunpack.c.l.b16 %v4032
      %v4144 = vunpack.c.l.b16 %v4035
      %v4145 = vunpack.c.l.b16 %v4039
      %v4146 = vunpack.c.l.b16 %v4042
      %v4147 = vunpack.c.l.b16 %v4046
      %v4148 = vunpack.c.l.b16 %v4049
      %v4149 = vunpack.c.l.b16 %v4053
      %v4150 = vunpack.c.l.b16 %v4056
      %v4151 = vunpack.c.l.b16 %v4060
      %v4152 = vunpack.c.l.b16 %v4063
      %v4153 = vunpack.c.l.b16 %v4067
      %v4154 = vunpack.c.l.b16 %v4070
      %v4155 = vunpack.c.l.b16 %v4074
      %v4156 = vunpack.c.l.b16 %v4077
      %v4157 = vunpack.c.l.b16 %v4081
      %v4158 = vunpack.c.l.b16 %v4084
      %v4159 = vunpack.c.l.b16 %v4088
      %v4160 = vunpack.c.l.b16 %v4091
      %v4161 = vunpack.c.l.b16 %v4095
      %v4162 = vunpack.c.l.b16 %v4098
      %v4163 = vunpack.c.l.b16 %v4102
      %v4164 = vunpack.c.l.b16 %v4105
      %v4165 = vunpack.c.l.b16 %v4109
      %v4166 = vunpack.c.l.b16 %v4112
      %v4167 = vunpack.c.l.b16 %v4116
      %v4168 = vunpack.c.l.b16 %v4119
      %v4169 = vpack.c.b16 %v4138, %v4137
      %v4170 = vpack.c.b16 %v4140, %v4139
      %v4171 = vpack.c.b16 %v4142, %v4141
      %v4172 = vpack.c.b16 %v4144, %v4143
      %v4173 = vpack.c.b16 %v4146, %v4145
      %v4174 = vpack.c.b16 %v4148, %v4147
      %v4175 = vpack.c.b16 %v4150, %v4149
      %v4176 = vpack.c.b16 %v4152, %v4151
      %v4177 = vpack.c.b16 %v4154, %v4153
      %v4178 = vpack.c.b16 %v4156, %v4155
      %v4179 = vpack.c.b16 %v4158, %v4157
      %v4180 = vpack.c.b16 %v4160, %v4159
      %v4181 = vpack.c.b16 %v4162, %v4161
      %v4182 = vpack.c.b16 %v4164, %v4163
      %v4183 = vpack.c.b16 %v4166, %v4165
      %v4184 = vpack.c.b16 %v4168, %v4167
      %v4217 = vunpack.c.l.b16 %v4121
      %v4218 = vunpack.c.l.b16 %v4122
      %v4219 = vunpack.c.l.b16 %v4123
      %v4220 = vunpack.c.l.b16 %v4124
      %v4221 = vunpack.c.l.b16 %v4125
      %v4222 = vunpack.c.l.b16 %v4126
      %v4223 = vunpack.c.l.b16 %v4127
      %v4224 = vunpack.c.l.b16 %v4128
      %v4225 = vunpack.c.l.b16 %v4129
      %v4226 = vunpack.c.l.b16 %v4130
      %v4227 = vunpack.c.l.b16 %v4131
      %v4228 = vunpack.c.l.b16 %v4132
      %v4229 = vunpack.c.l.b16 %v4133
      %v4230 = vunpack.c.l.b16 %v4134
      %v4231 = vunpack.c.l.b16 %v4135
      %v4232 = vunpack.c.l.b16 %v4136
      %v4233 = vpack.c.b16 %v4218, %v4217
      %v4234 = vpack.c.b16 %v4220, %v4219
      %v4235 = vpack.c.b16 %v4222, %v4221
      %v4236 = vpack.c.b16 %v4224, %v4223
      %v4237 = vpack.c.b16 %v4226, %v4225
      %v4238 = vpack.c.b16 %v4228, %v4227
      %v4239 = vpack.c.b16 %v4230, %v4229
      %v4240 = vpack.c.b16 %v4232, %v4231
      %4249 = vmatpush.bf16.msra.mxu0 %v4240
      %4250 = vmatpush.bf16.msra.mxu0 %v4239
      %4251 = vmatpush.bf16.msra.mxu0 %v4238
      %4252 = vmatpush.bf16.msra.mxu0 %v4237
      %4253 = vmatpush.bf16.msra.mxu0 %v4236
      %4254 = vmatpush.bf16.msra.mxu0 %v4235
      %4255 = vmatpush.bf16.msra.mxu0 %v4234
      %4256 = vmatpush.bf16.msra.mxu0 %v4233
      %4257 = vmatmul.bf16.gmra.mxu0 %v4169
      %v4258 = vpop.f32.mrf.mxu0
      %v4259 = vadd.f32 0.0, %v4258
      %v4260 = vpop.f32.mrf.mxu0
      %v4261 = vadd.f32 0.0, %v4260
      %4262 = vmatmul.bf16.gmra.mxu0 %v4170
      %v4263 = vpop.f32.mrf.mxu0
      %v4264 = vadd.f32 0.0, %v4263
      %v4265 = vpop.f32.mrf.mxu0
      %v4266 = vadd.f32 0.0, %v4265
      %4267 = vmatmul.bf16.gmra.mxu0 %v4171
      %v4268 = vpop.f32.mrf.mxu0
      %v4269 = vadd.f32 0.0, %v4268
      %v4270 = vpop.f32.mrf.mxu0
      %v4271 = vadd.f32 0.0, %v4270
      %4272 = vmatmul.bf16.gmra.mxu0 %v4172
      %v4273 = vpop.f32.mrf.mxu0
      %v4274 = vadd.f32 0.0, %v4273
      %v4275 = vpop.f32.mrf.mxu0
      %v4276 = vadd.f32 0.0, %v4275
      %4277 = vmatmul.bf16.gmra.mxu0 %v4173
      %v4278 = vpop.f32.mrf.mxu0
      %v4279 = vadd.f32 0.0, %v4278
      %v4280 = vpop.f32.mrf.mxu0
      %v4281 = vadd.f32 0.0, %v4280
      %4282 = vmatmul.bf16.gmra.mxu0 %v4174
      %v4283 = vpop.f32.mrf.mxu0
      %v4284 = vadd.f32 0.0, %v4283
      %v4285 = vpop.f32.mrf.mxu0
      %v4286 = vadd.f32 0.0, %v4285
      %4287 = vmatmul.bf16.gmra.mxu0 %v4175
      %v4288 = vpop.f32.mrf.mxu0
      %v4289 = vadd.f32 0.0, %v4288
      %v4290 = vpop.f32.mrf.mxu0
      %v4291 = vadd.f32 0.0, %v4290
      %4292 = vmatmul.bf16.gmra.mxu0 %v4176
      %v4293 = vpop.f32.mrf.mxu0
      %v4294 = vadd.f32 0.0, %v4293
      %v4295 = vpop.f32.mrf.mxu0
      %v4296 = vadd.f32 0.0, %v4295
      %4297 = vmatmul.bf16.gmra.mxu0 %v4177
      %v4298 = vpop.f32.mrf.mxu0
      %v4299 = vadd.f32 0.0, %v4298
      %v4300 = vpop.f32.mrf.mxu0
      %v4301 = vadd.f32 0.0, %v4300
      %4302 = vmatmul.bf16.gmra.mxu0 %v4178
      %v4303 = vpop.f32.mrf.mxu0
      %v4304 = vadd.f32 0.0, %v4303
      %v4305 = vpop.f32.mrf.mxu0
      %v4306 = vadd.f32 0.0, %v4305
      %4307 = vmatmul.bf16.gmra.mxu0 %v4179
      %v4308 = vpop.f32.mrf.mxu0
      %v4309 = vadd.f32 0.0, %v4308
      %v4310 = vpop.f32.mrf.mxu0
      %v4311 = vadd.f32 0.0, %v4310
      %4312 = vmatmul.bf16.gmra.mxu0 %v4180
      %v4313 = vpop.f32.mrf.mxu0
      %v4314 = vadd.f32 0.0, %v4313
      %v4315 = vpop.f32.mrf.mxu0
      %v4316 = vadd.f32 0.0, %v4315
      %4317 = vmatmul.bf16.gmra.mxu0 %v4181
      %v4318 = vpop.f32.mrf.mxu0
      %v4319 = vadd.f32 0.0, %v4318
      %v4320 = vpop.f32.mrf.mxu0
      %v4321 = vadd.f32 0.0, %v4320
      %4322 = vmatmul.bf16.gmra.mxu0 %v4182
      %v4323 = vpop.f32.mrf.mxu0
      %v4324 = vadd.f32 0.0, %v4323
      %v4325 = vpop.f32.mrf.mxu0
      %v4326 = vadd.f32 0.0, %v4325
      %4327 = vmatmul.bf16.gmra.mxu0 %v4183
      %v4328 = vpop.f32.mrf.mxu0
      %v4329 = vadd.f32 0.0, %v4328
      %v4330 = vpop.f32.mrf.mxu0
      %v4331 = vadd.f32 0.0, %v4330
      %4332 = vmatmul.bf16.gmra.mxu0 %v4184
      %v4333 = vpop.f32.mrf.mxu0
      %v4334 = vadd.f32 0.0, %v4333
      %v4335 = vpop.f32.mrf.mxu0
      %v4336 = vadd.f32 0.0, %v4335
      %4337 = vdwg.mxu0
      %v4338 = vadd.f32 %v3912, %v4259
      %v4339 = vadd.f32 %v3913, %v4261
      %v4340 = vadd.f32 %v3914, %v4264
      %v4341 = vadd.f32 %v3915, %v4266
      %v4342 = vadd.f32 %v3916, %v4269
      %v4343 = vadd.f32 %v3917, %v4271
      %v4344 = vadd.f32 %v3918, %v4274
      %v4345 = vadd.f32 %v3919, %v4276
      %v4346 = vadd.f32 %v3920, %v4279
      %v4347 = vadd.f32 %v3921, %v4281
      %v4348 = vadd.f32 %v3922, %v4284
      %v4349 = vadd.f32 %v3923, %v4286
      %v4350 = vadd.f32 %v3924, %v4289
      %v4351 = vadd.f32 %v3925, %v4291
      %v4352 = vadd.f32 %v3926, %v4294
      %v4353 = vadd.f32 %v3927, %v4296
      %v4354 = vadd.f32 %v3928, %v4299
      %v4355 = vadd.f32 %v3929, %v4301
      %v4356 = vadd.f32 %v3930, %v4304
      %v4357 = vadd.f32 %v3931, %v4306
      %v4358 = vadd.f32 %v3932, %v4309
      %v4359 = vadd.f32 %v3933, %v4311
      %v4360 = vadd.f32 %v3934, %v4314
      %v4361 = vadd.f32 %v3935, %v4316
      %v4362 = vadd.f32 %v3936, %v4319
      %v4363 = vadd.f32 %v3937, %v4321
      %v4364 = vadd.f32 %v3938, %v4324
      %v4365 = vadd.f32 %v3939, %v4326
      %v4366 = vadd.f32 %v3940, %v4329
      %v4367 = vadd.f32 %v3941, %v4331
      %v4368 = vadd.f32 %v3942, %v4334
      %v4369 = vadd.f32 %v3943, %v4336
      %v4370 = vld [vmem:[%s2] sm:$0x1]
      %v4372 = vperm.slane %v4370, 0
      %v4374 = vadd.f32 %v4338, %v4372
      %v4375 = vadd.f32 %v4339, %v4372
      %v4376 = vadd.f32 %v4340, %v4372
      %v4377 = vadd.f32 %v4341, %v4372
      %v4378 = vadd.f32 %v4342, %v4372
      %v4379 = vadd.f32 %v4343, %v4372
      %v4380 = vadd.f32 %v4344, %v4372
      %v4381 = vadd.f32 %v4345, %v4372
      %v4382 = vadd.f32 %v4346, %v4372
      %v4383 = vadd.f32 %v4347, %v4372
      %v4384 = vadd.f32 %v4348, %v4372
      %v4385 = vadd.f32 %v4349, %v4372
      %v4386 = vadd.f32 %v4350, %v4372
      %v4387 = vadd.f32 %v4351, %v4372
      %v4388 = vadd.f32 %v4352, %v4372
      %v4389 = vadd.f32 %v4353, %v4372
      %v4390 = vadd.f32 %v4354, %v4372
      %v4391 = vadd.f32 %v4355, %v4372
      %v4392 = vadd.f32 %v4356, %v4372
      %v4393 = vadd.f32 %v4357, %v4372
      %v4394 = vadd.f32 %v4358, %v4372
      %v4395 = vadd.f32 %v4359, %v4372
      %v4396 = vadd.f32 %v4360, %v4372
      %v4397 = vadd.f32 %v4361, %v4372
      %v4398 = vadd.f32 %v4362, %v4372
      %v4399 = vadd.f32 %v4363, %v4372
      %v4400 = vadd.f32 %v4364, %v4372
      %v4401 = vadd.f32 %v4365, %v4372
      %v4402 = vadd.f32 %v4366, %v4372
      %v4403 = vadd.f32 %v4367, %v4372
      %v4404 = vadd.f32 %v4368, %v4372
      %v4405 = vadd.f32 %v4369, %v4372
      %4406 = vst [vmem:[%s204] sm:$0xff] %v4374
      %4407 = vst [vmem:[%s204 + $0x8] sm:$0xff] %v4375
      %4408 = vst [vmem:[%s204 + $0x10] sm:$0xff] %v4376
      %4409 = vst [vmem:[%s204 + $0x18] sm:$0xff] %v4377
      %4410 = vst [vmem:[%s204 + $0x20] sm:$0xff] %v4378
      %4411 = vst [vmem:[%s204 + $0x28] sm:$0xff] %v4379
      %4412 = vst [vmem:[%s204 + $0x30] sm:$0xff] %v4380
      %4413 = vst [vmem:[%s204 + $0x38] sm:$0xff] %v4381
      %4414 = vst [vmem:[%s204 + $0x40] sm:$0xff] %v4382
      %4415 = vst [vmem:[%s204 + $0x48] sm:$0xff] %v4383
      %4416 = vst [vmem:[%s204 + $0x50] sm:$0xff] %v4384
      %4417 = vst [vmem:[%s204 + $0x58] sm:$0xff] %v4385
      %4418 = vst [vmem:[%s204 + $0x60] sm:$0xff] %v4386
      %4419 = vst [vmem:[%s204 + $0x68] sm:$0xff] %v4387
      %4420 = vst [vmem:[%s204 + $0x70] sm:$0xff] %v4388
      %4421 = vst [vmem:[%s204 + $0x78] sm:$0xff] %v4389
      %4422 = vst [vmem:[%s204 + $0x80] sm:$0xff] %v4390
      %4423 = vst [vmem:[%s204 + $0x88] sm:$0xff] %v4391
      %4424 = vst [vmem:[%s204 + $0x90] sm:$0xff] %v4392
      %4425 = vst [vmem:[%s204 + $0x98] sm:$0xff] %v4393
      %4426 = vst [vmem:[%s204 + $0xa0] sm:$0xff] %v4394
      %4427 = vst [vmem:[%s204 + $0xa8] sm:$0xff] %v4395
      %4428 = vst [vmem:[%s204 + $0xb0] sm:$0xff] %v4396
      %4429 = vst [vmem:[%s204 + $0xb8] sm:$0xff] %v4397
      %4430 = vst [vmem:[%s204 + $0xc0] sm:$0xff] %v4398
      %4431 = vst [vmem:[%s204 + $0xc8] sm:$0xff] %v4399
      %4432 = vst [vmem:[%s204 + $0xd0] sm:$0xff] %v4400
      %4433 = vst [vmem:[%s204 + $0xd8] sm:$0xff] %v4401
      %4434 = vst [vmem:[%s204 + $0xe0] sm:$0xff] %v4402
      %4435 = vst [vmem:[%s204 + $0xe8] sm:$0xff] %v4403
      %4436 = vst [vmem:[%s204 + $0xf0] sm:$0xff] %v4404
      %4437 = vst [vmem:[%s204 + $0xf8] sm:$0xff] %v4405
      %v4438 = vadd.f32 %v4374, %v4375
      %v4439 = vadd.f32 %v4438, %v4376
      %v4440 = vadd.f32 %v4439, %v4377
      %v4441 = vadd.f32 %v4440, %v4378
      %v4442 = vadd.f32 %v4441, %v4379
      %v4443 = vadd.f32 %v4442, %v4380
      %v4444 = vadd.f32 %v4443, %v4381
      %v4445 = vadd.f32 %v4444, %v4382
      %v4446 = vadd.f32 %v4445, %v4383
      %v4447 = vadd.f32 %v4446, %v4384
      %v4448 = vadd.f32 %v4447, %v4385
      %v4449 = vadd.f32 %v4448, %v4386
      %v4450 = vadd.f32 %v4449, %v4387
      %v4451 = vadd.f32 %v4450, %v4388
      %v4452 = vadd.f32 %v4451, %v4389
      %v4453 = vadd.f32 %v4452, %v4390
      %v4454 = vadd.f32 %v4453, %v4391
      %v4455 = vadd.f32 %v4454, %v4392
      %v4456 = vadd.f32 %v4455, %v4393
      %v4457 = vadd.f32 %v4456, %v4394
      %v4458 = vadd.f32 %v4457, %v4395
      %v4459 = vadd.f32 %v4458, %v4396
      %v4460 = vadd.f32 %v4459, %v4397
      %v4461 = vadd.f32 %v4460, %v4398
      %v4462 = vadd.f32 %v4461, %v4399
      %v4463 = vadd.f32 %v4462, %v4400
      %v4464 = vadd.f32 %v4463, %v4401
      %v4465 = vadd.f32 %v4464, %v4402
      %v4466 = vadd.f32 %v4465, %v4403
      %v4467 = vadd.f32 %v4466, %v4404
      %v4468 = vadd.f32 %v4467, %v4405
      %v4469 = vrot.slane %v4468, 4
      %v4470 = vadd.f32 %v4468, %v4469
      %v4471 = vrot.slane %v4470, 2
      %v4472 = vadd.f32 %v4470, %v4471
      %v4473 = vrot.slane %v4472, 1
      %v4474 = vadd.f32 %v4472, %v4473
      %4475 = vst [vmem:[%s208] sm:$0x1] %v4474
      %v4476 = vmul.f32 %v4374, %v4374
      %v4477 = vmul.f32 %v4375, %v4375
      %v4478 = vmul.f32 %v4376, %v4376
      %v4479 = vmul.f32 %v4377, %v4377
      %v4480 = vmul.f32 %v4378, %v4378
      %v4481 = vmul.f32 %v4379, %v4379
      %v4482 = vmul.f32 %v4380, %v4380
      %v4483 = vmul.f32 %v4381, %v4381
      %v4484 = vmul.f32 %v4382, %v4382
      %v4485 = vmul.f32 %v4383, %v4383
      %v4486 = vmul.f32 %v4384, %v4384
      %v4487 = vmul.f32 %v4385, %v4385
      %v4488 = vmul.f32 %v4386, %v4386
      %v4489 = vmul.f32 %v4387, %v4387
      %v4490 = vmul.f32 %v4388, %v4388
      %v4491 = vmul.f32 %v4389, %v4389
      %v4492 = vmul.f32 %v4390, %v4390
      %v4493 = vmul.f32 %v4391, %v4391
      %v4494 = vmul.f32 %v4392, %v4392
      %v4495 = vmul.f32 %v4393, %v4393
      %v4496 = vmul.f32 %v4394, %v4394
      %v4497 = vmul.f32 %v4395, %v4395
      %v4498 = vmul.f32 %v4396, %v4396
      %v4499 = vmul.f32 %v4397, %v4397
      %v4500 = vmul.f32 %v4398, %v4398
      %v4501 = vmul.f32 %v4399, %v4399
      %v4502 = vmul.f32 %v4400, %v4400
      %v4503 = vmul.f32 %v4401, %v4401
      %v4504 = vmul.f32 %v4402, %v4402
      %v4505 = vmul.f32 %v4403, %v4403
      %v4506 = vmul.f32 %v4404, %v4404
      %v4507 = vmul.f32 %v4405, %v4405
      %v4508 = vadd.f32 %v4476, %v4477
      %v4509 = vadd.f32 %v4508, %v4478
      %v4510 = vadd.f32 %v4509, %v4479
      %v4511 = vadd.f32 %v4510, %v4480
      %v4512 = vadd.f32 %v4511, %v4481
      %v4513 = vadd.f32 %v4512, %v4482
      %v4514 = vadd.f32 %v4513, %v4483
      %v4515 = vadd.f32 %v4514, %v4484
      %v4516 = vadd.f32 %v4515, %v4485
      %v4517 = vadd.f32 %v4516, %v4486
      %v4518 = vadd.f32 %v4517, %v4487
      %v4519 = vadd.f32 %v4518, %v4488
      %v4520 = vadd.f32 %v4519, %v4489
      %v4521 = vadd.f32 %v4520, %v4490
      %v4522 = vadd.f32 %v4521, %v4491
      %v4523 = vadd.f32 %v4522, %v4492
      %v4524 = vadd.f32 %v4523, %v4493
      %v4525 = vadd.f32 %v4524, %v4494
      %v4526 = vadd.f32 %v4525, %v4495
      %v4527 = vadd.f32 %v4526, %v4496
      %v4528 = vadd.f32 %v4527, %v4497
      %v4529 = vadd.f32 %v4528, %v4498
      %v4530 = vadd.f32 %v4529, %v4499
      %v4531 = vadd.f32 %v4530, %v4500
      %v4532 = vadd.f32 %v4531, %v4501
      %v4533 = vadd.f32 %v4532, %v4502
      %v4534 = vadd.f32 %v4533, %v4503
      %v4535 = vadd.f32 %v4534, %v4504
      %v4536 = vadd.f32 %v4535, %v4505
      %v4537 = vadd.f32 %v4536, %v4506
      %v4538 = vadd.f32 %v4537, %v4507
      %v4539 = vrot.slane %v4538, 4
      %v4540 = vadd.f32 %v4538, %v4539
      %v4541 = vrot.slane %v4540, 2
      %v4542 = vadd.f32 %v4540, %v4541
      %v4543 = vrot.slane %v4542, 1
      %v4544 = vadd.f32 %v4542, %v4543
      %4545 = vst [vmem:[%s208 + $0x1] sm:$0x1] %v4544
      %p4546 = scmp.lt.s32.totalorder %s16, 1
      %s4547 = scalar_select %p4546, %s16, 1
      %s4548 = smul.addr %s4547, 32
      %s4549 = smul.addr %s4548, 8
      %s4550 = scalar_lea.vmem %s3, %s4549
      %p4551 = scmp.lt.s32.totalorder %s16, 1
      %s4552 = scalar_select %p4551, %s16, 1
      %s4553 = smul.addr %s4552, 2
      %s4554 = scalar_lea.vmem %s4, %s4553
      // Predicated region
      $region33: #{unet_down_forward.6} parent=31 // pred_check
        %p4555 = pneg %p102
      $region34: #{unet_down_forward.6} parent=31 // pred_check_branch
        %4557 = sbr.rel (%p4555) target = $region36
      $region35: #{unet_down_forward.6} parent=31 // pred_region
        _
      $region36: #{unet_down_forward.6} parent=31 // pred_fallthru
        _
      // Predicated region
      $region37: #{unet_down_forward.6} parent=31 // pred_check
        %p4558 = pneg %p128
      $region38: #{unet_down_forward.6} parent=31 // pred_check_branch
        %4560 = sbr.rel (%p4558) target = $region40
      $region39: #{unet_down_forward.6} parent=31 // pred_region
        _
      $region40: #{unet_down_forward.6} parent=31 // pred_fallthru
        _
    $region32: #{unet_down_forward.6} parent=5 // pred_fallthru
      _
    %p4561 = scmp.le.s32.totalorder 2, %s11
    // Predicated region
    $region41: #{unet_down_forward.6} parent=5 // pred_check
      %p4562 = pneg %p4561
    $region42: #{unet_down_forward.6} parent=5 // pred_check_branch
      %4564 = sbr.rel (%p4562) target = $region44
    $region43: #{unet_down_forward.6} parent=5 // pred_region
      %s4565 = ssub.s32 %s11, 2
      // Predicated region
      $region45: #{unet_down_forward.6} parent=43 // pred_check
        %p4566 = pneg %p108
      $region46: #{unet_down_forward.6} parent=43 // pred_check_branch
        %4568 = sbr.rel (%p4566) target = $region48
      $region47: #{unet_down_forward.6} parent=43 // pred_region
        %p4569 = scmp.lt.s32.totalorder %s17, 1
        %s4570 = scalar_select %p4569, %s17, 1
        %s4571 = smul.addr %s4570, 32
        %s4572 = smul.addr %s4571, 8
        %s4573 = scalar_lea.vmem %s3, %s4572
      $region48: #{unet_down_forward.6} parent=43 // pred_fallthru
        _
      // Predicated region
      $region49: #{unet_down_forward.6} parent=43 // pred_check
        %p4574 = pneg %p134
      $region50: #{unet_down_forward.6} parent=43 // pred_check_branch
        %4576 = sbr.rel (%p4574) target = $region52
      $region51: #{unet_down_forward.6} parent=43 // pred_region
        %p4577 = scmp.lt.s32.totalorder %s17, 1
        %s4578 = scalar_select %p4577, %s17, 1
        %s4579 = smul.addr %s4578, 2
        %s4580 = scalar_lea.vmem %s4, %s4579
      $region52: #{unet_down_forward.6} parent=43 // pred_fallthru
        _
    $region44: #{unet_down_forward.6} parent=5 // pred_fallthru
      _
  $region6: #{unet_down_forward.6} parent=0 // loop_footer
    %s15 = sadd.s32 1, %s11
  $region7: #{unet_down_forward.6} parent=0 // loop_footer_branch
    %10 = sbr.rel target = $region3
  $region8: #{unet_down_forward.6} parent=0 // loop_exit
    _

</llo_original>
